<compile_context>
chip_gen: v7x
topology: tpu7x:2x2x1
jax: 0.10.0
libtpu: 0.0.40
codegen_flags: <defaults>
</compile_context>

<pallas_src>
import math

import numpy as np
import jax
import jax.numpy as jnp
from jax import lax
from jax.experimental import pallas as pl
from jax.experimental.pallas import tpu as pltpu

LEAKY_SLOPE = 0.1  # nn.LeakyReLU(0.1)


def _leaky(x):
    return jnp.where(x >= 0, x, LEAKY_SLOPE * x)


# --------------------------------------------------------------------------
# Fully fused ResNetBlock forward kernel
# --------------------------------------------------------------------------
def _make_fused_kernel(N, H, Kp, D4, out_dim, extent):
    M = N * H
    KD = Kp * D4
    inv_extent = 1.0 / float(extent)
    att_scale = 1.0 / math.sqrt(D4 // 4)      # GlobalAttentionHead: / sqrt(out_dim // 4)
    f32 = jnp.float32

    def kernel(featsa_ref, nbr_ref, rel_ref, kp_ref, wfs_ref, wconv_ref,
               expand_ref, wprojq_ref, sela_ref, ball_ref, w2_ref, o_ref):
        # ---- unary1 + unary_shortcut in ONE matmul (biases folded via the ones column) ----
        fs = jnp.dot(featsa_ref[...], wfs_ref[...], preferred_element_type=f32)   # (N, D4+out)
        residual = _leaky(fs[:, 0:D4])                      # unary1: LinearBlock(in_dim, D4)
        shortcut = _leaky(fs[:, D4:D4 + out_dim])           # unary_shortcut: LinearBlock(in, out)

        # ---- neighbor feature gather (padding index == N -> exact zero row) ----
        # TODO(synk): at production N replace the O(N*H*N) one-hot matmul with a
        # scalar-prefetch / DMA row gather over an N-tiled grid.
        col = lax.broadcasted_iota(jnp.int32, (M, N), 1)
        onehot = (nbr_ref[...] == col).astype(f32)                                 # (M, N)
        nbx = jnp.dot(onehot, residual, preferred_element_type=f32)                # (M, D4)

        # ---- KP influences for ConvOP1 + ConvOP2 at once (linear influence, clamp 0) ----
        rel = rel_ref[...]                                                          # (M, 3)
        r2 = jnp.sum(rel * rel, axis=1, keepdims=True)                              # (M, 1)
        relkp = jnp.dot(rel, kp_ref[0:3, :], preferred_element_type=f32)            # (M, Kp)
        # expanded |rel - kp|^2 (clamped >= 0); padded neighbors sit at +1e6 and padded kernel
        # points at +1e12 squared offset -> their influence is exactly 0.
        d2 = jnp.maximum(r2 - 2.0 * relkp + kp_ref[3:4, :], 0.0)                    # (M, Kp)
        infl = jnp.maximum(1.0 - jnp.sqrt(d2) * inv_extent, 0.0)                    # (M, Kp)

        # ---- fused ConvOP1 + ConvOP2 as wide, lane-dense MXU contractions (KD % 128 == 0) ----
        Z = jnp.dot(nbx, wconv_ref[...], preferred_element_type=f32)                # (M, KD)
        infl_e = jnp.dot(infl, expand_ref[...], preferred_element_type=f32)         # (M, KD)
        Q = jnp.sum((infl_e * Z).reshape(N, H, KD), axis=1)                         # (N, KD) sum_h

        # ---- GlobalAttentionHead projections + conv-side pooling selectors: the K-sum matrix
        #      is folded into wprojq on the host, so Q feeds ONE packed matmul; q/k are
        #      zero-padded to D4 lanes (exact: padded columns contribute 0 to the energy). ----
        QP = jnp.dot(Q, wprojq_ref[...], preferred_element_type=f32) + ball_ref[0:1, :]  # (N, 6*D4)
        v_p = QP[:, 0:D4]
        r_p = QP[:, D4:2 * D4]
        q_p = QP[:, 2 * D4:3 * D4]
        k_p = QP[:, 3 * D4:4 * D4]
        conv_e = QP[:, 4 * D4:5 * D4]        # even elements of conv_residual (cols >= D4/2)
        conv_o = QP[:, 5 * D4:6 * D4]        # odd  elements of conv_residual (cols >= D4/2)

        energy = lax.dot_general(q_p, k_p, (((1,), (1,)), ((), ())),
                                 preferred_element_type=f32) * att_scale            # (N, N)
        # NOTE: torch GlobalAttentionHead aggregates with the RAW energy (softmax is dead code).
        at = jnp.maximum(jnp.dot(energy, v_p, preferred_element_type=f32)
                         + ball_ref[1:2, 0:D4], 0.0)    # BatchNormBlock bias + nn.ReLU()
        att = r_p + at                                                               # (N, D4)

        # ---- cat([att, conv]) + AdaptiveMaxPool1d(D4): exact pair-max via selector matmul ----
        att_eo = jnp.dot(att, sela_ref[...], preferred_element_type=f32)             # (N, 2*D4)
        even = att_eo[:, 0:D4] + conv_e
        odd = att_eo[:, D4:2 * D4] + conv_o
        pooled = jnp.maximum(even, odd)                                              # (N, D4)

        # ---- batch_norm_conv bias + LeakyReLU, unary2 (no relu), shortcut, final LeakyReLU ----
        hmid = _leaky(pooled + ball_ref[2:3, 0:D4])
        res = jnp.dot(hmid, w2_ref[...], preferred_element_type=f32) + ball_ref[3:4, 0:out_dim]
        o_ref[...] = _leaky(res + shortcut)

    return kernel


# --------------------------------------------------------------------------
# Parameter init (deterministic, shapes follow the torch module __init__)
# --------------------------------------------------------------------------
def make_kernel_points(K, radius, seed):
    # TODO(synk): load_kernels() (optimized kernel-point dispositions) has no clean equivalent
    # here; replaced by deterministic random points in the sphere with a fixed center point.
    rng = np.random.default_rng(seed)
    pts = rng.uniform(-radius, radius, size=(K, 3)).astype(np.float32)
    pts[0, :] = 0.0
    return pts


def init_params(key, in_dim, out_dim, K1, K2, radius):
    D4 = out_dim // 4
    Dq = D4 // 4
    ks = jax.random.split(key, 20)

    def w(k, shape, scale=0.2):
        return jax.random.normal(k, shape, jnp.float32) * scale

    p = {}
    p["w_unary1"] = w(ks[0], (in_dim, D4));  p["b_unary1"] = w(ks[1], (D4,))
    p["w_conv1"] = w(ks[2], (K1, D4, D4))
    p["w_conv2"] = w(ks[3], (K2, D4, D4))
    p["kp1"] = make_kernel_points(K1, radius, seed=1)
    p["kp2"] = make_kernel_points(K2, radius * 0.75, seed=2)
    p["wq"] = w(ks[4], (D4, Dq));  p["bq"] = w(ks[5], (Dq,))
    p["wk"] = w(ks[6], (D4, Dq));  p["bk"] = w(ks[7], (Dq,))
    p["wv"] = w(ks[8], (D4, D4));  p["bv"] = w(ks[9], (D4,))
    p["wr"] = w(ks[10], (D4, D4)); p["br"] = w(ks[11], (D4,))
    p["b_attn_bn"] = w(ks[12], (D4,))
    p["b_bnconv"] = w(ks[13], (D4,))
    p["w_unary2"] = w(ks[14], (D4, out_dim)); p["b_unary2"] = w(ks[15], (out_dim,))
    p["w_sc"] = w(ks[16], (in_dim, out_dim)); p["b_sc"] = w(ks[17], (out_dim,))
    return p


# --------------------------------------------------------------------------
# Host-side folding of all compile-time-constant structure (done ONCE, outside the hot path)
# --------------------------------------------------------------------------
def prepare_operands(params, in_dim, out_dim):
    D4 = out_dim // 4
    Dq = D4 // 4
    half = D4 // 2

    kp1 = np.asarray(params["kp1"], np.float32)
    kp2 = np.asarray(params["kp2"], np.float32)
    K1, K2 = kp1.shape[0], kp2.shape[0]
    K_real = K1 + K2
    # pad K so KD = Kp*D4 is an exact multiple of 128 -> lane-dense (M, KD) tensors
    lane_mult = 128 // math.gcd(D4, 128)
    Kp = int(math.ceil(K_real / lane_mult) * lane_mult)
    KD = Kp * D4

    kp_all = np.zeros((Kp, 3), np.float32)
    kp_all[:K1] = kp1
    kp_all[K1:K_real] = kp2
    kpsq = np.full((Kp,), 1e12, np.float32)            # padded kernel points: influence == 0
    kpsq[:K_real] = np.sum(kp_all[:K_real] ** 2, axis=1)
    kp_pack = np.concatenate([kp_all.T, kpsq[None, :]], axis=0)             # (4, Kp)

    w_all = np.zeros((Kp, D4, D4), np.float32)         # padded kernel points: zero weights (exact)
    w_all[:K1] = np.asarray(params["w_conv1"], np.float32)
    w_all[K1:K_real] = np.asarray(params["w_conv2"], np.float32)
    wconv = np.transpose(w_all, (1, 0, 2)).reshape(D4, KD)                  # wconv[d, k*D4+o]=w[k,d,o]

    # structural constants
    expand = np.repeat(np.eye(Kp, dtype=np.float32), D4, axis=1)            # (Kp, KD) infl broadcast
    ksum = np.tile(np.eye(D4, dtype=np.float32), (Kp, 1))                   # (KD, D4) sum over k
    sea = np.zeros((D4, D4), np.float32); soa = np.zeros((D4, D4), np.float32)
    sec = np.zeros((D4, D4), np.float32); soc = np.zeros((D4, D4), np.float32)
    for j in range(D4):                                # AdaptiveMaxPool1d(D4) pair selectors
        if j < half:
            sea[2 * j, j] = 1.0; soa[2 * j + 1, j] = 1.0
        else:
            sec[2 * (j - half), j] = 1.0; soc[2 * (j - half) + 1, j] = 1.0
    selA = np.concatenate([sea, soa], axis=1)                                # (D4, 2*D4)

    # packed attention projection + conv-side pooling selectors, ksum folded in:
    # Q (N, KD) -> one matmul yields [v | r | q_pad | k_pad | conv_even | conv_odd]
    wq_pad = np.zeros((D4, D4), np.float32); wq_pad[:, :Dq] = np.asarray(params["wq"], np.float32)
    wk_pad = np.zeros((D4, D4), np.float32); wk_pad[:, :Dq] = np.asarray(params["wk"], np.float32)
    wproj_full = np.concatenate([np.asarray(params["wv"], np.float32),
                                 np.asarray(params["wr"], np.float32),
                                 wq_pad, wk_pad, sec, soc], axis=1)          # (D4, 6*D4)
    wprojq = (ksum @ wproj_full).astype(np.float32)                          # (KD, 6*D4)

    # all remaining small biases packed into one operand
    ball = np.zeros((4, 6 * D4), np.float32)
    bq_pad = np.zeros((D4,), np.float32); bq_pad[:Dq] = np.asarray(params["bq"], np.float32)
    bk_pad = np.zeros((D4,), np.float32); bk_pad[:Dq] = np.asarray(params["bk"], np.float32)
    ball[0, :4 * D4] = np.concatenate([np.asarray(params["bv"], np.float32),
                                       np.asarray(params["br"], np.float32), bq_pad, bk_pad])
    ball[1, :D4] = np.asarray(params["b_attn_bn"], np.float32)
    ball[2, :D4] = np.asarray(params["b_bnconv"], np.float32)
    ball[3, :out_dim] = np.asarray(params["b_unary2"], np.float32)

    # unary1 + shortcut merged into one matmul; their biases folded via a ones column on feats
    w1_aug = np.concatenate([np.asarray(params["w_unary1"], np.float32),
                             np.asarray(params["b_unary1"], np.float32)[None, :]], axis=0)
    wsc_aug = np.concatenate([np.asarray(params["w_sc"], np.float32),
                              np.asarray(params["b_sc"], np.float32)[None, :]], axis=0)
    wfs = np.concatenate([w1_aug, wsc_aug], axis=1)                          # (in_dim+1, D4+out_dim)

    return {"kp_pack": kp_pack, "wfs": wfs, "wconv": wconv, "expand": expand,
            "wprojq": wprojq, "selA": selA, "ball": ball,
            "w2": np.asarray(params["w_unary2"], np.float32),
            "Kp": Kp, "D4": D4, "out_dim": out_dim}


# --------------------------------------------------------------------------
# ResNetBlock forward ("resnetb_final": non-strided, global attention head)
# --------------------------------------------------------------------------
def resnet_block_forward(features, points, neighbors, ops, extent):
    N, in_dim = features.shape
    H = neighbors.shape[1]
    D4, out_dim, Kp = ops["D4"], ops["out_dim"], ops["Kp"]
    M = N * H

    # coordinate glue + ones-augmented features (bias folding) outside the kernel
    featsa = jnp.concatenate([features, jnp.ones((N, 1), jnp.float32)], axis=1)
    pts_pad = jnp.concatenate([points, jnp.full((1, 3), 1e6, jnp.float32)], axis=0)
    rel = (jnp.take(pts_pad, neighbors, axis=0) - points[:, None, :]).reshape(M, 3)
    nbr = neighbors.reshape(M, 1).astype(jnp.int32)

    vm = pl.BlockSpec(memory_space=pltpu.MemorySpace.VMEM)
    kernel = _make_fused_kernel(N, H, Kp, D4, out_dim, extent)
    # TODO(synk): production point counts need an N-tiled grid ('parallel' for v7x's 2 TCs),
    # kv-blocked attention and a DMA/scalar-prefetch row gather; single-shot is right at N=64.
    return pl.pallas_call(
        kernel,
        out_shape=jax.ShapeDtypeStruct((N, out_dim), jnp.float32),
        in_specs=[vm] * 11,
        out_specs=vm,
        compiler_params=pltpu.CompilerParams(vmem_limit_bytes=32 * 1024 * 1024),
    )(featsa, nbr, rel, ops["kp_pack"], ops["wfs"], ops["wconv"],
      ops["expand"], ops["wprojq"], ops["selA"], ops["ball"], ops["w2"])


# --------------------------------------------------------------------------
if __name__ == "__main__":
    N, H = 64, 16             # points, neighbors per point
    in_dim, out_dim = 16, 32  # feature dims (D4 = 8)
    radius = 0.5
    KP_extent_cfg, conv_radius_cfg, num_kernel_points = 1.2, 1.5, 15
    current_extent = radius * KP_extent_cfg / conv_radius_cfg
    K1, K2 = num_kernel_points, num_kernel_points - 5

    key = jax.random.PRNGKey(0)
    k_feat, k_pts, k_nb, k_par = jax.random.split(key, 4)
    features = jax.random.normal(k_feat, (N, in_dim), jnp.float32)
    points = jax.random.uniform(k_pts, (N, 3), jnp.float32) * 0.3
    # index N is the "padding" neighbor (maps to the far-away point / zero feature row)
    neighbors = jax.random.randint(k_nb, (N, H), 0, N + 1, dtype=jnp.int32)

    params = init_params(k_par, in_dim, out_dim, K1, K2, radius)
    ops = prepare_operands(params, in_dim, out_dim)

    fwd = jax.jit(lambda f, p, n: resnet_block_forward(f, p, n, ops, current_extent))
    out = fwd(features, points, neighbors)
    jax.block_until_ready(out)
    assert out.shape == (N, out_dim) and out.dtype == jnp.float32
    assert bool(jnp.all(jnp.isfinite(out)))
    print("KERNEL_OK")
</pallas_src>

<mosaic_0001>
module attributes {stable_mosaic.version = 11 : i64} {
  func.func @kernel(%arg0: memref<64x17xf32, #tpu.memory_space<vmem>>, %arg1: memref<1024x1xi32, #tpu.memory_space<vmem>>, %arg2: memref<1024x3xf32, #tpu.memory_space<vmem>>, %arg3: memref<4x32xf32, #tpu.memory_space<vmem>>, %arg4: memref<17x40xf32, #tpu.memory_space<vmem>>, %arg5: memref<8x256xf32, #tpu.memory_space<vmem>>, %arg6: memref<32x256xf32, #tpu.memory_space<vmem>>, %arg7: memref<256x48xf32, #tpu.memory_space<vmem>>, %arg8: memref<8x16xf32, #tpu.memory_space<vmem>>, %arg9: memref<4x48xf32, #tpu.memory_space<vmem>>, %arg10: memref<8x32xf32, #tpu.memory_space<vmem>>, %arg11: memref<64x32xf32, #tpu.memory_space<vmem>>) attributes {dimension_semantics = [], scalar_prefetch = 0 : i64, scratch_operands = 0 : i64, tpu.core_type = #tpu.core_type<tc>} {
    %c0 = arith.constant 0 : index
    %c0_0 = arith.constant 0 : index
    %0 = vector.load %arg0[%c0, %c0_0] : memref<64x17xf32, #tpu.memory_space<vmem>>, vector<64x17xf32>
    %c0_1 = arith.constant 0 : index
    %c0_2 = arith.constant 0 : index
    %1 = vector.load %arg4[%c0_1, %c0_2] : memref<17x40xf32, #tpu.memory_space<vmem>>, vector<17x40xf32>
    %cst = arith.constant dense<0.000000e+00> : vector<64x40xf32>
    %2 = tpu.matmul %0, %1, %cst {dimension_numbers = #tpu.dot_dimension_numbers<[1], [0], [0], [1], [0, 0, 1, 1], [], []>} : vector<64x17xf32>, vector<17x40xf32>, vector<64x40xf32> -> vector<64x40xf32>
    %3 = vector.extract_strided_slice %2 {offsets = [0, 0], sizes = [64, 8], strides = [1, 1]} : vector<64x40xf32> to vector<64x8xf32>
    %cst_3 = arith.constant 0.000000e+00 : f32
    %4 = vector.broadcast %cst_3 : f32 to vector<64x8xf32>
    %5 = arith.cmpf oge, %3, %4 : vector<64x8xf32>
    %cst_4 = arith.constant 1.000000e-01 : f32
    %6 = vector.broadcast %cst_4 : f32 to vector<64x8xf32>
    %7 = arith.mulf %6, %3 : vector<64x8xf32>
    %8 = arith.select %5, %3, %7 : vector<64x8xi1>, vector<64x8xf32>
    %9 = vector.extract_strided_slice %2 {offsets = [0, 8], sizes = [64, 32], strides = [1, 1]} : vector<64x40xf32> to vector<64x32xf32>
    %cst_5 = arith.constant 0.000000e+00 : f32
    %10 = vector.broadcast %cst_5 : f32 to vector<64x32xf32>
    %11 = arith.cmpf oge, %9, %10 : vector<64x32xf32>
    %cst_6 = arith.constant 1.000000e-01 : f32
    %12 = vector.broadcast %cst_6 : f32 to vector<64x32xf32>
    %13 = arith.mulf %12, %9 : vector<64x32xf32>
    %14 = arith.select %11, %9, %13 : vector<64x32xi1>, vector<64x32xf32>
    %15 = tpu.iota {dimensions = array<i32: 1>} : vector<1024x64xi32>
    %c0_7 = arith.constant 0 : index
    %c0_8 = arith.constant 0 : index
    %16 = vector.load %arg1[%c0_7, %c0_8] : memref<1024x1xi32, #tpu.memory_space<vmem>>, vector<1024x1xi32>
    %17 = vector.broadcast %16 : vector<1024x1xi32> to vector<1024x64xi32>
    %18 = arith.cmpi eq, %17, %15 : vector<1024x64xi32>
    %19 = arith.extui %18 : vector<1024x64xi1> to vector<1024x64xi32>
    %20 = arith.sitofp %19 : vector<1024x64xi32> to vector<1024x64xf32>
    %cst_9 = arith.constant dense<0.000000e+00> : vector<1024x8xf32>
    %21 = tpu.matmul %20, %8, %cst_9 {dimension_numbers = #tpu.dot_dimension_numbers<[1], [0], [0], [1], [0, 0, 1, 1], [], []>} : vector<1024x64xf32>, vector<64x8xf32>, vector<1024x8xf32> -> vector<1024x8xf32>
    %c0_10 = arith.constant 0 : index
    %c0_11 = arith.constant 0 : index
    %22 = vector.load %arg2[%c0_10, %c0_11] : memref<1024x3xf32, #tpu.memory_space<vmem>>, vector<1024x3xf32>
    %23 = arith.mulf %22, %22 : vector<1024x3xf32>
    %cst_12 = arith.constant dense<0.000000e+00> : vector<1024xf32>
    %24 = vector.multi_reduction <add>, %23, %cst_12 [1] : vector<1024x3xf32> to vector<1024xf32>
    %25 = vector.shape_cast %24 : vector<1024xf32> to vector<1024x1xf32>
    %c0_13 = arith.constant 0 : index
    %c0_14 = arith.constant 0 : index
    %26 = vector.load %arg3[%c0_13, %c0_14] : memref<4x32xf32, #tpu.memory_space<vmem>>, vector<3x32xf32>
    %cst_15 = arith.constant dense<0.000000e+00> : vector<1024x32xf32>
    %27 = tpu.matmul %22, %26, %cst_15 {dimension_numbers = #tpu.dot_dimension_numbers<[1], [0], [0], [1], [0, 0, 1, 1], [], []>} : vector<1024x3xf32>, vector<3x32xf32>, vector<1024x32xf32> -> vector<1024x32xf32>
    %cst_16 = arith.constant 2.000000e+00 : f32
    %28 = vector.broadcast %cst_16 : f32 to vector<1024x32xf32>
    %29 = arith.mulf %28, %27 : vector<1024x32xf32>
    %30 = vector.broadcast %25 : vector<1024x1xf32> to vector<1024x32xf32>
    %31 = arith.subf %30, %29 : vector<1024x32xf32>
    %c3 = arith.constant 3 : index
    %c0_17 = arith.constant 0 : index
    %32 = vector.load %arg3[%c3, %c0_17] : memref<4x32xf32, #tpu.memory_space<vmem>>, vector<1x32xf32>
    %33 = vector.broadcast %32 : vector<1x32xf32> to vector<1024x32xf32>
    %34 = arith.addf %31, %33 : vector<1024x32xf32>
    %cst_18 = arith.constant 0.000000e+00 : f32
    %35 = vector.broadcast %cst_18 : f32 to vector<1024x32xf32>
    %36 = arith.maximumf %34, %35 : vector<1024x32xf32>
    %37 = math.sqrt %36 : vector<1024x32xf32>
    %cst_19 = arith.constant 2.500000e+00 : f32
    %38 = vector.broadcast %cst_19 : f32 to vector<1024x32xf32>
    %39 = arith.mulf %37, %38 : vector<1024x32xf32>
    %cst_20 = arith.constant 1.000000e+00 : f32
    %40 = vector.broadcast %cst_20 : f32 to vector<1024x32xf32>
    %41 = arith.subf %40, %39 : vector<1024x32xf32>
    %cst_21 = arith.constant 0.000000e+00 : f32
    %42 = vector.broadcast %cst_21 : f32 to vector<1024x32xf32>
    %43 = arith.maximumf %41, %42 : vector<1024x32xf32>
    %c0_22 = arith.constant 0 : index
    %c0_23 = arith.constant 0 : index
    %44 = vector.load %arg5[%c0_22, %c0_23] : memref<8x256xf32, #tpu.memory_space<vmem>>, vector<8x256xf32>
    %cst_24 = arith.constant dense<0.000000e+00> : vector<1024x256xf32>
    %45 = tpu.matmul %21, %44, %cst_24 {dimension_numbers = #tpu.dot_dimension_numbers<[1], [0], [0], [1], [0, 0, 1, 1], [], []>} : vector<1024x8xf32>, vector<8x256xf32>, vector<1024x256xf32> -> vector<1024x256xf32>
    %c0_25 = arith.constant 0 : index
    %c0_26 = arith.constant 0 : index
    %46 = vector.load %arg6[%c0_25, %c0_26] : memref<32x256xf32, #tpu.memory_space<vmem>>, vector<32x256xf32>
    %cst_27 = arith.constant dense<0.000000e+00> : vector<1024x256xf32>
    %47 = tpu.matmul %43, %46, %cst_27 {dimension_numbers = #tpu.dot_dimension_numbers<[1], [0], [0], [1], [0, 0, 1, 1], [], []>} : vector<1024x32xf32>, vector<32x256xf32>, vector<1024x256xf32> -> vector<1024x256xf32>
    %48 = arith.mulf %47, %45 : vector<1024x256xf32>
    %49 = vector.shape_cast %48 : vector<1024x256xf32> to vector<64x16x256xf32>
    %cst_28 = arith.constant dense<0.000000e+00> : vector<64x256xf32>
    %50 = vector.multi_reduction <add>, %49, %cst_28 [1] : vector<64x16x256xf32> to vector<64x256xf32>
    %c0_29 = arith.constant 0 : index
    %c0_30 = arith.constant 0 : index
    %51 = vector.load %arg7[%c0_29, %c0_30] : memref<256x48xf32, #tpu.memory_space<vmem>>, vector<256x48xf32>
    %cst_31 = arith.constant dense<0.000000e+00> : vector<64x48xf32>
    %52 = tpu.matmul %50, %51, %cst_31 {dimension_numbers = #tpu.dot_dimension_numbers<[1], [0], [0], [1], [0, 0, 1, 1], [], []>} : vector<64x256xf32>, vector<256x48xf32>, vector<64x48xf32> -> vector<64x48xf32>
    %c0_32 = arith.constant 0 : index
    %c0_33 = arith.constant 0 : index
    %53 = vector.load %arg9[%c0_32, %c0_33] : memref<4x48xf32, #tpu.memory_space<vmem>>, vector<1x48xf32>
    %54 = vector.broadcast %53 : vector<1x48xf32> to vector<64x48xf32>
    %55 = arith.addf %52, %54 : vector<64x48xf32>
    %56 = vector.extract_strided_slice %55 {offsets = [0, 0], sizes = [64, 8], strides = [1, 1]} : vector<64x48xf32> to vector<64x8xf32>
    %57 = vector.extract_strided_slice %55 {offsets = [0, 8], sizes = [64, 8], strides = [1, 1]} : vector<64x48xf32> to vector<64x8xf32>
    %58 = vector.extract_strided_slice %55 {offsets = [0, 16], sizes = [64, 8], strides = [1, 1]} : vector<64x48xf32> to vector<64x8xf32>
    %59 = vector.extract_strided_slice %55 {offsets = [0, 24], sizes = [64, 8], strides = [1, 1]} : vector<64x48xf32> to vector<64x8xf32>
    %60 = vector.extract_strided_slice %55 {offsets = [0, 32], sizes = [64, 8], strides = [1, 1]} : vector<64x48xf32> to vector<64x8xf32>
    %61 = vector.extract_strided_slice %55 {offsets = [0, 40], sizes = [64, 8], strides = [1, 1]} : vector<64x48xf32> to vector<64x8xf32>
    %cst_34 = arith.constant dense<0.000000e+00> : vector<64x64xf32>
    %62 = tpu.matmul %58, %59, %cst_34 {dimension_numbers = #tpu.dot_dimension_numbers<[1], [1], [0], [0], [0, 0, 1, 0], [], []>} : vector<64x8xf32>, vector<64x8xf32>, vector<64x64xf32> -> vector<64x64xf32>
    %cst_35 = arith.constant 0.707106769 : f32
    %63 = vector.broadcast %cst_35 : f32 to vector<64x64xf32>
    %64 = arith.mulf %62, %63 : vector<64x64xf32>
    %cst_36 = arith.constant dense<0.000000e+00> : vector<64x8xf32>
    %65 = tpu.matmul %64, %56, %cst_36 {dimension_numbers = #tpu.dot_dimension_numbers<[1], [0], [0], [1], [0, 0, 1, 1], [], []>} : vector<64x64xf32>, vector<64x8xf32>, vector<64x8xf32> -> vector<64x8xf32>
    %c1 = arith.constant 1 : index
    %c0_37 = arith.constant 0 : index
    %66 = vector.load %arg9[%c1, %c0_37] : memref<4x48xf32, #tpu.memory_space<vmem>>, vector<1x8xf32>
    %67 = vector.broadcast %66 : vector<1x8xf32> to vector<64x8xf32>
    %68 = arith.addf %65, %67 : vector<64x8xf32>
    %cst_38 = arith.constant 0.000000e+00 : f32
    %69 = vector.broadcast %cst_38 : f32 to vector<64x8xf32>
    %70 = arith.maximumf %68, %69 : vector<64x8xf32>
    %71 = arith.addf %57, %70 : vector<64x8xf32>
    %c0_39 = arith.constant 0 : index
    %c0_40 = arith.constant 0 : index
    %72 = vector.load %arg8[%c0_39, %c0_40] : memref<8x16xf32, #tpu.memory_space<vmem>>, vector<8x16xf32>
    %cst_41 = arith.constant dense<0.000000e+00> : vector<64x16xf32>
    %73 = tpu.matmul %71, %72, %cst_41 {dimension_numbers = #tpu.dot_dimension_numbers<[1], [0], [0], [1], [0, 0, 1, 1], [], []>} : vector<64x8xf32>, vector<8x16xf32>, vector<64x16xf32> -> vector<64x16xf32>
    %74 = vector.extract_strided_slice %73 {offsets = [0, 0], sizes = [64, 8], strides = [1, 1]} : vector<64x16xf32> to vector<64x8xf32>
    %75 = arith.addf %74, %60 : vector<64x8xf32>
    %76 = vector.extract_strided_slice %73 {offsets = [0, 8], sizes = [64, 8], strides = [1, 1]} : vector<64x16xf32> to vector<64x8xf32>
    %77 = arith.addf %76, %61 : vector<64x8xf32>
    %78 = arith.maximumf %75, %77 : vector<64x8xf32>
    %c2 = arith.constant 2 : index
    %c0_42 = arith.constant 0 : index
    %79 = vector.load %arg9[%c2, %c0_42] : memref<4x48xf32, #tpu.memory_space<vmem>>, vector<1x8xf32>
    %80 = vector.broadcast %79 : vector<1x8xf32> to vector<64x8xf32>
    %81 = arith.addf %78, %80 : vector<64x8xf32>
    %cst_43 = arith.constant 0.000000e+00 : f32
    %82 = vector.broadcast %cst_43 : f32 to vector<64x8xf32>
    %83 = arith.cmpf oge, %81, %82 : vector<64x8xf32>
    %cst_44 = arith.constant 1.000000e-01 : f32
    %84 = vector.broadcast %cst_44 : f32 to vector<64x8xf32>
    %85 = arith.mulf %84, %81 : vector<64x8xf32>
    %86 = arith.select %83, %81, %85 : vector<64x8xi1>, vector<64x8xf32>
    %c0_45 = arith.constant 0 : index
    %c0_46 = arith.constant 0 : index
    %87 = vector.load %arg10[%c0_45, %c0_46] : memref<8x32xf32, #tpu.memory_space<vmem>>, vector<8x32xf32>
    %cst_47 = arith.constant dense<0.000000e+00> : vector<64x32xf32>
    %88 = tpu.matmul %86, %87, %cst_47 {dimension_numbers = #tpu.dot_dimension_numbers<[1], [0], [0], [1], [0, 0, 1, 1], [], []>} : vector<64x8xf32>, vector<8x32xf32>, vector<64x32xf32> -> vector<64x32xf32>
    %c3_48 = arith.constant 3 : index
    %c0_49 = arith.constant 0 : index
    %89 = vector.load %arg9[%c3_48, %c0_49] : memref<4x48xf32, #tpu.memory_space<vmem>>, vector<1x32xf32>
    %90 = vector.broadcast %89 : vector<1x32xf32> to vector<64x32xf32>
    %91 = arith.addf %88, %90 : vector<64x32xf32>
    %92 = arith.addf %91, %14 : vector<64x32xf32>
    %cst_50 = arith.constant 0.000000e+00 : f32
    %93 = vector.broadcast %cst_50 : f32 to vector<64x32xf32>
    %94 = arith.cmpf oge, %92, %93 : vector<64x32xf32>
    %cst_51 = arith.constant 1.000000e-01 : f32
    %95 = vector.broadcast %cst_51 : f32 to vector<64x32xf32>
    %96 = arith.mulf %95, %92 : vector<64x32xf32>
    %97 = arith.select %94, %92, %96 : vector<64x32xi1>, vector<64x32xf32>
    %c0_52 = arith.constant 0 : index
    %c0_53 = arith.constant 0 : index
    %98 = vector.load %arg11[%c0_52, %c0_53] : memref<64x32xf32, #tpu.memory_space<vmem>>, vector<64x32xf32>
    tpu.vector_store %arg11[%c0_52, %c0_53], %97 {strides = array<i32>} : memref<64x32xf32, #tpu.memory_space<vmem>>, vector<64x32xf32>,
    return
  }
}

</mosaic_0001>

<llo_original>
// kernel: _lambda_.1
$region0: #{_lambda_.1}
  #allocation0 [shape = 'u32[]', space=smem, size = 0x4, offset = 0x4, fixed_abs, tag = 'smem constant byte address 0x4 - core index']
  #allocation1 [shape = 'u32[144,128]{1,0:T(1,128)}', space=vmem, size = 0x12000, scoped, tag = 'internal scratch']
  %s0 = inlined_call_operand.vmem [shape: f32[64,17], index: 0, kind: input, shape index: {}]
  %s1 = inlined_call_operand.vmem [shape: s32[1024,1], index: 1, kind: input, shape index: {}]
  %s2 = inlined_call_operand.vmem [shape: f32[1024,3], index: 2, kind: input, shape index: {}]
  %s3 = inlined_call_operand.vmem [shape: f32[4,32], index: 3, kind: input, shape index: {}]
  %s4 = inlined_call_operand.vmem [shape: f32[17,40], index: 4, kind: input, shape index: {}]
  %s5 = inlined_call_operand.vmem [shape: f32[8,256], index: 5, kind: input, shape index: {}]
  %s6 = inlined_call_operand.vmem [shape: f32[32,256], index: 6, kind: input, shape index: {}]
  %s7 = inlined_call_operand.vmem [shape: f32[256,48], index: 7, kind: input, shape index: {}]
  %s8 = inlined_call_operand.vmem [shape: f32[8,16], index: 8, kind: input, shape index: {}]
  %s9 = inlined_call_operand.vmem [shape: f32[4,48], index: 9, kind: input, shape index: {}]
  %s10 = inlined_call_operand.vmem [shape: f32[8,32], index: 10, kind: input, shape index: {}]
  %s11 = inlined_call_operand.vmem [shape: f32[64,32], index: 11, kind: output, shape index: {}]
  %s12 = sld [smem:[#allocation0]]
  $region54: #{_lambda_.1} parent=0
    _
  %s14 = ssub.s32 1, %s12
  %s15 = scalar_select 0, %s14, %s12
  // Predicated region
  $region2: #{_lambda_.1} parent=0 // pred_check
    _
  $region3: #{_lambda_.1} parent=0 // pred_check_branch
    %17 = sbr.rel (0) target = $region5
  $region4: #{_lambda_.1} parent=0 // pred_region
    _
  $region5: #{_lambda_.1} parent=0 // pred_fallthru
    _
  // Predicated region
  $region6: #{_lambda_.1} parent=0 // pred_check
    _
  $region7: #{_lambda_.1} parent=0 // pred_check_branch
    %19 = sbr.rel (0) target = $region9
  $region8: #{_lambda_.1} parent=0 // pred_region
    _
  $region9: #{_lambda_.1} parent=0 // pred_fallthru
    _
  // Predicated region
  $region10: #{_lambda_.1} parent=0 // pred_check
    _
  $region11: #{_lambda_.1} parent=0 // pred_check_branch
    %21 = sbr.rel (0) target = $region13
  $region12: #{_lambda_.1} parent=0 // pred_region
    _
  $region13: #{_lambda_.1} parent=0 // pred_fallthru
    _
  // Predicated region
  $region14: #{_lambda_.1} parent=0 // pred_check
    _
  $region15: #{_lambda_.1} parent=0 // pred_check_branch
    %23 = sbr.rel (0) target = $region17
  $region16: #{_lambda_.1} parent=0 // pred_region
    _
  $region17: #{_lambda_.1} parent=0 // pred_fallthru
    _
  // Predicated region
  $region18: #{_lambda_.1} parent=0 // pred_check
    _
  $region19: #{_lambda_.1} parent=0 // pred_check_branch
    %25 = sbr.rel (0) target = $region21
  $region20: #{_lambda_.1} parent=0 // pred_region
    _
  $region21: #{_lambda_.1} parent=0 // pred_fallthru
    _
  // Predicated region
  $region22: #{_lambda_.1} parent=0 // pred_check
    _
  $region23: #{_lambda_.1} parent=0 // pred_check_branch
    %27 = sbr.rel (0) target = $region25
  $region24: #{_lambda_.1} parent=0 // pred_region
    _
  $region25: #{_lambda_.1} parent=0 // pred_fallthru
    _
  // Predicated region
  $region26: #{_lambda_.1} parent=0 // pred_check
    _
  $region27: #{_lambda_.1} parent=0 // pred_check_branch
    %29 = sbr.rel (0) target = $region29
  $region28: #{_lambda_.1} parent=0 // pred_region
    _
  $region29: #{_lambda_.1} parent=0 // pred_fallthru
    _
  // Predicated region
  $region30: #{_lambda_.1} parent=0 // pred_check
    _
  $region31: #{_lambda_.1} parent=0 // pred_check_branch
    %31 = sbr.rel (0) target = $region33
  $region32: #{_lambda_.1} parent=0 // pred_region
    _
  $region33: #{_lambda_.1} parent=0 // pred_fallthru
    _
  // Predicated region
  $region34: #{_lambda_.1} parent=0 // pred_check
    _
  $region35: #{_lambda_.1} parent=0 // pred_check_branch
    %33 = sbr.rel (0) target = $region37
  $region36: #{_lambda_.1} parent=0 // pred_region
    _
  $region37: #{_lambda_.1} parent=0 // pred_fallthru
    _
  // Predicated region
  $region38: #{_lambda_.1} parent=0 // pred_check
    _
  $region39: #{_lambda_.1} parent=0 // pred_check_branch
    %35 = sbr.rel (0) target = $region41
  $region40: #{_lambda_.1} parent=0 // pred_region
    _
  $region41: #{_lambda_.1} parent=0 // pred_fallthru
    _
  // Predicated region
  $region42: #{_lambda_.1} parent=0 // pred_check
    _
  $region43: #{_lambda_.1} parent=0 // pred_check_branch
    %37 = sbr.rel (0) target = $region45
  $region44: #{_lambda_.1} parent=0 // pred_region
    _
  $region45: #{_lambda_.1} parent=0 // pred_fallthru
    _
  %v38 = vld [vmem:[%s0] sm:$0xff]
  %v39 = vld [vmem:[%s0 + $0x8] sm:$0xff]
  %v40 = vld [vmem:[%s0 + $0x10] sm:$0xff]
  %v41 = vld [vmem:[%s0 + $0x18] sm:$0xff]
  %v42 = vld [vmem:[%s0 + $0x20] sm:$0xff]
  %v43 = vld [vmem:[%s0 + $0x28] sm:$0xff]
  %v44 = vld [vmem:[%s0 + $0x30] sm:$0xff]
  %v45 = vld [vmem:[%s0 + $0x38] sm:$0xff]
  %v46 = vld [vmem:[%s4] sm:$0xff]
  %v47 = vld [vmem:[%s4 + $0x8] sm:$0xff]
  %v48 = vld [vmem:[%s4 + $0x10] sm:$0x1]
  %vm49 = vcmask 138240
  %v51 = vsel %vm49, %v38, 0
  %v54 = vsel %vm49, %v39, 0
  %v57 = vsel %vm49, %v40, 0
  %v60 = vsel %vm49, %v41, 0
  %v63 = vsel %vm49, %v42, 0
  %v66 = vsel %vm49, %v43, 0
  %v69 = vsel %vm49, %v44, 0
  %v72 = vsel %vm49, %v45, 0
  %vm74 = vcmask 1040384
  %v76 = vsel %vm74, %v48, 0
  %78 = vmatprep.subr.mxu0 0.0
  %79 = vmatpush1.msra.mxu0 %v46
  %80 = vmatprep.subr.mxu0 0.0
  %81 = vmatpush1.msra.mxu0 %v47
  %82 = vmatprep.subr.mxu0 0.0
  %83 = vmatpush1.msra.mxu0 %v76
  %84 = vmatprep.subr.mxu0 0.0
  %85 = vmatpush1.msra.mxu0 0.0
  %86 = vmatprep.subr.mxu0 0.0
  %87 = vmatpush1.msra.mxu0 0.0
  %88 = vmatprep.subr.mxu0 0.0
  %89 = vmatpush1.msra.mxu0 0.0
  %90 = vmatprep.subr.mxu0 0.0
  %91 = vmatpush1.msra.mxu0 0.0
  %92 = vmatprep.subr.mxu0 0.0
  %93 = vmatpush1.msra.mxu0 0.0
  %94 = vmatprep.subr.mxu0 0.0
  %95 = vmatpush1.msra.mxu0 0.0
  %96 = vmatprep.subr.mxu0 0.0
  %97 = vmatpush1.msra.mxu0 0.0
  %98 = vmatprep.subr.mxu0 0.0
  %99 = vmatpush1.msra.mxu0 0.0
  %100 = vmatprep.subr.mxu0 0.0
  %101 = vmatpush1.msra.mxu0 0.0
  %102 = vmatprep.subr.mxu0 0.0
  %103 = vmatpush1.msra.mxu0 0.0
  %104 = vmatprep.subr.mxu0 0.0
  %105 = vmatpush1.msra.mxu0 0.0
  %106 = vmatprep.subr.mxu0 0.0
  %107 = vmatpush1.msra.mxu0 0.0
  %108 = vmatprep.subr.mxu0 0.0
  %109 = vmatpush1.msra.mxu0 0.0
  %110 = vmatprep.subr.mxu0 0.0
  %111 = vmatpush1.msra.mxu0 0.0
  %112 = vmatprep.subr.mxu0 0.0
  %113 = vmatpush1.msra.mxu0 0.0
  %114 = vmatprep.subr.mxu0 0.0
  %115 = vmatpush1.msra.mxu0 0.0
  %116 = vmatprep.subr.mxu0 0.0
  %117 = vmatpush1.msra.mxu0 0.0
  %118 = vmatprep.subr.mxu0 0.0
  %119 = vmatpush1.msra.mxu0 0.0
  %120 = vmatprep.subr.mxu0 0.0
  %121 = vmatpush1.msra.mxu0 0.0
  %122 = vmatprep.subr.mxu0 0.0
  %123 = vmatpush1.msra.mxu0 0.0
  %124 = vmatprep.subr.mxu0 0.0
  %125 = vmatpush1.msra.mxu0 0.0
  %126 = vmatprep.subr.mxu0 0.0
  %127 = vmatpush1.msra.mxu0 0.0
  %128 = vmatprep.subr.mxu0 0.0
  %129 = vmatpush1.msra.mxu0 0.0
  %130 = vmatprep.subr.mxu0 0.0
  %131 = vmatpush1.msra.mxu0 0.0
  %132 = vmatprep.subr.mxu0 0.0
  %133 = vmatpush1.msra.mxu0 0.0
  %134 = vmatprep.subr.mxu0 0.0
  %135 = vmatpush1.msra.mxu0 0.0
  %136 = vmatprep.subr.mxu0 0.0
  %137 = vmatpush1.msra.mxu0 0.0
  %138 = vmatprep.subr.mxu0 0.0
  %139 = vmatpush1.msra.mxu0 0.0
  %140 = vmatprep.subr.mxu0 0.0
  %141 = vmatpush1.msra.mxu0 0.0
  %142 = vmatprep.mubr.f32.mxu0 0.0
  %143 = vmatmul.mubr.f32.gmra.mrb[0].mxu0 %v51
  %v144 = vpop.f32.mrb[0].mxu0
  %v145 = vadd.f32 0.0, %v144
  %v146 = vpop.f32.mrb[0].mxu0
  %147 = vmatprep.mubr.f32.mxu0 0.0
  %148 = vmatmul.mubr.f32.gmra.mrb[0].mxu0 %v54
  %v149 = vpop.f32.mrb[0].mxu0
  %v150 = vadd.f32 0.0, %v149
  %v151 = vpop.f32.mrb[0].mxu0
  %152 = vmatprep.mubr.f32.mxu0 0.0
  %153 = vmatmul.mubr.f32.gmra.mrb[0].mxu0 %v57
  %v154 = vpop.f32.mrb[0].mxu0
  %v155 = vadd.f32 0.0, %v154
  %v156 = vpop.f32.mrb[0].mxu0
  %157 = vmatprep.mubr.f32.mxu0 0.0
  %158 = vmatmul.mubr.f32.gmra.mrb[0].mxu0 %v60
  %v159 = vpop.f32.mrb[0].mxu0
  %v160 = vadd.f32 0.0, %v159
  %v161 = vpop.f32.mrb[0].mxu0
  %162 = vmatprep.mubr.f32.mxu0 0.0
  %163 = vmatmul.mubr.f32.gmra.mrb[0].mxu0 %v63
  %v164 = vpop.f32.mrb[0].mxu0
  %v165 = vadd.f32 0.0, %v164
  %v166 = vpop.f32.mrb[0].mxu0
  %167 = vmatprep.mubr.f32.mxu0 0.0
  %168 = vmatmul.mubr.f32.gmra.mrb[0].mxu0 %v66
  %v169 = vpop.f32.mrb[0].mxu0
  %v170 = vadd.f32 0.0, %v169
  %v171 = vpop.f32.mrb[0].mxu0
  %172 = vmatprep.mubr.f32.mxu0 0.0
  %173 = vmatmul.mubr.f32.gmra.mrb[0].mxu0 %v69
  %v174 = vpop.f32.mrb[0].mxu0
  %v175 = vadd.f32 0.0, %v174
  %v176 = vpop.f32.mrb[0].mxu0
  %177 = vmatprep.mubr.f32.mxu0 0.0
  %178 = vmatmul.mubr.f32.gmra.mrb[0].mxu0 %v72
  %v179 = vpop.f32.mrb[0].mxu0
  %v180 = vadd.f32 0.0, %v179
  %v181 = vpop.f32.mrb[0].mxu0
  %182 = vdwg.mxu0
  %vm183 = vcmp.ge.f32.partialorder %v145, 0.0
  %vm184 = vcmp.ge.f32.partialorder %v150, 0.0
  %vm185 = vcmp.ge.f32.partialorder %v155, 0.0
  %vm186 = vcmp.ge.f32.partialorder %v160, 0.0
  %vm187 = vcmp.ge.f32.partialorder %v165, 0.0
  %vm188 = vcmp.ge.f32.partialorder %v170, 0.0
  %vm189 = vcmp.ge.f32.partialorder %v175, 0.0
  %vm190 = vcmp.ge.f32.partialorder %v180, 0.0
  %v191 = vmul.f32 %v145, 0.1
  %v192 = vmul.f32 %v150, 0.1
  %v193 = vmul.f32 %v155, 0.1
  %v194 = vmul.f32 %v160, 0.1
  %v195 = vmul.f32 %v165, 0.1
  %v196 = vmul.f32 %v170, 0.1
  %v197 = vmul.f32 %v175, 0.1
  %v198 = vmul.f32 %v180, 0.1
  %v199 = vsel %vm183, %v145, %v191
  %v200 = vsel %vm184, %v150, %v192
  %v201 = vsel %vm185, %v155, %v193
  %v202 = vsel %vm186, %v160, %v194
  %v203 = vsel %vm187, %v165, %v195
  %v204 = vsel %vm188, %v170, %v196
  %v205 = vsel %vm189, %v175, %v197
  %v206 = vsel %vm190, %v180, %v198
  %v207 = vlaneseq
  %v208 = vand.u32 %v207, 127
  %v209 = vld [vmem:[%s1] sm:$0xff]
  %v210 = vld [vmem:[%s1 + $0x8] sm:$0xff]
  %v211 = vld [vmem:[%s1 + $0x10] sm:$0xff]
  %v212 = vld [vmem:[%s1 + $0x18] sm:$0xff]
  %v213 = vld [vmem:[%s1 + $0x20] sm:$0xff]
  %v214 = vld [vmem:[%s1 + $0x28] sm:$0xff]
  %v215 = vld [vmem:[%s1 + $0x30] sm:$0xff]
  %v216 = vld [vmem:[%s1 + $0x38] sm:$0xff]
  %v217 = vld [vmem:[%s1 + $0x40] sm:$0xff]
  %v218 = vld [vmem:[%s1 + $0x48] sm:$0xff]
  %v219 = vld [vmem:[%s1 + $0x50] sm:$0xff]
  %v220 = vld [vmem:[%s1 + $0x58] sm:$0xff]
  %v221 = vld [vmem:[%s1 + $0x60] sm:$0xff]
  %v222 = vld [vmem:[%s1 + $0x68] sm:$0xff]
  %v223 = vld [vmem:[%s1 + $0x70] sm:$0xff]
  %v224 = vld [vmem:[%s1 + $0x78] sm:$0xff]
  %v225 = vld [vmem:[%s1 + $0x80] sm:$0xff]
  %v226 = vld [vmem:[%s1 + $0x88] sm:$0xff]
  %v227 = vld [vmem:[%s1 + $0x90] sm:$0xff]
  %v228 = vld [vmem:[%s1 + $0x98] sm:$0xff]
  %v229 = vld [vmem:[%s1 + $0xa0] sm:$0xff]
  %v230 = vld [vmem:[%s1 + $0xa8] sm:$0xff]
  %v231 = vld [vmem:[%s1 + $0xb0] sm:$0xff]
  %v232 = vld [vmem:[%s1 + $0xb8] sm:$0xff]
  %v233 = vld [vmem:[%s1 + $0xc0] sm:$0xff]
  %v234 = vld [vmem:[%s1 + $0xc8] sm:$0xff]
  %v235 = vld [vmem:[%s1 + $0xd0] sm:$0xff]
  %v236 = vld [vmem:[%s1 + $0xd8] sm:$0xff]
  %v237 = vld [vmem:[%s1 + $0xe0] sm:$0xff]
  %v238 = vld [vmem:[%s1 + $0xe8] sm:$0xff]
  %v239 = vld [vmem:[%s1 + $0xf0] sm:$0xff]
  %v240 = vld [vmem:[%s1 + $0xf8] sm:$0xff]
  %v241 = vld [vmem:[%s1 + $0x100] sm:$0xff]
  %v242 = vld [vmem:[%s1 + $0x108] sm:$0xff]
  %v243 = vld [vmem:[%s1 + $0x110] sm:$0xff]
  %v244 = vld [vmem:[%s1 + $0x118] sm:$0xff]
  %v245 = vld [vmem:[%s1 + $0x120] sm:$0xff]
  %v246 = vld [vmem:[%s1 + $0x128] sm:$0xff]
  %v247 = vld [vmem:[%s1 + $0x130] sm:$0xff]
  %v248 = vld [vmem:[%s1 + $0x138] sm:$0xff]
  %v249 = vld [vmem:[%s1 + $0x140] sm:$0xff]
  %v250 = vld [vmem:[%s1 + $0x148] sm:$0xff]
  %v251 = vld [vmem:[%s1 + $0x150] sm:$0xff]
  %v252 = vld [vmem:[%s1 + $0x158] sm:$0xff]
  %v253 = vld [vmem:[%s1 + $0x160] sm:$0xff]
  %v254 = vld [vmem:[%s1 + $0x168] sm:$0xff]
  %v255 = vld [vmem:[%s1 + $0x170] sm:$0xff]
  %v256 = vld [vmem:[%s1 + $0x178] sm:$0xff]
  %v257 = vld [vmem:[%s1 + $0x180] sm:$0xff]
  %v258 = vld [vmem:[%s1 + $0x188] sm:$0xff]
  %v259 = vld [vmem:[%s1 + $0x190] sm:$0xff]
  %v260 = vld [vmem:[%s1 + $0x198] sm:$0xff]
  %v261 = vld [vmem:[%s1 + $0x1a0] sm:$0xff]
  %v262 = vld [vmem:[%s1 + $0x1a8] sm:$0xff]
  %v263 = vld [vmem:[%s1 + $0x1b0] sm:$0xff]
  %v264 = vld [vmem:[%s1 + $0x1b8] sm:$0xff]
  %v265 = vld [vmem:[%s1 + $0x1c0] sm:$0xff]
  %v266 = vld [vmem:[%s1 + $0x1c8] sm:$0xff]
  %v267 = vld [vmem:[%s1 + $0x1d0] sm:$0xff]
  %v268 = vld [vmem:[%s1 + $0x1d8] sm:$0xff]
  %v269 = vld [vmem:[%s1 + $0x1e0] sm:$0xff]
  %v270 = vld [vmem:[%s1 + $0x1e8] sm:$0xff]
  %v271 = vld [vmem:[%s1 + $0x1f0] sm:$0xff]
  %v272 = vld [vmem:[%s1 + $0x1f8] sm:$0xff]
  %v273 = vld [vmem:[%s1 + $0x200] sm:$0xff]
  %v274 = vld [vmem:[%s1 + $0x208] sm:$0xff]
  %v275 = vld [vmem:[%s1 + $0x210] sm:$0xff]
  %v276 = vld [vmem:[%s1 + $0x218] sm:$0xff]
  %v277 = vld [vmem:[%s1 + $0x220] sm:$0xff]
  %v278 = vld [vmem:[%s1 + $0x228] sm:$0xff]
  %v279 = vld [vmem:[%s1 + $0x230] sm:$0xff]
  %v280 = vld [vmem:[%s1 + $0x238] sm:$0xff]
  %v281 = vld [vmem:[%s1 + $0x240] sm:$0xff]
  %v282 = vld [vmem:[%s1 + $0x248] sm:$0xff]
  %v283 = vld [vmem:[%s1 + $0x250] sm:$0xff]
  %v284 = vld [vmem:[%s1 + $0x258] sm:$0xff]
  %v285 = vld [vmem:[%s1 + $0x260] sm:$0xff]
  %v286 = vld [vmem:[%s1 + $0x268] sm:$0xff]
  %v287 = vld [vmem:[%s1 + $0x270] sm:$0xff]
  %v288 = vld [vmem:[%s1 + $0x278] sm:$0xff]
  %v289 = vld [vmem:[%s1 + $0x280] sm:$0xff]
  %v290 = vld [vmem:[%s1 + $0x288] sm:$0xff]
  %v291 = vld [vmem:[%s1 + $0x290] sm:$0xff]
  %v292 = vld [vmem:[%s1 + $0x298] sm:$0xff]
  %v293 = vld [vmem:[%s1 + $0x2a0] sm:$0xff]
  %v294 = vld [vmem:[%s1 + $0x2a8] sm:$0xff]
  %v295 = vld [vmem:[%s1 + $0x2b0] sm:$0xff]
  %v296 = vld [vmem:[%s1 + $0x2b8] sm:$0xff]
  %v297 = vld [vmem:[%s1 + $0x2c0] sm:$0xff]
  %v298 = vld [vmem:[%s1 + $0x2c8] sm:$0xff]
  %v299 = vld [vmem:[%s1 + $0x2d0] sm:$0xff]
  %v300 = vld [vmem:[%s1 + $0x2d8] sm:$0xff]
  %v301 = vld [vmem:[%s1 + $0x2e0] sm:$0xff]
  %v302 = vld [vmem:[%s1 + $0x2e8] sm:$0xff]
  %v303 = vld [vmem:[%s1 + $0x2f0] sm:$0xff]
  %v304 = vld [vmem:[%s1 + $0x2f8] sm:$0xff]
  %v305 = vld [vmem:[%s1 + $0x300] sm:$0xff]
  %v306 = vld [vmem:[%s1 + $0x308] sm:$0xff]
  %v307 = vld [vmem:[%s1 + $0x310] sm:$0xff]
  %v308 = vld [vmem:[%s1 + $0x318] sm:$0xff]
  %v309 = vld [vmem:[%s1 + $0x320] sm:$0xff]
  %v310 = vld [vmem:[%s1 + $0x328] sm:$0xff]
  %v311 = vld [vmem:[%s1 + $0x330] sm:$0xff]
  %v312 = vld [vmem:[%s1 + $0x338] sm:$0xff]
  %v313 = vld [vmem:[%s1 + $0x340] sm:$0xff]
  %v314 = vld [vmem:[%s1 + $0x348] sm:$0xff]
  %v315 = vld [vmem:[%s1 + $0x350] sm:$0xff]
  %v316 = vld [vmem:[%s1 + $0x358] sm:$0xff]
  %v317 = vld [vmem:[%s1 + $0x360] sm:$0xff]
  %v318 = vld [vmem:[%s1 + $0x368] sm:$0xff]
  %v319 = vld [vmem:[%s1 + $0x370] sm:$0xff]
  %v320 = vld [vmem:[%s1 + $0x378] sm:$0xff]
  %v321 = vld [vmem:[%s1 + $0x380] sm:$0xff]
  %v322 = vld [vmem:[%s1 + $0x388] sm:$0xff]
  %v323 = vld [vmem:[%s1 + $0x390] sm:$0xff]
  %v324 = vld [vmem:[%s1 + $0x398] sm:$0xff]
  %v325 = vld [vmem:[%s1 + $0x3a0] sm:$0xff]
  %v326 = vld [vmem:[%s1 + $0x3a8] sm:$0xff]
  %v327 = vld [vmem:[%s1 + $0x3b0] sm:$0xff]
  %v328 = vld [vmem:[%s1 + $0x3b8] sm:$0xff]
  %v329 = vld [vmem:[%s1 + $0x3c0] sm:$0xff]
  %v330 = vld [vmem:[%s1 + $0x3c8] sm:$0xff]
  %v331 = vld [vmem:[%s1 + $0x3d0] sm:$0xff]
  %v332 = vld [vmem:[%s1 + $0x3d8] sm:$0xff]
  %v333 = vld [vmem:[%s1 + $0x3e0] sm:$0xff]
  %v334 = vld [vmem:[%s1 + $0x3e8] sm:$0xff]
  %v335 = vld [vmem:[%s1 + $0x3f0] sm:$0xff]
  %v336 = vld [vmem:[%s1 + $0x3f8] sm:$0xff]
  %337 = vset.pattern.permute.xlu0 0
  %338 = vperm.xlu0 %337, %v209
  %v339 = vpop.permute.xlu0 %338
  %340 = vset.pattern.permute.xlu0 0
  %341 = vperm.xlu0 %340, %v210
  %v342 = vpop.permute.xlu0 %341
  %343 = vset.pattern.permute.xlu0 0
  %344 = vperm.xlu0 %343, %v211
  %v345 = vpop.permute.xlu0 %344
  %346 = vset.pattern.permute.xlu0 0
  %347 = vperm.xlu0 %346, %v212
  %v348 = vpop.permute.xlu0 %347
  %349 = vset.pattern.permute.xlu0 0
  %350 = vperm.xlu0 %349, %v213
  %v351 = vpop.permute.xlu0 %350
  %352 = vset.pattern.permute.xlu0 0
  %353 = vperm.xlu0 %352, %v214
  %v354 = vpop.permute.xlu0 %353
  %355 = vset.pattern.permute.xlu0 0
  %356 = vperm.xlu0 %355, %v215
  %v357 = vpop.permute.xlu0 %356
  %358 = vset.pattern.permute.xlu0 0
  %359 = vperm.xlu0 %358, %v216
  %v360 = vpop.permute.xlu0 %359
  %361 = vset.pattern.permute.xlu0 0
  %362 = vperm.xlu0 %361, %v217
  %v363 = vpop.permute.xlu0 %362
  %364 = vset.pattern.permute.xlu0 0
  %365 = vperm.xlu0 %364, %v218
  %v366 = vpop.permute.xlu0 %365
  %367 = vset.pattern.permute.xlu0 0
  %368 = vperm.xlu0 %367, %v219
  %v369 = vpop.permute.xlu0 %368
  %370 = vset.pattern.permute.xlu0 0
  %371 = vperm.xlu0 %370, %v220
  %v372 = vpop.permute.xlu0 %371
  %373 = vset.pattern.permute.xlu0 0
  %374 = vperm.xlu0 %373, %v221
  %v375 = vpop.permute.xlu0 %374
  %376 = vset.pattern.permute.xlu0 0
  %377 = vperm.xlu0 %376, %v222
  %v378 = vpop.permute.xlu0 %377
  %379 = vset.pattern.permute.xlu0 0
  %380 = vperm.xlu0 %379, %v223
  %v381 = vpop.permute.xlu0 %380
  %382 = vset.pattern.permute.xlu0 0
  %383 = vperm.xlu0 %382, %v224
  %v384 = vpop.permute.xlu0 %383
  %385 = vset.pattern.permute.xlu0 0
  %386 = vperm.xlu0 %385, %v225
  %v387 = vpop.permute.xlu0 %386
  %388 = vset.pattern.permute.xlu0 0
  %389 = vperm.xlu0 %388, %v226
  %v390 = vpop.permute.xlu0 %389
  %391 = vset.pattern.permute.xlu0 0
  %392 = vperm.xlu0 %391, %v227
  %v393 = vpop.permute.xlu0 %392
  %394 = vset.pattern.permute.xlu0 0
  %395 = vperm.xlu0 %394, %v228
  %v396 = vpop.permute.xlu0 %395
  %397 = vset.pattern.permute.xlu0 0
  %398 = vperm.xlu0 %397, %v229
  %v399 = vpop.permute.xlu0 %398
  %400 = vset.pattern.permute.xlu0 0
  %401 = vperm.xlu0 %400, %v230
  %v402 = vpop.permute.xlu0 %401
  %403 = vset.pattern.permute.xlu0 0
  %404 = vperm.xlu0 %403, %v231
  %v405 = vpop.permute.xlu0 %404
  %406 = vset.pattern.permute.xlu0 0
  %407 = vperm.xlu0 %406, %v232
  %v408 = vpop.permute.xlu0 %407
  %409 = vset.pattern.permute.xlu0 0
  %410 = vperm.xlu0 %409, %v233
  %v411 = vpop.permute.xlu0 %410
  %412 = vset.pattern.permute.xlu0 0
  %413 = vperm.xlu0 %412, %v234
  %v414 = vpop.permute.xlu0 %413
  %415 = vset.pattern.permute.xlu0 0
  %416 = vperm.xlu0 %415, %v235
  %v417 = vpop.permute.xlu0 %416
  %418 = vset.pattern.permute.xlu0 0
  %419 = vperm.xlu0 %418, %v236
  %v420 = vpop.permute.xlu0 %419
  %421 = vset.pattern.permute.xlu0 0
  %422 = vperm.xlu0 %421, %v237
  %v423 = vpop.permute.xlu0 %422
  %424 = vset.pattern.permute.xlu0 0
  %425 = vperm.xlu0 %424, %v238
  %v426 = vpop.permute.xlu0 %425
  %427 = vset.pattern.permute.xlu0 0
  %428 = vperm.xlu0 %427, %v239
  %v429 = vpop.permute.xlu0 %428
  %430 = vset.pattern.permute.xlu0 0
  %431 = vperm.xlu0 %430, %v240
  %v432 = vpop.permute.xlu0 %431
  %433 = vset.pattern.permute.xlu0 0
  %434 = vperm.xlu0 %433, %v241
  %v435 = vpop.permute.xlu0 %434
  %436 = vset.pattern.permute.xlu0 0
  %437 = vperm.xlu0 %436, %v242
  %v438 = vpop.permute.xlu0 %437
  %439 = vset.pattern.permute.xlu0 0
  %440 = vperm.xlu0 %439, %v243
  %v441 = vpop.permute.xlu0 %440
  %442 = vset.pattern.permute.xlu0 0
  %443 = vperm.xlu0 %442, %v244
  %v444 = vpop.permute.xlu0 %443
  %445 = vset.pattern.permute.xlu0 0
  %446 = vperm.xlu0 %445, %v245
  %v447 = vpop.permute.xlu0 %446
  %448 = vset.pattern.permute.xlu0 0
  %449 = vperm.xlu0 %448, %v246
  %v450 = vpop.permute.xlu0 %449
  %451 = vset.pattern.permute.xlu0 0
  %452 = vperm.xlu0 %451, %v247
  %v453 = vpop.permute.xlu0 %452
  %454 = vset.pattern.permute.xlu0 0
  %455 = vperm.xlu0 %454, %v248
  %v456 = vpop.permute.xlu0 %455
  %457 = vset.pattern.permute.xlu0 0
  %458 = vperm.xlu0 %457, %v249
  %v459 = vpop.permute.xlu0 %458
  %460 = vset.pattern.permute.xlu0 0
  %461 = vperm.xlu0 %460, %v250
  %v462 = vpop.permute.xlu0 %461
  %463 = vset.pattern.permute.xlu0 0
  %464 = vperm.xlu0 %463, %v251
  %v465 = vpop.permute.xlu0 %464
  %466 = vset.pattern.permute.xlu0 0
  %467 = vperm.xlu0 %466, %v252
  %v468 = vpop.permute.xlu0 %467
  %469 = vset.pattern.permute.xlu0 0
  %470 = vperm.xlu0 %469, %v253
  %v471 = vpop.permute.xlu0 %470
  %472 = vset.pattern.permute.xlu0 0
  %473 = vperm.xlu0 %472, %v254
  %v474 = vpop.permute.xlu0 %473
  %475 = vset.pattern.permute.xlu0 0
  %476 = vperm.xlu0 %475, %v255
  %v477 = vpop.permute.xlu0 %476
  %478 = vset.pattern.permute.xlu0 0
  %479 = vperm.xlu0 %478, %v256
  %v480 = vpop.permute.xlu0 %479
  %481 = vset.pattern.permute.xlu0 0
  %482 = vperm.xlu0 %481, %v257
  %v483 = vpop.permute.xlu0 %482
  %484 = vset.pattern.permute.xlu0 0
  %485 = vperm.xlu0 %484, %v258
  %v486 = vpop.permute.xlu0 %485
  %487 = vset.pattern.permute.xlu0 0
  %488 = vperm.xlu0 %487, %v259
  %v489 = vpop.permute.xlu0 %488
  %490 = vset.pattern.permute.xlu0 0
  %491 = vperm.xlu0 %490, %v260
  %v492 = vpop.permute.xlu0 %491
  %493 = vset.pattern.permute.xlu0 0
  %494 = vperm.xlu0 %493, %v261
  %v495 = vpop.permute.xlu0 %494
  %496 = vset.pattern.permute.xlu0 0
  %497 = vperm.xlu0 %496, %v262
  %v498 = vpop.permute.xlu0 %497
  %499 = vset.pattern.permute.xlu0 0
  %500 = vperm.xlu0 %499, %v263
  %v501 = vpop.permute.xlu0 %500
  %502 = vset.pattern.permute.xlu0 0
  %503 = vperm.xlu0 %502, %v264
  %v504 = vpop.permute.xlu0 %503
  %505 = vset.pattern.permute.xlu0 0
  %506 = vperm.xlu0 %505, %v265
  %v507 = vpop.permute.xlu0 %506
  %508 = vset.pattern.permute.xlu0 0
  %509 = vperm.xlu0 %508, %v266
  %v510 = vpop.permute.xlu0 %509
  %511 = vset.pattern.permute.xlu0 0
  %512 = vperm.xlu0 %511, %v267
  %v513 = vpop.permute.xlu0 %512
  %514 = vset.pattern.permute.xlu0 0
  %515 = vperm.xlu0 %514, %v268
  %v516 = vpop.permute.xlu0 %515
  %517 = vset.pattern.permute.xlu0 0
  %518 = vperm.xlu0 %517, %v269
  %v519 = vpop.permute.xlu0 %518
  %520 = vset.pattern.permute.xlu0 0
  %521 = vperm.xlu0 %520, %v270
  %v522 = vpop.permute.xlu0 %521
  %523 = vset.pattern.permute.xlu0 0
  %524 = vperm.xlu0 %523, %v271
  %v525 = vpop.permute.xlu0 %524
  %526 = vset.pattern.permute.xlu0 0
  %527 = vperm.xlu0 %526, %v272
  %v528 = vpop.permute.xlu0 %527
  %529 = vset.pattern.permute.xlu0 0
  %530 = vperm.xlu0 %529, %v273
  %v531 = vpop.permute.xlu0 %530
  %532 = vset.pattern.permute.xlu0 0
  %533 = vperm.xlu0 %532, %v274
  %v534 = vpop.permute.xlu0 %533
  %535 = vset.pattern.permute.xlu0 0
  %536 = vperm.xlu0 %535, %v275
  %v537 = vpop.permute.xlu0 %536
  %538 = vset.pattern.permute.xlu0 0
  %539 = vperm.xlu0 %538, %v276
  %v540 = vpop.permute.xlu0 %539
  %541 = vset.pattern.permute.xlu0 0
  %542 = vperm.xlu0 %541, %v277
  %v543 = vpop.permute.xlu0 %542
  %544 = vset.pattern.permute.xlu0 0
  %545 = vperm.xlu0 %544, %v278
  %v546 = vpop.permute.xlu0 %545
  %547 = vset.pattern.permute.xlu0 0
  %548 = vperm.xlu0 %547, %v279
  %v549 = vpop.permute.xlu0 %548
  %550 = vset.pattern.permute.xlu0 0
  %551 = vperm.xlu0 %550, %v280
  %v552 = vpop.permute.xlu0 %551
  %553 = vset.pattern.permute.xlu0 0
  %554 = vperm.xlu0 %553, %v281
  %v555 = vpop.permute.xlu0 %554
  %556 = vset.pattern.permute.xlu0 0
  %557 = vperm.xlu0 %556, %v282
  %v558 = vpop.permute.xlu0 %557
  %559 = vset.pattern.permute.xlu0 0
  %560 = vperm.xlu0 %559, %v283
  %v561 = vpop.permute.xlu0 %560
  %562 = vset.pattern.permute.xlu0 0
  %563 = vperm.xlu0 %562, %v284
  %v564 = vpop.permute.xlu0 %563
  %565 = vset.pattern.permute.xlu0 0
  %566 = vperm.xlu0 %565, %v285
  %v567 = vpop.permute.xlu0 %566
  %568 = vset.pattern.permute.xlu0 0
  %569 = vperm.xlu0 %568, %v286
  %v570 = vpop.permute.xlu0 %569
  %571 = vset.pattern.permute.xlu0 0
  %572 = vperm.xlu0 %571, %v287
  %v573 = vpop.permute.xlu0 %572
  %574 = vset.pattern.permute.xlu0 0
  %575 = vperm.xlu0 %574, %v288
  %v576 = vpop.permute.xlu0 %575
  %577 = vset.pattern.permute.xlu0 0
  %578 = vperm.xlu0 %577, %v289
  %v579 = vpop.permute.xlu0 %578
  %580 = vset.pattern.permute.xlu0 0
  %581 = vperm.xlu0 %580, %v290
  %v582 = vpop.permute.xlu0 %581
  %583 = vset.pattern.permute.xlu0 0
  %584 = vperm.xlu0 %583, %v291
  %v585 = vpop.permute.xlu0 %584
  %586 = vset.pattern.permute.xlu0 0
  %587 = vperm.xlu0 %586, %v292
  %v588 = vpop.permute.xlu0 %587
  %589 = vset.pattern.permute.xlu0 0
  %590 = vperm.xlu0 %589, %v293
  %v591 = vpop.permute.xlu0 %590
  %592 = vset.pattern.permute.xlu0 0
  %593 = vperm.xlu0 %592, %v294
  %v594 = vpop.permute.xlu0 %593
  %595 = vset.pattern.permute.xlu0 0
  %596 = vperm.xlu0 %595, %v295
  %v597 = vpop.permute.xlu0 %596
  %598 = vset.pattern.permute.xlu0 0
  %599 = vperm.xlu0 %598, %v296
  %v600 = vpop.permute.xlu0 %599
  %601 = vset.pattern.permute.xlu0 0
  %602 = vperm.xlu0 %601, %v297
  %v603 = vpop.permute.xlu0 %602
  %604 = vset.pattern.permute.xlu0 0
  %605 = vperm.xlu0 %604, %v298
  %v606 = vpop.permute.xlu0 %605
  %607 = vset.pattern.permute.xlu0 0
  %608 = vperm.xlu0 %607, %v299
  %v609 = vpop.permute.xlu0 %608
  %610 = vset.pattern.permute.xlu0 0
  %611 = vperm.xlu0 %610, %v300
  %v612 = vpop.permute.xlu0 %611
  %613 = vset.pattern.permute.xlu0 0
  %614 = vperm.xlu0 %613, %v301
  %v615 = vpop.permute.xlu0 %614
  %616 = vset.pattern.permute.xlu0 0
  %617 = vperm.xlu0 %616, %v302
  %v618 = vpop.permute.xlu0 %617
  %619 = vset.pattern.permute.xlu0 0
  %620 = vperm.xlu0 %619, %v303
  %v621 = vpop.permute.xlu0 %620
  %622 = vset.pattern.permute.xlu0 0
  %623 = vperm.xlu0 %622, %v304
  %v624 = vpop.permute.xlu0 %623
  %625 = vset.pattern.permute.xlu0 0
  %626 = vperm.xlu0 %625, %v305
  %v627 = vpop.permute.xlu0 %626
  %628 = vset.pattern.permute.xlu0 0
  %629 = vperm.xlu0 %628, %v306
  %v630 = vpop.permute.xlu0 %629
  %631 = vset.pattern.permute.xlu0 0
  %632 = vperm.xlu0 %631, %v307
  %v633 = vpop.permute.xlu0 %632
  %634 = vset.pattern.permute.xlu0 0
  %635 = vperm.xlu0 %634, %v308
  %v636 = vpop.permute.xlu0 %635
  %637 = vset.pattern.permute.xlu0 0
  %638 = vperm.xlu0 %637, %v309
  %v639 = vpop.permute.xlu0 %638
  %640 = vset.pattern.permute.xlu0 0
  %641 = vperm.xlu0 %640, %v310
  %v642 = vpop.permute.xlu0 %641
  %643 = vset.pattern.permute.xlu0 0
  %644 = vperm.xlu0 %643, %v311
  %v645 = vpop.permute.xlu0 %644
  %646 = vset.pattern.permute.xlu0 0
  %647 = vperm.xlu0 %646, %v312
  %v648 = vpop.permute.xlu0 %647
  %649 = vset.pattern.permute.xlu0 0
  %650 = vperm.xlu0 %649, %v313
  %v651 = vpop.permute.xlu0 %650
  %652 = vset.pattern.permute.xlu0 0
  %653 = vperm.xlu0 %652, %v314
  %v654 = vpop.permute.xlu0 %653
  %655 = vset.pattern.permute.xlu0 0
  %656 = vperm.xlu0 %655, %v315
  %v657 = vpop.permute.xlu0 %656
  %658 = vset.pattern.permute.xlu0 0
  %659 = vperm.xlu0 %658, %v316
  %v660 = vpop.permute.xlu0 %659
  %661 = vset.pattern.permute.xlu0 0
  %662 = vperm.xlu0 %661, %v317
  %v663 = vpop.permute.xlu0 %662
  %664 = vset.pattern.permute.xlu0 0
  %665 = vperm.xlu0 %664, %v318
  %v666 = vpop.permute.xlu0 %665
  %667 = vset.pattern.permute.xlu0 0
  %668 = vperm.xlu0 %667, %v319
  %v669 = vpop.permute.xlu0 %668
  %670 = vset.pattern.permute.xlu0 0
  %671 = vperm.xlu0 %670, %v320
  %v672 = vpop.permute.xlu0 %671
  %673 = vset.pattern.permute.xlu0 0
  %674 = vperm.xlu0 %673, %v321
  %v675 = vpop.permute.xlu0 %674
  %676 = vset.pattern.permute.xlu0 0
  %677 = vperm.xlu0 %676, %v322
  %v678 = vpop.permute.xlu0 %677
  %679 = vset.pattern.permute.xlu0 0
  %680 = vperm.xlu0 %679, %v323
  %v681 = vpop.permute.xlu0 %680
  %682 = vset.pattern.permute.xlu0 0
  %683 = vperm.xlu0 %682, %v324
  %v684 = vpop.permute.xlu0 %683
  %685 = vset.pattern.permute.xlu0 0
  %686 = vperm.xlu0 %685, %v325
  %v687 = vpop.permute.xlu0 %686
  %688 = vset.pattern.permute.xlu0 0
  %689 = vperm.xlu0 %688, %v326
  %v690 = vpop.permute.xlu0 %689
  %691 = vset.pattern.permute.xlu0 0
  %692 = vperm.xlu0 %691, %v327
  %v693 = vpop.permute.xlu0 %692
  %694 = vset.pattern.permute.xlu0 0
  %695 = vperm.xlu0 %694, %v328
  %v696 = vpop.permute.xlu0 %695
  %697 = vset.pattern.permute.xlu0 0
  %698 = vperm.xlu0 %697, %v329
  %v699 = vpop.permute.xlu0 %698
  %700 = vset.pattern.permute.xlu0 0
  %701 = vperm.xlu0 %700, %v330
  %v702 = vpop.permute.xlu0 %701
  %703 = vset.pattern.permute.xlu0 0
  %704 = vperm.xlu0 %703, %v331
  %v705 = vpop.permute.xlu0 %704
  %706 = vset.pattern.permute.xlu0 0
  %707 = vperm.xlu0 %706, %v332
  %v708 = vpop.permute.xlu0 %707
  %709 = vset.pattern.permute.xlu0 0
  %710 = vperm.xlu0 %709, %v333
  %v711 = vpop.permute.xlu0 %710
  %712 = vset.pattern.permute.xlu0 0
  %713 = vperm.xlu0 %712, %v334
  %v714 = vpop.permute.xlu0 %713
  %715 = vset.pattern.permute.xlu0 0
  %716 = vperm.xlu0 %715, %v335
  %v717 = vpop.permute.xlu0 %716
  %718 = vset.pattern.permute.xlu0 0
  %719 = vperm.xlu0 %718, %v336
  %v720 = vpop.permute.xlu0 %719
  %vm721 = vcmp.eq.s32.totalorder %v339, %v208
  %vm722 = vcmp.eq.s32.totalorder %v342, %v208
  %vm723 = vcmp.eq.s32.totalorder %v345, %v208
  %vm724 = vcmp.eq.s32.totalorder %v348, %v208
  %vm725 = vcmp.eq.s32.totalorder %v351, %v208
  %vm726 = vcmp.eq.s32.totalorder %v354, %v208
  %vm727 = vcmp.eq.s32.totalorder %v357, %v208
  %vm728 = vcmp.eq.s32.totalorder %v360, %v208
  %vm729 = vcmp.eq.s32.totalorder %v363, %v208
  %vm730 = vcmp.eq.s32.totalorder %v366, %v208
  %vm731 = vcmp.eq.s32.totalorder %v369, %v208
  %vm732 = vcmp.eq.s32.totalorder %v372, %v208
  %vm733 = vcmp.eq.s32.totalorder %v375, %v208
  %vm734 = vcmp.eq.s32.totalorder %v378, %v208
  %vm735 = vcmp.eq.s32.totalorder %v381, %v208
  %vm736 = vcmp.eq.s32.totalorder %v384, %v208
  %vm737 = vcmp.eq.s32.totalorder %v387, %v208
  %vm738 = vcmp.eq.s32.totalorder %v390, %v208
  %vm739 = vcmp.eq.s32.totalorder %v393, %v208
  %vm740 = vcmp.eq.s32.totalorder %v396, %v208
  %vm741 = vcmp.eq.s32.totalorder %v399, %v208
  %vm742 = vcmp.eq.s32.totalorder %v402, %v208
  %vm743 = vcmp.eq.s32.totalorder %v405, %v208
  %vm744 = vcmp.eq.s32.totalorder %v408, %v208
  %vm745 = vcmp.eq.s32.totalorder %v411, %v208
  %vm746 = vcmp.eq.s32.totalorder %v414, %v208
  %vm747 = vcmp.eq.s32.totalorder %v417, %v208
  %vm748 = vcmp.eq.s32.totalorder %v420, %v208
  %vm749 = vcmp.eq.s32.totalorder %v423, %v208
  %vm750 = vcmp.eq.s32.totalorder %v426, %v208
  %vm751 = vcmp.eq.s32.totalorder %v429, %v208
  %vm752 = vcmp.eq.s32.totalorder %v432, %v208
  %vm753 = vcmp.eq.s32.totalorder %v435, %v208
  %vm754 = vcmp.eq.s32.totalorder %v438, %v208
  %vm755 = vcmp.eq.s32.totalorder %v441, %v208
  %vm756 = vcmp.eq.s32.totalorder %v444, %v208
  %vm757 = vcmp.eq.s32.totalorder %v447, %v208
  %vm758 = vcmp.eq.s32.totalorder %v450, %v208
  %vm759 = vcmp.eq.s32.totalorder %v453, %v208
  %vm760 = vcmp.eq.s32.totalorder %v456, %v208
  %vm761 = vcmp.eq.s32.totalorder %v459, %v208
  %vm762 = vcmp.eq.s32.totalorder %v462, %v208
  %vm763 = vcmp.eq.s32.totalorder %v465, %v208
  %vm764 = vcmp.eq.s32.totalorder %v468, %v208
  %vm765 = vcmp.eq.s32.totalorder %v471, %v208
  %vm766 = vcmp.eq.s32.totalorder %v474, %v208
  %vm767 = vcmp.eq.s32.totalorder %v477, %v208
  %vm768 = vcmp.eq.s32.totalorder %v480, %v208
  %vm769 = vcmp.eq.s32.totalorder %v483, %v208
  %vm770 = vcmp.eq.s32.totalorder %v486, %v208
  %vm771 = vcmp.eq.s32.totalorder %v489, %v208
  %vm772 = vcmp.eq.s32.totalorder %v492, %v208
  %vm773 = vcmp.eq.s32.totalorder %v495, %v208
  %vm774 = vcmp.eq.s32.totalorder %v498, %v208
  %vm775 = vcmp.eq.s32.totalorder %v501, %v208
  %vm776 = vcmp.eq.s32.totalorder %v504, %v208
  %vm777 = vcmp.eq.s32.totalorder %v507, %v208
  %vm778 = vcmp.eq.s32.totalorder %v510, %v208
  %vm779 = vcmp.eq.s32.totalorder %v513, %v208
  %vm780 = vcmp.eq.s32.totalorder %v516, %v208
  %vm781 = vcmp.eq.s32.totalorder %v519, %v208
  %vm782 = vcmp.eq.s32.totalorder %v522, %v208
  %vm783 = vcmp.eq.s32.totalorder %v525, %v208
  %vm784 = vcmp.eq.s32.totalorder %v528, %v208
  %vm785 = vcmp.eq.s32.totalorder %v531, %v208
  %vm786 = vcmp.eq.s32.totalorder %v534, %v208
  %vm787 = vcmp.eq.s32.totalorder %v537, %v208
  %vm788 = vcmp.eq.s32.totalorder %v540, %v208
  %vm789 = vcmp.eq.s32.totalorder %v543, %v208
  %vm790 = vcmp.eq.s32.totalorder %v546, %v208
  %vm791 = vcmp.eq.s32.totalorder %v549, %v208
  %vm792 = vcmp.eq.s32.totalorder %v552, %v208
  %vm793 = vcmp.eq.s32.totalorder %v555, %v208
  %vm794 = vcmp.eq.s32.totalorder %v558, %v208
  %vm795 = vcmp.eq.s32.totalorder %v561, %v208
  %vm796 = vcmp.eq.s32.totalorder %v564, %v208
  %vm797 = vcmp.eq.s32.totalorder %v567, %v208
  %vm798 = vcmp.eq.s32.totalorder %v570, %v208
  %vm799 = vcmp.eq.s32.totalorder %v573, %v208
  %vm800 = vcmp.eq.s32.totalorder %v576, %v208
  %vm801 = vcmp.eq.s32.totalorder %v579, %v208
  %vm802 = vcmp.eq.s32.totalorder %v582, %v208
  %vm803 = vcmp.eq.s32.totalorder %v585, %v208
  %vm804 = vcmp.eq.s32.totalorder %v588, %v208
  %vm805 = vcmp.eq.s32.totalorder %v591, %v208
  %vm806 = vcmp.eq.s32.totalorder %v594, %v208
  %vm807 = vcmp.eq.s32.totalorder %v597, %v208
  %vm808 = vcmp.eq.s32.totalorder %v600, %v208
  %vm809 = vcmp.eq.s32.totalorder %v603, %v208
  %vm810 = vcmp.eq.s32.totalorder %v606, %v208
  %vm811 = vcmp.eq.s32.totalorder %v609, %v208
  %vm812 = vcmp.eq.s32.totalorder %v612, %v208
  %vm813 = vcmp.eq.s32.totalorder %v615, %v208
  %vm814 = vcmp.eq.s32.totalorder %v618, %v208
  %vm815 = vcmp.eq.s32.totalorder %v621, %v208
  %vm816 = vcmp.eq.s32.totalorder %v624, %v208
  %vm817 = vcmp.eq.s32.totalorder %v627, %v208
  %vm818 = vcmp.eq.s32.totalorder %v630, %v208
  %vm819 = vcmp.eq.s32.totalorder %v633, %v208
  %vm820 = vcmp.eq.s32.totalorder %v636, %v208
  %vm821 = vcmp.eq.s32.totalorder %v639, %v208
  %vm822 = vcmp.eq.s32.totalorder %v642, %v208
  %vm823 = vcmp.eq.s32.totalorder %v645, %v208
  %vm824 = vcmp.eq.s32.totalorder %v648, %v208
  %vm825 = vcmp.eq.s32.totalorder %v651, %v208
  %vm826 = vcmp.eq.s32.totalorder %v654, %v208
  %vm827 = vcmp.eq.s32.totalorder %v657, %v208
  %vm828 = vcmp.eq.s32.totalorder %v660, %v208
  %vm829 = vcmp.eq.s32.totalorder %v663, %v208
  %vm830 = vcmp.eq.s32.totalorder %v666, %v208
  %vm831 = vcmp.eq.s32.totalorder %v669, %v208
  %vm832 = vcmp.eq.s32.totalorder %v672, %v208
  %vm833 = vcmp.eq.s32.totalorder %v675, %v208
  %vm834 = vcmp.eq.s32.totalorder %v678, %v208
  %vm835 = vcmp.eq.s32.totalorder %v681, %v208
  %vm836 = vcmp.eq.s32.totalorder %v684, %v208
  %vm837 = vcmp.eq.s32.totalorder %v687, %v208
  %vm838 = vcmp.eq.s32.totalorder %v690, %v208
  %vm839 = vcmp.eq.s32.totalorder %v693, %v208
  %vm840 = vcmp.eq.s32.totalorder %v696, %v208
  %vm841 = vcmp.eq.s32.totalorder %v699, %v208
  %vm842 = vcmp.eq.s32.totalorder %v702, %v208
  %vm843 = vcmp.eq.s32.totalorder %v705, %v208
  %vm844 = vcmp.eq.s32.totalorder %v708, %v208
  %vm845 = vcmp.eq.s32.totalorder %v711, %v208
  %vm846 = vcmp.eq.s32.totalorder %v714, %v208
  %vm847 = vcmp.eq.s32.totalorder %v717, %v208
  %vm848 = vcmp.eq.s32.totalorder %v720, %v208
  %v849 = vsel %vm721, 1, 0
  %v850 = vsel %vm722, 1, 0
  %v851 = vsel %vm723, 1, 0
  %v852 = vsel %vm724, 1, 0
  %v853 = vsel %vm725, 1, 0
  %v854 = vsel %vm726, 1, 0
  %v855 = vsel %vm727, 1, 0
  %v856 = vsel %vm728, 1, 0
  %v857 = vsel %vm729, 1, 0
  %v858 = vsel %vm730, 1, 0
  %v859 = vsel %vm731, 1, 0
  %v860 = vsel %vm732, 1, 0
  %v861 = vsel %vm733, 1, 0
  %v862 = vsel %vm734, 1, 0
  %v863 = vsel %vm735, 1, 0
  %v864 = vsel %vm736, 1, 0
  %v865 = vsel %vm737, 1, 0
  %v866 = vsel %vm738, 1, 0
  %v867 = vsel %vm739, 1, 0
  %v868 = vsel %vm740, 1, 0
  %v869 = vsel %vm741, 1, 0
  %v870 = vsel %vm742, 1, 0
  %v871 = vsel %vm743, 1, 0
  %v872 = vsel %vm744, 1, 0
  %v873 = vsel %vm745, 1, 0
  %v874 = vsel %vm746, 1, 0
  %v875 = vsel %vm747, 1, 0
  %v876 = vsel %vm748, 1, 0
  %v877 = vsel %vm749, 1, 0
  %v878 = vsel %vm750, 1, 0
  %v879 = vsel %vm751, 1, 0
  %v880 = vsel %vm752, 1, 0
  %v881 = vsel %vm753, 1, 0
  %v882 = vsel %vm754, 1, 0
  %v883 = vsel %vm755, 1, 0
  %v884 = vsel %vm756, 1, 0
  %v885 = vsel %vm757, 1, 0
  %v886 = vsel %vm758, 1, 0
  %v887 = vsel %vm759, 1, 0
  %v888 = vsel %vm760, 1, 0
  %v889 = vsel %vm761, 1, 0
  %v890 = vsel %vm762, 1, 0
  %v891 = vsel %vm763, 1, 0
  %v892 = vsel %vm764, 1, 0
  %v893 = vsel %vm765, 1, 0
  %v894 = vsel %vm766, 1, 0
  %v895 = vsel %vm767, 1, 0
  %v896 = vsel %vm768, 1, 0
  %v897 = vsel %vm769, 1, 0
  %v898 = vsel %vm770, 1, 0
  %v899 = vsel %vm771, 1, 0
  %v900 = vsel %vm772, 1, 0
  %v901 = vsel %vm773, 1, 0
  %v902 = vsel %vm774, 1, 0
  %v903 = vsel %vm775, 1, 0
  %v904 = vsel %vm776, 1, 0
  %v905 = vsel %vm777, 1, 0
  %v906 = vsel %vm778, 1, 0
  %v907 = vsel %vm779, 1, 0
  %v908 = vsel %vm780, 1, 0
  %v909 = vsel %vm781, 1, 0
  %v910 = vsel %vm782, 1, 0
  %v911 = vsel %vm783, 1, 0
  %v912 = vsel %vm784, 1, 0
  %v913 = vsel %vm785, 1, 0
  %v914 = vsel %vm786, 1, 0
  %v915 = vsel %vm787, 1, 0
  %v916 = vsel %vm788, 1, 0
  %v917 = vsel %vm789, 1, 0
  %v918 = vsel %vm790, 1, 0
  %v919 = vsel %vm791, 1, 0
  %v920 = vsel %vm792, 1, 0
  %v921 = vsel %vm793, 1, 0
  %v922 = vsel %vm794, 1, 0
  %v923 = vsel %vm795, 1, 0
  %v924 = vsel %vm796, 1, 0
  %v925 = vsel %vm797, 1, 0
  %v926 = vsel %vm798, 1, 0
  %v927 = vsel %vm799, 1, 0
  %v928 = vsel %vm800, 1, 0
  %v929 = vsel %vm801, 1, 0
  %v930 = vsel %vm802, 1, 0
  %v931 = vsel %vm803, 1, 0
  %v932 = vsel %vm804, 1, 0
  %v933 = vsel %vm805, 1, 0
  %v934 = vsel %vm806, 1, 0
  %v935 = vsel %vm807, 1, 0
  %v936 = vsel %vm808, 1, 0
  %v937 = vsel %vm809, 1, 0
  %v938 = vsel %vm810, 1, 0
  %v939 = vsel %vm811, 1, 0
  %v940 = vsel %vm812, 1, 0
  %v941 = vsel %vm813, 1, 0
  %v942 = vsel %vm814, 1, 0
  %v943 = vsel %vm815, 1, 0
  %v944 = vsel %vm816, 1, 0
  %v945 = vsel %vm817, 1, 0
  %v946 = vsel %vm818, 1, 0
  %v947 = vsel %vm819, 1, 0
  %v948 = vsel %vm820, 1, 0
  %v949 = vsel %vm821, 1, 0
  %v950 = vsel %vm822, 1, 0
  %v951 = vsel %vm823, 1, 0
  %v952 = vsel %vm824, 1, 0
  %v953 = vsel %vm825, 1, 0
  %v954 = vsel %vm826, 1, 0
  %v955 = vsel %vm827, 1, 0
  %v956 = vsel %vm828, 1, 0
  %v957 = vsel %vm829, 1, 0
  %v958 = vsel %vm830, 1, 0
  %v959 = vsel %vm831, 1, 0
  %v960 = vsel %vm832, 1, 0
  %v961 = vsel %vm833, 1, 0
  %v962 = vsel %vm834, 1, 0
  %v963 = vsel %vm835, 1, 0
  %v964 = vsel %vm836, 1, 0
  %v965 = vsel %vm837, 1, 0
  %v966 = vsel %vm838, 1, 0
  %v967 = vsel %vm839, 1, 0
  %v968 = vsel %vm840, 1, 0
  %v969 = vsel %vm841, 1, 0
  %v970 = vsel %vm842, 1, 0
  %v971 = vsel %vm843, 1, 0
  %v972 = vsel %vm844, 1, 0
  %v973 = vsel %vm845, 1, 0
  %v974 = vsel %vm846, 1, 0
  %v975 = vsel %vm847, 1, 0
  %v976 = vsel %vm848, 1, 0
  %v977 = vcvt.s32.f32 %v849
  %v978 = vcvt.s32.f32 %v850
  %v979 = vcvt.s32.f32 %v851
  %v980 = vcvt.s32.f32 %v852
  %v981 = vcvt.s32.f32 %v853
  %v982 = vcvt.s32.f32 %v854
  %v983 = vcvt.s32.f32 %v855
  %v984 = vcvt.s32.f32 %v856
  %v985 = vcvt.s32.f32 %v857
  %v986 = vcvt.s32.f32 %v858
  %v987 = vcvt.s32.f32 %v859
  %v988 = vcvt.s32.f32 %v860
  %v989 = vcvt.s32.f32 %v861
  %v990 = vcvt.s32.f32 %v862
  %v991 = vcvt.s32.f32 %v863
  %v992 = vcvt.s32.f32 %v864
  %v993 = vcvt.s32.f32 %v865
  %v994 = vcvt.s32.f32 %v866
  %v995 = vcvt.s32.f32 %v867
  %v996 = vcvt.s32.f32 %v868
  %v997 = vcvt.s32.f32 %v869
  %v998 = vcvt.s32.f32 %v870
  %v999 = vcvt.s32.f32 %v871
  %v1000 = vcvt.s32.f32 %v872
  %v1001 = vcvt.s32.f32 %v873
  %v1002 = vcvt.s32.f32 %v874
  %v1003 = vcvt.s32.f32 %v875
  %v1004 = vcvt.s32.f32 %v876
  %v1005 = vcvt.s32.f32 %v877
  %v1006 = vcvt.s32.f32 %v878
  %v1007 = vcvt.s32.f32 %v879
  %v1008 = vcvt.s32.f32 %v880
  %v1009 = vcvt.s32.f32 %v881
  %v1010 = vcvt.s32.f32 %v882
  %v1011 = vcvt.s32.f32 %v883
  %v1012 = vcvt.s32.f32 %v884
  %v1013 = vcvt.s32.f32 %v885
  %v1014 = vcvt.s32.f32 %v886
  %v1015 = vcvt.s32.f32 %v887
  %v1016 = vcvt.s32.f32 %v888
  %v1017 = vcvt.s32.f32 %v889
  %v1018 = vcvt.s32.f32 %v890
  %v1019 = vcvt.s32.f32 %v891
  %v1020 = vcvt.s32.f32 %v892
  %v1021 = vcvt.s32.f32 %v893
  %v1022 = vcvt.s32.f32 %v894
  %v1023 = vcvt.s32.f32 %v895
  %v1024 = vcvt.s32.f32 %v896
  %v1025 = vcvt.s32.f32 %v897
  %v1026 = vcvt.s32.f32 %v898
  %v1027 = vcvt.s32.f32 %v899
  %v1028 = vcvt.s32.f32 %v900
  %v1029 = vcvt.s32.f32 %v901
  %v1030 = vcvt.s32.f32 %v902
  %v1031 = vcvt.s32.f32 %v903
  %v1032 = vcvt.s32.f32 %v904
  %v1033 = vcvt.s32.f32 %v905
  %v1034 = vcvt.s32.f32 %v906
  %v1035 = vcvt.s32.f32 %v907
  %v1036 = vcvt.s32.f32 %v908
  %v1037 = vcvt.s32.f32 %v909
  %v1038 = vcvt.s32.f32 %v910
  %v1039 = vcvt.s32.f32 %v911
  %v1040 = vcvt.s32.f32 %v912
  %v1041 = vcvt.s32.f32 %v913
  %v1042 = vcvt.s32.f32 %v914
  %v1043 = vcvt.s32.f32 %v915
  %v1044 = vcvt.s32.f32 %v916
  %v1045 = vcvt.s32.f32 %v917
  %v1046 = vcvt.s32.f32 %v918
  %v1047 = vcvt.s32.f32 %v919
  %v1048 = vcvt.s32.f32 %v920
  %v1049 = vcvt.s32.f32 %v921
  %v1050 = vcvt.s32.f32 %v922
  %v1051 = vcvt.s32.f32 %v923
  %v1052 = vcvt.s32.f32 %v924
  %v1053 = vcvt.s32.f32 %v925
  %v1054 = vcvt.s32.f32 %v926
  %v1055 = vcvt.s32.f32 %v927
  %v1056 = vcvt.s32.f32 %v928
  %v1057 = vcvt.s32.f32 %v929
  %v1058 = vcvt.s32.f32 %v930
  %v1059 = vcvt.s32.f32 %v931
  %v1060 = vcvt.s32.f32 %v932
  %v1061 = vcvt.s32.f32 %v933
  %v1062 = vcvt.s32.f32 %v934
  %v1063 = vcvt.s32.f32 %v935
  %v1064 = vcvt.s32.f32 %v936
  %v1065 = vcvt.s32.f32 %v937
  %v1066 = vcvt.s32.f32 %v938
  %v1067 = vcvt.s32.f32 %v939
  %v1068 = vcvt.s32.f32 %v940
  %v1069 = vcvt.s32.f32 %v941
  %v1070 = vcvt.s32.f32 %v942
  %v1071 = vcvt.s32.f32 %v943
  %v1072 = vcvt.s32.f32 %v944
  %v1073 = vcvt.s32.f32 %v945
  %v1074 = vcvt.s32.f32 %v946
  %v1075 = vcvt.s32.f32 %v947
  %v1076 = vcvt.s32.f32 %v948
  %v1077 = vcvt.s32.f32 %v949
  %v1078 = vcvt.s32.f32 %v950
  %v1079 = vcvt.s32.f32 %v951
  %v1080 = vcvt.s32.f32 %v952
  %v1081 = vcvt.s32.f32 %v953
  %v1082 = vcvt.s32.f32 %v954
  %v1083 = vcvt.s32.f32 %v955
  %v1084 = vcvt.s32.f32 %v956
  %v1085 = vcvt.s32.f32 %v957
  %v1086 = vcvt.s32.f32 %v958
  %v1087 = vcvt.s32.f32 %v959
  %v1088 = vcvt.s32.f32 %v960
  %v1089 = vcvt.s32.f32 %v961
  %v1090 = vcvt.s32.f32 %v962
  %v1091 = vcvt.s32.f32 %v963
  %v1092 = vcvt.s32.f32 %v964
  %v1093 = vcvt.s32.f32 %v965
  %v1094 = vcvt.s32.f32 %v966
  %v1095 = vcvt.s32.f32 %v967
  %v1096 = vcvt.s32.f32 %v968
  %v1097 = vcvt.s32.f32 %v969
  %v1098 = vcvt.s32.f32 %v970
  %v1099 = vcvt.s32.f32 %v971
  %v1100 = vcvt.s32.f32 %v972
  %v1101 = vcvt.s32.f32 %v973
  %v1102 = vcvt.s32.f32 %v974
  %v1103 = vcvt.s32.f32 %v975
  %v1104 = vcvt.s32.f32 %v976
  %vm1105 = vcmask 523264
  %v1107 = vsel %vm1105, %v977, 0
  %v1110 = vsel %vm1105, %v978, 0
  %v1113 = vsel %vm1105, %v979, 0
  %v1116 = vsel %vm1105, %v980, 0
  %v1119 = vsel %vm1105, %v981, 0
  %v1122 = vsel %vm1105, %v982, 0
  %v1125 = vsel %vm1105, %v983, 0
  %v1128 = vsel %vm1105, %v984, 0
  %v1131 = vsel %vm1105, %v985, 0
  %v1134 = vsel %vm1105, %v986, 0
  %v1137 = vsel %vm1105, %v987, 0
  %v1140 = vsel %vm1105, %v988, 0
  %v1143 = vsel %vm1105, %v989, 0
  %v1146 = vsel %vm1105, %v990, 0
  %v1149 = vsel %vm1105, %v991, 0
  %v1152 = vsel %vm1105, %v992, 0
  %v1155 = vsel %vm1105, %v993, 0
  %v1158 = vsel %vm1105, %v994, 0
  %v1161 = vsel %vm1105, %v995, 0
  %v1164 = vsel %vm1105, %v996, 0
  %v1167 = vsel %vm1105, %v997, 0
  %v1170 = vsel %vm1105, %v998, 0
  %v1173 = vsel %vm1105, %v999, 0
  %v1176 = vsel %vm1105, %v1000, 0
  %v1179 = vsel %vm1105, %v1001, 0
  %v1182 = vsel %vm1105, %v1002, 0
  %v1185 = vsel %vm1105, %v1003, 0
  %v1188 = vsel %vm1105, %v1004, 0
  %v1191 = vsel %vm1105, %v1005, 0
  %v1194 = vsel %vm1105, %v1006, 0
  %v1197 = vsel %vm1105, %v1007, 0
  %v1200 = vsel %vm1105, %v1008, 0
  %v1203 = vsel %vm1105, %v1009, 0
  %v1206 = vsel %vm1105, %v1010, 0
  %v1209 = vsel %vm1105, %v1011, 0
  %v1212 = vsel %vm1105, %v1012, 0
  %v1215 = vsel %vm1105, %v1013, 0
  %v1218 = vsel %vm1105, %v1014, 0
  %v1221 = vsel %vm1105, %v1015, 0
  %v1224 = vsel %vm1105, %v1016, 0
  %v1227 = vsel %vm1105, %v1017, 0
  %v1230 = vsel %vm1105, %v1018, 0
  %v1233 = vsel %vm1105, %v1019, 0
  %v1236 = vsel %vm1105, %v1020, 0
  %v1239 = vsel %vm1105, %v1021, 0
  %v1242 = vsel %vm1105, %v1022, 0
  %v1245 = vsel %vm1105, %v1023, 0
  %v1248 = vsel %vm1105, %v1024, 0
  %v1251 = vsel %vm1105, %v1025, 0
  %v1254 = vsel %vm1105, %v1026, 0
  %v1257 = vsel %vm1105, %v1027, 0
  %v1260 = vsel %vm1105, %v1028, 0
  %v1263 = vsel %vm1105, %v1029, 0
  %v1266 = vsel %vm1105, %v1030, 0
  %v1269 = vsel %vm1105, %v1031, 0
  %v1272 = vsel %vm1105, %v1032, 0
  %v1275 = vsel %vm1105, %v1033, 0
  %v1278 = vsel %vm1105, %v1034, 0
  %v1281 = vsel %vm1105, %v1035, 0
  %v1284 = vsel %vm1105, %v1036, 0
  %v1287 = vsel %vm1105, %v1037, 0
  %v1290 = vsel %vm1105, %v1038, 0
  %v1293 = vsel %vm1105, %v1039, 0
  %v1296 = vsel %vm1105, %v1040, 0
  %v1299 = vsel %vm1105, %v1041, 0
  %v1302 = vsel %vm1105, %v1042, 0
  %v1305 = vsel %vm1105, %v1043, 0
  %v1308 = vsel %vm1105, %v1044, 0
  %v1311 = vsel %vm1105, %v1045, 0
  %v1314 = vsel %vm1105, %v1046, 0
  %v1317 = vsel %vm1105, %v1047, 0
  %v1320 = vsel %vm1105, %v1048, 0
  %v1323 = vsel %vm1105, %v1049, 0
  %v1326 = vsel %vm1105, %v1050, 0
  %v1329 = vsel %vm1105, %v1051, 0
  %v1332 = vsel %vm1105, %v1052, 0
  %v1335 = vsel %vm1105, %v1053, 0
  %v1338 = vsel %vm1105, %v1054, 0
  %v1341 = vsel %vm1105, %v1055, 0
  %v1344 = vsel %vm1105, %v1056, 0
  %v1347 = vsel %vm1105, %v1057, 0
  %v1350 = vsel %vm1105, %v1058, 0
  %v1353 = vsel %vm1105, %v1059, 0
  %v1356 = vsel %vm1105, %v1060, 0
  %v1359 = vsel %vm1105, %v1061, 0
  %v1362 = vsel %vm1105, %v1062, 0
  %v1365 = vsel %vm1105, %v1063, 0
  %v1368 = vsel %vm1105, %v1064, 0
  %v1371 = vsel %vm1105, %v1065, 0
  %v1374 = vsel %vm1105, %v1066, 0
  %v1377 = vsel %vm1105, %v1067, 0
  %v1380 = vsel %vm1105, %v1068, 0
  %v1383 = vsel %vm1105, %v1069, 0
  %v1386 = vsel %vm1105, %v1070, 0
  %v1389 = vsel %vm1105, %v1071, 0
  %v1392 = vsel %vm1105, %v1072, 0
  %v1395 = vsel %vm1105, %v1073, 0
  %v1398 = vsel %vm1105, %v1074, 0
  %v1401 = vsel %vm1105, %v1075, 0
  %v1404 = vsel %vm1105, %v1076, 0
  %v1407 = vsel %vm1105, %v1077, 0
  %v1410 = vsel %vm1105, %v1078, 0
  %v1413 = vsel %vm1105, %v1079, 0
  %v1416 = vsel %vm1105, %v1080, 0
  %v1419 = vsel %vm1105, %v1081, 0
  %v1422 = vsel %vm1105, %v1082, 0
  %v1425 = vsel %vm1105, %v1083, 0
  %v1428 = vsel %vm1105, %v1084, 0
  %v1431 = vsel %vm1105, %v1085, 0
  %v1434 = vsel %vm1105, %v1086, 0
  %v1437 = vsel %vm1105, %v1087, 0
  %v1440 = vsel %vm1105, %v1088, 0
  %v1443 = vsel %vm1105, %v1089, 0
  %v1446 = vsel %vm1105, %v1090, 0
  %v1449 = vsel %vm1105, %v1091, 0
  %v1452 = vsel %vm1105, %v1092, 0
  %v1455 = vsel %vm1105, %v1093, 0
  %v1458 = vsel %vm1105, %v1094, 0
  %v1461 = vsel %vm1105, %v1095, 0
  %v1464 = vsel %vm1105, %v1096, 0
  %v1467 = vsel %vm1105, %v1097, 0
  %v1470 = vsel %vm1105, %v1098, 0
  %v1473 = vsel %vm1105, %v1099, 0
  %v1476 = vsel %vm1105, %v1100, 0
  %v1479 = vsel %vm1105, %v1101, 0
  %v1482 = vsel %vm1105, %v1102, 0
  %v1485 = vsel %vm1105, %v1103, 0
  %v1488 = vsel %vm1105, %v1104, 0
  %1490 = vmatprep.subr.mxu0 0.0
  %1491 = vmatpush1.msra.mxu0 %v199
  %1492 = vmatprep.subr.mxu0 0.0
  %1493 = vmatpush1.msra.mxu0 %v200
  %1494 = vmatprep.subr.mxu0 0.0
  %1495 = vmatpush1.msra.mxu0 %v201
  %1496 = vmatprep.subr.mxu0 0.0
  %1497 = vmatpush1.msra.mxu0 %v202
  %1498 = vmatprep.subr.mxu0 0.0
  %1499 = vmatpush1.msra.mxu0 %v203
  %1500 = vmatprep.subr.mxu0 0.0
  %1501 = vmatpush1.msra.mxu0 %v204
  %1502 = vmatprep.subr.mxu0 0.0
  %1503 = vmatpush1.msra.mxu0 %v205
  %1504 = vmatprep.subr.mxu0 0.0
  %1505 = vmatpush1.msra.mxu0 %v206
  %1506 = vmatprep.subr.mxu0 0.0
  %1507 = vmatpush1.msra.mxu0 0.0
  %1508 = vmatprep.subr.mxu0 0.0
  %1509 = vmatpush1.msra.mxu0 0.0
  %1510 = vmatprep.subr.mxu0 0.0
  %1511 = vmatpush1.msra.mxu0 0.0
  %1512 = vmatprep.subr.mxu0 0.0
  %1513 = vmatpush1.msra.mxu0 0.0
  %1514 = vmatprep.subr.mxu0 0.0
  %1515 = vmatpush1.msra.mxu0 0.0
  %1516 = vmatprep.subr.mxu0 0.0
  %1517 = vmatpush1.msra.mxu0 0.0
  %1518 = vmatprep.subr.mxu0 0.0
  %1519 = vmatpush1.msra.mxu0 0.0
  %1520 = vmatprep.subr.mxu0 0.0
  %1521 = vmatpush1.msra.mxu0 0.0
  %1522 = vmatprep.subr.mxu0 0.0
  %1523 = vmatpush1.msra.mxu0 0.0
  %1524 = vmatprep.subr.mxu0 0.0
  %1525 = vmatpush1.msra.mxu0 0.0
  %1526 = vmatprep.subr.mxu0 0.0
  %1527 = vmatpush1.msra.mxu0 0.0
  %1528 = vmatprep.subr.mxu0 0.0
  %1529 = vmatpush1.msra.mxu0 0.0
  %1530 = vmatprep.subr.mxu0 0.0
  %1531 = vmatpush1.msra.mxu0 0.0
  %1532 = vmatprep.subr.mxu0 0.0
  %1533 = vmatpush1.msra.mxu0 0.0
  %1534 = vmatprep.subr.mxu0 0.0
  %1535 = vmatpush1.msra.mxu0 0.0
  %1536 = vmatprep.subr.mxu0 0.0
  %1537 = vmatpush1.msra.mxu0 0.0
  %1538 = vmatprep.subr.mxu0 0.0
  %1539 = vmatpush1.msra.mxu0 0.0
  %1540 = vmatprep.subr.mxu0 0.0
  %1541 = vmatpush1.msra.mxu0 0.0
  %1542 = vmatprep.subr.mxu0 0.0
  %1543 = vmatpush1.msra.mxu0 0.0
  %1544 = vmatprep.subr.mxu0 0.0
  %1545 = vmatpush1.msra.mxu0 0.0
  %1546 = vmatprep.subr.mxu0 0.0
  %1547 = vmatpush1.msra.mxu0 0.0
  %1548 = vmatprep.subr.mxu0 0.0
  %1549 = vmatpush1.msra.mxu0 0.0
  %1550 = vmatprep.subr.mxu0 0.0
  %1551 = vmatpush1.msra.mxu0 0.0
  %1552 = vmatprep.subr.mxu0 0.0
  %1553 = vmatpush1.msra.mxu0 0.0
  %1554 = vmatprep.mubr.f32.mxu0 0.0
  %1555 = vmatmul.mubr.f32.gmra.mrb[0].mxu0 %v1107
  %v1556 = vpop.f32.mrb[0].mxu0
  %v1557 = vadd.f32 0.0, %v1556
  %v1558 = vpop.f32.mrb[0].mxu0
  %1559 = vmatprep.mubr.f32.mxu0 0.0
  %1560 = vmatmul.mubr.f32.gmra.mrb[0].mxu0 %v1110
  %v1561 = vpop.f32.mrb[0].mxu0
  %v1562 = vadd.f32 0.0, %v1561
  %v1563 = vpop.f32.mrb[0].mxu0
  %1564 = vmatprep.mubr.f32.mxu0 0.0
  %1565 = vmatmul.mubr.f32.gmra.mrb[0].mxu0 %v1113
  %v1566 = vpop.f32.mrb[0].mxu0
  %v1567 = vadd.f32 0.0, %v1566
  %v1568 = vpop.f32.mrb[0].mxu0
  %1569 = vmatprep.mubr.f32.mxu0 0.0
  %1570 = vmatmul.mubr.f32.gmra.mrb[0].mxu0 %v1116
  %v1571 = vpop.f32.mrb[0].mxu0
  %v1572 = vadd.f32 0.0, %v1571
  %v1573 = vpop.f32.mrb[0].mxu0
  %1574 = vmatprep.mubr.f32.mxu0 0.0
  %1575 = vmatmul.mubr.f32.gmra.mrb[0].mxu0 %v1119
  %v1576 = vpop.f32.mrb[0].mxu0
  %v1577 = vadd.f32 0.0, %v1576
  %v1578 = vpop.f32.mrb[0].mxu0
  %1579 = vmatprep.mubr.f32.mxu0 0.0
  %1580 = vmatmul.mubr.f32.gmra.mrb[0].mxu0 %v1122
  %v1581 = vpop.f32.mrb[0].mxu0
  %v1582 = vadd.f32 0.0, %v1581
  %v1583 = vpop.f32.mrb[0].mxu0
  %1584 = vmatprep.mubr.f32.mxu0 0.0
  %1585 = vmatmul.mubr.f32.gmra.mrb[0].mxu0 %v1125
  %v1586 = vpop.f32.mrb[0].mxu0
  %v1587 = vadd.f32 0.0, %v1586
  %v1588 = vpop.f32.mrb[0].mxu0
  %1589 = vmatprep.mubr.f32.mxu0 0.0
  %1590 = vmatmul.mubr.f32.gmra.mrb[0].mxu0 %v1128
  %v1591 = vpop.f32.mrb[0].mxu0
  %v1592 = vadd.f32 0.0, %v1591
  %v1593 = vpop.f32.mrb[0].mxu0
  %1594 = vmatprep.mubr.f32.mxu0 0.0
  %1595 = vmatmul.mubr.f32.gmra.mrb[0].mxu0 %v1131
  %v1596 = vpop.f32.mrb[0].mxu0
  %v1597 = vadd.f32 0.0, %v1596
  %v1598 = vpop.f32.mrb[0].mxu0
  %1599 = vmatprep.mubr.f32.mxu0 0.0
  %1600 = vmatmul.mubr.f32.gmra.mrb[0].mxu0 %v1134
  %v1601 = vpop.f32.mrb[0].mxu0
  %v1602 = vadd.f32 0.0, %v1601
  %v1603 = vpop.f32.mrb[0].mxu0
  %1604 = vmatprep.mubr.f32.mxu0 0.0
  %1605 = vmatmul.mubr.f32.gmra.mrb[0].mxu0 %v1137
  %v1606 = vpop.f32.mrb[0].mxu0
  %v1607 = vadd.f32 0.0, %v1606
  %v1608 = vpop.f32.mrb[0].mxu0
  %1609 = vmatprep.mubr.f32.mxu0 0.0
  %1610 = vmatmul.mubr.f32.gmra.mrb[0].mxu0 %v1140
  %v1611 = vpop.f32.mrb[0].mxu0
  %v1612 = vadd.f32 0.0, %v1611
  %v1613 = vpop.f32.mrb[0].mxu0
  %1614 = vmatprep.mubr.f32.mxu0 0.0
  %1615 = vmatmul.mubr.f32.gmra.mrb[0].mxu0 %v1143
  %v1616 = vpop.f32.mrb[0].mxu0
  %v1617 = vadd.f32 0.0, %v1616
  %v1618 = vpop.f32.mrb[0].mxu0
  %1619 = vmatprep.mubr.f32.mxu0 0.0
  %1620 = vmatmul.mubr.f32.gmra.mrb[0].mxu0 %v1146
  %v1621 = vpop.f32.mrb[0].mxu0
  %v1622 = vadd.f32 0.0, %v1621
  %v1623 = vpop.f32.mrb[0].mxu0
  %1624 = vmatprep.mubr.f32.mxu0 0.0
  %1625 = vmatmul.mubr.f32.gmra.mrb[0].mxu0 %v1149
  %v1626 = vpop.f32.mrb[0].mxu0
  %v1627 = vadd.f32 0.0, %v1626
  %v1628 = vpop.f32.mrb[0].mxu0
  %1629 = vmatprep.mubr.f32.mxu0 0.0
  %1630 = vmatmul.mubr.f32.gmra.mrb[0].mxu0 %v1152
  %v1631 = vpop.f32.mrb[0].mxu0
  %v1632 = vadd.f32 0.0, %v1631
  %v1633 = vpop.f32.mrb[0].mxu0
  %1634 = vmatprep.mubr.f32.mxu0 0.0
  %1635 = vmatmul.mubr.f32.gmra.mrb[0].mxu0 %v1155
  %v1636 = vpop.f32.mrb[0].mxu0
  %v1637 = vadd.f32 0.0, %v1636
  %v1638 = vpop.f32.mrb[0].mxu0
  %1639 = vmatprep.mubr.f32.mxu0 0.0
  %1640 = vmatmul.mubr.f32.gmra.mrb[0].mxu0 %v1158
  %v1641 = vpop.f32.mrb[0].mxu0
  %v1642 = vadd.f32 0.0, %v1641
  %v1643 = vpop.f32.mrb[0].mxu0
  %1644 = vmatprep.mubr.f32.mxu0 0.0
  %1645 = vmatmul.mubr.f32.gmra.mrb[0].mxu0 %v1161
  %v1646 = vpop.f32.mrb[0].mxu0
  %v1647 = vadd.f32 0.0, %v1646
  %v1648 = vpop.f32.mrb[0].mxu0
  %1649 = vmatprep.mubr.f32.mxu0 0.0
  %1650 = vmatmul.mubr.f32.gmra.mrb[0].mxu0 %v1164
  %v1651 = vpop.f32.mrb[0].mxu0
  %v1652 = vadd.f32 0.0, %v1651
  %v1653 = vpop.f32.mrb[0].mxu0
  %1654 = vmatprep.mubr.f32.mxu0 0.0
  %1655 = vmatmul.mubr.f32.gmra.mrb[0].mxu0 %v1167
  %v1656 = vpop.f32.mrb[0].mxu0
  %v1657 = vadd.f32 0.0, %v1656
  %v1658 = vpop.f32.mrb[0].mxu0
  %1659 = vmatprep.mubr.f32.mxu0 0.0
  %1660 = vmatmul.mubr.f32.gmra.mrb[0].mxu0 %v1170
  %v1661 = vpop.f32.mrb[0].mxu0
  %v1662 = vadd.f32 0.0, %v1661
  %v1663 = vpop.f32.mrb[0].mxu0
  %1664 = vmatprep.mubr.f32.mxu0 0.0
  %1665 = vmatmul.mubr.f32.gmra.mrb[0].mxu0 %v1173
  %v1666 = vpop.f32.mrb[0].mxu0
  %v1667 = vadd.f32 0.0, %v1666
  %v1668 = vpop.f32.mrb[0].mxu0
  %1669 = vmatprep.mubr.f32.mxu0 0.0
  %1670 = vmatmul.mubr.f32.gmra.mrb[0].mxu0 %v1176
  %v1671 = vpop.f32.mrb[0].mxu0
  %v1672 = vadd.f32 0.0, %v1671
  %v1673 = vpop.f32.mrb[0].mxu0
  %1674 = vmatprep.mubr.f32.mxu0 0.0
  %1675 = vmatmul.mubr.f32.gmra.mrb[0].mxu0 %v1179
  %v1676 = vpop.f32.mrb[0].mxu0
  %v1677 = vadd.f32 0.0, %v1676
  %v1678 = vpop.f32.mrb[0].mxu0
  %1679 = vmatprep.mubr.f32.mxu0 0.0
  %1680 = vmatmul.mubr.f32.gmra.mrb[0].mxu0 %v1182
  %v1681 = vpop.f32.mrb[0].mxu0
  %v1682 = vadd.f32 0.0, %v1681
  %v1683 = vpop.f32.mrb[0].mxu0
  %1684 = vmatprep.mubr.f32.mxu0 0.0
  %1685 = vmatmul.mubr.f32.gmra.mrb[0].mxu0 %v1185
  %v1686 = vpop.f32.mrb[0].mxu0
  %v1687 = vadd.f32 0.0, %v1686
  %v1688 = vpop.f32.mrb[0].mxu0
  %1689 = vmatprep.mubr.f32.mxu0 0.0
  %1690 = vmatmul.mubr.f32.gmra.mrb[0].mxu0 %v1188
  %v1691 = vpop.f32.mrb[0].mxu0
  %v1692 = vadd.f32 0.0, %v1691
  %v1693 = vpop.f32.mrb[0].mxu0
  %1694 = vmatprep.mubr.f32.mxu0 0.0
  %1695 = vmatmul.mubr.f32.gmra.mrb[0].mxu0 %v1191
  %v1696 = vpop.f32.mrb[0].mxu0
  %v1697 = vadd.f32 0.0, %v1696
  %v1698 = vpop.f32.mrb[0].mxu0
  %1699 = vmatprep.mubr.f32.mxu0 0.0
  %1700 = vmatmul.mubr.f32.gmra.mrb[0].mxu0 %v1194
  %v1701 = vpop.f32.mrb[0].mxu0
  %v1702 = vadd.f32 0.0, %v1701
  %v1703 = vpop.f32.mrb[0].mxu0
  %1704 = vmatprep.mubr.f32.mxu0 0.0
  %1705 = vmatmul.mubr.f32.gmra.mrb[0].mxu0 %v1197
  %v1706 = vpop.f32.mrb[0].mxu0
  %v1707 = vadd.f32 0.0, %v1706
  %v1708 = vpop.f32.mrb[0].mxu0
  %1709 = vmatprep.mubr.f32.mxu0 0.0
  %1710 = vmatmul.mubr.f32.gmra.mrb[0].mxu0 %v1200
  %v1711 = vpop.f32.mrb[0].mxu0
  %v1712 = vadd.f32 0.0, %v1711
  %v1713 = vpop.f32.mrb[0].mxu0
  %1714 = vmatprep.mubr.f32.mxu0 0.0
  %1715 = vmatmul.mubr.f32.gmra.mrb[0].mxu0 %v1203
  %v1716 = vpop.f32.mrb[0].mxu0
  %v1717 = vadd.f32 0.0, %v1716
  %v1718 = vpop.f32.mrb[0].mxu0
  %1719 = vmatprep.mubr.f32.mxu0 0.0
  %1720 = vmatmul.mubr.f32.gmra.mrb[0].mxu0 %v1206
  %v1721 = vpop.f32.mrb[0].mxu0
  %v1722 = vadd.f32 0.0, %v1721
  %v1723 = vpop.f32.mrb[0].mxu0
  %1724 = vmatprep.mubr.f32.mxu0 0.0
  %1725 = vmatmul.mubr.f32.gmra.mrb[0].mxu0 %v1209
  %v1726 = vpop.f32.mrb[0].mxu0
  %v1727 = vadd.f32 0.0, %v1726
  %v1728 = vpop.f32.mrb[0].mxu0
  %1729 = vmatprep.mubr.f32.mxu0 0.0
  %1730 = vmatmul.mubr.f32.gmra.mrb[0].mxu0 %v1212
  %v1731 = vpop.f32.mrb[0].mxu0
  %v1732 = vadd.f32 0.0, %v1731
  %v1733 = vpop.f32.mrb[0].mxu0
  %1734 = vmatprep.mubr.f32.mxu0 0.0
  %1735 = vmatmul.mubr.f32.gmra.mrb[0].mxu0 %v1215
  %v1736 = vpop.f32.mrb[0].mxu0
  %v1737 = vadd.f32 0.0, %v1736
  %v1738 = vpop.f32.mrb[0].mxu0
  %1739 = vmatprep.mubr.f32.mxu0 0.0
  %1740 = vmatmul.mubr.f32.gmra.mrb[0].mxu0 %v1218
  %v1741 = vpop.f32.mrb[0].mxu0
  %v1742 = vadd.f32 0.0, %v1741
  %v1743 = vpop.f32.mrb[0].mxu0
  %1744 = vmatprep.mubr.f32.mxu0 0.0
  %1745 = vmatmul.mubr.f32.gmra.mrb[0].mxu0 %v1221
  %v1746 = vpop.f32.mrb[0].mxu0
  %v1747 = vadd.f32 0.0, %v1746
  %v1748 = vpop.f32.mrb[0].mxu0
  %1749 = vmatprep.mubr.f32.mxu0 0.0
  %1750 = vmatmul.mubr.f32.gmra.mrb[0].mxu0 %v1224
  %v1751 = vpop.f32.mrb[0].mxu0
  %v1752 = vadd.f32 0.0, %v1751
  %v1753 = vpop.f32.mrb[0].mxu0
  %1754 = vmatprep.mubr.f32.mxu0 0.0
  %1755 = vmatmul.mubr.f32.gmra.mrb[0].mxu0 %v1227
  %v1756 = vpop.f32.mrb[0].mxu0
  %v1757 = vadd.f32 0.0, %v1756
  %v1758 = vpop.f32.mrb[0].mxu0
  %1759 = vmatprep.mubr.f32.mxu0 0.0
  %1760 = vmatmul.mubr.f32.gmra.mrb[0].mxu0 %v1230
  %v1761 = vpop.f32.mrb[0].mxu0
  %v1762 = vadd.f32 0.0, %v1761
  %v1763 = vpop.f32.mrb[0].mxu0
  %1764 = vmatprep.mubr.f32.mxu0 0.0
  %1765 = vmatmul.mubr.f32.gmra.mrb[0].mxu0 %v1233
  %v1766 = vpop.f32.mrb[0].mxu0
  %v1767 = vadd.f32 0.0, %v1766
  %v1768 = vpop.f32.mrb[0].mxu0
  %1769 = vmatprep.mubr.f32.mxu0 0.0
  %1770 = vmatmul.mubr.f32.gmra.mrb[0].mxu0 %v1236
  %v1771 = vpop.f32.mrb[0].mxu0
  %v1772 = vadd.f32 0.0, %v1771
  %v1773 = vpop.f32.mrb[0].mxu0
  %1774 = vmatprep.mubr.f32.mxu0 0.0
  %1775 = vmatmul.mubr.f32.gmra.mrb[0].mxu0 %v1239
  %v1776 = vpop.f32.mrb[0].mxu0
  %v1777 = vadd.f32 0.0, %v1776
  %v1778 = vpop.f32.mrb[0].mxu0
  %1779 = vmatprep.mubr.f32.mxu0 0.0
  %1780 = vmatmul.mubr.f32.gmra.mrb[0].mxu0 %v1242
  %v1781 = vpop.f32.mrb[0].mxu0
  %v1782 = vadd.f32 0.0, %v1781
  %v1783 = vpop.f32.mrb[0].mxu0
  %1784 = vmatprep.mubr.f32.mxu0 0.0
  %1785 = vmatmul.mubr.f32.gmra.mrb[0].mxu0 %v1245
  %v1786 = vpop.f32.mrb[0].mxu0
  %v1787 = vadd.f32 0.0, %v1786
  %v1788 = vpop.f32.mrb[0].mxu0
  %1789 = vmatprep.mubr.f32.mxu0 0.0
  %1790 = vmatmul.mubr.f32.gmra.mrb[0].mxu0 %v1248
  %v1791 = vpop.f32.mrb[0].mxu0
  %v1792 = vadd.f32 0.0, %v1791
  %v1793 = vpop.f32.mrb[0].mxu0
  %1794 = vmatprep.mubr.f32.mxu0 0.0
  %1795 = vmatmul.mubr.f32.gmra.mrb[0].mxu0 %v1251
  %v1796 = vpop.f32.mrb[0].mxu0
  %v1797 = vadd.f32 0.0, %v1796
  %v1798 = vpop.f32.mrb[0].mxu0
  %1799 = vmatprep.mubr.f32.mxu0 0.0
  %1800 = vmatmul.mubr.f32.gmra.mrb[0].mxu0 %v1254
  %v1801 = vpop.f32.mrb[0].mxu0
  %v1802 = vadd.f32 0.0, %v1801
  %v1803 = vpop.f32.mrb[0].mxu0
  %1804 = vmatprep.mubr.f32.mxu0 0.0
  %1805 = vmatmul.mubr.f32.gmra.mrb[0].mxu0 %v1257
  %v1806 = vpop.f32.mrb[0].mxu0
  %v1807 = vadd.f32 0.0, %v1806
  %v1808 = vpop.f32.mrb[0].mxu0
  %1809 = vmatprep.mubr.f32.mxu0 0.0
  %1810 = vmatmul.mubr.f32.gmra.mrb[0].mxu0 %v1260
  %v1811 = vpop.f32.mrb[0].mxu0
  %v1812 = vadd.f32 0.0, %v1811
  %v1813 = vpop.f32.mrb[0].mxu0
  %1814 = vmatprep.mubr.f32.mxu0 0.0
  %1815 = vmatmul.mubr.f32.gmra.mrb[0].mxu0 %v1263
  %v1816 = vpop.f32.mrb[0].mxu0
  %v1817 = vadd.f32 0.0, %v1816
  %v1818 = vpop.f32.mrb[0].mxu0
  %1819 = vmatprep.mubr.f32.mxu0 0.0
  %1820 = vmatmul.mubr.f32.gmra.mrb[0].mxu0 %v1266
  %v1821 = vpop.f32.mrb[0].mxu0
  %v1822 = vadd.f32 0.0, %v1821
  %v1823 = vpop.f32.mrb[0].mxu0
  %1824 = vmatprep.mubr.f32.mxu0 0.0
  %1825 = vmatmul.mubr.f32.gmra.mrb[0].mxu0 %v1269
  %v1826 = vpop.f32.mrb[0].mxu0
  %v1827 = vadd.f32 0.0, %v1826
  %v1828 = vpop.f32.mrb[0].mxu0
  %1829 = vmatprep.mubr.f32.mxu0 0.0
  %1830 = vmatmul.mubr.f32.gmra.mrb[0].mxu0 %v1272
  %v1831 = vpop.f32.mrb[0].mxu0
  %v1832 = vadd.f32 0.0, %v1831
  %v1833 = vpop.f32.mrb[0].mxu0
  %1834 = vmatprep.mubr.f32.mxu0 0.0
  %1835 = vmatmul.mubr.f32.gmra.mrb[0].mxu0 %v1275
  %v1836 = vpop.f32.mrb[0].mxu0
  %v1837 = vadd.f32 0.0, %v1836
  %v1838 = vpop.f32.mrb[0].mxu0
  %1839 = vmatprep.mubr.f32.mxu0 0.0
  %1840 = vmatmul.mubr.f32.gmra.mrb[0].mxu0 %v1278
  %v1841 = vpop.f32.mrb[0].mxu0
  %v1842 = vadd.f32 0.0, %v1841
  %v1843 = vpop.f32.mrb[0].mxu0
  %1844 = vmatprep.mubr.f32.mxu0 0.0
  %1845 = vmatmul.mubr.f32.gmra.mrb[0].mxu0 %v1281
  %v1846 = vpop.f32.mrb[0].mxu0
  %v1847 = vadd.f32 0.0, %v1846
  %v1848 = vpop.f32.mrb[0].mxu0
  %1849 = vmatprep.mubr.f32.mxu0 0.0
  %1850 = vmatmul.mubr.f32.gmra.mrb[0].mxu0 %v1284
  %v1851 = vpop.f32.mrb[0].mxu0
  %v1852 = vadd.f32 0.0, %v1851
  %v1853 = vpop.f32.mrb[0].mxu0
  %1854 = vmatprep.mubr.f32.mxu0 0.0
  %1855 = vmatmul.mubr.f32.gmra.mrb[0].mxu0 %v1287
  %v1856 = vpop.f32.mrb[0].mxu0
  %v1857 = vadd.f32 0.0, %v1856
  %v1858 = vpop.f32.mrb[0].mxu0
  %1859 = vmatprep.mubr.f32.mxu0 0.0
  %1860 = vmatmul.mubr.f32.gmra.mrb[0].mxu0 %v1290
  %v1861 = vpop.f32.mrb[0].mxu0
  %v1862 = vadd.f32 0.0, %v1861
  %v1863 = vpop.f32.mrb[0].mxu0
  %1864 = vmatprep.mubr.f32.mxu0 0.0
  %1865 = vmatmul.mubr.f32.gmra.mrb[0].mxu0 %v1293
  %v1866 = vpop.f32.mrb[0].mxu0
  %v1867 = vadd.f32 0.0, %v1866
  %v1868 = vpop.f32.mrb[0].mxu0
  %1869 = vmatprep.mubr.f32.mxu0 0.0
  %1870 = vmatmul.mubr.f32.gmra.mrb[0].mxu0 %v1296
  %v1871 = vpop.f32.mrb[0].mxu0
  %v1872 = vadd.f32 0.0, %v1871
  %v1873 = vpop.f32.mrb[0].mxu0
  %1874 = vmatprep.mubr.f32.mxu0 0.0
  %1875 = vmatmul.mubr.f32.gmra.mrb[0].mxu0 %v1299
  %v1876 = vpop.f32.mrb[0].mxu0
  %v1877 = vadd.f32 0.0, %v1876
  %v1878 = vpop.f32.mrb[0].mxu0
  %1879 = vmatprep.mubr.f32.mxu0 0.0
  %1880 = vmatmul.mubr.f32.gmra.mrb[0].mxu0 %v1302
  %v1881 = vpop.f32.mrb[0].mxu0
  %v1882 = vadd.f32 0.0, %v1881
  %v1883 = vpop.f32.mrb[0].mxu0
  %1884 = vmatprep.mubr.f32.mxu0 0.0
  %1885 = vmatmul.mubr.f32.gmra.mrb[0].mxu0 %v1305
  %v1886 = vpop.f32.mrb[0].mxu0
  %v1887 = vadd.f32 0.0, %v1886
  %v1888 = vpop.f32.mrb[0].mxu0
  %1889 = vmatprep.mubr.f32.mxu0 0.0
  %1890 = vmatmul.mubr.f32.gmra.mrb[0].mxu0 %v1308
  %v1891 = vpop.f32.mrb[0].mxu0
  %v1892 = vadd.f32 0.0, %v1891
  %v1893 = vpop.f32.mrb[0].mxu0
  %1894 = vmatprep.mubr.f32.mxu0 0.0
  %1895 = vmatmul.mubr.f32.gmra.mrb[0].mxu0 %v1311
  %v1896 = vpop.f32.mrb[0].mxu0
  %v1897 = vadd.f32 0.0, %v1896
  %v1898 = vpop.f32.mrb[0].mxu0
  %1899 = vmatprep.mubr.f32.mxu0 0.0
  %1900 = vmatmul.mubr.f32.gmra.mrb[0].mxu0 %v1314
  %v1901 = vpop.f32.mrb[0].mxu0
  %v1902 = vadd.f32 0.0, %v1901
  %v1903 = vpop.f32.mrb[0].mxu0
  %1904 = vmatprep.mubr.f32.mxu0 0.0
  %1905 = vmatmul.mubr.f32.gmra.mrb[0].mxu0 %v1317
  %v1906 = vpop.f32.mrb[0].mxu0
  %v1907 = vadd.f32 0.0, %v1906
  %v1908 = vpop.f32.mrb[0].mxu0
  %1909 = vmatprep.mubr.f32.mxu0 0.0
  %1910 = vmatmul.mubr.f32.gmra.mrb[0].mxu0 %v1320
  %v1911 = vpop.f32.mrb[0].mxu0
  %v1912 = vadd.f32 0.0, %v1911
  %v1913 = vpop.f32.mrb[0].mxu0
  %1914 = vmatprep.mubr.f32.mxu0 0.0
  %1915 = vmatmul.mubr.f32.gmra.mrb[0].mxu0 %v1323
  %v1916 = vpop.f32.mrb[0].mxu0
  %v1917 = vadd.f32 0.0, %v1916
  %v1918 = vpop.f32.mrb[0].mxu0
  %1919 = vmatprep.mubr.f32.mxu0 0.0
  %1920 = vmatmul.mubr.f32.gmra.mrb[0].mxu0 %v1326
  %v1921 = vpop.f32.mrb[0].mxu0
  %v1922 = vadd.f32 0.0, %v1921
  %v1923 = vpop.f32.mrb[0].mxu0
  %1924 = vmatprep.mubr.f32.mxu0 0.0
  %1925 = vmatmul.mubr.f32.gmra.mrb[0].mxu0 %v1329
  %v1926 = vpop.f32.mrb[0].mxu0
  %v1927 = vadd.f32 0.0, %v1926
  %v1928 = vpop.f32.mrb[0].mxu0
  %1929 = vmatprep.mubr.f32.mxu0 0.0
  %1930 = vmatmul.mubr.f32.gmra.mrb[0].mxu0 %v1332
  %v1931 = vpop.f32.mrb[0].mxu0
  %v1932 = vadd.f32 0.0, %v1931
  %v1933 = vpop.f32.mrb[0].mxu0
  %1934 = vmatprep.mubr.f32.mxu0 0.0
  %1935 = vmatmul.mubr.f32.gmra.mrb[0].mxu0 %v1335
  %v1936 = vpop.f32.mrb[0].mxu0
  %v1937 = vadd.f32 0.0, %v1936
  %v1938 = vpop.f32.mrb[0].mxu0
  %1939 = vmatprep.mubr.f32.mxu0 0.0
  %1940 = vmatmul.mubr.f32.gmra.mrb[0].mxu0 %v1338
  %v1941 = vpop.f32.mrb[0].mxu0
  %v1942 = vadd.f32 0.0, %v1941
  %v1943 = vpop.f32.mrb[0].mxu0
  %1944 = vmatprep.mubr.f32.mxu0 0.0
  %1945 = vmatmul.mubr.f32.gmra.mrb[0].mxu0 %v1341
  %v1946 = vpop.f32.mrb[0].mxu0
  %v1947 = vadd.f32 0.0, %v1946
  %v1948 = vpop.f32.mrb[0].mxu0
  %1949 = vmatprep.mubr.f32.mxu0 0.0
  %1950 = vmatmul.mubr.f32.gmra.mrb[0].mxu0 %v1344
  %v1951 = vpop.f32.mrb[0].mxu0
  %v1952 = vadd.f32 0.0, %v1951
  %v1953 = vpop.f32.mrb[0].mxu0
  %1954 = vmatprep.mubr.f32.mxu0 0.0
  %1955 = vmatmul.mubr.f32.gmra.mrb[0].mxu0 %v1347
  %v1956 = vpop.f32.mrb[0].mxu0
  %v1957 = vadd.f32 0.0, %v1956
  %v1958 = vpop.f32.mrb[0].mxu0
  %1959 = vmatprep.mubr.f32.mxu0 0.0
  %1960 = vmatmul.mubr.f32.gmra.mrb[0].mxu0 %v1350
  %v1961 = vpop.f32.mrb[0].mxu0
  %v1962 = vadd.f32 0.0, %v1961
  %v1963 = vpop.f32.mrb[0].mxu0
  %1964 = vmatprep.mubr.f32.mxu0 0.0
  %1965 = vmatmul.mubr.f32.gmra.mrb[0].mxu0 %v1353
  %v1966 = vpop.f32.mrb[0].mxu0
  %v1967 = vadd.f32 0.0, %v1966
  %v1968 = vpop.f32.mrb[0].mxu0
  %1969 = vmatprep.mubr.f32.mxu0 0.0
  %1970 = vmatmul.mubr.f32.gmra.mrb[0].mxu0 %v1356
  %v1971 = vpop.f32.mrb[0].mxu0
  %v1972 = vadd.f32 0.0, %v1971
  %v1973 = vpop.f32.mrb[0].mxu0
  %1974 = vmatprep.mubr.f32.mxu0 0.0
  %1975 = vmatmul.mubr.f32.gmra.mrb[0].mxu0 %v1359
  %v1976 = vpop.f32.mrb[0].mxu0
  %v1977 = vadd.f32 0.0, %v1976
  %v1978 = vpop.f32.mrb[0].mxu0
  %1979 = vmatprep.mubr.f32.mxu0 0.0
  %1980 = vmatmul.mubr.f32.gmra.mrb[0].mxu0 %v1362
  %v1981 = vpop.f32.mrb[0].mxu0
  %v1982 = vadd.f32 0.0, %v1981
  %v1983 = vpop.f32.mrb[0].mxu0
  %1984 = vmatprep.mubr.f32.mxu0 0.0
  %1985 = vmatmul.mubr.f32.gmra.mrb[0].mxu0 %v1365
  %v1986 = vpop.f32.mrb[0].mxu0
  %v1987 = vadd.f32 0.0, %v1986
  %v1988 = vpop.f32.mrb[0].mxu0
  %1989 = vmatprep.mubr.f32.mxu0 0.0
  %1990 = vmatmul.mubr.f32.gmra.mrb[0].mxu0 %v1368
  %v1991 = vpop.f32.mrb[0].mxu0
  %v1992 = vadd.f32 0.0, %v1991
  %v1993 = vpop.f32.mrb[0].mxu0
  %1994 = vmatprep.mubr.f32.mxu0 0.0
  %1995 = vmatmul.mubr.f32.gmra.mrb[0].mxu0 %v1371
  %v1996 = vpop.f32.mrb[0].mxu0
  %v1997 = vadd.f32 0.0, %v1996
  %v1998 = vpop.f32.mrb[0].mxu0
  %1999 = vmatprep.mubr.f32.mxu0 0.0
  %2000 = vmatmul.mubr.f32.gmra.mrb[0].mxu0 %v1374
  %v2001 = vpop.f32.mrb[0].mxu0
  %v2002 = vadd.f32 0.0, %v2001
  %v2003 = vpop.f32.mrb[0].mxu0
  %2004 = vmatprep.mubr.f32.mxu0 0.0
  %2005 = vmatmul.mubr.f32.gmra.mrb[0].mxu0 %v1377
  %v2006 = vpop.f32.mrb[0].mxu0
  %v2007 = vadd.f32 0.0, %v2006
  %v2008 = vpop.f32.mrb[0].mxu0
  %2009 = vmatprep.mubr.f32.mxu0 0.0
  %2010 = vmatmul.mubr.f32.gmra.mrb[0].mxu0 %v1380
  %v2011 = vpop.f32.mrb[0].mxu0
  %v2012 = vadd.f32 0.0, %v2011
  %v2013 = vpop.f32.mrb[0].mxu0
  %2014 = vmatprep.mubr.f32.mxu0 0.0
  %2015 = vmatmul.mubr.f32.gmra.mrb[0].mxu0 %v1383
  %v2016 = vpop.f32.mrb[0].mxu0
  %v2017 = vadd.f32 0.0, %v2016
  %v2018 = vpop.f32.mrb[0].mxu0
  %2019 = vmatprep.mubr.f32.mxu0 0.0
  %2020 = vmatmul.mubr.f32.gmra.mrb[0].mxu0 %v1386
  %v2021 = vpop.f32.mrb[0].mxu0
  %v2022 = vadd.f32 0.0, %v2021
  %v2023 = vpop.f32.mrb[0].mxu0
  %2024 = vmatprep.mubr.f32.mxu0 0.0
  %2025 = vmatmul.mubr.f32.gmra.mrb[0].mxu0 %v1389
  %v2026 = vpop.f32.mrb[0].mxu0
  %v2027 = vadd.f32 0.0, %v2026
  %v2028 = vpop.f32.mrb[0].mxu0
  %2029 = vmatprep.mubr.f32.mxu0 0.0
  %2030 = vmatmul.mubr.f32.gmra.mrb[0].mxu0 %v1392
  %v2031 = vpop.f32.mrb[0].mxu0
  %v2032 = vadd.f32 0.0, %v2031
  %v2033 = vpop.f32.mrb[0].mxu0
  %2034 = vmatprep.mubr.f32.mxu0 0.0
  %2035 = vmatmul.mubr.f32.gmra.mrb[0].mxu0 %v1395
  %v2036 = vpop.f32.mrb[0].mxu0
  %v2037 = vadd.f32 0.0, %v2036
  %v2038 = vpop.f32.mrb[0].mxu0
  %2039 = vmatprep.mubr.f32.mxu0 0.0
  %2040 = vmatmul.mubr.f32.gmra.mrb[0].mxu0 %v1398
  %v2041 = vpop.f32.mrb[0].mxu0
  %v2042 = vadd.f32 0.0, %v2041
  %v2043 = vpop.f32.mrb[0].mxu0
  %2044 = vmatprep.mubr.f32.mxu0 0.0
  %2045 = vmatmul.mubr.f32.gmra.mrb[0].mxu0 %v1401
  %v2046 = vpop.f32.mrb[0].mxu0
  %v2047 = vadd.f32 0.0, %v2046
  %v2048 = vpop.f32.mrb[0].mxu0
  %2049 = vmatprep.mubr.f32.mxu0 0.0
  %2050 = vmatmul.mubr.f32.gmra.mrb[0].mxu0 %v1404
  %v2051 = vpop.f32.mrb[0].mxu0
  %v2052 = vadd.f32 0.0, %v2051
  %v2053 = vpop.f32.mrb[0].mxu0
  %2054 = vmatprep.mubr.f32.mxu0 0.0
  %2055 = vmatmul.mubr.f32.gmra.mrb[0].mxu0 %v1407
  %v2056 = vpop.f32.mrb[0].mxu0
  %v2057 = vadd.f32 0.0, %v2056
  %v2058 = vpop.f32.mrb[0].mxu0
  %2059 = vmatprep.mubr.f32.mxu0 0.0
  %2060 = vmatmul.mubr.f32.gmra.mrb[0].mxu0 %v1410
  %v2061 = vpop.f32.mrb[0].mxu0
  %v2062 = vadd.f32 0.0, %v2061
  %v2063 = vpop.f32.mrb[0].mxu0
  %2064 = vmatprep.mubr.f32.mxu0 0.0
  %2065 = vmatmul.mubr.f32.gmra.mrb[0].mxu0 %v1413
  %v2066 = vpop.f32.mrb[0].mxu0
  %v2067 = vadd.f32 0.0, %v2066
  %v2068 = vpop.f32.mrb[0].mxu0
  %2069 = vmatprep.mubr.f32.mxu0 0.0
  %2070 = vmatmul.mubr.f32.gmra.mrb[0].mxu0 %v1416
  %v2071 = vpop.f32.mrb[0].mxu0
  %v2072 = vadd.f32 0.0, %v2071
  %v2073 = vpop.f32.mrb[0].mxu0
  %2074 = vmatprep.mubr.f32.mxu0 0.0
  %2075 = vmatmul.mubr.f32.gmra.mrb[0].mxu0 %v1419
  %v2076 = vpop.f32.mrb[0].mxu0
  %v2077 = vadd.f32 0.0, %v2076
  %v2078 = vpop.f32.mrb[0].mxu0
  %2079 = vmatprep.mubr.f32.mxu0 0.0
  %2080 = vmatmul.mubr.f32.gmra.mrb[0].mxu0 %v1422
  %v2081 = vpop.f32.mrb[0].mxu0
  %v2082 = vadd.f32 0.0, %v2081
  %v2083 = vpop.f32.mrb[0].mxu0
  %2084 = vmatprep.mubr.f32.mxu0 0.0
  %2085 = vmatmul.mubr.f32.gmra.mrb[0].mxu0 %v1425
  %v2086 = vpop.f32.mrb[0].mxu0
  %v2087 = vadd.f32 0.0, %v2086
  %v2088 = vpop.f32.mrb[0].mxu0
  %2089 = vmatprep.mubr.f32.mxu0 0.0
  %2090 = vmatmul.mubr.f32.gmra.mrb[0].mxu0 %v1428
  %v2091 = vpop.f32.mrb[0].mxu0
  %v2092 = vadd.f32 0.0, %v2091
  %v2093 = vpop.f32.mrb[0].mxu0
  %2094 = vmatprep.mubr.f32.mxu0 0.0
  %2095 = vmatmul.mubr.f32.gmra.mrb[0].mxu0 %v1431
  %v2096 = vpop.f32.mrb[0].mxu0
  %v2097 = vadd.f32 0.0, %v2096
  %v2098 = vpop.f32.mrb[0].mxu0
  %2099 = vmatprep.mubr.f32.mxu0 0.0
  %2100 = vmatmul.mubr.f32.gmra.mrb[0].mxu0 %v1434
  %v2101 = vpop.f32.mrb[0].mxu0
  %v2102 = vadd.f32 0.0, %v2101
  %v2103 = vpop.f32.mrb[0].mxu0
  %2104 = vmatprep.mubr.f32.mxu0 0.0
  %2105 = vmatmul.mubr.f32.gmra.mrb[0].mxu0 %v1437
  %v2106 = vpop.f32.mrb[0].mxu0
  %v2107 = vadd.f32 0.0, %v2106
  %v2108 = vpop.f32.mrb[0].mxu0
  %2109 = vmatprep.mubr.f32.mxu0 0.0
  %2110 = vmatmul.mubr.f32.gmra.mrb[0].mxu0 %v1440
  %v2111 = vpop.f32.mrb[0].mxu0
  %v2112 = vadd.f32 0.0, %v2111
  %v2113 = vpop.f32.mrb[0].mxu0
  %2114 = vmatprep.mubr.f32.mxu0 0.0
  %2115 = vmatmul.mubr.f32.gmra.mrb[0].mxu0 %v1443
  %v2116 = vpop.f32.mrb[0].mxu0
  %v2117 = vadd.f32 0.0, %v2116
  %v2118 = vpop.f32.mrb[0].mxu0
  %2119 = vmatprep.mubr.f32.mxu0 0.0
  %2120 = vmatmul.mubr.f32.gmra.mrb[0].mxu0 %v1446
  %v2121 = vpop.f32.mrb[0].mxu0
  %v2122 = vadd.f32 0.0, %v2121
  %v2123 = vpop.f32.mrb[0].mxu0
  %2124 = vmatprep.mubr.f32.mxu0 0.0
  %2125 = vmatmul.mubr.f32.gmra.mrb[0].mxu0 %v1449
  %v2126 = vpop.f32.mrb[0].mxu0
  %v2127 = vadd.f32 0.0, %v2126
  %v2128 = vpop.f32.mrb[0].mxu0
  %2129 = vmatprep.mubr.f32.mxu0 0.0
  %2130 = vmatmul.mubr.f32.gmra.mrb[0].mxu0 %v1452
  %v2131 = vpop.f32.mrb[0].mxu0
  %v2132 = vadd.f32 0.0, %v2131
  %v2133 = vpop.f32.mrb[0].mxu0
  %2134 = vmatprep.mubr.f32.mxu0 0.0
  %2135 = vmatmul.mubr.f32.gmra.mrb[0].mxu0 %v1455
  %v2136 = vpop.f32.mrb[0].mxu0
  %v2137 = vadd.f32 0.0, %v2136
  %v2138 = vpop.f32.mrb[0].mxu0
  %2139 = vmatprep.mubr.f32.mxu0 0.0
  %2140 = vmatmul.mubr.f32.gmra.mrb[0].mxu0 %v1458
  %v2141 = vpop.f32.mrb[0].mxu0
  %v2142 = vadd.f32 0.0, %v2141
  %v2143 = vpop.f32.mrb[0].mxu0
  %2144 = vmatprep.mubr.f32.mxu0 0.0
  %2145 = vmatmul.mubr.f32.gmra.mrb[0].mxu0 %v1461
  %v2146 = vpop.f32.mrb[0].mxu0
  %v2147 = vadd.f32 0.0, %v2146
  %v2148 = vpop.f32.mrb[0].mxu0
  %2149 = vmatprep.mubr.f32.mxu0 0.0
  %2150 = vmatmul.mubr.f32.gmra.mrb[0].mxu0 %v1464
  %v2151 = vpop.f32.mrb[0].mxu0
  %v2152 = vadd.f32 0.0, %v2151
  %v2153 = vpop.f32.mrb[0].mxu0
  %2154 = vmatprep.mubr.f32.mxu0 0.0
  %2155 = vmatmul.mubr.f32.gmra.mrb[0].mxu0 %v1467
  %v2156 = vpop.f32.mrb[0].mxu0
  %v2157 = vadd.f32 0.0, %v2156
  %v2158 = vpop.f32.mrb[0].mxu0
  %2159 = vmatprep.mubr.f32.mxu0 0.0
  %2160 = vmatmul.mubr.f32.gmra.mrb[0].mxu0 %v1470
  %v2161 = vpop.f32.mrb[0].mxu0
  %v2162 = vadd.f32 0.0, %v2161
  %v2163 = vpop.f32.mrb[0].mxu0
  %2164 = vmatprep.mubr.f32.mxu0 0.0
  %2165 = vmatmul.mubr.f32.gmra.mrb[0].mxu0 %v1473
  %v2166 = vpop.f32.mrb[0].mxu0
  %v2167 = vadd.f32 0.0, %v2166
  %v2168 = vpop.f32.mrb[0].mxu0
  %2169 = vmatprep.mubr.f32.mxu0 0.0
  %2170 = vmatmul.mubr.f32.gmra.mrb[0].mxu0 %v1476
  %v2171 = vpop.f32.mrb[0].mxu0
  %v2172 = vadd.f32 0.0, %v2171
  %v2173 = vpop.f32.mrb[0].mxu0
  %2174 = vmatprep.mubr.f32.mxu0 0.0
  %2175 = vmatmul.mubr.f32.gmra.mrb[0].mxu0 %v1479
  %v2176 = vpop.f32.mrb[0].mxu0
  %v2177 = vadd.f32 0.0, %v2176
  %v2178 = vpop.f32.mrb[0].mxu0
  %2179 = vmatprep.mubr.f32.mxu0 0.0
  %2180 = vmatmul.mubr.f32.gmra.mrb[0].mxu0 %v1482
  %v2181 = vpop.f32.mrb[0].mxu0
  %v2182 = vadd.f32 0.0, %v2181
  %v2183 = vpop.f32.mrb[0].mxu0
  %2184 = vmatprep.mubr.f32.mxu0 0.0
  %2185 = vmatmul.mubr.f32.gmra.mrb[0].mxu0 %v1485
  %v2186 = vpop.f32.mrb[0].mxu0
  %v2187 = vadd.f32 0.0, %v2186
  %v2188 = vpop.f32.mrb[0].mxu0
  %2189 = vmatprep.mubr.f32.mxu0 0.0
  %2190 = vmatmul.mubr.f32.gmra.mrb[0].mxu0 %v1488
  %v2191 = vpop.f32.mrb[0].mxu0
  %v2192 = vadd.f32 0.0, %v2191
  %v2193 = vpop.f32.mrb[0].mxu0
  %2194 = vdwg.mxu0
  %v2195 = vld [vmem:[%s2] sm:$0xff]
  %v2196 = vld [vmem:[%s2 + $0x8] sm:$0xff]
  %v2197 = vld [vmem:[%s2 + $0x10] sm:$0xff]
  %v2198 = vld [vmem:[%s2 + $0x18] sm:$0xff]
  %v2199 = vld [vmem:[%s2 + $0x20] sm:$0xff]
  %v2200 = vld [vmem:[%s2 + $0x28] sm:$0xff]
  %v2201 = vld [vmem:[%s2 + $0x30] sm:$0xff]
  %v2202 = vld [vmem:[%s2 + $0x38] sm:$0xff]
  %v2203 = vld [vmem:[%s2 + $0x40] sm:$0xff]
  %v2204 = vld [vmem:[%s2 + $0x48] sm:$0xff]
  %v2205 = vld [vmem:[%s2 + $0x50] sm:$0xff]
  %v2206 = vld [vmem:[%s2 + $0x58] sm:$0xff]
  %v2207 = vld [vmem:[%s2 + $0x60] sm:$0xff]
  %v2208 = vld [vmem:[%s2 + $0x68] sm:$0xff]
  %v2209 = vld [vmem:[%s2 + $0x70] sm:$0xff]
  %v2210 = vld [vmem:[%s2 + $0x78] sm:$0xff]
  %v2211 = vld [vmem:[%s2 + $0x80] sm:$0xff]
  %v2212 = vld [vmem:[%s2 + $0x88] sm:$0xff]
  %v2213 = vld [vmem:[%s2 + $0x90] sm:$0xff]
  %v2214 = vld [vmem:[%s2 + $0x98] sm:$0xff]
  %v2215 = vld [vmem:[%s2 + $0xa0] sm:$0xff]
  %v2216 = vld [vmem:[%s2 + $0xa8] sm:$0xff]
  %v2217 = vld [vmem:[%s2 + $0xb0] sm:$0xff]
  %v2218 = vld [vmem:[%s2 + $0xb8] sm:$0xff]
  %v2219 = vld [vmem:[%s2 + $0xc0] sm:$0xff]
  %v2220 = vld [vmem:[%s2 + $0xc8] sm:$0xff]
  %v2221 = vld [vmem:[%s2 + $0xd0] sm:$0xff]
  %v2222 = vld [vmem:[%s2 + $0xd8] sm:$0xff]
  %v2223 = vld [vmem:[%s2 + $0xe0] sm:$0xff]
  %v2224 = vld [vmem:[%s2 + $0xe8] sm:$0xff]
  %v2225 = vld [vmem:[%s2 + $0xf0] sm:$0xff]
  %v2226 = vld [vmem:[%s2 + $0xf8] sm:$0xff]
  %v2227 = vld [vmem:[%s2 + $0x100] sm:$0xff]
  %v2228 = vld [vmem:[%s2 + $0x108] sm:$0xff]
  %v2229 = vld [vmem:[%s2 + $0x110] sm:$0xff]
  %v2230 = vld [vmem:[%s2 + $0x118] sm:$0xff]
  %v2231 = vld [vmem:[%s2 + $0x120] sm:$0xff]
  %v2232 = vld [vmem:[%s2 + $0x128] sm:$0xff]
  %v2233 = vld [vmem:[%s2 + $0x130] sm:$0xff]
  %v2234 = vld [vmem:[%s2 + $0x138] sm:$0xff]
  %v2235 = vld [vmem:[%s2 + $0x140] sm:$0xff]
  %v2236 = vld [vmem:[%s2 + $0x148] sm:$0xff]
  %v2237 = vld [vmem:[%s2 + $0x150] sm:$0xff]
  %v2238 = vld [vmem:[%s2 + $0x158] sm:$0xff]
  %v2239 = vld [vmem:[%s2 + $0x160] sm:$0xff]
  %v2240 = vld [vmem:[%s2 + $0x168] sm:$0xff]
  %v2241 = vld [vmem:[%s2 + $0x170] sm:$0xff]
  %v2242 = vld [vmem:[%s2 + $0x178] sm:$0xff]
  %v2243 = vld [vmem:[%s2 + $0x180] sm:$0xff]
  %v2244 = vld [vmem:[%s2 + $0x188] sm:$0xff]
  %v2245 = vld [vmem:[%s2 + $0x190] sm:$0xff]
  %v2246 = vld [vmem:[%s2 + $0x198] sm:$0xff]
  %v2247 = vld [vmem:[%s2 + $0x1a0] sm:$0xff]
  %v2248 = vld [vmem:[%s2 + $0x1a8] sm:$0xff]
  %v2249 = vld [vmem:[%s2 + $0x1b0] sm:$0xff]
  %v2250 = vld [vmem:[%s2 + $0x1b8] sm:$0xff]
  %v2251 = vld [vmem:[%s2 + $0x1c0] sm:$0xff]
  %v2252 = vld [vmem:[%s2 + $0x1c8] sm:$0xff]
  %v2253 = vld [vmem:[%s2 + $0x1d0] sm:$0xff]
  %v2254 = vld [vmem:[%s2 + $0x1d8] sm:$0xff]
  %v2255 = vld [vmem:[%s2 + $0x1e0] sm:$0xff]
  %v2256 = vld [vmem:[%s2 + $0x1e8] sm:$0xff]
  %v2257 = vld [vmem:[%s2 + $0x1f0] sm:$0xff]
  %v2258 = vld [vmem:[%s2 + $0x1f8] sm:$0xff]
  %v2259 = vld [vmem:[%s2 + $0x200] sm:$0xff]
  %v2260 = vld [vmem:[%s2 + $0x208] sm:$0xff]
  %v2261 = vld [vmem:[%s2 + $0x210] sm:$0xff]
  %v2262 = vld [vmem:[%s2 + $0x218] sm:$0xff]
  %v2263 = vld [vmem:[%s2 + $0x220] sm:$0xff]
  %v2264 = vld [vmem:[%s2 + $0x228] sm:$0xff]
  %v2265 = vld [vmem:[%s2 + $0x230] sm:$0xff]
  %v2266 = vld [vmem:[%s2 + $0x238] sm:$0xff]
  %v2267 = vld [vmem:[%s2 + $0x240] sm:$0xff]
  %v2268 = vld [vmem:[%s2 + $0x248] sm:$0xff]
  %v2269 = vld [vmem:[%s2 + $0x250] sm:$0xff]
  %v2270 = vld [vmem:[%s2 + $0x258] sm:$0xff]
  %v2271 = vld [vmem:[%s2 + $0x260] sm:$0xff]
  %v2272 = vld [vmem:[%s2 + $0x268] sm:$0xff]
  %v2273 = vld [vmem:[%s2 + $0x270] sm:$0xff]
  %v2274 = vld [vmem:[%s2 + $0x278] sm:$0xff]
  %v2275 = vld [vmem:[%s2 + $0x280] sm:$0xff]
  %v2276 = vld [vmem:[%s2 + $0x288] sm:$0xff]
  %v2277 = vld [vmem:[%s2 + $0x290] sm:$0xff]
  %v2278 = vld [vmem:[%s2 + $0x298] sm:$0xff]
  %v2279 = vld [vmem:[%s2 + $0x2a0] sm:$0xff]
  %v2280 = vld [vmem:[%s2 + $0x2a8] sm:$0xff]
  %v2281 = vld [vmem:[%s2 + $0x2b0] sm:$0xff]
  %v2282 = vld [vmem:[%s2 + $0x2b8] sm:$0xff]
  %v2283 = vld [vmem:[%s2 + $0x2c0] sm:$0xff]
  %v2284 = vld [vmem:[%s2 + $0x2c8] sm:$0xff]
  %v2285 = vld [vmem:[%s2 + $0x2d0] sm:$0xff]
  %v2286 = vld [vmem:[%s2 + $0x2d8] sm:$0xff]
  %v2287 = vld [vmem:[%s2 + $0x2e0] sm:$0xff]
  %v2288 = vld [vmem:[%s2 + $0x2e8] sm:$0xff]
  %v2289 = vld [vmem:[%s2 + $0x2f0] sm:$0xff]
  %v2290 = vld [vmem:[%s2 + $0x2f8] sm:$0xff]
  %v2291 = vld [vmem:[%s2 + $0x300] sm:$0xff]
  %v2292 = vld [vmem:[%s2 + $0x308] sm:$0xff]
  %v2293 = vld [vmem:[%s2 + $0x310] sm:$0xff]
  %v2294 = vld [vmem:[%s2 + $0x318] sm:$0xff]
  %v2295 = vld [vmem:[%s2 + $0x320] sm:$0xff]
  %v2296 = vld [vmem:[%s2 + $0x328] sm:$0xff]
  %v2297 = vld [vmem:[%s2 + $0x330] sm:$0xff]
  %v2298 = vld [vmem:[%s2 + $0x338] sm:$0xff]
  %v2299 = vld [vmem:[%s2 + $0x340] sm:$0xff]
  %v2300 = vld [vmem:[%s2 + $0x348] sm:$0xff]
  %v2301 = vld [vmem:[%s2 + $0x350] sm:$0xff]
  %v2302 = vld [vmem:[%s2 + $0x358] sm:$0xff]
  %v2303 = vld [vmem:[%s2 + $0x360] sm:$0xff]
  %v2304 = vld [vmem:[%s2 + $0x368] sm:$0xff]
  %v2305 = vld [vmem:[%s2 + $0x370] sm:$0xff]
  %v2306 = vld [vmem:[%s2 + $0x378] sm:$0xff]
  %v2307 = vld [vmem:[%s2 + $0x380] sm:$0xff]
  %v2308 = vld [vmem:[%s2 + $0x388] sm:$0xff]
  %v2309 = vld [vmem:[%s2 + $0x390] sm:$0xff]
  %v2310 = vld [vmem:[%s2 + $0x398] sm:$0xff]
  %v2311 = vld [vmem:[%s2 + $0x3a0] sm:$0xff]
  %v2312 = vld [vmem:[%s2 + $0x3a8] sm:$0xff]
  %v2313 = vld [vmem:[%s2 + $0x3b0] sm:$0xff]
  %v2314 = vld [vmem:[%s2 + $0x3b8] sm:$0xff]
  %v2315 = vld [vmem:[%s2 + $0x3c0] sm:$0xff]
  %v2316 = vld [vmem:[%s2 + $0x3c8] sm:$0xff]
  %v2317 = vld [vmem:[%s2 + $0x3d0] sm:$0xff]
  %v2318 = vld [vmem:[%s2 + $0x3d8] sm:$0xff]
  %v2319 = vld [vmem:[%s2 + $0x3e0] sm:$0xff]
  %v2320 = vld [vmem:[%s2 + $0x3e8] sm:$0xff]
  %v2321 = vld [vmem:[%s2 + $0x3f0] sm:$0xff]
  %v2322 = vld [vmem:[%s2 + $0x3f8] sm:$0xff]
  %v2323 = vmul.f32 %v2195, %v2195
  %v2324 = vmul.f32 %v2196, %v2196
  %v2325 = vmul.f32 %v2197, %v2197
  %v2326 = vmul.f32 %v2198, %v2198
  %v2327 = vmul.f32 %v2199, %v2199
  %v2328 = vmul.f32 %v2200, %v2200
  %v2329 = vmul.f32 %v2201, %v2201
  %v2330 = vmul.f32 %v2202, %v2202
  %v2331 = vmul.f32 %v2203, %v2203
  %v2332 = vmul.f32 %v2204, %v2204
  %v2333 = vmul.f32 %v2205, %v2205
  %v2334 = vmul.f32 %v2206, %v2206
  %v2335 = vmul.f32 %v2207, %v2207
  %v2336 = vmul.f32 %v2208, %v2208
  %v2337 = vmul.f32 %v2209, %v2209
  %v2338 = vmul.f32 %v2210, %v2210
  %v2339 = vmul.f32 %v2211, %v2211
  %v2340 = vmul.f32 %v2212, %v2212
  %v2341 = vmul.f32 %v2213, %v2213
  %v2342 = vmul.f32 %v2214, %v2214
  %v2343 = vmul.f32 %v2215, %v2215
  %v2344 = vmul.f32 %v2216, %v2216
  %v2345 = vmul.f32 %v2217, %v2217
  %v2346 = vmul.f32 %v2218, %v2218
  %v2347 = vmul.f32 %v2219, %v2219
  %v2348 = vmul.f32 %v2220, %v2220
  %v2349 = vmul.f32 %v2221, %v2221
  %v2350 = vmul.f32 %v2222, %v2222
  %v2351 = vmul.f32 %v2223, %v2223
  %v2352 = vmul.f32 %v2224, %v2224
  %v2353 = vmul.f32 %v2225, %v2225
  %v2354 = vmul.f32 %v2226, %v2226
  %v2355 = vmul.f32 %v2227, %v2227
  %v2356 = vmul.f32 %v2228, %v2228
  %v2357 = vmul.f32 %v2229, %v2229
  %v2358 = vmul.f32 %v2230, %v2230
  %v2359 = vmul.f32 %v2231, %v2231
  %v2360 = vmul.f32 %v2232, %v2232
  %v2361 = vmul.f32 %v2233, %v2233
  %v2362 = vmul.f32 %v2234, %v2234
  %v2363 = vmul.f32 %v2235, %v2235
  %v2364 = vmul.f32 %v2236, %v2236
  %v2365 = vmul.f32 %v2237, %v2237
  %v2366 = vmul.f32 %v2238, %v2238
  %v2367 = vmul.f32 %v2239, %v2239
  %v2368 = vmul.f32 %v2240, %v2240
  %v2369 = vmul.f32 %v2241, %v2241
  %v2370 = vmul.f32 %v2242, %v2242
  %v2371 = vmul.f32 %v2243, %v2243
  %v2372 = vmul.f32 %v2244, %v2244
  %v2373 = vmul.f32 %v2245, %v2245
  %v2374 = vmul.f32 %v2246, %v2246
  %v2375 = vmul.f32 %v2247, %v2247
  %v2376 = vmul.f32 %v2248, %v2248
  %v2377 = vmul.f32 %v2249, %v2249
  %v2378 = vmul.f32 %v2250, %v2250
  %v2379 = vmul.f32 %v2251, %v2251
  %v2380 = vmul.f32 %v2252, %v2252
  %v2381 = vmul.f32 %v2253, %v2253
  %v2382 = vmul.f32 %v2254, %v2254
  %v2383 = vmul.f32 %v2255, %v2255
  %v2384 = vmul.f32 %v2256, %v2256
  %v2385 = vmul.f32 %v2257, %v2257
  %v2386 = vmul.f32 %v2258, %v2258
  %v2387 = vmul.f32 %v2259, %v2259
  %v2388 = vmul.f32 %v2260, %v2260
  %v2389 = vmul.f32 %v2261, %v2261
  %v2390 = vmul.f32 %v2262, %v2262
  %v2391 = vmul.f32 %v2263, %v2263
  %v2392 = vmul.f32 %v2264, %v2264
  %v2393 = vmul.f32 %v2265, %v2265
  %v2394 = vmul.f32 %v2266, %v2266
  %v2395 = vmul.f32 %v2267, %v2267
  %v2396 = vmul.f32 %v2268, %v2268
  %v2397 = vmul.f32 %v2269, %v2269
  %v2398 = vmul.f32 %v2270, %v2270
  %v2399 = vmul.f32 %v2271, %v2271
  %v2400 = vmul.f32 %v2272, %v2272
  %v2401 = vmul.f32 %v2273, %v2273
  %v2402 = vmul.f32 %v2274, %v2274
  %v2403 = vmul.f32 %v2275, %v2275
  %v2404 = vmul.f32 %v2276, %v2276
  %v2405 = vmul.f32 %v2277, %v2277
  %v2406 = vmul.f32 %v2278, %v2278
  %v2407 = vmul.f32 %v2279, %v2279
  %v2408 = vmul.f32 %v2280, %v2280
  %v2409 = vmul.f32 %v2281, %v2281
  %v2410 = vmul.f32 %v2282, %v2282
  %v2411 = vmul.f32 %v2283, %v2283
  %v2412 = vmul.f32 %v2284, %v2284
  %v2413 = vmul.f32 %v2285, %v2285
  %v2414 = vmul.f32 %v2286, %v2286
  %v2415 = vmul.f32 %v2287, %v2287
  %v2416 = vmul.f32 %v2288, %v2288
  %v2417 = vmul.f32 %v2289, %v2289
  %v2418 = vmul.f32 %v2290, %v2290
  %v2419 = vmul.f32 %v2291, %v2291
  %v2420 = vmul.f32 %v2292, %v2292
  %v2421 = vmul.f32 %v2293, %v2293
  %v2422 = vmul.f32 %v2294, %v2294
  %v2423 = vmul.f32 %v2295, %v2295
  %v2424 = vmul.f32 %v2296, %v2296
  %v2425 = vmul.f32 %v2297, %v2297
  %v2426 = vmul.f32 %v2298, %v2298
  %v2427 = vmul.f32 %v2299, %v2299
  %v2428 = vmul.f32 %v2300, %v2300
  %v2429 = vmul.f32 %v2301, %v2301
  %v2430 = vmul.f32 %v2302, %v2302
  %v2431 = vmul.f32 %v2303, %v2303
  %v2432 = vmul.f32 %v2304, %v2304
  %v2433 = vmul.f32 %v2305, %v2305
  %v2434 = vmul.f32 %v2306, %v2306
  %v2435 = vmul.f32 %v2307, %v2307
  %v2436 = vmul.f32 %v2308, %v2308
  %v2437 = vmul.f32 %v2309, %v2309
  %v2438 = vmul.f32 %v2310, %v2310
  %v2439 = vmul.f32 %v2311, %v2311
  %v2440 = vmul.f32 %v2312, %v2312
  %v2441 = vmul.f32 %v2313, %v2313
  %v2442 = vmul.f32 %v2314, %v2314
  %v2443 = vmul.f32 %v2315, %v2315
  %v2444 = vmul.f32 %v2316, %v2316
  %v2445 = vmul.f32 %v2317, %v2317
  %v2446 = vmul.f32 %v2318, %v2318
  %v2447 = vmul.f32 %v2319, %v2319
  %v2448 = vmul.f32 %v2320, %v2320
  %v2449 = vmul.f32 %v2321, %v2321
  %v2450 = vmul.f32 %v2322, %v2322
  %vm2451 = vcmask 23552
  %v2452 = vsel %vm2451, %v2323, 0.0
  %2453 = vadd.xlane.f32.xlu0 %v2452
  %v2454 = vpop.xlane.xlu0 %2453
  %v2455 = vsel %vm2451, %v2324, 0.0
  %2456 = vadd.xlane.f32.xlu0 %v2455
  %v2457 = vpop.xlane.xlu0 %2456
  %v2458 = vsel %vm2451, %v2325, 0.0
  %2459 = vadd.xlane.f32.xlu0 %v2458
  %v2460 = vpop.xlane.xlu0 %2459
  %v2461 = vsel %vm2451, %v2326, 0.0
  %2462 = vadd.xlane.f32.xlu0 %v2461
  %v2463 = vpop.xlane.xlu0 %2462
  %v2464 = vsel %vm2451, %v2327, 0.0
  %2465 = vadd.xlane.f32.xlu0 %v2464
  %v2466 = vpop.xlane.xlu0 %2465
  %v2467 = vsel %vm2451, %v2328, 0.0
  %2468 = vadd.xlane.f32.xlu0 %v2467
  %v2469 = vpop.xlane.xlu0 %2468
  %v2470 = vsel %vm2451, %v2329, 0.0
  %2471 = vadd.xlane.f32.xlu0 %v2470
  %v2472 = vpop.xlane.xlu0 %2471
  %v2473 = vsel %vm2451, %v2330, 0.0
  %2474 = vadd.xlane.f32.xlu0 %v2473
  %v2475 = vpop.xlane.xlu0 %2474
  %v2476 = vsel %vm2451, %v2331, 0.0
  %2477 = vadd.xlane.f32.xlu0 %v2476
  %v2478 = vpop.xlane.xlu0 %2477
  %v2479 = vsel %vm2451, %v2332, 0.0
  %2480 = vadd.xlane.f32.xlu0 %v2479
  %v2481 = vpop.xlane.xlu0 %2480
  %v2482 = vsel %vm2451, %v2333, 0.0
  %2483 = vadd.xlane.f32.xlu0 %v2482
  %v2484 = vpop.xlane.xlu0 %2483
  %v2485 = vsel %vm2451, %v2334, 0.0
  %2486 = vadd.xlane.f32.xlu0 %v2485
  %v2487 = vpop.xlane.xlu0 %2486
  %v2488 = vsel %vm2451, %v2335, 0.0
  %2489 = vadd.xlane.f32.xlu0 %v2488
  %v2490 = vpop.xlane.xlu0 %2489
  %v2491 = vsel %vm2451, %v2336, 0.0
  %2492 = vadd.xlane.f32.xlu0 %v2491
  %v2493 = vpop.xlane.xlu0 %2492
  %v2494 = vsel %vm2451, %v2337, 0.0
  %2495 = vadd.xlane.f32.xlu0 %v2494
  %v2496 = vpop.xlane.xlu0 %2495
  %v2497 = vsel %vm2451, %v2338, 0.0
  %2498 = vadd.xlane.f32.xlu0 %v2497
  %v2499 = vpop.xlane.xlu0 %2498
  %v2500 = vsel %vm2451, %v2339, 0.0
  %2501 = vadd.xlane.f32.xlu0 %v2500
  %v2502 = vpop.xlane.xlu0 %2501
  %v2503 = vsel %vm2451, %v2340, 0.0
  %2504 = vadd.xlane.f32.xlu0 %v2503
  %v2505 = vpop.xlane.xlu0 %2504
  %v2506 = vsel %vm2451, %v2341, 0.0
  %2507 = vadd.xlane.f32.xlu0 %v2506
  %v2508 = vpop.xlane.xlu0 %2507
  %v2509 = vsel %vm2451, %v2342, 0.0
  %2510 = vadd.xlane.f32.xlu0 %v2509
  %v2511 = vpop.xlane.xlu0 %2510
  %v2512 = vsel %vm2451, %v2343, 0.0
  %2513 = vadd.xlane.f32.xlu0 %v2512
  %v2514 = vpop.xlane.xlu0 %2513
  %v2515 = vsel %vm2451, %v2344, 0.0
  %2516 = vadd.xlane.f32.xlu0 %v2515
  %v2517 = vpop.xlane.xlu0 %2516
  %v2518 = vsel %vm2451, %v2345, 0.0
  %2519 = vadd.xlane.f32.xlu0 %v2518
  %v2520 = vpop.xlane.xlu0 %2519
  %v2521 = vsel %vm2451, %v2346, 0.0
  %2522 = vadd.xlane.f32.xlu0 %v2521
  %v2523 = vpop.xlane.xlu0 %2522
  %v2524 = vsel %vm2451, %v2347, 0.0
  %2525 = vadd.xlane.f32.xlu0 %v2524
  %v2526 = vpop.xlane.xlu0 %2525
  %v2527 = vsel %vm2451, %v2348, 0.0
  %2528 = vadd.xlane.f32.xlu0 %v2527
  %v2529 = vpop.xlane.xlu0 %2528
  %v2530 = vsel %vm2451, %v2349, 0.0
  %2531 = vadd.xlane.f32.xlu0 %v2530
  %v2532 = vpop.xlane.xlu0 %2531
  %v2533 = vsel %vm2451, %v2350, 0.0
  %2534 = vadd.xlane.f32.xlu0 %v2533
  %v2535 = vpop.xlane.xlu0 %2534
  %v2536 = vsel %vm2451, %v2351, 0.0
  %2537 = vadd.xlane.f32.xlu0 %v2536
  %v2538 = vpop.xlane.xlu0 %2537
  %v2539 = vsel %vm2451, %v2352, 0.0
  %2540 = vadd.xlane.f32.xlu0 %v2539
  %v2541 = vpop.xlane.xlu0 %2540
  %v2542 = vsel %vm2451, %v2353, 0.0
  %2543 = vadd.xlane.f32.xlu0 %v2542
  %v2544 = vpop.xlane.xlu0 %2543
  %v2545 = vsel %vm2451, %v2354, 0.0
  %2546 = vadd.xlane.f32.xlu0 %v2545
  %v2547 = vpop.xlane.xlu0 %2546
  %v2548 = vsel %vm2451, %v2355, 0.0
  %2549 = vadd.xlane.f32.xlu0 %v2548
  %v2550 = vpop.xlane.xlu0 %2549
  %v2551 = vsel %vm2451, %v2356, 0.0
  %2552 = vadd.xlane.f32.xlu0 %v2551
  %v2553 = vpop.xlane.xlu0 %2552
  %v2554 = vsel %vm2451, %v2357, 0.0
  %2555 = vadd.xlane.f32.xlu0 %v2554
  %v2556 = vpop.xlane.xlu0 %2555
  %v2557 = vsel %vm2451, %v2358, 0.0
  %2558 = vadd.xlane.f32.xlu0 %v2557
  %v2559 = vpop.xlane.xlu0 %2558
  %v2560 = vsel %vm2451, %v2359, 0.0
  %2561 = vadd.xlane.f32.xlu0 %v2560
  %v2562 = vpop.xlane.xlu0 %2561
  %v2563 = vsel %vm2451, %v2360, 0.0
  %2564 = vadd.xlane.f32.xlu0 %v2563
  %v2565 = vpop.xlane.xlu0 %2564
  %v2566 = vsel %vm2451, %v2361, 0.0
  %2567 = vadd.xlane.f32.xlu0 %v2566
  %v2568 = vpop.xlane.xlu0 %2567
  %v2569 = vsel %vm2451, %v2362, 0.0
  %2570 = vadd.xlane.f32.xlu0 %v2569
  %v2571 = vpop.xlane.xlu0 %2570
  %v2572 = vsel %vm2451, %v2363, 0.0
  %2573 = vadd.xlane.f32.xlu0 %v2572
  %v2574 = vpop.xlane.xlu0 %2573
  %v2575 = vsel %vm2451, %v2364, 0.0
  %2576 = vadd.xlane.f32.xlu0 %v2575
  %v2577 = vpop.xlane.xlu0 %2576
  %v2578 = vsel %vm2451, %v2365, 0.0
  %2579 = vadd.xlane.f32.xlu0 %v2578
  %v2580 = vpop.xlane.xlu0 %2579
  %v2581 = vsel %vm2451, %v2366, 0.0
  %2582 = vadd.xlane.f32.xlu0 %v2581
  %v2583 = vpop.xlane.xlu0 %2582
  %v2584 = vsel %vm2451, %v2367, 0.0
  %2585 = vadd.xlane.f32.xlu0 %v2584
  %v2586 = vpop.xlane.xlu0 %2585
  %v2587 = vsel %vm2451, %v2368, 0.0
  %2588 = vadd.xlane.f32.xlu0 %v2587
  %v2589 = vpop.xlane.xlu0 %2588
  %v2590 = vsel %vm2451, %v2369, 0.0
  %2591 = vadd.xlane.f32.xlu0 %v2590
  %v2592 = vpop.xlane.xlu0 %2591
  %v2593 = vsel %vm2451, %v2370, 0.0
  %2594 = vadd.xlane.f32.xlu0 %v2593
  %v2595 = vpop.xlane.xlu0 %2594
  %v2596 = vsel %vm2451, %v2371, 0.0
  %2597 = vadd.xlane.f32.xlu0 %v2596
  %v2598 = vpop.xlane.xlu0 %2597
  %v2599 = vsel %vm2451, %v2372, 0.0
  %2600 = vadd.xlane.f32.xlu0 %v2599
  %v2601 = vpop.xlane.xlu0 %2600
  %v2602 = vsel %vm2451, %v2373, 0.0
  %2603 = vadd.xlane.f32.xlu0 %v2602
  %v2604 = vpop.xlane.xlu0 %2603
  %v2605 = vsel %vm2451, %v2374, 0.0
  %2606 = vadd.xlane.f32.xlu0 %v2605
  %v2607 = vpop.xlane.xlu0 %2606
  %v2608 = vsel %vm2451, %v2375, 0.0
  %2609 = vadd.xlane.f32.xlu0 %v2608
  %v2610 = vpop.xlane.xlu0 %2609
  %v2611 = vsel %vm2451, %v2376, 0.0
  %2612 = vadd.xlane.f32.xlu0 %v2611
  %v2613 = vpop.xlane.xlu0 %2612
  %v2614 = vsel %vm2451, %v2377, 0.0
  %2615 = vadd.xlane.f32.xlu0 %v2614
  %v2616 = vpop.xlane.xlu0 %2615
  %v2617 = vsel %vm2451, %v2378, 0.0
  %2618 = vadd.xlane.f32.xlu0 %v2617
  %v2619 = vpop.xlane.xlu0 %2618
  %v2620 = vsel %vm2451, %v2379, 0.0
  %2621 = vadd.xlane.f32.xlu0 %v2620
  %v2622 = vpop.xlane.xlu0 %2621
  %v2623 = vsel %vm2451, %v2380, 0.0
  %2624 = vadd.xlane.f32.xlu0 %v2623
  %v2625 = vpop.xlane.xlu0 %2624
  %v2626 = vsel %vm2451, %v2381, 0.0
  %2627 = vadd.xlane.f32.xlu0 %v2626
  %v2628 = vpop.xlane.xlu0 %2627
  %v2629 = vsel %vm2451, %v2382, 0.0
  %2630 = vadd.xlane.f32.xlu0 %v2629
  %v2631 = vpop.xlane.xlu0 %2630
  %v2632 = vsel %vm2451, %v2383, 0.0
  %2633 = vadd.xlane.f32.xlu0 %v2632
  %v2634 = vpop.xlane.xlu0 %2633
  %v2635 = vsel %vm2451, %v2384, 0.0
  %2636 = vadd.xlane.f32.xlu0 %v2635
  %v2637 = vpop.xlane.xlu0 %2636
  %v2638 = vsel %vm2451, %v2385, 0.0
  %2639 = vadd.xlane.f32.xlu0 %v2638
  %v2640 = vpop.xlane.xlu0 %2639
  %v2641 = vsel %vm2451, %v2386, 0.0
  %2642 = vadd.xlane.f32.xlu0 %v2641
  %v2643 = vpop.xlane.xlu0 %2642
  %v2644 = vsel %vm2451, %v2387, 0.0
  %2645 = vadd.xlane.f32.xlu0 %v2644
  %v2646 = vpop.xlane.xlu0 %2645
  %v2647 = vsel %vm2451, %v2388, 0.0
  %2648 = vadd.xlane.f32.xlu0 %v2647
  %v2649 = vpop.xlane.xlu0 %2648
  %v2650 = vsel %vm2451, %v2389, 0.0
  %2651 = vadd.xlane.f32.xlu0 %v2650
  %v2652 = vpop.xlane.xlu0 %2651
  %v2653 = vsel %vm2451, %v2390, 0.0
  %2654 = vadd.xlane.f32.xlu0 %v2653
  %v2655 = vpop.xlane.xlu0 %2654
  %v2656 = vsel %vm2451, %v2391, 0.0
  %2657 = vadd.xlane.f32.xlu0 %v2656
  %v2658 = vpop.xlane.xlu0 %2657
  %v2659 = vsel %vm2451, %v2392, 0.0
  %2660 = vadd.xlane.f32.xlu0 %v2659
  %v2661 = vpop.xlane.xlu0 %2660
  %v2662 = vsel %vm2451, %v2393, 0.0
  %2663 = vadd.xlane.f32.xlu0 %v2662
  %v2664 = vpop.xlane.xlu0 %2663
  %v2665 = vsel %vm2451, %v2394, 0.0
  %2666 = vadd.xlane.f32.xlu0 %v2665
  %v2667 = vpop.xlane.xlu0 %2666
  %v2668 = vsel %vm2451, %v2395, 0.0
  %2669 = vadd.xlane.f32.xlu0 %v2668
  %v2670 = vpop.xlane.xlu0 %2669
  %v2671 = vsel %vm2451, %v2396, 0.0
  %2672 = vadd.xlane.f32.xlu0 %v2671
  %v2673 = vpop.xlane.xlu0 %2672
  %v2674 = vsel %vm2451, %v2397, 0.0
  %2675 = vadd.xlane.f32.xlu0 %v2674
  %v2676 = vpop.xlane.xlu0 %2675
  %v2677 = vsel %vm2451, %v2398, 0.0
  %2678 = vadd.xlane.f32.xlu0 %v2677
  %v2679 = vpop.xlane.xlu0 %2678
  %v2680 = vsel %vm2451, %v2399, 0.0
  %2681 = vadd.xlane.f32.xlu0 %v2680
  %v2682 = vpop.xlane.xlu0 %2681
  %v2683 = vsel %vm2451, %v2400, 0.0
  %2684 = vadd.xlane.f32.xlu0 %v2683
  %v2685 = vpop.xlane.xlu0 %2684
  %v2686 = vsel %vm2451, %v2401, 0.0
  %2687 = vadd.xlane.f32.xlu0 %v2686
  %v2688 = vpop.xlane.xlu0 %2687
  %v2689 = vsel %vm2451, %v2402, 0.0
  %2690 = vadd.xlane.f32.xlu0 %v2689
  %v2691 = vpop.xlane.xlu0 %2690
  %v2692 = vsel %vm2451, %v2403, 0.0
  %2693 = vadd.xlane.f32.xlu0 %v2692
  %v2694 = vpop.xlane.xlu0 %2693
  %v2695 = vsel %vm2451, %v2404, 0.0
  %2696 = vadd.xlane.f32.xlu0 %v2695
  %v2697 = vpop.xlane.xlu0 %2696
  %v2698 = vsel %vm2451, %v2405, 0.0
  %2699 = vadd.xlane.f32.xlu0 %v2698
  %v2700 = vpop.xlane.xlu0 %2699
  %v2701 = vsel %vm2451, %v2406, 0.0
  %2702 = vadd.xlane.f32.xlu0 %v2701
  %v2703 = vpop.xlane.xlu0 %2702
  %v2704 = vsel %vm2451, %v2407, 0.0
  %2705 = vadd.xlane.f32.xlu0 %v2704
  %v2706 = vpop.xlane.xlu0 %2705
  %v2707 = vsel %vm2451, %v2408, 0.0
  %2708 = vadd.xlane.f32.xlu0 %v2707
  %v2709 = vpop.xlane.xlu0 %2708
  %v2710 = vsel %vm2451, %v2409, 0.0
  %2711 = vadd.xlane.f32.xlu0 %v2710
  %v2712 = vpop.xlane.xlu0 %2711
  %v2713 = vsel %vm2451, %v2410, 0.0
  %2714 = vadd.xlane.f32.xlu0 %v2713
  %v2715 = vpop.xlane.xlu0 %2714
  %v2716 = vsel %vm2451, %v2411, 0.0
  %2717 = vadd.xlane.f32.xlu0 %v2716
  %v2718 = vpop.xlane.xlu0 %2717
  %v2719 = vsel %vm2451, %v2412, 0.0
  %2720 = vadd.xlane.f32.xlu0 %v2719
  %v2721 = vpop.xlane.xlu0 %2720
  %v2722 = vsel %vm2451, %v2413, 0.0
  %2723 = vadd.xlane.f32.xlu0 %v2722
  %v2724 = vpop.xlane.xlu0 %2723
  %v2725 = vsel %vm2451, %v2414, 0.0
  %2726 = vadd.xlane.f32.xlu0 %v2725
  %v2727 = vpop.xlane.xlu0 %2726
  %v2728 = vsel %vm2451, %v2415, 0.0
  %2729 = vadd.xlane.f32.xlu0 %v2728
  %v2730 = vpop.xlane.xlu0 %2729
  %v2731 = vsel %vm2451, %v2416, 0.0
  %2732 = vadd.xlane.f32.xlu0 %v2731
  %v2733 = vpop.xlane.xlu0 %2732
  %v2734 = vsel %vm2451, %v2417, 0.0
  %2735 = vadd.xlane.f32.xlu0 %v2734
  %v2736 = vpop.xlane.xlu0 %2735
  %v2737 = vsel %vm2451, %v2418, 0.0
  %2738 = vadd.xlane.f32.xlu0 %v2737
  %v2739 = vpop.xlane.xlu0 %2738
  %v2740 = vsel %vm2451, %v2419, 0.0
  %2741 = vadd.xlane.f32.xlu0 %v2740
  %v2742 = vpop.xlane.xlu0 %2741
  %v2743 = vsel %vm2451, %v2420, 0.0
  %2744 = vadd.xlane.f32.xlu0 %v2743
  %v2745 = vpop.xlane.xlu0 %2744
  %v2746 = vsel %vm2451, %v2421, 0.0
  %2747 = vadd.xlane.f32.xlu0 %v2746
  %v2748 = vpop.xlane.xlu0 %2747
  %v2749 = vsel %vm2451, %v2422, 0.0
  %2750 = vadd.xlane.f32.xlu0 %v2749
  %v2751 = vpop.xlane.xlu0 %2750
  %v2752 = vsel %vm2451, %v2423, 0.0
  %2753 = vadd.xlane.f32.xlu0 %v2752
  %v2754 = vpop.xlane.xlu0 %2753
  %v2755 = vsel %vm2451, %v2424, 0.0
  %2756 = vadd.xlane.f32.xlu0 %v2755
  %v2757 = vpop.xlane.xlu0 %2756
  %v2758 = vsel %vm2451, %v2425, 0.0
  %2759 = vadd.xlane.f32.xlu0 %v2758
  %v2760 = vpop.xlane.xlu0 %2759
  %v2761 = vsel %vm2451, %v2426, 0.0
  %2762 = vadd.xlane.f32.xlu0 %v2761
  %v2763 = vpop.xlane.xlu0 %2762
  %v2764 = vsel %vm2451, %v2427, 0.0
  %2765 = vadd.xlane.f32.xlu0 %v2764
  %v2766 = vpop.xlane.xlu0 %2765
  %v2767 = vsel %vm2451, %v2428, 0.0
  %2768 = vadd.xlane.f32.xlu0 %v2767
  %v2769 = vpop.xlane.xlu0 %2768
  %v2770 = vsel %vm2451, %v2429, 0.0
  %2771 = vadd.xlane.f32.xlu0 %v2770
  %v2772 = vpop.xlane.xlu0 %2771
  %v2773 = vsel %vm2451, %v2430, 0.0
  %2774 = vadd.xlane.f32.xlu0 %v2773
  %v2775 = vpop.xlane.xlu0 %2774
  %v2776 = vsel %vm2451, %v2431, 0.0
  %2777 = vadd.xlane.f32.xlu0 %v2776
  %v2778 = vpop.xlane.xlu0 %2777
  %v2779 = vsel %vm2451, %v2432, 0.0
  %2780 = vadd.xlane.f32.xlu0 %v2779
  %v2781 = vpop.xlane.xlu0 %2780
  %v2782 = vsel %vm2451, %v2433, 0.0
  %2783 = vadd.xlane.f32.xlu0 %v2782
  %v2784 = vpop.xlane.xlu0 %2783
  %v2785 = vsel %vm2451, %v2434, 0.0
  %2786 = vadd.xlane.f32.xlu0 %v2785
  %v2787 = vpop.xlane.xlu0 %2786
  %v2788 = vsel %vm2451, %v2435, 0.0
  %2789 = vadd.xlane.f32.xlu0 %v2788
  %v2790 = vpop.xlane.xlu0 %2789
  %v2791 = vsel %vm2451, %v2436, 0.0
  %2792 = vadd.xlane.f32.xlu0 %v2791
  %v2793 = vpop.xlane.xlu0 %2792
  %v2794 = vsel %vm2451, %v2437, 0.0
  %2795 = vadd.xlane.f32.xlu0 %v2794
  %v2796 = vpop.xlane.xlu0 %2795
  %v2797 = vsel %vm2451, %v2438, 0.0
  %2798 = vadd.xlane.f32.xlu0 %v2797
  %v2799 = vpop.xlane.xlu0 %2798
  %v2800 = vsel %vm2451, %v2439, 0.0
  %2801 = vadd.xlane.f32.xlu0 %v2800
  %v2802 = vpop.xlane.xlu0 %2801
  %v2803 = vsel %vm2451, %v2440, 0.0
  %2804 = vadd.xlane.f32.xlu0 %v2803
  %v2805 = vpop.xlane.xlu0 %2804
  %v2806 = vsel %vm2451, %v2441, 0.0
  %2807 = vadd.xlane.f32.xlu0 %v2806
  %v2808 = vpop.xlane.xlu0 %2807
  %v2809 = vsel %vm2451, %v2442, 0.0
  %2810 = vadd.xlane.f32.xlu0 %v2809
  %v2811 = vpop.xlane.xlu0 %2810
  %v2812 = vsel %vm2451, %v2443, 0.0
  %2813 = vadd.xlane.f32.xlu0 %v2812
  %v2814 = vpop.xlane.xlu0 %2813
  %v2815 = vsel %vm2451, %v2444, 0.0
  %2816 = vadd.xlane.f32.xlu0 %v2815
  %v2817 = vpop.xlane.xlu0 %2816
  %v2818 = vsel %vm2451, %v2445, 0.0
  %2819 = vadd.xlane.f32.xlu0 %v2818
  %v2820 = vpop.xlane.xlu0 %2819
  %v2821 = vsel %vm2451, %v2446, 0.0
  %2822 = vadd.xlane.f32.xlu0 %v2821
  %v2823 = vpop.xlane.xlu0 %2822
  %v2824 = vsel %vm2451, %v2447, 0.0
  %2825 = vadd.xlane.f32.xlu0 %v2824
  %v2826 = vpop.xlane.xlu0 %2825
  %v2827 = vsel %vm2451, %v2448, 0.0
  %2828 = vadd.xlane.f32.xlu0 %v2827
  %v2829 = vpop.xlane.xlu0 %2828
  %v2830 = vsel %vm2451, %v2449, 0.0
  %2831 = vadd.xlane.f32.xlu0 %v2830
  %v2832 = vpop.xlane.xlu0 %2831
  %v2833 = vsel %vm2451, %v2450, 0.0
  %2834 = vadd.xlane.f32.xlu0 %v2833
  %v2835 = vpop.xlane.xlu0 %2834
  %v2836 = vld [vmem:[%s3] sm:$0x7]
  %v2838 = vsel %vm2451, %v2195, 0
  %v2841 = vsel %vm2451, %v2196, 0
  %v2844 = vsel %vm2451, %v2197, 0
  %v2847 = vsel %vm2451, %v2198, 0
  %v2850 = vsel %vm2451, %v2199, 0
  %v2853 = vsel %vm2451, %v2200, 0
  %v2856 = vsel %vm2451, %v2201, 0
  %v2859 = vsel %vm2451, %v2202, 0
  %v2862 = vsel %vm2451, %v2203, 0
  %v2865 = vsel %vm2451, %v2204, 0
  %v2868 = vsel %vm2451, %v2205, 0
  %v2871 = vsel %vm2451, %v2206, 0
  %v2874 = vsel %vm2451, %v2207, 0
  %v2877 = vsel %vm2451, %v2208, 0
  %v2880 = vsel %vm2451, %v2209, 0
  %v2883 = vsel %vm2451, %v2210, 0
  %v2886 = vsel %vm2451, %v2211, 0
  %v2889 = vsel %vm2451, %v2212, 0
  %v2892 = vsel %vm2451, %v2213, 0
  %v2895 = vsel %vm2451, %v2214, 0
  %v2898 = vsel %vm2451, %v2215, 0
  %v2901 = vsel %vm2451, %v2216, 0
  %v2904 = vsel %vm2451, %v2217, 0
  %v2907 = vsel %vm2451, %v2218, 0
  %v2910 = vsel %vm2451, %v2219, 0
  %v2913 = vsel %vm2451, %v2220, 0
  %v2916 = vsel %vm2451, %v2221, 0
  %v2919 = vsel %vm2451, %v2222, 0
  %v2922 = vsel %vm2451, %v2223, 0
  %v2925 = vsel %vm2451, %v2224, 0
  %v2928 = vsel %vm2451, %v2225, 0
  %v2931 = vsel %vm2451, %v2226, 0
  %v2934 = vsel %vm2451, %v2227, 0
  %v2937 = vsel %vm2451, %v2228, 0
  %v2940 = vsel %vm2451, %v2229, 0
  %v2943 = vsel %vm2451, %v2230, 0
  %v2946 = vsel %vm2451, %v2231, 0
  %v2949 = vsel %vm2451, %v2232, 0
  %v2952 = vsel %vm2451, %v2233, 0
  %v2955 = vsel %vm2451, %v2234, 0
  %v2958 = vsel %vm2451, %v2235, 0
  %v2961 = vsel %vm2451, %v2236, 0
  %v2964 = vsel %vm2451, %v2237, 0
  %v2967 = vsel %vm2451, %v2238, 0
  %v2970 = vsel %vm2451, %v2239, 0
  %v2973 = vsel %vm2451, %v2240, 0
  %v2976 = vsel %vm2451, %v2241, 0
  %v2979 = vsel %vm2451, %v2242, 0
  %v2982 = vsel %vm2451, %v2243, 0
  %v2985 = vsel %vm2451, %v2244, 0
  %v2988 = vsel %vm2451, %v2245, 0
  %v2991 = vsel %vm2451, %v2246, 0
  %v2994 = vsel %vm2451, %v2247, 0
  %v2997 = vsel %vm2451, %v2248, 0
  %v3000 = vsel %vm2451, %v2249, 0
  %v3003 = vsel %vm2451, %v2250, 0
  %v3006 = vsel %vm2451, %v2251, 0
  %v3009 = vsel %vm2451, %v2252, 0
  %v3012 = vsel %vm2451, %v2253, 0
  %v3015 = vsel %vm2451, %v2254, 0
  %v3018 = vsel %vm2451, %v2255, 0
  %v3021 = vsel %vm2451, %v2256, 0
  %v3024 = vsel %vm2451, %v2257, 0
  %v3027 = vsel %vm2451, %v2258, 0
  %v3030 = vsel %vm2451, %v2259, 0
  %v3033 = vsel %vm2451, %v2260, 0
  %v3036 = vsel %vm2451, %v2261, 0
  %v3039 = vsel %vm2451, %v2262, 0
  %v3042 = vsel %vm2451, %v2263, 0
  %v3045 = vsel %vm2451, %v2264, 0
  %v3048 = vsel %vm2451, %v2265, 0
  %v3051 = vsel %vm2451, %v2266, 0
  %v3054 = vsel %vm2451, %v2267, 0
  %v3057 = vsel %vm2451, %v2268, 0
  %v3060 = vsel %vm2451, %v2269, 0
  %v3063 = vsel %vm2451, %v2270, 0
  %v3066 = vsel %vm2451, %v2271, 0
  %v3069 = vsel %vm2451, %v2272, 0
  %v3072 = vsel %vm2451, %v2273, 0
  %v3075 = vsel %vm2451, %v2274, 0
  %v3078 = vsel %vm2451, %v2275, 0
  %v3081 = vsel %vm2451, %v2276, 0
  %v3084 = vsel %vm2451, %v2277, 0
  %v3087 = vsel %vm2451, %v2278, 0
  %v3090 = vsel %vm2451, %v2279, 0
  %v3093 = vsel %vm2451, %v2280, 0
  %v3096 = vsel %vm2451, %v2281, 0
  %v3099 = vsel %vm2451, %v2282, 0
  %v3102 = vsel %vm2451, %v2283, 0
  %v3105 = vsel %vm2451, %v2284, 0
  %v3108 = vsel %vm2451, %v2285, 0
  %v3111 = vsel %vm2451, %v2286, 0
  %v3114 = vsel %vm2451, %v2287, 0
  %v3117 = vsel %vm2451, %v2288, 0
  %v3120 = vsel %vm2451, %v2289, 0
  %v3123 = vsel %vm2451, %v2290, 0
  %v3126 = vsel %vm2451, %v2291, 0
  %v3129 = vsel %vm2451, %v2292, 0
  %v3132 = vsel %vm2451, %v2293, 0
  %v3135 = vsel %vm2451, %v2294, 0
  %v3138 = vsel %vm2451, %v2295, 0
  %v3141 = vsel %vm2451, %v2296, 0
  %v3144 = vsel %vm2451, %v2297, 0
  %v3147 = vsel %vm2451, %v2298, 0
  %v3150 = vsel %vm2451, %v2299, 0
  %v3153 = vsel %vm2451, %v2300, 0
  %v3156 = vsel %vm2451, %v2301, 0
  %v3159 = vsel %vm2451, %v2302, 0
  %v3162 = vsel %vm2451, %v2303, 0
  %v3165 = vsel %vm2451, %v2304, 0
  %v3168 = vsel %vm2451, %v2305, 0
  %v3171 = vsel %vm2451, %v2306, 0
  %v3174 = vsel %vm2451, %v2307, 0
  %v3177 = vsel %vm2451, %v2308, 0
  %v3180 = vsel %vm2451, %v2309, 0
  %v3183 = vsel %vm2451, %v2310, 0
  %v3186 = vsel %vm2451, %v2311, 0
  %v3189 = vsel %vm2451, %v2312, 0
  %v3192 = vsel %vm2451, %v2313, 0
  %v3195 = vsel %vm2451, %v2314, 0
  %v3198 = vsel %vm2451, %v2315, 0
  %v3201 = vsel %vm2451, %v2316, 0
  %v3204 = vsel %vm2451, %v2317, 0
  %v3207 = vsel %vm2451, %v2318, 0
  %v3210 = vsel %vm2451, %v2319, 0
  %v3213 = vsel %vm2451, %v2320, 0
  %v3216 = vsel %vm2451, %v2321, 0
  %v3219 = vsel %vm2451, %v2322, 0
  %vm3221 = vcmask 1042432
  %v3223 = vsel %vm3221, %v2836, 0
  %3225 = vmatprep.subr.mxu0 0.0
  %3226 = vmatpush1.msra.mxu0 %v3223
  %3227 = vmatprep.subr.mxu0 0.0
  %3228 = vmatpush1.msra.mxu0 0.0
  %3229 = vmatprep.subr.mxu0 0.0
  %3230 = vmatpush1.msra.mxu0 0.0
  %3231 = vmatprep.subr.mxu0 0.0
  %3232 = vmatpush1.msra.mxu0 0.0
  %3233 = vmatprep.subr.mxu0 0.0
  %3234 = vmatpush1.msra.mxu0 0.0
  %3235 = vmatprep.subr.mxu0 0.0
  %3236 = vmatpush1.msra.mxu0 0.0
  %3237 = vmatprep.subr.mxu0 0.0
  %3238 = vmatpush1.msra.mxu0 0.0
  %3239 = vmatprep.subr.mxu0 0.0
  %3240 = vmatpush1.msra.mxu0 0.0
  %3241 = vmatprep.subr.mxu0 0.0
  %3242 = vmatpush1.msra.mxu0 0.0
  %3243 = vmatprep.subr.mxu0 0.0
  %3244 = vmatpush1.msra.mxu0 0.0
  %3245 = vmatprep.subr.mxu0 0.0
  %3246 = vmatpush1.msra.mxu0 0.0
  %3247 = vmatprep.subr.mxu0 0.0
  %3248 = vmatpush1.msra.mxu0 0.0
  %3249 = vmatprep.subr.mxu0 0.0
  %3250 = vmatpush1.msra.mxu0 0.0
  %3251 = vmatprep.subr.mxu0 0.0
  %3252 = vmatpush1.msra.mxu0 0.0
  %3253 = vmatprep.subr.mxu0 0.0
  %3254 = vmatpush1.msra.mxu0 0.0
  %3255 = vmatprep.subr.mxu0 0.0
  %3256 = vmatpush1.msra.mxu0 0.0
  %3257 = vmatprep.subr.mxu0 0.0
  %3258 = vmatpush1.msra.mxu0 0.0
  %3259 = vmatprep.subr.mxu0 0.0
  %3260 = vmatpush1.msra.mxu0 0.0
  %3261 = vmatprep.subr.mxu0 0.0
  %3262 = vmatpush1.msra.mxu0 0.0
  %3263 = vmatprep.subr.mxu0 0.0
  %3264 = vmatpush1.msra.mxu0 0.0
  %3265 = vmatprep.subr.mxu0 0.0
  %3266 = vmatpush1.msra.mxu0 0.0
  %3267 = vmatprep.subr.mxu0 0.0
  %3268 = vmatpush1.msra.mxu0 0.0
  %3269 = vmatprep.subr.mxu0 0.0
  %3270 = vmatpush1.msra.mxu0 0.0
  %3271 = vmatprep.subr.mxu0 0.0
  %3272 = vmatpush1.msra.mxu0 0.0
  %3273 = vmatprep.subr.mxu0 0.0
  %3274 = vmatpush1.msra.mxu0 0.0
  %3275 = vmatprep.subr.mxu0 0.0
  %3276 = vmatpush1.msra.mxu0 0.0
  %3277 = vmatprep.subr.mxu0 0.0
  %3278 = vmatpush1.msra.mxu0 0.0
  %3279 = vmatprep.subr.mxu0 0.0
  %3280 = vmatpush1.msra.mxu0 0.0
  %3281 = vmatprep.subr.mxu0 0.0
  %3282 = vmatpush1.msra.mxu0 0.0
  %3283 = vmatprep.subr.mxu0 0.0
  %3284 = vmatpush1.msra.mxu0 0.0
  %3285 = vmatprep.subr.mxu0 0.0
  %3286 = vmatpush1.msra.mxu0 0.0
  %3287 = vmatprep.subr.mxu0 0.0
  %3288 = vmatpush1.msra.mxu0 0.0
  %3289 = vmatprep.mubr.f32.mxu0 0.0
  %3290 = vmatmul.mubr.f32.gmra.mrb[0].mxu0 %v2838
  %v3291 = vpop.f32.mrb[0].mxu0
  %v3292 = vadd.f32 0.0, %v3291
  %v3293 = vpop.f32.mrb[0].mxu0
  %3294 = vmatprep.mubr.f32.mxu0 0.0
  %3295 = vmatmul.mubr.f32.gmra.mrb[0].mxu0 %v2841
  %v3296 = vpop.f32.mrb[0].mxu0
  %v3297 = vadd.f32 0.0, %v3296
  %v3298 = vpop.f32.mrb[0].mxu0
  %3299 = vmatprep.mubr.f32.mxu0 0.0
  %3300 = vmatmul.mubr.f32.gmra.mrb[0].mxu0 %v2844
  %v3301 = vpop.f32.mrb[0].mxu0
  %v3302 = vadd.f32 0.0, %v3301
  %v3303 = vpop.f32.mrb[0].mxu0
  %3304 = vmatprep.mubr.f32.mxu0 0.0
  %3305 = vmatmul.mubr.f32.gmra.mrb[0].mxu0 %v2847
  %v3306 = vpop.f32.mrb[0].mxu0
  %v3307 = vadd.f32 0.0, %v3306
  %v3308 = vpop.f32.mrb[0].mxu0
  %3309 = vmatprep.mubr.f32.mxu0 0.0
  %3310 = vmatmul.mubr.f32.gmra.mrb[0].mxu0 %v2850
  %v3311 = vpop.f32.mrb[0].mxu0
  %v3312 = vadd.f32 0.0, %v3311
  %v3313 = vpop.f32.mrb[0].mxu0
  %3314 = vmatprep.mubr.f32.mxu0 0.0
  %3315 = vmatmul.mubr.f32.gmra.mrb[0].mxu0 %v2853
  %v3316 = vpop.f32.mrb[0].mxu0
  %v3317 = vadd.f32 0.0, %v3316
  %v3318 = vpop.f32.mrb[0].mxu0
  %3319 = vmatprep.mubr.f32.mxu0 0.0
  %3320 = vmatmul.mubr.f32.gmra.mrb[0].mxu0 %v2856
  %v3321 = vpop.f32.mrb[0].mxu0
  %v3322 = vadd.f32 0.0, %v3321
  %v3323 = vpop.f32.mrb[0].mxu0
  %3324 = vmatprep.mubr.f32.mxu0 0.0
  %3325 = vmatmul.mubr.f32.gmra.mrb[0].mxu0 %v2859
  %v3326 = vpop.f32.mrb[0].mxu0
  %v3327 = vadd.f32 0.0, %v3326
  %v3328 = vpop.f32.mrb[0].mxu0
  %3329 = vmatprep.mubr.f32.mxu0 0.0
  %3330 = vmatmul.mubr.f32.gmra.mrb[0].mxu0 %v2862
  %v3331 = vpop.f32.mrb[0].mxu0
  %v3332 = vadd.f32 0.0, %v3331
  %v3333 = vpop.f32.mrb[0].mxu0
  %3334 = vmatprep.mubr.f32.mxu0 0.0
  %3335 = vmatmul.mubr.f32.gmra.mrb[0].mxu0 %v2865
  %v3336 = vpop.f32.mrb[0].mxu0
  %v3337 = vadd.f32 0.0, %v3336
  %v3338 = vpop.f32.mrb[0].mxu0
  %3339 = vmatprep.mubr.f32.mxu0 0.0
  %3340 = vmatmul.mubr.f32.gmra.mrb[0].mxu0 %v2868
  %v3341 = vpop.f32.mrb[0].mxu0
  %v3342 = vadd.f32 0.0, %v3341
  %v3343 = vpop.f32.mrb[0].mxu0
  %3344 = vmatprep.mubr.f32.mxu0 0.0
  %3345 = vmatmul.mubr.f32.gmra.mrb[0].mxu0 %v2871
  %v3346 = vpop.f32.mrb[0].mxu0
  %v3347 = vadd.f32 0.0, %v3346
  %v3348 = vpop.f32.mrb[0].mxu0
  %3349 = vmatprep.mubr.f32.mxu0 0.0
  %3350 = vmatmul.mubr.f32.gmra.mrb[0].mxu0 %v2874
  %v3351 = vpop.f32.mrb[0].mxu0
  %v3352 = vadd.f32 0.0, %v3351
  %v3353 = vpop.f32.mrb[0].mxu0
  %3354 = vmatprep.mubr.f32.mxu0 0.0
  %3355 = vmatmul.mubr.f32.gmra.mrb[0].mxu0 %v2877
  %v3356 = vpop.f32.mrb[0].mxu0
  %v3357 = vadd.f32 0.0, %v3356
  %v3358 = vpop.f32.mrb[0].mxu0
  %3359 = vmatprep.mubr.f32.mxu0 0.0
  %3360 = vmatmul.mubr.f32.gmra.mrb[0].mxu0 %v2880
  %v3361 = vpop.f32.mrb[0].mxu0
  %v3362 = vadd.f32 0.0, %v3361
  %v3363 = vpop.f32.mrb[0].mxu0
  %3364 = vmatprep.mubr.f32.mxu0 0.0
  %3365 = vmatmul.mubr.f32.gmra.mrb[0].mxu0 %v2883
  %v3366 = vpop.f32.mrb[0].mxu0
  %v3367 = vadd.f32 0.0, %v3366
  %v3368 = vpop.f32.mrb[0].mxu0
  %3369 = vmatprep.mubr.f32.mxu0 0.0
  %3370 = vmatmul.mubr.f32.gmra.mrb[0].mxu0 %v2886
  %v3371 = vpop.f32.mrb[0].mxu0
  %v3372 = vadd.f32 0.0, %v3371
  %v3373 = vpop.f32.mrb[0].mxu0
  %3374 = vmatprep.mubr.f32.mxu0 0.0
  %3375 = vmatmul.mubr.f32.gmra.mrb[0].mxu0 %v2889
  %v3376 = vpop.f32.mrb[0].mxu0
  %v3377 = vadd.f32 0.0, %v3376
  %v3378 = vpop.f32.mrb[0].mxu0
  %3379 = vmatprep.mubr.f32.mxu0 0.0
  %3380 = vmatmul.mubr.f32.gmra.mrb[0].mxu0 %v2892
  %v3381 = vpop.f32.mrb[0].mxu0
  %v3382 = vadd.f32 0.0, %v3381
  %v3383 = vpop.f32.mrb[0].mxu0
  %3384 = vmatprep.mubr.f32.mxu0 0.0
  %3385 = vmatmul.mubr.f32.gmra.mrb[0].mxu0 %v2895
  %v3386 = vpop.f32.mrb[0].mxu0
  %v3387 = vadd.f32 0.0, %v3386
  %v3388 = vpop.f32.mrb[0].mxu0
  %3389 = vmatprep.mubr.f32.mxu0 0.0
  %3390 = vmatmul.mubr.f32.gmra.mrb[0].mxu0 %v2898
  %v3391 = vpop.f32.mrb[0].mxu0
  %v3392 = vadd.f32 0.0, %v3391
  %v3393 = vpop.f32.mrb[0].mxu0
  %3394 = vmatprep.mubr.f32.mxu0 0.0
  %3395 = vmatmul.mubr.f32.gmra.mrb[0].mxu0 %v2901
  %v3396 = vpop.f32.mrb[0].mxu0
  %v3397 = vadd.f32 0.0, %v3396
  %v3398 = vpop.f32.mrb[0].mxu0
  %3399 = vmatprep.mubr.f32.mxu0 0.0
  %3400 = vmatmul.mubr.f32.gmra.mrb[0].mxu0 %v2904
  %v3401 = vpop.f32.mrb[0].mxu0
  %v3402 = vadd.f32 0.0, %v3401
  %v3403 = vpop.f32.mrb[0].mxu0
  %3404 = vmatprep.mubr.f32.mxu0 0.0
  %3405 = vmatmul.mubr.f32.gmra.mrb[0].mxu0 %v2907
  %v3406 = vpop.f32.mrb[0].mxu0
  %v3407 = vadd.f32 0.0, %v3406
  %v3408 = vpop.f32.mrb[0].mxu0
  %3409 = vmatprep.mubr.f32.mxu0 0.0
  %3410 = vmatmul.mubr.f32.gmra.mrb[0].mxu0 %v2910
  %v3411 = vpop.f32.mrb[0].mxu0
  %v3412 = vadd.f32 0.0, %v3411
  %v3413 = vpop.f32.mrb[0].mxu0
  %3414 = vmatprep.mubr.f32.mxu0 0.0
  %3415 = vmatmul.mubr.f32.gmra.mrb[0].mxu0 %v2913
  %v3416 = vpop.f32.mrb[0].mxu0
  %v3417 = vadd.f32 0.0, %v3416
  %v3418 = vpop.f32.mrb[0].mxu0
  %3419 = vmatprep.mubr.f32.mxu0 0.0
  %3420 = vmatmul.mubr.f32.gmra.mrb[0].mxu0 %v2916
  %v3421 = vpop.f32.mrb[0].mxu0
  %v3422 = vadd.f32 0.0, %v3421
  %v3423 = vpop.f32.mrb[0].mxu0
  %3424 = vmatprep.mubr.f32.mxu0 0.0
  %3425 = vmatmul.mubr.f32.gmra.mrb[0].mxu0 %v2919
  %v3426 = vpop.f32.mrb[0].mxu0
  %v3427 = vadd.f32 0.0, %v3426
  %v3428 = vpop.f32.mrb[0].mxu0
  %3429 = vmatprep.mubr.f32.mxu0 0.0
  %3430 = vmatmul.mubr.f32.gmra.mrb[0].mxu0 %v2922
  %v3431 = vpop.f32.mrb[0].mxu0
  %v3432 = vadd.f32 0.0, %v3431
  %v3433 = vpop.f32.mrb[0].mxu0
  %3434 = vmatprep.mubr.f32.mxu0 0.0
  %3435 = vmatmul.mubr.f32.gmra.mrb[0].mxu0 %v2925
  %v3436 = vpop.f32.mrb[0].mxu0
  %v3437 = vadd.f32 0.0, %v3436
  %v3438 = vpop.f32.mrb[0].mxu0
  %3439 = vmatprep.mubr.f32.mxu0 0.0
  %3440 = vmatmul.mubr.f32.gmra.mrb[0].mxu0 %v2928
  %v3441 = vpop.f32.mrb[0].mxu0
  %v3442 = vadd.f32 0.0, %v3441
  %v3443 = vpop.f32.mrb[0].mxu0
  %3444 = vmatprep.mubr.f32.mxu0 0.0
  %3445 = vmatmul.mubr.f32.gmra.mrb[0].mxu0 %v2931
  %v3446 = vpop.f32.mrb[0].mxu0
  %v3447 = vadd.f32 0.0, %v3446
  %v3448 = vpop.f32.mrb[0].mxu0
  %3449 = vmatprep.mubr.f32.mxu0 0.0
  %3450 = vmatmul.mubr.f32.gmra.mrb[0].mxu0 %v2934
  %v3451 = vpop.f32.mrb[0].mxu0
  %v3452 = vadd.f32 0.0, %v3451
  %v3453 = vpop.f32.mrb[0].mxu0
  %3454 = vmatprep.mubr.f32.mxu0 0.0
  %3455 = vmatmul.mubr.f32.gmra.mrb[0].mxu0 %v2937
  %v3456 = vpop.f32.mrb[0].mxu0
  %v3457 = vadd.f32 0.0, %v3456
  %v3458 = vpop.f32.mrb[0].mxu0
  %3459 = vmatprep.mubr.f32.mxu0 0.0
  %3460 = vmatmul.mubr.f32.gmra.mrb[0].mxu0 %v2940
  %v3461 = vpop.f32.mrb[0].mxu0
  %v3462 = vadd.f32 0.0, %v3461
  %v3463 = vpop.f32.mrb[0].mxu0
  %3464 = vmatprep.mubr.f32.mxu0 0.0
  %3465 = vmatmul.mubr.f32.gmra.mrb[0].mxu0 %v2943
  %v3466 = vpop.f32.mrb[0].mxu0
  %v3467 = vadd.f32 0.0, %v3466
  %v3468 = vpop.f32.mrb[0].mxu0
  %3469 = vmatprep.mubr.f32.mxu0 0.0
  %3470 = vmatmul.mubr.f32.gmra.mrb[0].mxu0 %v2946
  %v3471 = vpop.f32.mrb[0].mxu0
  %v3472 = vadd.f32 0.0, %v3471
  %v3473 = vpop.f32.mrb[0].mxu0
  %3474 = vmatprep.mubr.f32.mxu0 0.0
  %3475 = vmatmul.mubr.f32.gmra.mrb[0].mxu0 %v2949
  %v3476 = vpop.f32.mrb[0].mxu0
  %v3477 = vadd.f32 0.0, %v3476
  %v3478 = vpop.f32.mrb[0].mxu0
  %3479 = vmatprep.mubr.f32.mxu0 0.0
  %3480 = vmatmul.mubr.f32.gmra.mrb[0].mxu0 %v2952
  %v3481 = vpop.f32.mrb[0].mxu0
  %v3482 = vadd.f32 0.0, %v3481
  %v3483 = vpop.f32.mrb[0].mxu0
  %3484 = vmatprep.mubr.f32.mxu0 0.0
  %3485 = vmatmul.mubr.f32.gmra.mrb[0].mxu0 %v2955
  %v3486 = vpop.f32.mrb[0].mxu0
  %v3487 = vadd.f32 0.0, %v3486
  %v3488 = vpop.f32.mrb[0].mxu0
  %3489 = vmatprep.mubr.f32.mxu0 0.0
  %3490 = vmatmul.mubr.f32.gmra.mrb[0].mxu0 %v2958
  %v3491 = vpop.f32.mrb[0].mxu0
  %v3492 = vadd.f32 0.0, %v3491
  %v3493 = vpop.f32.mrb[0].mxu0
  %3494 = vmatprep.mubr.f32.mxu0 0.0
  %3495 = vmatmul.mubr.f32.gmra.mrb[0].mxu0 %v2961
  %v3496 = vpop.f32.mrb[0].mxu0
  %v3497 = vadd.f32 0.0, %v3496
  %v3498 = vpop.f32.mrb[0].mxu0
  %3499 = vmatprep.mubr.f32.mxu0 0.0
  %3500 = vmatmul.mubr.f32.gmra.mrb[0].mxu0 %v2964
  %v3501 = vpop.f32.mrb[0].mxu0
  %v3502 = vadd.f32 0.0, %v3501
  %v3503 = vpop.f32.mrb[0].mxu0
  %3504 = vmatprep.mubr.f32.mxu0 0.0
  %3505 = vmatmul.mubr.f32.gmra.mrb[0].mxu0 %v2967
  %v3506 = vpop.f32.mrb[0].mxu0
  %v3507 = vadd.f32 0.0, %v3506
  %v3508 = vpop.f32.mrb[0].mxu0
  %3509 = vmatprep.mubr.f32.mxu0 0.0
  %3510 = vmatmul.mubr.f32.gmra.mrb[0].mxu0 %v2970
  %v3511 = vpop.f32.mrb[0].mxu0
  %v3512 = vadd.f32 0.0, %v3511
  %v3513 = vpop.f32.mrb[0].mxu0
  %3514 = vmatprep.mubr.f32.mxu0 0.0
  %3515 = vmatmul.mubr.f32.gmra.mrb[0].mxu0 %v2973
  %v3516 = vpop.f32.mrb[0].mxu0
  %v3517 = vadd.f32 0.0, %v3516
  %v3518 = vpop.f32.mrb[0].mxu0
  %3519 = vmatprep.mubr.f32.mxu0 0.0
  %3520 = vmatmul.mubr.f32.gmra.mrb[0].mxu0 %v2976
  %v3521 = vpop.f32.mrb[0].mxu0
  %v3522 = vadd.f32 0.0, %v3521
  %v3523 = vpop.f32.mrb[0].mxu0
  %3524 = vmatprep.mubr.f32.mxu0 0.0
  %3525 = vmatmul.mubr.f32.gmra.mrb[0].mxu0 %v2979
  %v3526 = vpop.f32.mrb[0].mxu0
  %v3527 = vadd.f32 0.0, %v3526
  %v3528 = vpop.f32.mrb[0].mxu0
  %3529 = vmatprep.mubr.f32.mxu0 0.0
  %3530 = vmatmul.mubr.f32.gmra.mrb[0].mxu0 %v2982
  %v3531 = vpop.f32.mrb[0].mxu0
  %v3532 = vadd.f32 0.0, %v3531
  %v3533 = vpop.f32.mrb[0].mxu0
  %3534 = vmatprep.mubr.f32.mxu0 0.0
  %3535 = vmatmul.mubr.f32.gmra.mrb[0].mxu0 %v2985
  %v3536 = vpop.f32.mrb[0].mxu0
  %v3537 = vadd.f32 0.0, %v3536
  %v3538 = vpop.f32.mrb[0].mxu0
  %3539 = vmatprep.mubr.f32.mxu0 0.0
  %3540 = vmatmul.mubr.f32.gmra.mrb[0].mxu0 %v2988
  %v3541 = vpop.f32.mrb[0].mxu0
  %v3542 = vadd.f32 0.0, %v3541
  %v3543 = vpop.f32.mrb[0].mxu0
  %3544 = vmatprep.mubr.f32.mxu0 0.0
  %3545 = vmatmul.mubr.f32.gmra.mrb[0].mxu0 %v2991
  %v3546 = vpop.f32.mrb[0].mxu0
  %v3547 = vadd.f32 0.0, %v3546
  %v3548 = vpop.f32.mrb[0].mxu0
  %3549 = vmatprep.mubr.f32.mxu0 0.0
  %3550 = vmatmul.mubr.f32.gmra.mrb[0].mxu0 %v2994
  %v3551 = vpop.f32.mrb[0].mxu0
  %v3552 = vadd.f32 0.0, %v3551
  %v3553 = vpop.f32.mrb[0].mxu0
  %3554 = vmatprep.mubr.f32.mxu0 0.0
  %3555 = vmatmul.mubr.f32.gmra.mrb[0].mxu0 %v2997
  %v3556 = vpop.f32.mrb[0].mxu0
  %v3557 = vadd.f32 0.0, %v3556
  %v3558 = vpop.f32.mrb[0].mxu0
  %3559 = vmatprep.mubr.f32.mxu0 0.0
  %3560 = vmatmul.mubr.f32.gmra.mrb[0].mxu0 %v3000
  %v3561 = vpop.f32.mrb[0].mxu0
  %v3562 = vadd.f32 0.0, %v3561
  %v3563 = vpop.f32.mrb[0].mxu0
  %3564 = vmatprep.mubr.f32.mxu0 0.0
  %3565 = vmatmul.mubr.f32.gmra.mrb[0].mxu0 %v3003
  %v3566 = vpop.f32.mrb[0].mxu0
  %v3567 = vadd.f32 0.0, %v3566
  %v3568 = vpop.f32.mrb[0].mxu0
  %3569 = vmatprep.mubr.f32.mxu0 0.0
  %3570 = vmatmul.mubr.f32.gmra.mrb[0].mxu0 %v3006
  %v3571 = vpop.f32.mrb[0].mxu0
  %v3572 = vadd.f32 0.0, %v3571
  %v3573 = vpop.f32.mrb[0].mxu0
  %3574 = vmatprep.mubr.f32.mxu0 0.0
  %3575 = vmatmul.mubr.f32.gmra.mrb[0].mxu0 %v3009
  %v3576 = vpop.f32.mrb[0].mxu0
  %v3577 = vadd.f32 0.0, %v3576
  %v3578 = vpop.f32.mrb[0].mxu0
  %3579 = vmatprep.mubr.f32.mxu0 0.0
  %3580 = vmatmul.mubr.f32.gmra.mrb[0].mxu0 %v3012
  %v3581 = vpop.f32.mrb[0].mxu0
  %v3582 = vadd.f32 0.0, %v3581
  %v3583 = vpop.f32.mrb[0].mxu0
  %3584 = vmatprep.mubr.f32.mxu0 0.0
  %3585 = vmatmul.mubr.f32.gmra.mrb[0].mxu0 %v3015
  %v3586 = vpop.f32.mrb[0].mxu0
  %v3587 = vadd.f32 0.0, %v3586
  %v3588 = vpop.f32.mrb[0].mxu0
  %3589 = vmatprep.mubr.f32.mxu0 0.0
  %3590 = vmatmul.mubr.f32.gmra.mrb[0].mxu0 %v3018
  %v3591 = vpop.f32.mrb[0].mxu0
  %v3592 = vadd.f32 0.0, %v3591
  %v3593 = vpop.f32.mrb[0].mxu0
  %3594 = vmatprep.mubr.f32.mxu0 0.0
  %3595 = vmatmul.mubr.f32.gmra.mrb[0].mxu0 %v3021
  %v3596 = vpop.f32.mrb[0].mxu0
  %v3597 = vadd.f32 0.0, %v3596
  %v3598 = vpop.f32.mrb[0].mxu0
  %3599 = vmatprep.mubr.f32.mxu0 0.0
  %3600 = vmatmul.mubr.f32.gmra.mrb[0].mxu0 %v3024
  %v3601 = vpop.f32.mrb[0].mxu0
  %v3602 = vadd.f32 0.0, %v3601
  %v3603 = vpop.f32.mrb[0].mxu0
  %3604 = vmatprep.mubr.f32.mxu0 0.0
  %3605 = vmatmul.mubr.f32.gmra.mrb[0].mxu0 %v3027
  %v3606 = vpop.f32.mrb[0].mxu0
  %v3607 = vadd.f32 0.0, %v3606
  %v3608 = vpop.f32.mrb[0].mxu0
  %3609 = vmatprep.mubr.f32.mxu0 0.0
  %3610 = vmatmul.mubr.f32.gmra.mrb[0].mxu0 %v3030
  %v3611 = vpop.f32.mrb[0].mxu0
  %v3612 = vadd.f32 0.0, %v3611
  %v3613 = vpop.f32.mrb[0].mxu0
  %3614 = vmatprep.mubr.f32.mxu0 0.0
  %3615 = vmatmul.mubr.f32.gmra.mrb[0].mxu0 %v3033
  %v3616 = vpop.f32.mrb[0].mxu0
  %v3617 = vadd.f32 0.0, %v3616
  %v3618 = vpop.f32.mrb[0].mxu0
  %3619 = vmatprep.mubr.f32.mxu0 0.0
  %3620 = vmatmul.mubr.f32.gmra.mrb[0].mxu0 %v3036
  %v3621 = vpop.f32.mrb[0].mxu0
  %v3622 = vadd.f32 0.0, %v3621
  %v3623 = vpop.f32.mrb[0].mxu0
  %3624 = vmatprep.mubr.f32.mxu0 0.0
  %3625 = vmatmul.mubr.f32.gmra.mrb[0].mxu0 %v3039
  %v3626 = vpop.f32.mrb[0].mxu0
  %v3627 = vadd.f32 0.0, %v3626
  %v3628 = vpop.f32.mrb[0].mxu0
  %3629 = vmatprep.mubr.f32.mxu0 0.0
  %3630 = vmatmul.mubr.f32.gmra.mrb[0].mxu0 %v3042
  %v3631 = vpop.f32.mrb[0].mxu0
  %v3632 = vadd.f32 0.0, %v3631
  %v3633 = vpop.f32.mrb[0].mxu0
  %3634 = vmatprep.mubr.f32.mxu0 0.0
  %3635 = vmatmul.mubr.f32.gmra.mrb[0].mxu0 %v3045
  %v3636 = vpop.f32.mrb[0].mxu0
  %v3637 = vadd.f32 0.0, %v3636
  %v3638 = vpop.f32.mrb[0].mxu0
  %3639 = vmatprep.mubr.f32.mxu0 0.0
  %3640 = vmatmul.mubr.f32.gmra.mrb[0].mxu0 %v3048
  %v3641 = vpop.f32.mrb[0].mxu0
  %v3642 = vadd.f32 0.0, %v3641
  %v3643 = vpop.f32.mrb[0].mxu0
  %3644 = vmatprep.mubr.f32.mxu0 0.0
  %3645 = vmatmul.mubr.f32.gmra.mrb[0].mxu0 %v3051
  %v3646 = vpop.f32.mrb[0].mxu0
  %v3647 = vadd.f32 0.0, %v3646
  %v3648 = vpop.f32.mrb[0].mxu0
  %3649 = vmatprep.mubr.f32.mxu0 0.0
  %3650 = vmatmul.mubr.f32.gmra.mrb[0].mxu0 %v3054
  %v3651 = vpop.f32.mrb[0].mxu0
  %v3652 = vadd.f32 0.0, %v3651
  %v3653 = vpop.f32.mrb[0].mxu0
  %3654 = vmatprep.mubr.f32.mxu0 0.0
  %3655 = vmatmul.mubr.f32.gmra.mrb[0].mxu0 %v3057
  %v3656 = vpop.f32.mrb[0].mxu0
  %v3657 = vadd.f32 0.0, %v3656
  %v3658 = vpop.f32.mrb[0].mxu0
  %3659 = vmatprep.mubr.f32.mxu0 0.0
  %3660 = vmatmul.mubr.f32.gmra.mrb[0].mxu0 %v3060
  %v3661 = vpop.f32.mrb[0].mxu0
  %v3662 = vadd.f32 0.0, %v3661
  %v3663 = vpop.f32.mrb[0].mxu0
  %3664 = vmatprep.mubr.f32.mxu0 0.0
  %3665 = vmatmul.mubr.f32.gmra.mrb[0].mxu0 %v3063
  %v3666 = vpop.f32.mrb[0].mxu0
  %v3667 = vadd.f32 0.0, %v3666
  %v3668 = vpop.f32.mrb[0].mxu0
  %3669 = vmatprep.mubr.f32.mxu0 0.0
  %3670 = vmatmul.mubr.f32.gmra.mrb[0].mxu0 %v3066
  %v3671 = vpop.f32.mrb[0].mxu0
  %v3672 = vadd.f32 0.0, %v3671
  %v3673 = vpop.f32.mrb[0].mxu0
  %3674 = vmatprep.mubr.f32.mxu0 0.0
  %3675 = vmatmul.mubr.f32.gmra.mrb[0].mxu0 %v3069
  %v3676 = vpop.f32.mrb[0].mxu0
  %v3677 = vadd.f32 0.0, %v3676
  %v3678 = vpop.f32.mrb[0].mxu0
  %3679 = vmatprep.mubr.f32.mxu0 0.0
  %3680 = vmatmul.mubr.f32.gmra.mrb[0].mxu0 %v3072
  %v3681 = vpop.f32.mrb[0].mxu0
  %v3682 = vadd.f32 0.0, %v3681
  %v3683 = vpop.f32.mrb[0].mxu0
  %3684 = vmatprep.mubr.f32.mxu0 0.0
  %3685 = vmatmul.mubr.f32.gmra.mrb[0].mxu0 %v3075
  %v3686 = vpop.f32.mrb[0].mxu0
  %v3687 = vadd.f32 0.0, %v3686
  %v3688 = vpop.f32.mrb[0].mxu0
  %3689 = vmatprep.mubr.f32.mxu0 0.0
  %3690 = vmatmul.mubr.f32.gmra.mrb[0].mxu0 %v3078
  %v3691 = vpop.f32.mrb[0].mxu0
  %v3692 = vadd.f32 0.0, %v3691
  %v3693 = vpop.f32.mrb[0].mxu0
  %3694 = vmatprep.mubr.f32.mxu0 0.0
  %3695 = vmatmul.mubr.f32.gmra.mrb[0].mxu0 %v3081
  %v3696 = vpop.f32.mrb[0].mxu0
  %v3697 = vadd.f32 0.0, %v3696
  %v3698 = vpop.f32.mrb[0].mxu0
  %3699 = vmatprep.mubr.f32.mxu0 0.0
  %3700 = vmatmul.mubr.f32.gmra.mrb[0].mxu0 %v3084
  %v3701 = vpop.f32.mrb[0].mxu0
  %v3702 = vadd.f32 0.0, %v3701
  %v3703 = vpop.f32.mrb[0].mxu0
  %3704 = vmatprep.mubr.f32.mxu0 0.0
  %3705 = vmatmul.mubr.f32.gmra.mrb[0].mxu0 %v3087
  %v3706 = vpop.f32.mrb[0].mxu0
  %v3707 = vadd.f32 0.0, %v3706
  %v3708 = vpop.f32.mrb[0].mxu0
  %3709 = vmatprep.mubr.f32.mxu0 0.0
  %3710 = vmatmul.mubr.f32.gmra.mrb[0].mxu0 %v3090
  %v3711 = vpop.f32.mrb[0].mxu0
  %v3712 = vadd.f32 0.0, %v3711
  %v3713 = vpop.f32.mrb[0].mxu0
  %3714 = vmatprep.mubr.f32.mxu0 0.0
  %3715 = vmatmul.mubr.f32.gmra.mrb[0].mxu0 %v3093
  %v3716 = vpop.f32.mrb[0].mxu0
  %v3717 = vadd.f32 0.0, %v3716
  %v3718 = vpop.f32.mrb[0].mxu0
  %3719 = vmatprep.mubr.f32.mxu0 0.0
  %3720 = vmatmul.mubr.f32.gmra.mrb[0].mxu0 %v3096
  %v3721 = vpop.f32.mrb[0].mxu0
  %v3722 = vadd.f32 0.0, %v3721
  %v3723 = vpop.f32.mrb[0].mxu0
  %3724 = vmatprep.mubr.f32.mxu0 0.0
  %3725 = vmatmul.mubr.f32.gmra.mrb[0].mxu0 %v3099
  %v3726 = vpop.f32.mrb[0].mxu0
  %v3727 = vadd.f32 0.0, %v3726
  %v3728 = vpop.f32.mrb[0].mxu0
  %3729 = vmatprep.mubr.f32.mxu0 0.0
  %3730 = vmatmul.mubr.f32.gmra.mrb[0].mxu0 %v3102
  %v3731 = vpop.f32.mrb[0].mxu0
  %v3732 = vadd.f32 0.0, %v3731
  %v3733 = vpop.f32.mrb[0].mxu0
  %3734 = vmatprep.mubr.f32.mxu0 0.0
  %3735 = vmatmul.mubr.f32.gmra.mrb[0].mxu0 %v3105
  %v3736 = vpop.f32.mrb[0].mxu0
  %v3737 = vadd.f32 0.0, %v3736
  %v3738 = vpop.f32.mrb[0].mxu0
  %3739 = vmatprep.mubr.f32.mxu0 0.0
  %3740 = vmatmul.mubr.f32.gmra.mrb[0].mxu0 %v3108
  %v3741 = vpop.f32.mrb[0].mxu0
  %v3742 = vadd.f32 0.0, %v3741
  %v3743 = vpop.f32.mrb[0].mxu0
  %3744 = vmatprep.mubr.f32.mxu0 0.0
  %3745 = vmatmul.mubr.f32.gmra.mrb[0].mxu0 %v3111
  %v3746 = vpop.f32.mrb[0].mxu0
  %v3747 = vadd.f32 0.0, %v3746
  %v3748 = vpop.f32.mrb[0].mxu0
  %3749 = vmatprep.mubr.f32.mxu0 0.0
  %3750 = vmatmul.mubr.f32.gmra.mrb[0].mxu0 %v3114
  %v3751 = vpop.f32.mrb[0].mxu0
  %v3752 = vadd.f32 0.0, %v3751
  %v3753 = vpop.f32.mrb[0].mxu0
  %3754 = vmatprep.mubr.f32.mxu0 0.0
  %3755 = vmatmul.mubr.f32.gmra.mrb[0].mxu0 %v3117
  %v3756 = vpop.f32.mrb[0].mxu0
  %v3757 = vadd.f32 0.0, %v3756
  %v3758 = vpop.f32.mrb[0].mxu0
  %3759 = vmatprep.mubr.f32.mxu0 0.0
  %3760 = vmatmul.mubr.f32.gmra.mrb[0].mxu0 %v3120
  %v3761 = vpop.f32.mrb[0].mxu0
  %v3762 = vadd.f32 0.0, %v3761
  %v3763 = vpop.f32.mrb[0].mxu0
  %3764 = vmatprep.mubr.f32.mxu0 0.0
  %3765 = vmatmul.mubr.f32.gmra.mrb[0].mxu0 %v3123
  %v3766 = vpop.f32.mrb[0].mxu0
  %v3767 = vadd.f32 0.0, %v3766
  %v3768 = vpop.f32.mrb[0].mxu0
  %3769 = vmatprep.mubr.f32.mxu0 0.0
  %3770 = vmatmul.mubr.f32.gmra.mrb[0].mxu0 %v3126
  %v3771 = vpop.f32.mrb[0].mxu0
  %v3772 = vadd.f32 0.0, %v3771
  %v3773 = vpop.f32.mrb[0].mxu0
  %3774 = vmatprep.mubr.f32.mxu0 0.0
  %3775 = vmatmul.mubr.f32.gmra.mrb[0].mxu0 %v3129
  %v3776 = vpop.f32.mrb[0].mxu0
  %v3777 = vadd.f32 0.0, %v3776
  %v3778 = vpop.f32.mrb[0].mxu0
  %3779 = vmatprep.mubr.f32.mxu0 0.0
  %3780 = vmatmul.mubr.f32.gmra.mrb[0].mxu0 %v3132
  %v3781 = vpop.f32.mrb[0].mxu0
  %v3782 = vadd.f32 0.0, %v3781
  %v3783 = vpop.f32.mrb[0].mxu0
  %3784 = vmatprep.mubr.f32.mxu0 0.0
  %3785 = vmatmul.mubr.f32.gmra.mrb[0].mxu0 %v3135
  %v3786 = vpop.f32.mrb[0].mxu0
  %v3787 = vadd.f32 0.0, %v3786
  %v3788 = vpop.f32.mrb[0].mxu0
  %3789 = vmatprep.mubr.f32.mxu0 0.0
  %3790 = vmatmul.mubr.f32.gmra.mrb[0].mxu0 %v3138
  %v3791 = vpop.f32.mrb[0].mxu0
  %v3792 = vadd.f32 0.0, %v3791
  %v3793 = vpop.f32.mrb[0].mxu0
  %3794 = vmatprep.mubr.f32.mxu0 0.0
  %3795 = vmatmul.mubr.f32.gmra.mrb[0].mxu0 %v3141
  %v3796 = vpop.f32.mrb[0].mxu0
  %v3797 = vadd.f32 0.0, %v3796
  %v3798 = vpop.f32.mrb[0].mxu0
  %3799 = vmatprep.mubr.f32.mxu0 0.0
  %3800 = vmatmul.mubr.f32.gmra.mrb[0].mxu0 %v3144
  %v3801 = vpop.f32.mrb[0].mxu0
  %v3802 = vadd.f32 0.0, %v3801
  %v3803 = vpop.f32.mrb[0].mxu0
  %3804 = vmatprep.mubr.f32.mxu0 0.0
  %3805 = vmatmul.mubr.f32.gmra.mrb[0].mxu0 %v3147
  %v3806 = vpop.f32.mrb[0].mxu0
  %v3807 = vadd.f32 0.0, %v3806
  %v3808 = vpop.f32.mrb[0].mxu0
  %3809 = vmatprep.mubr.f32.mxu0 0.0
  %3810 = vmatmul.mubr.f32.gmra.mrb[0].mxu0 %v3150
  %v3811 = vpop.f32.mrb[0].mxu0
  %v3812 = vadd.f32 0.0, %v3811
  %v3813 = vpop.f32.mrb[0].mxu0
  %3814 = vmatprep.mubr.f32.mxu0 0.0
  %3815 = vmatmul.mubr.f32.gmra.mrb[0].mxu0 %v3153
  %v3816 = vpop.f32.mrb[0].mxu0
  %v3817 = vadd.f32 0.0, %v3816
  %v3818 = vpop.f32.mrb[0].mxu0
  %3819 = vmatprep.mubr.f32.mxu0 0.0
  %3820 = vmatmul.mubr.f32.gmra.mrb[0].mxu0 %v3156
  %v3821 = vpop.f32.mrb[0].mxu0
  %v3822 = vadd.f32 0.0, %v3821
  %v3823 = vpop.f32.mrb[0].mxu0
  %3824 = vmatprep.mubr.f32.mxu0 0.0
  %3825 = vmatmul.mubr.f32.gmra.mrb[0].mxu0 %v3159
  %v3826 = vpop.f32.mrb[0].mxu0
  %v3827 = vadd.f32 0.0, %v3826
  %v3828 = vpop.f32.mrb[0].mxu0
  %3829 = vmatprep.mubr.f32.mxu0 0.0
  %3830 = vmatmul.mubr.f32.gmra.mrb[0].mxu0 %v3162
  %v3831 = vpop.f32.mrb[0].mxu0
  %v3832 = vadd.f32 0.0, %v3831
  %v3833 = vpop.f32.mrb[0].mxu0
  %3834 = vmatprep.mubr.f32.mxu0 0.0
  %3835 = vmatmul.mubr.f32.gmra.mrb[0].mxu0 %v3165
  %v3836 = vpop.f32.mrb[0].mxu0
  %v3837 = vadd.f32 0.0, %v3836
  %v3838 = vpop.f32.mrb[0].mxu0
  %3839 = vmatprep.mubr.f32.mxu0 0.0
  %3840 = vmatmul.mubr.f32.gmra.mrb[0].mxu0 %v3168
  %v3841 = vpop.f32.mrb[0].mxu0
  %v3842 = vadd.f32 0.0, %v3841
  %v3843 = vpop.f32.mrb[0].mxu0
  %3844 = vmatprep.mubr.f32.mxu0 0.0
  %3845 = vmatmul.mubr.f32.gmra.mrb[0].mxu0 %v3171
  %v3846 = vpop.f32.mrb[0].mxu0
  %v3847 = vadd.f32 0.0, %v3846
  %v3848 = vpop.f32.mrb[0].mxu0
  %3849 = vmatprep.mubr.f32.mxu0 0.0
  %3850 = vmatmul.mubr.f32.gmra.mrb[0].mxu0 %v3174
  %v3851 = vpop.f32.mrb[0].mxu0
  %v3852 = vadd.f32 0.0, %v3851
  %v3853 = vpop.f32.mrb[0].mxu0
  %3854 = vmatprep.mubr.f32.mxu0 0.0
  %3855 = vmatmul.mubr.f32.gmra.mrb[0].mxu0 %v3177
  %v3856 = vpop.f32.mrb[0].mxu0
  %v3857 = vadd.f32 0.0, %v3856
  %v3858 = vpop.f32.mrb[0].mxu0
  %3859 = vmatprep.mubr.f32.mxu0 0.0
  %3860 = vmatmul.mubr.f32.gmra.mrb[0].mxu0 %v3180
  %v3861 = vpop.f32.mrb[0].mxu0
  %v3862 = vadd.f32 0.0, %v3861
  %v3863 = vpop.f32.mrb[0].mxu0
  %3864 = vmatprep.mubr.f32.mxu0 0.0
  %3865 = vmatmul.mubr.f32.gmra.mrb[0].mxu0 %v3183
  %v3866 = vpop.f32.mrb[0].mxu0
  %v3867 = vadd.f32 0.0, %v3866
  %v3868 = vpop.f32.mrb[0].mxu0
  %3869 = vmatprep.mubr.f32.mxu0 0.0
  %3870 = vmatmul.mubr.f32.gmra.mrb[0].mxu0 %v3186
  %v3871 = vpop.f32.mrb[0].mxu0
  %v3872 = vadd.f32 0.0, %v3871
  %v3873 = vpop.f32.mrb[0].mxu0
  %3874 = vmatprep.mubr.f32.mxu0 0.0
  %3875 = vmatmul.mubr.f32.gmra.mrb[0].mxu0 %v3189
  %v3876 = vpop.f32.mrb[0].mxu0
  %v3877 = vadd.f32 0.0, %v3876
  %v3878 = vpop.f32.mrb[0].mxu0
  %3879 = vmatprep.mubr.f32.mxu0 0.0
  %3880 = vmatmul.mubr.f32.gmra.mrb[0].mxu0 %v3192
  %v3881 = vpop.f32.mrb[0].mxu0
  %v3882 = vadd.f32 0.0, %v3881
  %v3883 = vpop.f32.mrb[0].mxu0
  %3884 = vmatprep.mubr.f32.mxu0 0.0
  %3885 = vmatmul.mubr.f32.gmra.mrb[0].mxu0 %v3195
  %v3886 = vpop.f32.mrb[0].mxu0
  %v3887 = vadd.f32 0.0, %v3886
  %v3888 = vpop.f32.mrb[0].mxu0
  %3889 = vmatprep.mubr.f32.mxu0 0.0
  %3890 = vmatmul.mubr.f32.gmra.mrb[0].mxu0 %v3198
  %v3891 = vpop.f32.mrb[0].mxu0
  %v3892 = vadd.f32 0.0, %v3891
  %v3893 = vpop.f32.mrb[0].mxu0
  %3894 = vmatprep.mubr.f32.mxu0 0.0
  %3895 = vmatmul.mubr.f32.gmra.mrb[0].mxu0 %v3201
  %v3896 = vpop.f32.mrb[0].mxu0
  %v3897 = vadd.f32 0.0, %v3896
  %v3898 = vpop.f32.mrb[0].mxu0
  %3899 = vmatprep.mubr.f32.mxu0 0.0
  %3900 = vmatmul.mubr.f32.gmra.mrb[0].mxu0 %v3204
  %v3901 = vpop.f32.mrb[0].mxu0
  %v3902 = vadd.f32 0.0, %v3901
  %v3903 = vpop.f32.mrb[0].mxu0
  %3904 = vmatprep.mubr.f32.mxu0 0.0
  %3905 = vmatmul.mubr.f32.gmra.mrb[0].mxu0 %v3207
  %v3906 = vpop.f32.mrb[0].mxu0
  %v3907 = vadd.f32 0.0, %v3906
  %v3908 = vpop.f32.mrb[0].mxu0
  %3909 = vmatprep.mubr.f32.mxu0 0.0
  %3910 = vmatmul.mubr.f32.gmra.mrb[0].mxu0 %v3210
  %v3911 = vpop.f32.mrb[0].mxu0
  %v3912 = vadd.f32 0.0, %v3911
  %v3913 = vpop.f32.mrb[0].mxu0
  %3914 = vmatprep.mubr.f32.mxu0 0.0
  %3915 = vmatmul.mubr.f32.gmra.mrb[0].mxu0 %v3213
  %v3916 = vpop.f32.mrb[0].mxu0
  %v3917 = vadd.f32 0.0, %v3916
  %v3918 = vpop.f32.mrb[0].mxu0
  %3919 = vmatprep.mubr.f32.mxu0 0.0
  %3920 = vmatmul.mubr.f32.gmra.mrb[0].mxu0 %v3216
  %v3921 = vpop.f32.mrb[0].mxu0
  %v3922 = vadd.f32 0.0, %v3921
  %v3923 = vpop.f32.mrb[0].mxu0
  %3924 = vmatprep.mubr.f32.mxu0 0.0
  %3925 = vmatmul.mubr.f32.gmra.mrb[0].mxu0 %v3219
  %v3926 = vpop.f32.mrb[0].mxu0
  %v3927 = vadd.f32 0.0, %v3926
  %v3928 = vpop.f32.mrb[0].mxu0
  %3929 = vdwg.mxu0
  %v3930 = vmul.f32 %v3292, 2.0
  %v3931 = vmul.f32 %v3297, 2.0
  %v3932 = vmul.f32 %v3302, 2.0
  %v3933 = vmul.f32 %v3307, 2.0
  %v3934 = vmul.f32 %v3312, 2.0
  %v3935 = vmul.f32 %v3317, 2.0
  %v3936 = vmul.f32 %v3322, 2.0
  %v3937 = vmul.f32 %v3327, 2.0
  %v3938 = vmul.f32 %v3332, 2.0
  %v3939 = vmul.f32 %v3337, 2.0
  %v3940 = vmul.f32 %v3342, 2.0
  %v3941 = vmul.f32 %v3347, 2.0
  %v3942 = vmul.f32 %v3352, 2.0
  %v3943 = vmul.f32 %v3357, 2.0
  %v3944 = vmul.f32 %v3362, 2.0
  %v3945 = vmul.f32 %v3367, 2.0
  %v3946 = vmul.f32 %v3372, 2.0
  %v3947 = vmul.f32 %v3377, 2.0
  %v3948 = vmul.f32 %v3382, 2.0
  %v3949 = vmul.f32 %v3387, 2.0
  %v3950 = vmul.f32 %v3392, 2.0
  %v3951 = vmul.f32 %v3397, 2.0
  %v3952 = vmul.f32 %v3402, 2.0
  %v3953 = vmul.f32 %v3407, 2.0
  %v3954 = vmul.f32 %v3412, 2.0
  %v3955 = vmul.f32 %v3417, 2.0
  %v3956 = vmul.f32 %v3422, 2.0
  %v3957 = vmul.f32 %v3427, 2.0
  %v3958 = vmul.f32 %v3432, 2.0
  %v3959 = vmul.f32 %v3437, 2.0
  %v3960 = vmul.f32 %v3442, 2.0
  %v3961 = vmul.f32 %v3447, 2.0
  %v3962 = vmul.f32 %v3452, 2.0
  %v3963 = vmul.f32 %v3457, 2.0
  %v3964 = vmul.f32 %v3462, 2.0
  %v3965 = vmul.f32 %v3467, 2.0
  %v3966 = vmul.f32 %v3472, 2.0
  %v3967 = vmul.f32 %v3477, 2.0
  %v3968 = vmul.f32 %v3482, 2.0
  %v3969 = vmul.f32 %v3487, 2.0
  %v3970 = vmul.f32 %v3492, 2.0
  %v3971 = vmul.f32 %v3497, 2.0
  %v3972 = vmul.f32 %v3502, 2.0
  %v3973 = vmul.f32 %v3507, 2.0
  %v3974 = vmul.f32 %v3512, 2.0
  %v3975 = vmul.f32 %v3517, 2.0
  %v3976 = vmul.f32 %v3522, 2.0
  %v3977 = vmul.f32 %v3527, 2.0
  %v3978 = vmul.f32 %v3532, 2.0
  %v3979 = vmul.f32 %v3537, 2.0
  %v3980 = vmul.f32 %v3542, 2.0
  %v3981 = vmul.f32 %v3547, 2.0
  %v3982 = vmul.f32 %v3552, 2.0
  %v3983 = vmul.f32 %v3557, 2.0
  %v3984 = vmul.f32 %v3562, 2.0
  %v3985 = vmul.f32 %v3567, 2.0
  %v3986 = vmul.f32 %v3572, 2.0
  %v3987 = vmul.f32 %v3577, 2.0
  %v3988 = vmul.f32 %v3582, 2.0
  %v3989 = vmul.f32 %v3587, 2.0
  %v3990 = vmul.f32 %v3592, 2.0
  %v3991 = vmul.f32 %v3597, 2.0
  %v3992 = vmul.f32 %v3602, 2.0
  %v3993 = vmul.f32 %v3607, 2.0
  %v3994 = vmul.f32 %v3612, 2.0
  %v3995 = vmul.f32 %v3617, 2.0
  %v3996 = vmul.f32 %v3622, 2.0
  %v3997 = vmul.f32 %v3627, 2.0
  %v3998 = vmul.f32 %v3632, 2.0
  %v3999 = vmul.f32 %v3637, 2.0
  %v4000 = vmul.f32 %v3642, 2.0
  %v4001 = vmul.f32 %v3647, 2.0
  %v4002 = vmul.f32 %v3652, 2.0
  %v4003 = vmul.f32 %v3657, 2.0
  %v4004 = vmul.f32 %v3662, 2.0
  %v4005 = vmul.f32 %v3667, 2.0
  %v4006 = vmul.f32 %v3672, 2.0
  %v4007 = vmul.f32 %v3677, 2.0
  %v4008 = vmul.f32 %v3682, 2.0
  %v4009 = vmul.f32 %v3687, 2.0
  %v4010 = vmul.f32 %v3692, 2.0
  %v4011 = vmul.f32 %v3697, 2.0
  %v4012 = vmul.f32 %v3702, 2.0
  %v4013 = vmul.f32 %v3707, 2.0
  %v4014 = vmul.f32 %v3712, 2.0
  %v4015 = vmul.f32 %v3717, 2.0
  %v4016 = vmul.f32 %v3722, 2.0
  %v4017 = vmul.f32 %v3727, 2.0
  %v4018 = vmul.f32 %v3732, 2.0
  %v4019 = vmul.f32 %v3737, 2.0
  %v4020 = vmul.f32 %v3742, 2.0
  %v4021 = vmul.f32 %v3747, 2.0
  %v4022 = vmul.f32 %v3752, 2.0
  %v4023 = vmul.f32 %v3757, 2.0
  %v4024 = vmul.f32 %v3762, 2.0
  %v4025 = vmul.f32 %v3767, 2.0
  %v4026 = vmul.f32 %v3772, 2.0
  %v4027 = vmul.f32 %v3777, 2.0
  %v4028 = vmul.f32 %v3782, 2.0
  %v4029 = vmul.f32 %v3787, 2.0
  %v4030 = vmul.f32 %v3792, 2.0
  %v4031 = vmul.f32 %v3797, 2.0
  %v4032 = vmul.f32 %v3802, 2.0
  %v4033 = vmul.f32 %v3807, 2.0
  %v4034 = vmul.f32 %v3812, 2.0
  %v4035 = vmul.f32 %v3817, 2.0
  %v4036 = vmul.f32 %v3822, 2.0
  %v4037 = vmul.f32 %v3827, 2.0
  %v4038 = vmul.f32 %v3832, 2.0
  %v4039 = vmul.f32 %v3837, 2.0
  %v4040 = vmul.f32 %v3842, 2.0
  %v4041 = vmul.f32 %v3847, 2.0
  %v4042 = vmul.f32 %v3852, 2.0
  %v4043 = vmul.f32 %v3857, 2.0
  %v4044 = vmul.f32 %v3862, 2.0
  %v4045 = vmul.f32 %v3867, 2.0
  %v4046 = vmul.f32 %v3872, 2.0
  %v4047 = vmul.f32 %v3877, 2.0
  %v4048 = vmul.f32 %v3882, 2.0
  %v4049 = vmul.f32 %v3887, 2.0
  %v4050 = vmul.f32 %v3892, 2.0
  %v4051 = vmul.f32 %v3897, 2.0
  %v4052 = vmul.f32 %v3902, 2.0
  %v4053 = vmul.f32 %v3907, 2.0
  %v4054 = vmul.f32 %v3912, 2.0
  %v4055 = vmul.f32 %v3917, 2.0
  %v4056 = vmul.f32 %v3922, 2.0
  %v4057 = vmul.f32 %v3927, 2.0
  %v4058 = vsub.f32 %v2454, %v3930
  %v4059 = vsub.f32 %v2457, %v3931
  %v4060 = vsub.f32 %v2460, %v3932
  %v4061 = vsub.f32 %v2463, %v3933
  %v4062 = vsub.f32 %v2466, %v3934
  %v4063 = vsub.f32 %v2469, %v3935
  %v4064 = vsub.f32 %v2472, %v3936
  %v4065 = vsub.f32 %v2475, %v3937
  %v4066 = vsub.f32 %v2478, %v3938
  %v4067 = vsub.f32 %v2481, %v3939
  %v4068 = vsub.f32 %v2484, %v3940
  %v4069 = vsub.f32 %v2487, %v3941
  %v4070 = vsub.f32 %v2490, %v3942
  %v4071 = vsub.f32 %v2493, %v3943
  %v4072 = vsub.f32 %v2496, %v3944
  %v4073 = vsub.f32 %v2499, %v3945
  %v4074 = vsub.f32 %v2502, %v3946
  %v4075 = vsub.f32 %v2505, %v3947
  %v4076 = vsub.f32 %v2508, %v3948
  %v4077 = vsub.f32 %v2511, %v3949
  %v4078 = vsub.f32 %v2514, %v3950
  %v4079 = vsub.f32 %v2517, %v3951
  %v4080 = vsub.f32 %v2520, %v3952
  %v4081 = vsub.f32 %v2523, %v3953
  %v4082 = vsub.f32 %v2526, %v3954
  %v4083 = vsub.f32 %v2529, %v3955
  %v4084 = vsub.f32 %v2532, %v3956
  %v4085 = vsub.f32 %v2535, %v3957
  %v4086 = vsub.f32 %v2538, %v3958
  %v4087 = vsub.f32 %v2541, %v3959
  %v4088 = vsub.f32 %v2544, %v3960
  %v4089 = vsub.f32 %v2547, %v3961
  %v4090 = vsub.f32 %v2550, %v3962
  %v4091 = vsub.f32 %v2553, %v3963
  %v4092 = vsub.f32 %v2556, %v3964
  %v4093 = vsub.f32 %v2559, %v3965
  %v4094 = vsub.f32 %v2562, %v3966
  %v4095 = vsub.f32 %v2565, %v3967
  %v4096 = vsub.f32 %v2568, %v3968
  %v4097 = vsub.f32 %v2571, %v3969
  %v4098 = vsub.f32 %v2574, %v3970
  %v4099 = vsub.f32 %v2577, %v3971
  %v4100 = vsub.f32 %v2580, %v3972
  %v4101 = vsub.f32 %v2583, %v3973
  %v4102 = vsub.f32 %v2586, %v3974
  %v4103 = vsub.f32 %v2589, %v3975
  %v4104 = vsub.f32 %v2592, %v3976
  %v4105 = vsub.f32 %v2595, %v3977
  %v4106 = vsub.f32 %v2598, %v3978
  %v4107 = vsub.f32 %v2601, %v3979
  %v4108 = vsub.f32 %v2604, %v3980
  %v4109 = vsub.f32 %v2607, %v3981
  %v4110 = vsub.f32 %v2610, %v3982
  %v4111 = vsub.f32 %v2613, %v3983
  %v4112 = vsub.f32 %v2616, %v3984
  %v4113 = vsub.f32 %v2619, %v3985
  %v4114 = vsub.f32 %v2622, %v3986
  %v4115 = vsub.f32 %v2625, %v3987
  %v4116 = vsub.f32 %v2628, %v3988
  %v4117 = vsub.f32 %v2631, %v3989
  %v4118 = vsub.f32 %v2634, %v3990
  %v4119 = vsub.f32 %v2637, %v3991
  %v4120 = vsub.f32 %v2640, %v3992
  %v4121 = vsub.f32 %v2643, %v3993
  %v4122 = vsub.f32 %v2646, %v3994
  %v4123 = vsub.f32 %v2649, %v3995
  %v4124 = vsub.f32 %v2652, %v3996
  %v4125 = vsub.f32 %v2655, %v3997
  %v4126 = vsub.f32 %v2658, %v3998
  %v4127 = vsub.f32 %v2661, %v3999
  %v4128 = vsub.f32 %v2664, %v4000
  %v4129 = vsub.f32 %v2667, %v4001
  %v4130 = vsub.f32 %v2670, %v4002
  %v4131 = vsub.f32 %v2673, %v4003
  %v4132 = vsub.f32 %v2676, %v4004
  %v4133 = vsub.f32 %v2679, %v4005
  %v4134 = vsub.f32 %v2682, %v4006
  %v4135 = vsub.f32 %v2685, %v4007
  %v4136 = vsub.f32 %v2688, %v4008
  %v4137 = vsub.f32 %v2691, %v4009
  %v4138 = vsub.f32 %v2694, %v4010
  %v4139 = vsub.f32 %v2697, %v4011
  %v4140 = vsub.f32 %v2700, %v4012
  %v4141 = vsub.f32 %v2703, %v4013
  %v4142 = vsub.f32 %v2706, %v4014
  %v4143 = vsub.f32 %v2709, %v4015
  %v4144 = vsub.f32 %v2712, %v4016
  %v4145 = vsub.f32 %v2715, %v4017
  %v4146 = vsub.f32 %v2718, %v4018
  %v4147 = vsub.f32 %v2721, %v4019
  %v4148 = vsub.f32 %v2724, %v4020
  %v4149 = vsub.f32 %v2727, %v4021
  %v4150 = vsub.f32 %v2730, %v4022
  %v4151 = vsub.f32 %v2733, %v4023
  %v4152 = vsub.f32 %v2736, %v4024
  %v4153 = vsub.f32 %v2739, %v4025
  %v4154 = vsub.f32 %v2742, %v4026
  %v4155 = vsub.f32 %v2745, %v4027
  %v4156 = vsub.f32 %v2748, %v4028
  %v4157 = vsub.f32 %v2751, %v4029
  %v4158 = vsub.f32 %v2754, %v4030
  %v4159 = vsub.f32 %v2757, %v4031
  %v4160 = vsub.f32 %v2760, %v4032
  %v4161 = vsub.f32 %v2763, %v4033
  %v4162 = vsub.f32 %v2766, %v4034
  %v4163 = vsub.f32 %v2769, %v4035
  %v4164 = vsub.f32 %v2772, %v4036
  %v4165 = vsub.f32 %v2775, %v4037
  %v4166 = vsub.f32 %v2778, %v4038
  %v4167 = vsub.f32 %v2781, %v4039
  %v4168 = vsub.f32 %v2784, %v4040
  %v4169 = vsub.f32 %v2787, %v4041
  %v4170 = vsub.f32 %v2790, %v4042
  %v4171 = vsub.f32 %v2793, %v4043
  %v4172 = vsub.f32 %v2796, %v4044
  %v4173 = vsub.f32 %v2799, %v4045
  %v4174 = vsub.f32 %v2802, %v4046
  %v4175 = vsub.f32 %v2805, %v4047
  %v4176 = vsub.f32 %v2808, %v4048
  %v4177 = vsub.f32 %v2811, %v4049
  %v4178 = vsub.f32 %v2814, %v4050
  %v4179 = vsub.f32 %v2817, %v4051
  %v4180 = vsub.f32 %v2820, %v4052
  %v4181 = vsub.f32 %v2823, %v4053
  %v4182 = vsub.f32 %v2826, %v4054
  %v4183 = vsub.f32 %v2829, %v4055
  %v4184 = vsub.f32 %v2832, %v4056
  %v4185 = vsub.f32 %v2835, %v4057
  %v4186 = vld [vmem:[%s3 + $0x3] sm:$0x1]
  %v4187 = vlaneseq
  %v4188 = vshrl.u32 %v4187, 7
  %v4189 = vsub.s32 0, %v4188
  %v4190 = vrot.slane %v4186, %v4189
  %v4191 = vadd.f32 %v4058, %v4190
  %v4192 = vadd.f32 %v4059, %v4190
  %v4193 = vadd.f32 %v4060, %v4190
  %v4194 = vadd.f32 %v4061, %v4190
  %v4195 = vadd.f32 %v4062, %v4190
  %v4196 = vadd.f32 %v4063, %v4190
  %v4197 = vadd.f32 %v4064, %v4190
  %v4198 = vadd.f32 %v4065, %v4190
  %v4199 = vadd.f32 %v4066, %v4190
  %v4200 = vadd.f32 %v4067, %v4190
  %v4201 = vadd.f32 %v4068, %v4190
  %v4202 = vadd.f32 %v4069, %v4190
  %v4203 = vadd.f32 %v4070, %v4190
  %v4204 = vadd.f32 %v4071, %v4190
  %v4205 = vadd.f32 %v4072, %v4190
  %v4206 = vadd.f32 %v4073, %v4190
  %v4207 = vadd.f32 %v4074, %v4190
  %v4208 = vadd.f32 %v4075, %v4190
  %v4209 = vadd.f32 %v4076, %v4190
  %v4210 = vadd.f32 %v4077, %v4190
  %v4211 = vadd.f32 %v4078, %v4190
  %v4212 = vadd.f32 %v4079, %v4190
  %v4213 = vadd.f32 %v4080, %v4190
  %v4214 = vadd.f32 %v4081, %v4190
  %v4215 = vadd.f32 %v4082, %v4190
  %v4216 = vadd.f32 %v4083, %v4190
  %v4217 = vadd.f32 %v4084, %v4190
  %v4218 = vadd.f32 %v4085, %v4190
  %v4219 = vadd.f32 %v4086, %v4190
  %v4220 = vadd.f32 %v4087, %v4190
  %v4221 = vadd.f32 %v4088, %v4190
  %v4222 = vadd.f32 %v4089, %v4190
  %v4223 = vadd.f32 %v4090, %v4190
  %v4224 = vadd.f32 %v4091, %v4190
  %v4225 = vadd.f32 %v4092, %v4190
  %v4226 = vadd.f32 %v4093, %v4190
  %v4227 = vadd.f32 %v4094, %v4190
  %v4228 = vadd.f32 %v4095, %v4190
  %v4229 = vadd.f32 %v4096, %v4190
  %v4230 = vadd.f32 %v4097, %v4190
  %v4231 = vadd.f32 %v4098, %v4190
  %v4232 = vadd.f32 %v4099, %v4190
  %v4233 = vadd.f32 %v4100, %v4190
  %v4234 = vadd.f32 %v4101, %v4190
  %v4235 = vadd.f32 %v4102, %v4190
  %v4236 = vadd.f32 %v4103, %v4190
  %v4237 = vadd.f32 %v4104, %v4190
  %v4238 = vadd.f32 %v4105, %v4190
  %v4239 = vadd.f32 %v4106, %v4190
  %v4240 = vadd.f32 %v4107, %v4190
  %v4241 = vadd.f32 %v4108, %v4190
  %v4242 = vadd.f32 %v4109, %v4190
  %v4243 = vadd.f32 %v4110, %v4190
  %v4244 = vadd.f32 %v4111, %v4190
  %v4245 = vadd.f32 %v4112, %v4190
  %v4246 = vadd.f32 %v4113, %v4190
  %v4247 = vadd.f32 %v4114, %v4190
  %v4248 = vadd.f32 %v4115, %v4190
  %v4249 = vadd.f32 %v4116, %v4190
  %v4250 = vadd.f32 %v4117, %v4190
  %v4251 = vadd.f32 %v4118, %v4190
  %v4252 = vadd.f32 %v4119, %v4190
  %v4253 = vadd.f32 %v4120, %v4190
  %v4254 = vadd.f32 %v4121, %v4190
  %v4255 = vadd.f32 %v4122, %v4190
  %v4256 = vadd.f32 %v4123, %v4190
  %v4257 = vadd.f32 %v4124, %v4190
  %v4258 = vadd.f32 %v4125, %v4190
  %v4259 = vadd.f32 %v4126, %v4190
  %v4260 = vadd.f32 %v4127, %v4190
  %v4261 = vadd.f32 %v4128, %v4190
  %v4262 = vadd.f32 %v4129, %v4190
  %v4263 = vadd.f32 %v4130, %v4190
  %v4264 = vadd.f32 %v4131, %v4190
  %v4265 = vadd.f32 %v4132, %v4190
  %v4266 = vadd.f32 %v4133, %v4190
  %v4267 = vadd.f32 %v4134, %v4190
  %v4268 = vadd.f32 %v4135, %v4190
  %v4269 = vadd.f32 %v4136, %v4190
  %v4270 = vadd.f32 %v4137, %v4190
  %v4271 = vadd.f32 %v4138, %v4190
  %v4272 = vadd.f32 %v4139, %v4190
  %v4273 = vadd.f32 %v4140, %v4190
  %v4274 = vadd.f32 %v4141, %v4190
  %v4275 = vadd.f32 %v4142, %v4190
  %v4276 = vadd.f32 %v4143, %v4190
  %v4277 = vadd.f32 %v4144, %v4190
  %v4278 = vadd.f32 %v4145, %v4190
  %v4279 = vadd.f32 %v4146, %v4190
  %v4280 = vadd.f32 %v4147, %v4190
  %v4281 = vadd.f32 %v4148, %v4190
  %v4282 = vadd.f32 %v4149, %v4190
  %v4283 = vadd.f32 %v4150, %v4190
  %v4284 = vadd.f32 %v4151, %v4190
  %v4285 = vadd.f32 %v4152, %v4190
  %v4286 = vadd.f32 %v4153, %v4190
  %v4287 = vadd.f32 %v4154, %v4190
  %v4288 = vadd.f32 %v4155, %v4190
  %v4289 = vadd.f32 %v4156, %v4190
  %v4290 = vadd.f32 %v4157, %v4190
  %v4291 = vadd.f32 %v4158, %v4190
  %v4292 = vadd.f32 %v4159, %v4190
  %v4293 = vadd.f32 %v4160, %v4190
  %v4294 = vadd.f32 %v4161, %v4190
  %v4295 = vadd.f32 %v4162, %v4190
  %v4296 = vadd.f32 %v4163, %v4190
  %v4297 = vadd.f32 %v4164, %v4190
  %v4298 = vadd.f32 %v4165, %v4190
  %v4299 = vadd.f32 %v4166, %v4190
  %v4300 = vadd.f32 %v4167, %v4190
  %v4301 = vadd.f32 %v4168, %v4190
  %v4302 = vadd.f32 %v4169, %v4190
  %v4303 = vadd.f32 %v4170, %v4190
  %v4304 = vadd.f32 %v4171, %v4190
  %v4305 = vadd.f32 %v4172, %v4190
  %v4306 = vadd.f32 %v4173, %v4190
  %v4307 = vadd.f32 %v4174, %v4190
  %v4308 = vadd.f32 %v4175, %v4190
  %v4309 = vadd.f32 %v4176, %v4190
  %v4310 = vadd.f32 %v4177, %v4190
  %v4311 = vadd.f32 %v4178, %v4190
  %v4312 = vadd.f32 %v4179, %v4190
  %v4313 = vadd.f32 %v4180, %v4190
  %v4314 = vadd.f32 %v4181, %v4190
  %v4315 = vadd.f32 %v4182, %v4190
  %v4316 = vadd.f32 %v4183, %v4190
  %v4317 = vadd.f32 %v4184, %v4190
  %v4318 = vadd.f32 %v4185, %v4190
  %v4319 = vmax.f32 %v4191, 0.0
  %v4320 = vmax.f32 %v4192, 0.0
  %v4321 = vmax.f32 %v4193, 0.0
  %v4322 = vmax.f32 %v4194, 0.0
  %v4323 = vmax.f32 %v4195, 0.0
  %v4324 = vmax.f32 %v4196, 0.0
  %v4325 = vmax.f32 %v4197, 0.0
  %v4326 = vmax.f32 %v4198, 0.0
  %v4327 = vmax.f32 %v4199, 0.0
  %v4328 = vmax.f32 %v4200, 0.0
  %v4329 = vmax.f32 %v4201, 0.0
  %v4330 = vmax.f32 %v4202, 0.0
  %v4331 = vmax.f32 %v4203, 0.0
  %v4332 = vmax.f32 %v4204, 0.0
  %v4333 = vmax.f32 %v4205, 0.0
  %v4334 = vmax.f32 %v4206, 0.0
  %v4335 = vmax.f32 %v4207, 0.0
  %v4336 = vmax.f32 %v4208, 0.0
  %v4337 = vmax.f32 %v4209, 0.0
  %v4338 = vmax.f32 %v4210, 0.0
  %v4339 = vmax.f32 %v4211, 0.0
  %v4340 = vmax.f32 %v4212, 0.0
  %v4341 = vmax.f32 %v4213, 0.0
  %v4342 = vmax.f32 %v4214, 0.0
  %v4343 = vmax.f32 %v4215, 0.0
  %v4344 = vmax.f32 %v4216, 0.0
  %v4345 = vmax.f32 %v4217, 0.0
  %v4346 = vmax.f32 %v4218, 0.0
  %v4347 = vmax.f32 %v4219, 0.0
  %v4348 = vmax.f32 %v4220, 0.0
  %v4349 = vmax.f32 %v4221, 0.0
  %v4350 = vmax.f32 %v4222, 0.0
  %v4351 = vmax.f32 %v4223, 0.0
  %v4352 = vmax.f32 %v4224, 0.0
  %v4353 = vmax.f32 %v4225, 0.0
  %v4354 = vmax.f32 %v4226, 0.0
  %v4355 = vmax.f32 %v4227, 0.0
  %v4356 = vmax.f32 %v4228, 0.0
  %v4357 = vmax.f32 %v4229, 0.0
  %v4358 = vmax.f32 %v4230, 0.0
  %v4359 = vmax.f32 %v4231, 0.0
  %v4360 = vmax.f32 %v4232, 0.0
  %v4361 = vmax.f32 %v4233, 0.0
  %v4362 = vmax.f32 %v4234, 0.0
  %v4363 = vmax.f32 %v4235, 0.0
  %v4364 = vmax.f32 %v4236, 0.0
  %v4365 = vmax.f32 %v4237, 0.0
  %v4366 = vmax.f32 %v4238, 0.0
  %v4367 = vmax.f32 %v4239, 0.0
  %v4368 = vmax.f32 %v4240, 0.0
  %v4369 = vmax.f32 %v4241, 0.0
  %v4370 = vmax.f32 %v4242, 0.0
  %v4371 = vmax.f32 %v4243, 0.0
  %v4372 = vmax.f32 %v4244, 0.0
  %v4373 = vmax.f32 %v4245, 0.0
  %v4374 = vmax.f32 %v4246, 0.0
  %v4375 = vmax.f32 %v4247, 0.0
  %v4376 = vmax.f32 %v4248, 0.0
  %v4377 = vmax.f32 %v4249, 0.0
  %v4378 = vmax.f32 %v4250, 0.0
  %v4379 = vmax.f32 %v4251, 0.0
  %v4380 = vmax.f32 %v4252, 0.0
  %v4381 = vmax.f32 %v4253, 0.0
  %v4382 = vmax.f32 %v4254, 0.0
  %v4383 = vmax.f32 %v4255, 0.0
  %v4384 = vmax.f32 %v4256, 0.0
  %v4385 = vmax.f32 %v4257, 0.0
  %v4386 = vmax.f32 %v4258, 0.0
  %v4387 = vmax.f32 %v4259, 0.0
  %v4388 = vmax.f32 %v4260, 0.0
  %v4389 = vmax.f32 %v4261, 0.0
  %v4390 = vmax.f32 %v4262, 0.0
  %v4391 = vmax.f32 %v4263, 0.0
  %v4392 = vmax.f32 %v4264, 0.0
  %v4393 = vmax.f32 %v4265, 0.0
  %v4394 = vmax.f32 %v4266, 0.0
  %v4395 = vmax.f32 %v4267, 0.0
  %v4396 = vmax.f32 %v4268, 0.0
  %v4397 = vmax.f32 %v4269, 0.0
  %v4398 = vmax.f32 %v4270, 0.0
  %v4399 = vmax.f32 %v4271, 0.0
  %v4400 = vmax.f32 %v4272, 0.0
  %v4401 = vmax.f32 %v4273, 0.0
  %v4402 = vmax.f32 %v4274, 0.0
  %v4403 = vmax.f32 %v4275, 0.0
  %v4404 = vmax.f32 %v4276, 0.0
  %v4405 = vmax.f32 %v4277, 0.0
  %v4406 = vmax.f32 %v4278, 0.0
  %v4407 = vmax.f32 %v4279, 0.0
  %v4408 = vmax.f32 %v4280, 0.0
  %v4409 = vmax.f32 %v4281, 0.0
  %v4410 = vmax.f32 %v4282, 0.0
  %v4411 = vmax.f32 %v4283, 0.0
  %v4412 = vmax.f32 %v4284, 0.0
  %v4413 = vmax.f32 %v4285, 0.0
  %v4414 = vmax.f32 %v4286, 0.0
  %v4415 = vmax.f32 %v4287, 0.0
  %v4416 = vmax.f32 %v4288, 0.0
  %v4417 = vmax.f32 %v4289, 0.0
  %v4418 = vmax.f32 %v4290, 0.0
  %v4419 = vmax.f32 %v4291, 0.0
  %v4420 = vmax.f32 %v4292, 0.0
  %v4421 = vmax.f32 %v4293, 0.0
  %v4422 = vmax.f32 %v4294, 0.0
  %v4423 = vmax.f32 %v4295, 0.0
  %v4424 = vmax.f32 %v4296, 0.0
  %v4425 = vmax.f32 %v4297, 0.0
  %v4426 = vmax.f32 %v4298, 0.0
  %v4427 = vmax.f32 %v4299, 0.0
  %v4428 = vmax.f32 %v4300, 0.0
  %v4429 = vmax.f32 %v4301, 0.0
  %v4430 = vmax.f32 %v4302, 0.0
  %v4431 = vmax.f32 %v4303, 0.0
  %v4432 = vmax.f32 %v4304, 0.0
  %v4433 = vmax.f32 %v4305, 0.0
  %v4434 = vmax.f32 %v4306, 0.0
  %v4435 = vmax.f32 %v4307, 0.0
  %v4436 = vmax.f32 %v4308, 0.0
  %v4437 = vmax.f32 %v4309, 0.0
  %v4438 = vmax.f32 %v4310, 0.0
  %v4439 = vmax.f32 %v4311, 0.0
  %v4440 = vmax.f32 %v4312, 0.0
  %v4441 = vmax.f32 %v4313, 0.0
  %v4442 = vmax.f32 %v4314, 0.0
  %v4443 = vmax.f32 %v4315, 0.0
  %v4444 = vmax.f32 %v4316, 0.0
  %v4445 = vmax.f32 %v4317, 0.0
  %v4446 = vmax.f32 %v4318, 0.0
  %v4447 = vrsqrt.pop %v4319
  %v4448 = vmul.f32 %v4319, %v4447
  %vm4449 = vcmp.eq.f32.partialorder %v4319, inf
  %v4450 = vsel %vm4449, %v4319, %v4448
  %vm4451 = vcmp.eq.f32.partialorder %v4319, 0.0
  %v4452 = vand.u32 %v4319, 2147483648
  %v4453 = vsel %vm4451, %v4452, %v4450
  %v4454 = vrsqrt.pop %v4320
  %v4455 = vmul.f32 %v4320, %v4454
  %vm4456 = vcmp.eq.f32.partialorder %v4320, inf
  %v4457 = vsel %vm4456, %v4320, %v4455
  %vm4458 = vcmp.eq.f32.partialorder %v4320, 0.0
  %v4459 = vand.u32 %v4320, 2147483648
  %v4460 = vsel %vm4458, %v4459, %v4457
  %v4461 = vrsqrt.pop %v4321
  %v4462 = vmul.f32 %v4321, %v4461
  %vm4463 = vcmp.eq.f32.partialorder %v4321, inf
  %v4464 = vsel %vm4463, %v4321, %v4462
  %vm4465 = vcmp.eq.f32.partialorder %v4321, 0.0
  %v4466 = vand.u32 %v4321, 2147483648
  %v4467 = vsel %vm4465, %v4466, %v4464
  %v4468 = vrsqrt.pop %v4322
  %v4469 = vmul.f32 %v4322, %v4468
  %vm4470 = vcmp.eq.f32.partialorder %v4322, inf
  %v4471 = vsel %vm4470, %v4322, %v4469
  %vm4472 = vcmp.eq.f32.partialorder %v4322, 0.0
  %v4473 = vand.u32 %v4322, 2147483648
  %v4474 = vsel %vm4472, %v4473, %v4471
  %v4475 = vrsqrt.pop %v4323
  %v4476 = vmul.f32 %v4323, %v4475
  %vm4477 = vcmp.eq.f32.partialorder %v4323, inf
  %v4478 = vsel %vm4477, %v4323, %v4476
  %vm4479 = vcmp.eq.f32.partialorder %v4323, 0.0
  %v4480 = vand.u32 %v4323, 2147483648
  %v4481 = vsel %vm4479, %v4480, %v4478
  %v4482 = vrsqrt.pop %v4324
  %v4483 = vmul.f32 %v4324, %v4482
  %vm4484 = vcmp.eq.f32.partialorder %v4324, inf
  %v4485 = vsel %vm4484, %v4324, %v4483
  %vm4486 = vcmp.eq.f32.partialorder %v4324, 0.0
  %v4487 = vand.u32 %v4324, 2147483648
  %v4488 = vsel %vm4486, %v4487, %v4485
  %v4489 = vrsqrt.pop %v4325
  %v4490 = vmul.f32 %v4325, %v4489
  %vm4491 = vcmp.eq.f32.partialorder %v4325, inf
  %v4492 = vsel %vm4491, %v4325, %v4490
  %vm4493 = vcmp.eq.f32.partialorder %v4325, 0.0
  %v4494 = vand.u32 %v4325, 2147483648
  %v4495 = vsel %vm4493, %v4494, %v4492
  %v4496 = vrsqrt.pop %v4326
  %v4497 = vmul.f32 %v4326, %v4496
  %vm4498 = vcmp.eq.f32.partialorder %v4326, inf
  %v4499 = vsel %vm4498, %v4326, %v4497
  %vm4500 = vcmp.eq.f32.partialorder %v4326, 0.0
  %v4501 = vand.u32 %v4326, 2147483648
  %v4502 = vsel %vm4500, %v4501, %v4499
  %v4503 = vrsqrt.pop %v4327
  %v4504 = vmul.f32 %v4327, %v4503
  %vm4505 = vcmp.eq.f32.partialorder %v4327, inf
  %v4506 = vsel %vm4505, %v4327, %v4504
  %vm4507 = vcmp.eq.f32.partialorder %v4327, 0.0
  %v4508 = vand.u32 %v4327, 2147483648
  %v4509 = vsel %vm4507, %v4508, %v4506
  %v4510 = vrsqrt.pop %v4328
  %v4511 = vmul.f32 %v4328, %v4510
  %vm4512 = vcmp.eq.f32.partialorder %v4328, inf
  %v4513 = vsel %vm4512, %v4328, %v4511
  %vm4514 = vcmp.eq.f32.partialorder %v4328, 0.0
  %v4515 = vand.u32 %v4328, 2147483648
  %v4516 = vsel %vm4514, %v4515, %v4513
  %v4517 = vrsqrt.pop %v4329
  %v4518 = vmul.f32 %v4329, %v4517
  %vm4519 = vcmp.eq.f32.partialorder %v4329, inf
  %v4520 = vsel %vm4519, %v4329, %v4518
  %vm4521 = vcmp.eq.f32.partialorder %v4329, 0.0
  %v4522 = vand.u32 %v4329, 2147483648
  %v4523 = vsel %vm4521, %v4522, %v4520
  %v4524 = vrsqrt.pop %v4330
  %v4525 = vmul.f32 %v4330, %v4524
  %vm4526 = vcmp.eq.f32.partialorder %v4330, inf
  %v4527 = vsel %vm4526, %v4330, %v4525
  %vm4528 = vcmp.eq.f32.partialorder %v4330, 0.0
  %v4529 = vand.u32 %v4330, 2147483648
  %v4530 = vsel %vm4528, %v4529, %v4527
  %v4531 = vrsqrt.pop %v4331
  %v4532 = vmul.f32 %v4331, %v4531
  %vm4533 = vcmp.eq.f32.partialorder %v4331, inf
  %v4534 = vsel %vm4533, %v4331, %v4532
  %vm4535 = vcmp.eq.f32.partialorder %v4331, 0.0
  %v4536 = vand.u32 %v4331, 2147483648
  %v4537 = vsel %vm4535, %v4536, %v4534
  %v4538 = vrsqrt.pop %v4332
  %v4539 = vmul.f32 %v4332, %v4538
  %vm4540 = vcmp.eq.f32.partialorder %v4332, inf
  %v4541 = vsel %vm4540, %v4332, %v4539
  %vm4542 = vcmp.eq.f32.partialorder %v4332, 0.0
  %v4543 = vand.u32 %v4332, 2147483648
  %v4544 = vsel %vm4542, %v4543, %v4541
  %v4545 = vrsqrt.pop %v4333
  %v4546 = vmul.f32 %v4333, %v4545
  %vm4547 = vcmp.eq.f32.partialorder %v4333, inf
  %v4548 = vsel %vm4547, %v4333, %v4546
  %vm4549 = vcmp.eq.f32.partialorder %v4333, 0.0
  %v4550 = vand.u32 %v4333, 2147483648
  %v4551 = vsel %vm4549, %v4550, %v4548
  %v4552 = vrsqrt.pop %v4334
  %v4553 = vmul.f32 %v4334, %v4552
  %vm4554 = vcmp.eq.f32.partialorder %v4334, inf
  %v4555 = vsel %vm4554, %v4334, %v4553
  %vm4556 = vcmp.eq.f32.partialorder %v4334, 0.0
  %v4557 = vand.u32 %v4334, 2147483648
  %v4558 = vsel %vm4556, %v4557, %v4555
  %v4559 = vrsqrt.pop %v4335
  %v4560 = vmul.f32 %v4335, %v4559
  %vm4561 = vcmp.eq.f32.partialorder %v4335, inf
  %v4562 = vsel %vm4561, %v4335, %v4560
  %vm4563 = vcmp.eq.f32.partialorder %v4335, 0.0
  %v4564 = vand.u32 %v4335, 2147483648
  %v4565 = vsel %vm4563, %v4564, %v4562
  %v4566 = vrsqrt.pop %v4336
  %v4567 = vmul.f32 %v4336, %v4566
  %vm4568 = vcmp.eq.f32.partialorder %v4336, inf
  %v4569 = vsel %vm4568, %v4336, %v4567
  %vm4570 = vcmp.eq.f32.partialorder %v4336, 0.0
  %v4571 = vand.u32 %v4336, 2147483648
  %v4572 = vsel %vm4570, %v4571, %v4569
  %v4573 = vrsqrt.pop %v4337
  %v4574 = vmul.f32 %v4337, %v4573
  %vm4575 = vcmp.eq.f32.partialorder %v4337, inf
  %v4576 = vsel %vm4575, %v4337, %v4574
  %vm4577 = vcmp.eq.f32.partialorder %v4337, 0.0
  %v4578 = vand.u32 %v4337, 2147483648
  %v4579 = vsel %vm4577, %v4578, %v4576
  %v4580 = vrsqrt.pop %v4338
  %v4581 = vmul.f32 %v4338, %v4580
  %vm4582 = vcmp.eq.f32.partialorder %v4338, inf
  %v4583 = vsel %vm4582, %v4338, %v4581
  %vm4584 = vcmp.eq.f32.partialorder %v4338, 0.0
  %v4585 = vand.u32 %v4338, 2147483648
  %v4586 = vsel %vm4584, %v4585, %v4583
  %v4587 = vrsqrt.pop %v4339
  %v4588 = vmul.f32 %v4339, %v4587
  %vm4589 = vcmp.eq.f32.partialorder %v4339, inf
  %v4590 = vsel %vm4589, %v4339, %v4588
  %vm4591 = vcmp.eq.f32.partialorder %v4339, 0.0
  %v4592 = vand.u32 %v4339, 2147483648
  %v4593 = vsel %vm4591, %v4592, %v4590
  %v4594 = vrsqrt.pop %v4340
  %v4595 = vmul.f32 %v4340, %v4594
  %vm4596 = vcmp.eq.f32.partialorder %v4340, inf
  %v4597 = vsel %vm4596, %v4340, %v4595
  %vm4598 = vcmp.eq.f32.partialorder %v4340, 0.0
  %v4599 = vand.u32 %v4340, 2147483648
  %v4600 = vsel %vm4598, %v4599, %v4597
  %v4601 = vrsqrt.pop %v4341
  %v4602 = vmul.f32 %v4341, %v4601
  %vm4603 = vcmp.eq.f32.partialorder %v4341, inf
  %v4604 = vsel %vm4603, %v4341, %v4602
  %vm4605 = vcmp.eq.f32.partialorder %v4341, 0.0
  %v4606 = vand.u32 %v4341, 2147483648
  %v4607 = vsel %vm4605, %v4606, %v4604
  %v4608 = vrsqrt.pop %v4342
  %v4609 = vmul.f32 %v4342, %v4608
  %vm4610 = vcmp.eq.f32.partialorder %v4342, inf
  %v4611 = vsel %vm4610, %v4342, %v4609
  %vm4612 = vcmp.eq.f32.partialorder %v4342, 0.0
  %v4613 = vand.u32 %v4342, 2147483648
  %v4614 = vsel %vm4612, %v4613, %v4611
  %v4615 = vrsqrt.pop %v4343
  %v4616 = vmul.f32 %v4343, %v4615
  %vm4617 = vcmp.eq.f32.partialorder %v4343, inf
  %v4618 = vsel %vm4617, %v4343, %v4616
  %vm4619 = vcmp.eq.f32.partialorder %v4343, 0.0
  %v4620 = vand.u32 %v4343, 2147483648
  %v4621 = vsel %vm4619, %v4620, %v4618
  %v4622 = vrsqrt.pop %v4344
  %v4623 = vmul.f32 %v4344, %v4622
  %vm4624 = vcmp.eq.f32.partialorder %v4344, inf
  %v4625 = vsel %vm4624, %v4344, %v4623
  %vm4626 = vcmp.eq.f32.partialorder %v4344, 0.0
  %v4627 = vand.u32 %v4344, 2147483648
  %v4628 = vsel %vm4626, %v4627, %v4625
  %v4629 = vrsqrt.pop %v4345
  %v4630 = vmul.f32 %v4345, %v4629
  %vm4631 = vcmp.eq.f32.partialorder %v4345, inf
  %v4632 = vsel %vm4631, %v4345, %v4630
  %vm4633 = vcmp.eq.f32.partialorder %v4345, 0.0
  %v4634 = vand.u32 %v4345, 2147483648
  %v4635 = vsel %vm4633, %v4634, %v4632
  %v4636 = vrsqrt.pop %v4346
  %v4637 = vmul.f32 %v4346, %v4636
  %vm4638 = vcmp.eq.f32.partialorder %v4346, inf
  %v4639 = vsel %vm4638, %v4346, %v4637
  %vm4640 = vcmp.eq.f32.partialorder %v4346, 0.0
  %v4641 = vand.u32 %v4346, 2147483648
  %v4642 = vsel %vm4640, %v4641, %v4639
  %v4643 = vrsqrt.pop %v4347
  %v4644 = vmul.f32 %v4347, %v4643
  %vm4645 = vcmp.eq.f32.partialorder %v4347, inf
  %v4646 = vsel %vm4645, %v4347, %v4644
  %vm4647 = vcmp.eq.f32.partialorder %v4347, 0.0
  %v4648 = vand.u32 %v4347, 2147483648
  %v4649 = vsel %vm4647, %v4648, %v4646
  %v4650 = vrsqrt.pop %v4348
  %v4651 = vmul.f32 %v4348, %v4650
  %vm4652 = vcmp.eq.f32.partialorder %v4348, inf
  %v4653 = vsel %vm4652, %v4348, %v4651
  %vm4654 = vcmp.eq.f32.partialorder %v4348, 0.0
  %v4655 = vand.u32 %v4348, 2147483648
  %v4656 = vsel %vm4654, %v4655, %v4653
  %v4657 = vrsqrt.pop %v4349
  %v4658 = vmul.f32 %v4349, %v4657
  %vm4659 = vcmp.eq.f32.partialorder %v4349, inf
  %v4660 = vsel %vm4659, %v4349, %v4658
  %vm4661 = vcmp.eq.f32.partialorder %v4349, 0.0
  %v4662 = vand.u32 %v4349, 2147483648
  %v4663 = vsel %vm4661, %v4662, %v4660
  %v4664 = vrsqrt.pop %v4350
  %v4665 = vmul.f32 %v4350, %v4664
  %vm4666 = vcmp.eq.f32.partialorder %v4350, inf
  %v4667 = vsel %vm4666, %v4350, %v4665
  %vm4668 = vcmp.eq.f32.partialorder %v4350, 0.0
  %v4669 = vand.u32 %v4350, 2147483648
  %v4670 = vsel %vm4668, %v4669, %v4667
  %v4671 = vrsqrt.pop %v4351
  %v4672 = vmul.f32 %v4351, %v4671
  %vm4673 = vcmp.eq.f32.partialorder %v4351, inf
  %v4674 = vsel %vm4673, %v4351, %v4672
  %vm4675 = vcmp.eq.f32.partialorder %v4351, 0.0
  %v4676 = vand.u32 %v4351, 2147483648
  %v4677 = vsel %vm4675, %v4676, %v4674
  %v4678 = vrsqrt.pop %v4352
  %v4679 = vmul.f32 %v4352, %v4678
  %vm4680 = vcmp.eq.f32.partialorder %v4352, inf
  %v4681 = vsel %vm4680, %v4352, %v4679
  %vm4682 = vcmp.eq.f32.partialorder %v4352, 0.0
  %v4683 = vand.u32 %v4352, 2147483648
  %v4684 = vsel %vm4682, %v4683, %v4681
  %v4685 = vrsqrt.pop %v4353
  %v4686 = vmul.f32 %v4353, %v4685
  %vm4687 = vcmp.eq.f32.partialorder %v4353, inf
  %v4688 = vsel %vm4687, %v4353, %v4686
  %vm4689 = vcmp.eq.f32.partialorder %v4353, 0.0
  %v4690 = vand.u32 %v4353, 2147483648
  %v4691 = vsel %vm4689, %v4690, %v4688
  %v4692 = vrsqrt.pop %v4354
  %v4693 = vmul.f32 %v4354, %v4692
  %vm4694 = vcmp.eq.f32.partialorder %v4354, inf
  %v4695 = vsel %vm4694, %v4354, %v4693
  %vm4696 = vcmp.eq.f32.partialorder %v4354, 0.0
  %v4697 = vand.u32 %v4354, 2147483648
  %v4698 = vsel %vm4696, %v4697, %v4695
  %v4699 = vrsqrt.pop %v4355
  %v4700 = vmul.f32 %v4355, %v4699
  %vm4701 = vcmp.eq.f32.partialorder %v4355, inf
  %v4702 = vsel %vm4701, %v4355, %v4700
  %vm4703 = vcmp.eq.f32.partialorder %v4355, 0.0
  %v4704 = vand.u32 %v4355, 2147483648
  %v4705 = vsel %vm4703, %v4704, %v4702
  %v4706 = vrsqrt.pop %v4356
  %v4707 = vmul.f32 %v4356, %v4706
  %vm4708 = vcmp.eq.f32.partialorder %v4356, inf
  %v4709 = vsel %vm4708, %v4356, %v4707
  %vm4710 = vcmp.eq.f32.partialorder %v4356, 0.0
  %v4711 = vand.u32 %v4356, 2147483648
  %v4712 = vsel %vm4710, %v4711, %v4709
  %v4713 = vrsqrt.pop %v4357
  %v4714 = vmul.f32 %v4357, %v4713
  %vm4715 = vcmp.eq.f32.partialorder %v4357, inf
  %v4716 = vsel %vm4715, %v4357, %v4714
  %vm4717 = vcmp.eq.f32.partialorder %v4357, 0.0
  %v4718 = vand.u32 %v4357, 2147483648
  %v4719 = vsel %vm4717, %v4718, %v4716
  %v4720 = vrsqrt.pop %v4358
  %v4721 = vmul.f32 %v4358, %v4720
  %vm4722 = vcmp.eq.f32.partialorder %v4358, inf
  %v4723 = vsel %vm4722, %v4358, %v4721
  %vm4724 = vcmp.eq.f32.partialorder %v4358, 0.0
  %v4725 = vand.u32 %v4358, 2147483648
  %v4726 = vsel %vm4724, %v4725, %v4723
  %v4727 = vrsqrt.pop %v4359
  %v4728 = vmul.f32 %v4359, %v4727
  %vm4729 = vcmp.eq.f32.partialorder %v4359, inf
  %v4730 = vsel %vm4729, %v4359, %v4728
  %vm4731 = vcmp.eq.f32.partialorder %v4359, 0.0
  %v4732 = vand.u32 %v4359, 2147483648
  %v4733 = vsel %vm4731, %v4732, %v4730
  %v4734 = vrsqrt.pop %v4360
  %v4735 = vmul.f32 %v4360, %v4734
  %vm4736 = vcmp.eq.f32.partialorder %v4360, inf
  %v4737 = vsel %vm4736, %v4360, %v4735
  %vm4738 = vcmp.eq.f32.partialorder %v4360, 0.0
  %v4739 = vand.u32 %v4360, 2147483648
  %v4740 = vsel %vm4738, %v4739, %v4737
  %v4741 = vrsqrt.pop %v4361
  %v4742 = vmul.f32 %v4361, %v4741
  %vm4743 = vcmp.eq.f32.partialorder %v4361, inf
  %v4744 = vsel %vm4743, %v4361, %v4742
  %vm4745 = vcmp.eq.f32.partialorder %v4361, 0.0
  %v4746 = vand.u32 %v4361, 2147483648
  %v4747 = vsel %vm4745, %v4746, %v4744
  %v4748 = vrsqrt.pop %v4362
  %v4749 = vmul.f32 %v4362, %v4748
  %vm4750 = vcmp.eq.f32.partialorder %v4362, inf
  %v4751 = vsel %vm4750, %v4362, %v4749
  %vm4752 = vcmp.eq.f32.partialorder %v4362, 0.0
  %v4753 = vand.u32 %v4362, 2147483648
  %v4754 = vsel %vm4752, %v4753, %v4751
  %v4755 = vrsqrt.pop %v4363
  %v4756 = vmul.f32 %v4363, %v4755
  %vm4757 = vcmp.eq.f32.partialorder %v4363, inf
  %v4758 = vsel %vm4757, %v4363, %v4756
  %vm4759 = vcmp.eq.f32.partialorder %v4363, 0.0
  %v4760 = vand.u32 %v4363, 2147483648
  %v4761 = vsel %vm4759, %v4760, %v4758
  %v4762 = vrsqrt.pop %v4364
  %v4763 = vmul.f32 %v4364, %v4762
  %vm4764 = vcmp.eq.f32.partialorder %v4364, inf
  %v4765 = vsel %vm4764, %v4364, %v4763
  %vm4766 = vcmp.eq.f32.partialorder %v4364, 0.0
  %v4767 = vand.u32 %v4364, 2147483648
  %v4768 = vsel %vm4766, %v4767, %v4765
  %v4769 = vrsqrt.pop %v4365
  %v4770 = vmul.f32 %v4365, %v4769
  %vm4771 = vcmp.eq.f32.partialorder %v4365, inf
  %v4772 = vsel %vm4771, %v4365, %v4770
  %vm4773 = vcmp.eq.f32.partialorder %v4365, 0.0
  %v4774 = vand.u32 %v4365, 2147483648
  %v4775 = vsel %vm4773, %v4774, %v4772
  %v4776 = vrsqrt.pop %v4366
  %v4777 = vmul.f32 %v4366, %v4776
  %vm4778 = vcmp.eq.f32.partialorder %v4366, inf
  %v4779 = vsel %vm4778, %v4366, %v4777
  %vm4780 = vcmp.eq.f32.partialorder %v4366, 0.0
  %v4781 = vand.u32 %v4366, 2147483648
  %v4782 = vsel %vm4780, %v4781, %v4779
  %v4783 = vrsqrt.pop %v4367
  %v4784 = vmul.f32 %v4367, %v4783
  %vm4785 = vcmp.eq.f32.partialorder %v4367, inf
  %v4786 = vsel %vm4785, %v4367, %v4784
  %vm4787 = vcmp.eq.f32.partialorder %v4367, 0.0
  %v4788 = vand.u32 %v4367, 2147483648
  %v4789 = vsel %vm4787, %v4788, %v4786
  %v4790 = vrsqrt.pop %v4368
  %v4791 = vmul.f32 %v4368, %v4790
  %vm4792 = vcmp.eq.f32.partialorder %v4368, inf
  %v4793 = vsel %vm4792, %v4368, %v4791
  %vm4794 = vcmp.eq.f32.partialorder %v4368, 0.0
  %v4795 = vand.u32 %v4368, 2147483648
  %v4796 = vsel %vm4794, %v4795, %v4793
  %v4797 = vrsqrt.pop %v4369
  %v4798 = vmul.f32 %v4369, %v4797
  %vm4799 = vcmp.eq.f32.partialorder %v4369, inf
  %v4800 = vsel %vm4799, %v4369, %v4798
  %vm4801 = vcmp.eq.f32.partialorder %v4369, 0.0
  %v4802 = vand.u32 %v4369, 2147483648
  %v4803 = vsel %vm4801, %v4802, %v4800
  %v4804 = vrsqrt.pop %v4370
  %v4805 = vmul.f32 %v4370, %v4804
  %vm4806 = vcmp.eq.f32.partialorder %v4370, inf
  %v4807 = vsel %vm4806, %v4370, %v4805
  %vm4808 = vcmp.eq.f32.partialorder %v4370, 0.0
  %v4809 = vand.u32 %v4370, 2147483648
  %v4810 = vsel %vm4808, %v4809, %v4807
  %v4811 = vrsqrt.pop %v4371
  %v4812 = vmul.f32 %v4371, %v4811
  %vm4813 = vcmp.eq.f32.partialorder %v4371, inf
  %v4814 = vsel %vm4813, %v4371, %v4812
  %vm4815 = vcmp.eq.f32.partialorder %v4371, 0.0
  %v4816 = vand.u32 %v4371, 2147483648
  %v4817 = vsel %vm4815, %v4816, %v4814
  %v4818 = vrsqrt.pop %v4372
  %v4819 = vmul.f32 %v4372, %v4818
  %vm4820 = vcmp.eq.f32.partialorder %v4372, inf
  %v4821 = vsel %vm4820, %v4372, %v4819
  %vm4822 = vcmp.eq.f32.partialorder %v4372, 0.0
  %v4823 = vand.u32 %v4372, 2147483648
  %v4824 = vsel %vm4822, %v4823, %v4821
  %v4825 = vrsqrt.pop %v4373
  %v4826 = vmul.f32 %v4373, %v4825
  %vm4827 = vcmp.eq.f32.partialorder %v4373, inf
  %v4828 = vsel %vm4827, %v4373, %v4826
  %vm4829 = vcmp.eq.f32.partialorder %v4373, 0.0
  %v4830 = vand.u32 %v4373, 2147483648
  %v4831 = vsel %vm4829, %v4830, %v4828
  %v4832 = vrsqrt.pop %v4374
  %v4833 = vmul.f32 %v4374, %v4832
  %vm4834 = vcmp.eq.f32.partialorder %v4374, inf
  %v4835 = vsel %vm4834, %v4374, %v4833
  %vm4836 = vcmp.eq.f32.partialorder %v4374, 0.0
  %v4837 = vand.u32 %v4374, 2147483648
  %v4838 = vsel %vm4836, %v4837, %v4835
  %v4839 = vrsqrt.pop %v4375
  %v4840 = vmul.f32 %v4375, %v4839
  %vm4841 = vcmp.eq.f32.partialorder %v4375, inf
  %v4842 = vsel %vm4841, %v4375, %v4840
  %vm4843 = vcmp.eq.f32.partialorder %v4375, 0.0
  %v4844 = vand.u32 %v4375, 2147483648
  %v4845 = vsel %vm4843, %v4844, %v4842
  %v4846 = vrsqrt.pop %v4376
  %v4847 = vmul.f32 %v4376, %v4846
  %vm4848 = vcmp.eq.f32.partialorder %v4376, inf
  %v4849 = vsel %vm4848, %v4376, %v4847
  %vm4850 = vcmp.eq.f32.partialorder %v4376, 0.0
  %v4851 = vand.u32 %v4376, 2147483648
  %v4852 = vsel %vm4850, %v4851, %v4849
  %v4853 = vrsqrt.pop %v4377
  %v4854 = vmul.f32 %v4377, %v4853
  %vm4855 = vcmp.eq.f32.partialorder %v4377, inf
  %v4856 = vsel %vm4855, %v4377, %v4854
  %vm4857 = vcmp.eq.f32.partialorder %v4377, 0.0
  %v4858 = vand.u32 %v4377, 2147483648
  %v4859 = vsel %vm4857, %v4858, %v4856
  %v4860 = vrsqrt.pop %v4378
  %v4861 = vmul.f32 %v4378, %v4860
  %vm4862 = vcmp.eq.f32.partialorder %v4378, inf
  %v4863 = vsel %vm4862, %v4378, %v4861
  %vm4864 = vcmp.eq.f32.partialorder %v4378, 0.0
  %v4865 = vand.u32 %v4378, 2147483648
  %v4866 = vsel %vm4864, %v4865, %v4863
  %v4867 = vrsqrt.pop %v4379
  %v4868 = vmul.f32 %v4379, %v4867
  %vm4869 = vcmp.eq.f32.partialorder %v4379, inf
  %v4870 = vsel %vm4869, %v4379, %v4868
  %vm4871 = vcmp.eq.f32.partialorder %v4379, 0.0
  %v4872 = vand.u32 %v4379, 2147483648
  %v4873 = vsel %vm4871, %v4872, %v4870
  %v4874 = vrsqrt.pop %v4380
  %v4875 = vmul.f32 %v4380, %v4874
  %vm4876 = vcmp.eq.f32.partialorder %v4380, inf
  %v4877 = vsel %vm4876, %v4380, %v4875
  %vm4878 = vcmp.eq.f32.partialorder %v4380, 0.0
  %v4879 = vand.u32 %v4380, 2147483648
  %v4880 = vsel %vm4878, %v4879, %v4877
  %v4881 = vrsqrt.pop %v4381
  %v4882 = vmul.f32 %v4381, %v4881
  %vm4883 = vcmp.eq.f32.partialorder %v4381, inf
  %v4884 = vsel %vm4883, %v4381, %v4882
  %vm4885 = vcmp.eq.f32.partialorder %v4381, 0.0
  %v4886 = vand.u32 %v4381, 2147483648
  %v4887 = vsel %vm4885, %v4886, %v4884
  %v4888 = vrsqrt.pop %v4382
  %v4889 = vmul.f32 %v4382, %v4888
  %vm4890 = vcmp.eq.f32.partialorder %v4382, inf
  %v4891 = vsel %vm4890, %v4382, %v4889
  %vm4892 = vcmp.eq.f32.partialorder %v4382, 0.0
  %v4893 = vand.u32 %v4382, 2147483648
  %v4894 = vsel %vm4892, %v4893, %v4891
  %v4895 = vrsqrt.pop %v4383
  %v4896 = vmul.f32 %v4383, %v4895
  %vm4897 = vcmp.eq.f32.partialorder %v4383, inf
  %v4898 = vsel %vm4897, %v4383, %v4896
  %vm4899 = vcmp.eq.f32.partialorder %v4383, 0.0
  %v4900 = vand.u32 %v4383, 2147483648
  %v4901 = vsel %vm4899, %v4900, %v4898
  %v4902 = vrsqrt.pop %v4384
  %v4903 = vmul.f32 %v4384, %v4902
  %vm4904 = vcmp.eq.f32.partialorder %v4384, inf
  %v4905 = vsel %vm4904, %v4384, %v4903
  %vm4906 = vcmp.eq.f32.partialorder %v4384, 0.0
  %v4907 = vand.u32 %v4384, 2147483648
  %v4908 = vsel %vm4906, %v4907, %v4905
  %v4909 = vrsqrt.pop %v4385
  %v4910 = vmul.f32 %v4385, %v4909
  %vm4911 = vcmp.eq.f32.partialorder %v4385, inf
  %v4912 = vsel %vm4911, %v4385, %v4910
  %vm4913 = vcmp.eq.f32.partialorder %v4385, 0.0
  %v4914 = vand.u32 %v4385, 2147483648
  %v4915 = vsel %vm4913, %v4914, %v4912
  %v4916 = vrsqrt.pop %v4386
  %v4917 = vmul.f32 %v4386, %v4916
  %vm4918 = vcmp.eq.f32.partialorder %v4386, inf
  %v4919 = vsel %vm4918, %v4386, %v4917
  %vm4920 = vcmp.eq.f32.partialorder %v4386, 0.0
  %v4921 = vand.u32 %v4386, 2147483648
  %v4922 = vsel %vm4920, %v4921, %v4919
  %v4923 = vrsqrt.pop %v4387
  %v4924 = vmul.f32 %v4387, %v4923
  %vm4925 = vcmp.eq.f32.partialorder %v4387, inf
  %v4926 = vsel %vm4925, %v4387, %v4924
  %vm4927 = vcmp.eq.f32.partialorder %v4387, 0.0
  %v4928 = vand.u32 %v4387, 2147483648
  %v4929 = vsel %vm4927, %v4928, %v4926
  %v4930 = vrsqrt.pop %v4388
  %v4931 = vmul.f32 %v4388, %v4930
  %vm4932 = vcmp.eq.f32.partialorder %v4388, inf
  %v4933 = vsel %vm4932, %v4388, %v4931
  %vm4934 = vcmp.eq.f32.partialorder %v4388, 0.0
  %v4935 = vand.u32 %v4388, 2147483648
  %v4936 = vsel %vm4934, %v4935, %v4933
  %v4937 = vrsqrt.pop %v4389
  %v4938 = vmul.f32 %v4389, %v4937
  %vm4939 = vcmp.eq.f32.partialorder %v4389, inf
  %v4940 = vsel %vm4939, %v4389, %v4938
  %vm4941 = vcmp.eq.f32.partialorder %v4389, 0.0
  %v4942 = vand.u32 %v4389, 2147483648
  %v4943 = vsel %vm4941, %v4942, %v4940
  %v4944 = vrsqrt.pop %v4390
  %v4945 = vmul.f32 %v4390, %v4944
  %vm4946 = vcmp.eq.f32.partialorder %v4390, inf
  %v4947 = vsel %vm4946, %v4390, %v4945
  %vm4948 = vcmp.eq.f32.partialorder %v4390, 0.0
  %v4949 = vand.u32 %v4390, 2147483648
  %v4950 = vsel %vm4948, %v4949, %v4947
  %v4951 = vrsqrt.pop %v4391
  %v4952 = vmul.f32 %v4391, %v4951
  %vm4953 = vcmp.eq.f32.partialorder %v4391, inf
  %v4954 = vsel %vm4953, %v4391, %v4952
  %vm4955 = vcmp.eq.f32.partialorder %v4391, 0.0
  %v4956 = vand.u32 %v4391, 2147483648
  %v4957 = vsel %vm4955, %v4956, %v4954
  %v4958 = vrsqrt.pop %v4392
  %v4959 = vmul.f32 %v4392, %v4958
  %vm4960 = vcmp.eq.f32.partialorder %v4392, inf
  %v4961 = vsel %vm4960, %v4392, %v4959
  %vm4962 = vcmp.eq.f32.partialorder %v4392, 0.0
  %v4963 = vand.u32 %v4392, 2147483648
  %v4964 = vsel %vm4962, %v4963, %v4961
  %v4965 = vrsqrt.pop %v4393
  %v4966 = vmul.f32 %v4393, %v4965
  %vm4967 = vcmp.eq.f32.partialorder %v4393, inf
  %v4968 = vsel %vm4967, %v4393, %v4966
  %vm4969 = vcmp.eq.f32.partialorder %v4393, 0.0
  %v4970 = vand.u32 %v4393, 2147483648
  %v4971 = vsel %vm4969, %v4970, %v4968
  %v4972 = vrsqrt.pop %v4394
  %v4973 = vmul.f32 %v4394, %v4972
  %vm4974 = vcmp.eq.f32.partialorder %v4394, inf
  %v4975 = vsel %vm4974, %v4394, %v4973
  %vm4976 = vcmp.eq.f32.partialorder %v4394, 0.0
  %v4977 = vand.u32 %v4394, 2147483648
  %v4978 = vsel %vm4976, %v4977, %v4975
  %v4979 = vrsqrt.pop %v4395
  %v4980 = vmul.f32 %v4395, %v4979
  %vm4981 = vcmp.eq.f32.partialorder %v4395, inf
  %v4982 = vsel %vm4981, %v4395, %v4980
  %vm4983 = vcmp.eq.f32.partialorder %v4395, 0.0
  %v4984 = vand.u32 %v4395, 2147483648
  %v4985 = vsel %vm4983, %v4984, %v4982
  %v4986 = vrsqrt.pop %v4396
  %v4987 = vmul.f32 %v4396, %v4986
  %vm4988 = vcmp.eq.f32.partialorder %v4396, inf
  %v4989 = vsel %vm4988, %v4396, %v4987
  %vm4990 = vcmp.eq.f32.partialorder %v4396, 0.0
  %v4991 = vand.u32 %v4396, 2147483648
  %v4992 = vsel %vm4990, %v4991, %v4989
  %v4993 = vrsqrt.pop %v4397
  %v4994 = vmul.f32 %v4397, %v4993
  %vm4995 = vcmp.eq.f32.partialorder %v4397, inf
  %v4996 = vsel %vm4995, %v4397, %v4994
  %vm4997 = vcmp.eq.f32.partialorder %v4397, 0.0
  %v4998 = vand.u32 %v4397, 2147483648
  %v4999 = vsel %vm4997, %v4998, %v4996
  %v5000 = vrsqrt.pop %v4398
  %v5001 = vmul.f32 %v4398, %v5000
  %vm5002 = vcmp.eq.f32.partialorder %v4398, inf
  %v5003 = vsel %vm5002, %v4398, %v5001
  %vm5004 = vcmp.eq.f32.partialorder %v4398, 0.0
  %v5005 = vand.u32 %v4398, 2147483648
  %v5006 = vsel %vm5004, %v5005, %v5003
  %v5007 = vrsqrt.pop %v4399
  %v5008 = vmul.f32 %v4399, %v5007
  %vm5009 = vcmp.eq.f32.partialorder %v4399, inf
  %v5010 = vsel %vm5009, %v4399, %v5008
  %vm5011 = vcmp.eq.f32.partialorder %v4399, 0.0
  %v5012 = vand.u32 %v4399, 2147483648
  %v5013 = vsel %vm5011, %v5012, %v5010
  %v5014 = vrsqrt.pop %v4400
  %v5015 = vmul.f32 %v4400, %v5014
  %vm5016 = vcmp.eq.f32.partialorder %v4400, inf
  %v5017 = vsel %vm5016, %v4400, %v5015
  %vm5018 = vcmp.eq.f32.partialorder %v4400, 0.0
  %v5019 = vand.u32 %v4400, 2147483648
  %v5020 = vsel %vm5018, %v5019, %v5017
  %v5021 = vrsqrt.pop %v4401
  %v5022 = vmul.f32 %v4401, %v5021
  %vm5023 = vcmp.eq.f32.partialorder %v4401, inf
  %v5024 = vsel %vm5023, %v4401, %v5022
  %vm5025 = vcmp.eq.f32.partialorder %v4401, 0.0
  %v5026 = vand.u32 %v4401, 2147483648
  %v5027 = vsel %vm5025, %v5026, %v5024
  %v5028 = vrsqrt.pop %v4402
  %v5029 = vmul.f32 %v4402, %v5028
  %vm5030 = vcmp.eq.f32.partialorder %v4402, inf
  %v5031 = vsel %vm5030, %v4402, %v5029
  %vm5032 = vcmp.eq.f32.partialorder %v4402, 0.0
  %v5033 = vand.u32 %v4402, 2147483648
  %v5034 = vsel %vm5032, %v5033, %v5031
  %v5035 = vrsqrt.pop %v4403
  %v5036 = vmul.f32 %v4403, %v5035
  %vm5037 = vcmp.eq.f32.partialorder %v4403, inf
  %v5038 = vsel %vm5037, %v4403, %v5036
  %vm5039 = vcmp.eq.f32.partialorder %v4403, 0.0
  %v5040 = vand.u32 %v4403, 2147483648
  %v5041 = vsel %vm5039, %v5040, %v5038
  %v5042 = vrsqrt.pop %v4404
  %v5043 = vmul.f32 %v4404, %v5042
  %vm5044 = vcmp.eq.f32.partialorder %v4404, inf
  %v5045 = vsel %vm5044, %v4404, %v5043
  %vm5046 = vcmp.eq.f32.partialorder %v4404, 0.0
  %v5047 = vand.u32 %v4404, 2147483648
  %v5048 = vsel %vm5046, %v5047, %v5045
  %v5049 = vrsqrt.pop %v4405
  %v5050 = vmul.f32 %v4405, %v5049
  %vm5051 = vcmp.eq.f32.partialorder %v4405, inf
  %v5052 = vsel %vm5051, %v4405, %v5050
  %vm5053 = vcmp.eq.f32.partialorder %v4405, 0.0
  %v5054 = vand.u32 %v4405, 2147483648
  %v5055 = vsel %vm5053, %v5054, %v5052
  %v5056 = vrsqrt.pop %v4406
  %v5057 = vmul.f32 %v4406, %v5056
  %vm5058 = vcmp.eq.f32.partialorder %v4406, inf
  %v5059 = vsel %vm5058, %v4406, %v5057
  %vm5060 = vcmp.eq.f32.partialorder %v4406, 0.0
  %v5061 = vand.u32 %v4406, 2147483648
  %v5062 = vsel %vm5060, %v5061, %v5059
  %v5063 = vrsqrt.pop %v4407
  %v5064 = vmul.f32 %v4407, %v5063
  %vm5065 = vcmp.eq.f32.partialorder %v4407, inf
  %v5066 = vsel %vm5065, %v4407, %v5064
  %vm5067 = vcmp.eq.f32.partialorder %v4407, 0.0
  %v5068 = vand.u32 %v4407, 2147483648
  %v5069 = vsel %vm5067, %v5068, %v5066
  %v5070 = vrsqrt.pop %v4408
  %v5071 = vmul.f32 %v4408, %v5070
  %vm5072 = vcmp.eq.f32.partialorder %v4408, inf
  %v5073 = vsel %vm5072, %v4408, %v5071
  %vm5074 = vcmp.eq.f32.partialorder %v4408, 0.0
  %v5075 = vand.u32 %v4408, 2147483648
  %v5076 = vsel %vm5074, %v5075, %v5073
  %v5077 = vrsqrt.pop %v4409
  %v5078 = vmul.f32 %v4409, %v5077
  %vm5079 = vcmp.eq.f32.partialorder %v4409, inf
  %v5080 = vsel %vm5079, %v4409, %v5078
  %vm5081 = vcmp.eq.f32.partialorder %v4409, 0.0
  %v5082 = vand.u32 %v4409, 2147483648
  %v5083 = vsel %vm5081, %v5082, %v5080
  %v5084 = vrsqrt.pop %v4410
  %v5085 = vmul.f32 %v4410, %v5084
  %vm5086 = vcmp.eq.f32.partialorder %v4410, inf
  %v5087 = vsel %vm5086, %v4410, %v5085
  %vm5088 = vcmp.eq.f32.partialorder %v4410, 0.0
  %v5089 = vand.u32 %v4410, 2147483648
  %v5090 = vsel %vm5088, %v5089, %v5087
  %v5091 = vrsqrt.pop %v4411
  %v5092 = vmul.f32 %v4411, %v5091
  %vm5093 = vcmp.eq.f32.partialorder %v4411, inf
  %v5094 = vsel %vm5093, %v4411, %v5092
  %vm5095 = vcmp.eq.f32.partialorder %v4411, 0.0
  %v5096 = vand.u32 %v4411, 2147483648
  %v5097 = vsel %vm5095, %v5096, %v5094
  %v5098 = vrsqrt.pop %v4412
  %v5099 = vmul.f32 %v4412, %v5098
  %vm5100 = vcmp.eq.f32.partialorder %v4412, inf
  %v5101 = vsel %vm5100, %v4412, %v5099
  %vm5102 = vcmp.eq.f32.partialorder %v4412, 0.0
  %v5103 = vand.u32 %v4412, 2147483648
  %v5104 = vsel %vm5102, %v5103, %v5101
  %v5105 = vrsqrt.pop %v4413
  %v5106 = vmul.f32 %v4413, %v5105
  %vm5107 = vcmp.eq.f32.partialorder %v4413, inf
  %v5108 = vsel %vm5107, %v4413, %v5106
  %vm5109 = vcmp.eq.f32.partialorder %v4413, 0.0
  %v5110 = vand.u32 %v4413, 2147483648
  %v5111 = vsel %vm5109, %v5110, %v5108
  %v5112 = vrsqrt.pop %v4414
  %v5113 = vmul.f32 %v4414, %v5112
  %vm5114 = vcmp.eq.f32.partialorder %v4414, inf
  %v5115 = vsel %vm5114, %v4414, %v5113
  %vm5116 = vcmp.eq.f32.partialorder %v4414, 0.0
  %v5117 = vand.u32 %v4414, 2147483648
  %v5118 = vsel %vm5116, %v5117, %v5115
  %v5119 = vrsqrt.pop %v4415
  %v5120 = vmul.f32 %v4415, %v5119
  %vm5121 = vcmp.eq.f32.partialorder %v4415, inf
  %v5122 = vsel %vm5121, %v4415, %v5120
  %vm5123 = vcmp.eq.f32.partialorder %v4415, 0.0
  %v5124 = vand.u32 %v4415, 2147483648
  %v5125 = vsel %vm5123, %v5124, %v5122
  %v5126 = vrsqrt.pop %v4416
  %v5127 = vmul.f32 %v4416, %v5126
  %vm5128 = vcmp.eq.f32.partialorder %v4416, inf
  %v5129 = vsel %vm5128, %v4416, %v5127
  %vm5130 = vcmp.eq.f32.partialorder %v4416, 0.0
  %v5131 = vand.u32 %v4416, 2147483648
  %v5132 = vsel %vm5130, %v5131, %v5129
  %v5133 = vrsqrt.pop %v4417
  %v5134 = vmul.f32 %v4417, %v5133
  %vm5135 = vcmp.eq.f32.partialorder %v4417, inf
  %v5136 = vsel %vm5135, %v4417, %v5134
  %vm5137 = vcmp.eq.f32.partialorder %v4417, 0.0
  %v5138 = vand.u32 %v4417, 2147483648
  %v5139 = vsel %vm5137, %v5138, %v5136
  %v5140 = vrsqrt.pop %v4418
  %v5141 = vmul.f32 %v4418, %v5140
  %vm5142 = vcmp.eq.f32.partialorder %v4418, inf
  %v5143 = vsel %vm5142, %v4418, %v5141
  %vm5144 = vcmp.eq.f32.partialorder %v4418, 0.0
  %v5145 = vand.u32 %v4418, 2147483648
  %v5146 = vsel %vm5144, %v5145, %v5143
  %v5147 = vrsqrt.pop %v4419
  %v5148 = vmul.f32 %v4419, %v5147
  %vm5149 = vcmp.eq.f32.partialorder %v4419, inf
  %v5150 = vsel %vm5149, %v4419, %v5148
  %vm5151 = vcmp.eq.f32.partialorder %v4419, 0.0
  %v5152 = vand.u32 %v4419, 2147483648
  %v5153 = vsel %vm5151, %v5152, %v5150
  %v5154 = vrsqrt.pop %v4420
  %v5155 = vmul.f32 %v4420, %v5154
  %vm5156 = vcmp.eq.f32.partialorder %v4420, inf
  %v5157 = vsel %vm5156, %v4420, %v5155
  %vm5158 = vcmp.eq.f32.partialorder %v4420, 0.0
  %v5159 = vand.u32 %v4420, 2147483648
  %v5160 = vsel %vm5158, %v5159, %v5157
  %v5161 = vrsqrt.pop %v4421
  %v5162 = vmul.f32 %v4421, %v5161
  %vm5163 = vcmp.eq.f32.partialorder %v4421, inf
  %v5164 = vsel %vm5163, %v4421, %v5162
  %vm5165 = vcmp.eq.f32.partialorder %v4421, 0.0
  %v5166 = vand.u32 %v4421, 2147483648
  %v5167 = vsel %vm5165, %v5166, %v5164
  %v5168 = vrsqrt.pop %v4422
  %v5169 = vmul.f32 %v4422, %v5168
  %vm5170 = vcmp.eq.f32.partialorder %v4422, inf
  %v5171 = vsel %vm5170, %v4422, %v5169
  %vm5172 = vcmp.eq.f32.partialorder %v4422, 0.0
  %v5173 = vand.u32 %v4422, 2147483648
  %v5174 = vsel %vm5172, %v5173, %v5171
  %v5175 = vrsqrt.pop %v4423
  %v5176 = vmul.f32 %v4423, %v5175
  %vm5177 = vcmp.eq.f32.partialorder %v4423, inf
  %v5178 = vsel %vm5177, %v4423, %v5176
  %vm5179 = vcmp.eq.f32.partialorder %v4423, 0.0
  %v5180 = vand.u32 %v4423, 2147483648
  %v5181 = vsel %vm5179, %v5180, %v5178
  %v5182 = vrsqrt.pop %v4424
  %v5183 = vmul.f32 %v4424, %v5182
  %vm5184 = vcmp.eq.f32.partialorder %v4424, inf
  %v5185 = vsel %vm5184, %v4424, %v5183
  %vm5186 = vcmp.eq.f32.partialorder %v4424, 0.0
  %v5187 = vand.u32 %v4424, 2147483648
  %v5188 = vsel %vm5186, %v5187, %v5185
  %v5189 = vrsqrt.pop %v4425
  %v5190 = vmul.f32 %v4425, %v5189
  %vm5191 = vcmp.eq.f32.partialorder %v4425, inf
  %v5192 = vsel %vm5191, %v4425, %v5190
  %vm5193 = vcmp.eq.f32.partialorder %v4425, 0.0
  %v5194 = vand.u32 %v4425, 2147483648
  %v5195 = vsel %vm5193, %v5194, %v5192
  %v5196 = vrsqrt.pop %v4426
  %v5197 = vmul.f32 %v4426, %v5196
  %vm5198 = vcmp.eq.f32.partialorder %v4426, inf
  %v5199 = vsel %vm5198, %v4426, %v5197
  %vm5200 = vcmp.eq.f32.partialorder %v4426, 0.0
  %v5201 = vand.u32 %v4426, 2147483648
  %v5202 = vsel %vm5200, %v5201, %v5199
  %v5203 = vrsqrt.pop %v4427
  %v5204 = vmul.f32 %v4427, %v5203
  %vm5205 = vcmp.eq.f32.partialorder %v4427, inf
  %v5206 = vsel %vm5205, %v4427, %v5204
  %vm5207 = vcmp.eq.f32.partialorder %v4427, 0.0
  %v5208 = vand.u32 %v4427, 2147483648
  %v5209 = vsel %vm5207, %v5208, %v5206
  %v5210 = vrsqrt.pop %v4428
  %v5211 = vmul.f32 %v4428, %v5210
  %vm5212 = vcmp.eq.f32.partialorder %v4428, inf
  %v5213 = vsel %vm5212, %v4428, %v5211
  %vm5214 = vcmp.eq.f32.partialorder %v4428, 0.0
  %v5215 = vand.u32 %v4428, 2147483648
  %v5216 = vsel %vm5214, %v5215, %v5213
  %v5217 = vrsqrt.pop %v4429
  %v5218 = vmul.f32 %v4429, %v5217
  %vm5219 = vcmp.eq.f32.partialorder %v4429, inf
  %v5220 = vsel %vm5219, %v4429, %v5218
  %vm5221 = vcmp.eq.f32.partialorder %v4429, 0.0
  %v5222 = vand.u32 %v4429, 2147483648
  %v5223 = vsel %vm5221, %v5222, %v5220
  %v5224 = vrsqrt.pop %v4430
  %v5225 = vmul.f32 %v4430, %v5224
  %vm5226 = vcmp.eq.f32.partialorder %v4430, inf
  %v5227 = vsel %vm5226, %v4430, %v5225
  %vm5228 = vcmp.eq.f32.partialorder %v4430, 0.0
  %v5229 = vand.u32 %v4430, 2147483648
  %v5230 = vsel %vm5228, %v5229, %v5227
  %v5231 = vrsqrt.pop %v4431
  %v5232 = vmul.f32 %v4431, %v5231
  %vm5233 = vcmp.eq.f32.partialorder %v4431, inf
  %v5234 = vsel %vm5233, %v4431, %v5232
  %vm5235 = vcmp.eq.f32.partialorder %v4431, 0.0
  %v5236 = vand.u32 %v4431, 2147483648
  %v5237 = vsel %vm5235, %v5236, %v5234
  %v5238 = vrsqrt.pop %v4432
  %v5239 = vmul.f32 %v4432, %v5238
  %vm5240 = vcmp.eq.f32.partialorder %v4432, inf
  %v5241 = vsel %vm5240, %v4432, %v5239
  %vm5242 = vcmp.eq.f32.partialorder %v4432, 0.0
  %v5243 = vand.u32 %v4432, 2147483648
  %v5244 = vsel %vm5242, %v5243, %v5241
  %v5245 = vrsqrt.pop %v4433
  %v5246 = vmul.f32 %v4433, %v5245
  %vm5247 = vcmp.eq.f32.partialorder %v4433, inf
  %v5248 = vsel %vm5247, %v4433, %v5246
  %vm5249 = vcmp.eq.f32.partialorder %v4433, 0.0
  %v5250 = vand.u32 %v4433, 2147483648
  %v5251 = vsel %vm5249, %v5250, %v5248
  %v5252 = vrsqrt.pop %v4434
  %v5253 = vmul.f32 %v4434, %v5252
  %vm5254 = vcmp.eq.f32.partialorder %v4434, inf
  %v5255 = vsel %vm5254, %v4434, %v5253
  %vm5256 = vcmp.eq.f32.partialorder %v4434, 0.0
  %v5257 = vand.u32 %v4434, 2147483648
  %v5258 = vsel %vm5256, %v5257, %v5255
  %v5259 = vrsqrt.pop %v4435
  %v5260 = vmul.f32 %v4435, %v5259
  %vm5261 = vcmp.eq.f32.partialorder %v4435, inf
  %v5262 = vsel %vm5261, %v4435, %v5260
  %vm5263 = vcmp.eq.f32.partialorder %v4435, 0.0
  %v5264 = vand.u32 %v4435, 2147483648
  %v5265 = vsel %vm5263, %v5264, %v5262
  %v5266 = vrsqrt.pop %v4436
  %v5267 = vmul.f32 %v4436, %v5266
  %vm5268 = vcmp.eq.f32.partialorder %v4436, inf
  %v5269 = vsel %vm5268, %v4436, %v5267
  %vm5270 = vcmp.eq.f32.partialorder %v4436, 0.0
  %v5271 = vand.u32 %v4436, 2147483648
  %v5272 = vsel %vm5270, %v5271, %v5269
  %v5273 = vrsqrt.pop %v4437
  %v5274 = vmul.f32 %v4437, %v5273
  %vm5275 = vcmp.eq.f32.partialorder %v4437, inf
  %v5276 = vsel %vm5275, %v4437, %v5274
  %vm5277 = vcmp.eq.f32.partialorder %v4437, 0.0
  %v5278 = vand.u32 %v4437, 2147483648
  %v5279 = vsel %vm5277, %v5278, %v5276
  %v5280 = vrsqrt.pop %v4438
  %v5281 = vmul.f32 %v4438, %v5280
  %vm5282 = vcmp.eq.f32.partialorder %v4438, inf
  %v5283 = vsel %vm5282, %v4438, %v5281
  %vm5284 = vcmp.eq.f32.partialorder %v4438, 0.0
  %v5285 = vand.u32 %v4438, 2147483648
  %v5286 = vsel %vm5284, %v5285, %v5283
  %v5287 = vrsqrt.pop %v4439
  %v5288 = vmul.f32 %v4439, %v5287
  %vm5289 = vcmp.eq.f32.partialorder %v4439, inf
  %v5290 = vsel %vm5289, %v4439, %v5288
  %vm5291 = vcmp.eq.f32.partialorder %v4439, 0.0
  %v5292 = vand.u32 %v4439, 2147483648
  %v5293 = vsel %vm5291, %v5292, %v5290
  %v5294 = vrsqrt.pop %v4440
  %v5295 = vmul.f32 %v4440, %v5294
  %vm5296 = vcmp.eq.f32.partialorder %v4440, inf
  %v5297 = vsel %vm5296, %v4440, %v5295
  %vm5298 = vcmp.eq.f32.partialorder %v4440, 0.0
  %v5299 = vand.u32 %v4440, 2147483648
  %v5300 = vsel %vm5298, %v5299, %v5297
  %v5301 = vrsqrt.pop %v4441
  %v5302 = vmul.f32 %v4441, %v5301
  %vm5303 = vcmp.eq.f32.partialorder %v4441, inf
  %v5304 = vsel %vm5303, %v4441, %v5302
  %vm5305 = vcmp.eq.f32.partialorder %v4441, 0.0
  %v5306 = vand.u32 %v4441, 2147483648
  %v5307 = vsel %vm5305, %v5306, %v5304
  %v5308 = vrsqrt.pop %v4442
  %v5309 = vmul.f32 %v4442, %v5308
  %vm5310 = vcmp.eq.f32.partialorder %v4442, inf
  %v5311 = vsel %vm5310, %v4442, %v5309
  %vm5312 = vcmp.eq.f32.partialorder %v4442, 0.0
  %v5313 = vand.u32 %v4442, 2147483648
  %v5314 = vsel %vm5312, %v5313, %v5311
  %v5315 = vrsqrt.pop %v4443
  %v5316 = vmul.f32 %v4443, %v5315
  %vm5317 = vcmp.eq.f32.partialorder %v4443, inf
  %v5318 = vsel %vm5317, %v4443, %v5316
  %vm5319 = vcmp.eq.f32.partialorder %v4443, 0.0
  %v5320 = vand.u32 %v4443, 2147483648
  %v5321 = vsel %vm5319, %v5320, %v5318
  %v5322 = vrsqrt.pop %v4444
  %v5323 = vmul.f32 %v4444, %v5322
  %vm5324 = vcmp.eq.f32.partialorder %v4444, inf
  %v5325 = vsel %vm5324, %v4444, %v5323
  %vm5326 = vcmp.eq.f32.partialorder %v4444, 0.0
  %v5327 = vand.u32 %v4444, 2147483648
  %v5328 = vsel %vm5326, %v5327, %v5325
  %v5329 = vrsqrt.pop %v4445
  %v5330 = vmul.f32 %v4445, %v5329
  %vm5331 = vcmp.eq.f32.partialorder %v4445, inf
  %v5332 = vsel %vm5331, %v4445, %v5330
  %vm5333 = vcmp.eq.f32.partialorder %v4445, 0.0
  %v5334 = vand.u32 %v4445, 2147483648
  %v5335 = vsel %vm5333, %v5334, %v5332
  %v5336 = vrsqrt.pop %v4446
  %v5337 = vmul.f32 %v4446, %v5336
  %vm5338 = vcmp.eq.f32.partialorder %v4446, inf
  %v5339 = vsel %vm5338, %v4446, %v5337
  %vm5340 = vcmp.eq.f32.partialorder %v4446, 0.0
  %v5341 = vand.u32 %v4446, 2147483648
  %v5342 = vsel %vm5340, %v5341, %v5339
  %v5343 = vmul.f32 %v4453, 2.5
  %v5344 = vmul.f32 %v4460, 2.5
  %v5345 = vmul.f32 %v4467, 2.5
  %v5346 = vmul.f32 %v4474, 2.5
  %v5347 = vmul.f32 %v4481, 2.5
  %v5348 = vmul.f32 %v4488, 2.5
  %v5349 = vmul.f32 %v4495, 2.5
  %v5350 = vmul.f32 %v4502, 2.5
  %v5351 = vmul.f32 %v4509, 2.5
  %v5352 = vmul.f32 %v4516, 2.5
  %v5353 = vmul.f32 %v4523, 2.5
  %v5354 = vmul.f32 %v4530, 2.5
  %v5355 = vmul.f32 %v4537, 2.5
  %v5356 = vmul.f32 %v4544, 2.5
  %v5357 = vmul.f32 %v4551, 2.5
  %v5358 = vmul.f32 %v4558, 2.5
  %v5359 = vmul.f32 %v4565, 2.5
  %v5360 = vmul.f32 %v4572, 2.5
  %v5361 = vmul.f32 %v4579, 2.5
  %v5362 = vmul.f32 %v4586, 2.5
  %v5363 = vmul.f32 %v4593, 2.5
  %v5364 = vmul.f32 %v4600, 2.5
  %v5365 = vmul.f32 %v4607, 2.5
  %v5366 = vmul.f32 %v4614, 2.5
  %v5367 = vmul.f32 %v4621, 2.5
  %v5368 = vmul.f32 %v4628, 2.5
  %v5369 = vmul.f32 %v4635, 2.5
  %v5370 = vmul.f32 %v4642, 2.5
  %v5371 = vmul.f32 %v4649, 2.5
  %v5372 = vmul.f32 %v4656, 2.5
  %v5373 = vmul.f32 %v4663, 2.5
  %v5374 = vmul.f32 %v4670, 2.5
  %v5375 = vmul.f32 %v4677, 2.5
  %v5376 = vmul.f32 %v4684, 2.5
  %v5377 = vmul.f32 %v4691, 2.5
  %v5378 = vmul.f32 %v4698, 2.5
  %v5379 = vmul.f32 %v4705, 2.5
  %v5380 = vmul.f32 %v4712, 2.5
  %v5381 = vmul.f32 %v4719, 2.5
  %v5382 = vmul.f32 %v4726, 2.5
  %v5383 = vmul.f32 %v4733, 2.5
  %v5384 = vmul.f32 %v4740, 2.5
  %v5385 = vmul.f32 %v4747, 2.5
  %v5386 = vmul.f32 %v4754, 2.5
  %v5387 = vmul.f32 %v4761, 2.5
  %v5388 = vmul.f32 %v4768, 2.5
  %v5389 = vmul.f32 %v4775, 2.5
  %v5390 = vmul.f32 %v4782, 2.5
  %v5391 = vmul.f32 %v4789, 2.5
  %v5392 = vmul.f32 %v4796, 2.5
  %v5393 = vmul.f32 %v4803, 2.5
  %v5394 = vmul.f32 %v4810, 2.5
  %v5395 = vmul.f32 %v4817, 2.5
  %v5396 = vmul.f32 %v4824, 2.5
  %v5397 = vmul.f32 %v4831, 2.5
  %v5398 = vmul.f32 %v4838, 2.5
  %v5399 = vmul.f32 %v4845, 2.5
  %v5400 = vmul.f32 %v4852, 2.5
  %v5401 = vmul.f32 %v4859, 2.5
  %v5402 = vmul.f32 %v4866, 2.5
  %v5403 = vmul.f32 %v4873, 2.5
  %v5404 = vmul.f32 %v4880, 2.5
  %v5405 = vmul.f32 %v4887, 2.5
  %v5406 = vmul.f32 %v4894, 2.5
  %v5407 = vmul.f32 %v4901, 2.5
  %v5408 = vmul.f32 %v4908, 2.5
  %v5409 = vmul.f32 %v4915, 2.5
  %v5410 = vmul.f32 %v4922, 2.5
  %v5411 = vmul.f32 %v4929, 2.5
  %v5412 = vmul.f32 %v4936, 2.5
  %v5413 = vmul.f32 %v4943, 2.5
  %v5414 = vmul.f32 %v4950, 2.5
  %v5415 = vmul.f32 %v4957, 2.5
  %v5416 = vmul.f32 %v4964, 2.5
  %v5417 = vmul.f32 %v4971, 2.5
  %v5418 = vmul.f32 %v4978, 2.5
  %v5419 = vmul.f32 %v4985, 2.5
  %v5420 = vmul.f32 %v4992, 2.5
  %v5421 = vmul.f32 %v4999, 2.5
  %v5422 = vmul.f32 %v5006, 2.5
  %v5423 = vmul.f32 %v5013, 2.5
  %v5424 = vmul.f32 %v5020, 2.5
  %v5425 = vmul.f32 %v5027, 2.5
  %v5426 = vmul.f32 %v5034, 2.5
  %v5427 = vmul.f32 %v5041, 2.5
  %v5428 = vmul.f32 %v5048, 2.5
  %v5429 = vmul.f32 %v5055, 2.5
  %v5430 = vmul.f32 %v5062, 2.5
  %v5431 = vmul.f32 %v5069, 2.5
  %v5432 = vmul.f32 %v5076, 2.5
  %v5433 = vmul.f32 %v5083, 2.5
  %v5434 = vmul.f32 %v5090, 2.5
  %v5435 = vmul.f32 %v5097, 2.5
  %v5436 = vmul.f32 %v5104, 2.5
  %v5437 = vmul.f32 %v5111, 2.5
  %v5438 = vmul.f32 %v5118, 2.5
  %v5439 = vmul.f32 %v5125, 2.5
  %v5440 = vmul.f32 %v5132, 2.5
  %v5441 = vmul.f32 %v5139, 2.5
  %v5442 = vmul.f32 %v5146, 2.5
  %v5443 = vmul.f32 %v5153, 2.5
  %v5444 = vmul.f32 %v5160, 2.5
  %v5445 = vmul.f32 %v5167, 2.5
  %v5446 = vmul.f32 %v5174, 2.5
  %v5447 = vmul.f32 %v5181, 2.5
  %v5448 = vmul.f32 %v5188, 2.5
  %v5449 = vmul.f32 %v5195, 2.5
  %v5450 = vmul.f32 %v5202, 2.5
  %v5451 = vmul.f32 %v5209, 2.5
  %v5452 = vmul.f32 %v5216, 2.5
  %v5453 = vmul.f32 %v5223, 2.5
  %v5454 = vmul.f32 %v5230, 2.5
  %v5455 = vmul.f32 %v5237, 2.5
  %v5456 = vmul.f32 %v5244, 2.5
  %v5457 = vmul.f32 %v5251, 2.5
  %v5458 = vmul.f32 %v5258, 2.5
  %v5459 = vmul.f32 %v5265, 2.5
  %v5460 = vmul.f32 %v5272, 2.5
  %v5461 = vmul.f32 %v5279, 2.5
  %v5462 = vmul.f32 %v5286, 2.5
  %v5463 = vmul.f32 %v5293, 2.5
  %v5464 = vmul.f32 %v5300, 2.5
  %v5465 = vmul.f32 %v5307, 2.5
  %v5466 = vmul.f32 %v5314, 2.5
  %v5467 = vmul.f32 %v5321, 2.5
  %v5468 = vmul.f32 %v5328, 2.5
  %v5469 = vmul.f32 %v5335, 2.5
  %v5470 = vmul.f32 %v5342, 2.5
  %v5471 = vsub.f32 1.0, %v5343
  %v5472 = vsub.f32 1.0, %v5344
  %v5473 = vsub.f32 1.0, %v5345
  %v5474 = vsub.f32 1.0, %v5346
  %v5475 = vsub.f32 1.0, %v5347
  %v5476 = vsub.f32 1.0, %v5348
  %v5477 = vsub.f32 1.0, %v5349
  %v5478 = vsub.f32 1.0, %v5350
  %v5479 = vsub.f32 1.0, %v5351
  %v5480 = vsub.f32 1.0, %v5352
  %v5481 = vsub.f32 1.0, %v5353
  %v5482 = vsub.f32 1.0, %v5354
  %v5483 = vsub.f32 1.0, %v5355
  %v5484 = vsub.f32 1.0, %v5356
  %v5485 = vsub.f32 1.0, %v5357
  %v5486 = vsub.f32 1.0, %v5358
  %v5487 = vsub.f32 1.0, %v5359
  %v5488 = vsub.f32 1.0, %v5360
  %v5489 = vsub.f32 1.0, %v5361
  %v5490 = vsub.f32 1.0, %v5362
  %v5491 = vsub.f32 1.0, %v5363
  %v5492 = vsub.f32 1.0, %v5364
  %v5493 = vsub.f32 1.0, %v5365
  %v5494 = vsub.f32 1.0, %v5366
  %v5495 = vsub.f32 1.0, %v5367
  %v5496 = vsub.f32 1.0, %v5368
  %v5497 = vsub.f32 1.0, %v5369
  %v5498 = vsub.f32 1.0, %v5370
  %v5499 = vsub.f32 1.0, %v5371
  %v5500 = vsub.f32 1.0, %v5372
  %v5501 = vsub.f32 1.0, %v5373
  %v5502 = vsub.f32 1.0, %v5374
  %v5503 = vsub.f32 1.0, %v5375
  %v5504 = vsub.f32 1.0, %v5376
  %v5505 = vsub.f32 1.0, %v5377
  %v5506 = vsub.f32 1.0, %v5378
  %v5507 = vsub.f32 1.0, %v5379
  %v5508 = vsub.f32 1.0, %v5380
  %v5509 = vsub.f32 1.0, %v5381
  %v5510 = vsub.f32 1.0, %v5382
  %v5511 = vsub.f32 1.0, %v5383
  %v5512 = vsub.f32 1.0, %v5384
  %v5513 = vsub.f32 1.0, %v5385
  %v5514 = vsub.f32 1.0, %v5386
  %v5515 = vsub.f32 1.0, %v5387
  %v5516 = vsub.f32 1.0, %v5388
  %v5517 = vsub.f32 1.0, %v5389
  %v5518 = vsub.f32 1.0, %v5390
  %v5519 = vsub.f32 1.0, %v5391
  %v5520 = vsub.f32 1.0, %v5392
  %v5521 = vsub.f32 1.0, %v5393
  %v5522 = vsub.f32 1.0, %v5394
  %v5523 = vsub.f32 1.0, %v5395
  %v5524 = vsub.f32 1.0, %v5396
  %v5525 = vsub.f32 1.0, %v5397
  %v5526 = vsub.f32 1.0, %v5398
  %v5527 = vsub.f32 1.0, %v5399
  %v5528 = vsub.f32 1.0, %v5400
  %v5529 = vsub.f32 1.0, %v5401
  %v5530 = vsub.f32 1.0, %v5402
  %v5531 = vsub.f32 1.0, %v5403
  %v5532 = vsub.f32 1.0, %v5404
  %v5533 = vsub.f32 1.0, %v5405
  %v5534 = vsub.f32 1.0, %v5406
  %v5535 = vsub.f32 1.0, %v5407
  %v5536 = vsub.f32 1.0, %v5408
  %v5537 = vsub.f32 1.0, %v5409
  %v5538 = vsub.f32 1.0, %v5410
  %v5539 = vsub.f32 1.0, %v5411
  %v5540 = vsub.f32 1.0, %v5412
  %v5541 = vsub.f32 1.0, %v5413
  %v5542 = vsub.f32 1.0, %v5414
  %v5543 = vsub.f32 1.0, %v5415
  %v5544 = vsub.f32 1.0, %v5416
  %v5545 = vsub.f32 1.0, %v5417
  %v5546 = vsub.f32 1.0, %v5418
  %v5547 = vsub.f32 1.0, %v5419
  %v5548 = vsub.f32 1.0, %v5420
  %v5549 = vsub.f32 1.0, %v5421
  %v5550 = vsub.f32 1.0, %v5422
  %v5551 = vsub.f32 1.0, %v5423
  %v5552 = vsub.f32 1.0, %v5424
  %v5553 = vsub.f32 1.0, %v5425
  %v5554 = vsub.f32 1.0, %v5426
  %v5555 = vsub.f32 1.0, %v5427
  %v5556 = vsub.f32 1.0, %v5428
  %v5557 = vsub.f32 1.0, %v5429
  %v5558 = vsub.f32 1.0, %v5430
  %v5559 = vsub.f32 1.0, %v5431
  %v5560 = vsub.f32 1.0, %v5432
  %v5561 = vsub.f32 1.0, %v5433
  %v5562 = vsub.f32 1.0, %v5434
  %v5563 = vsub.f32 1.0, %v5435
  %v5564 = vsub.f32 1.0, %v5436
  %v5565 = vsub.f32 1.0, %v5437
  %v5566 = vsub.f32 1.0, %v5438
  %v5567 = vsub.f32 1.0, %v5439
  %v5568 = vsub.f32 1.0, %v5440
  %v5569 = vsub.f32 1.0, %v5441
  %v5570 = vsub.f32 1.0, %v5442
  %v5571 = vsub.f32 1.0, %v5443
  %v5572 = vsub.f32 1.0, %v5444
  %v5573 = vsub.f32 1.0, %v5445
  %v5574 = vsub.f32 1.0, %v5446
  %v5575 = vsub.f32 1.0, %v5447
  %v5576 = vsub.f32 1.0, %v5448
  %v5577 = vsub.f32 1.0, %v5449
  %v5578 = vsub.f32 1.0, %v5450
  %v5579 = vsub.f32 1.0, %v5451
  %v5580 = vsub.f32 1.0, %v5452
  %v5581 = vsub.f32 1.0, %v5453
  %v5582 = vsub.f32 1.0, %v5454
  %v5583 = vsub.f32 1.0, %v5455
  %v5584 = vsub.f32 1.0, %v5456
  %v5585 = vsub.f32 1.0, %v5457
  %v5586 = vsub.f32 1.0, %v5458
  %v5587 = vsub.f32 1.0, %v5459
  %v5588 = vsub.f32 1.0, %v5460
  %v5589 = vsub.f32 1.0, %v5461
  %v5590 = vsub.f32 1.0, %v5462
  %v5591 = vsub.f32 1.0, %v5463
  %v5592 = vsub.f32 1.0, %v5464
  %v5593 = vsub.f32 1.0, %v5465
  %v5594 = vsub.f32 1.0, %v5466
  %v5595 = vsub.f32 1.0, %v5467
  %v5596 = vsub.f32 1.0, %v5468
  %v5597 = vsub.f32 1.0, %v5469
  %v5598 = vsub.f32 1.0, %v5470
  %v5599 = vmax.f32 %v5471, 0.0
  %v5600 = vmax.f32 %v5472, 0.0
  %v5601 = vmax.f32 %v5473, 0.0
  %v5602 = vmax.f32 %v5474, 0.0
  %v5603 = vmax.f32 %v5475, 0.0
  %v5604 = vmax.f32 %v5476, 0.0
  %v5605 = vmax.f32 %v5477, 0.0
  %v5606 = vmax.f32 %v5478, 0.0
  %v5607 = vmax.f32 %v5479, 0.0
  %v5608 = vmax.f32 %v5480, 0.0
  %v5609 = vmax.f32 %v5481, 0.0
  %v5610 = vmax.f32 %v5482, 0.0
  %v5611 = vmax.f32 %v5483, 0.0
  %v5612 = vmax.f32 %v5484, 0.0
  %v5613 = vmax.f32 %v5485, 0.0
  %v5614 = vmax.f32 %v5486, 0.0
  %v5615 = vmax.f32 %v5487, 0.0
  %v5616 = vmax.f32 %v5488, 0.0
  %v5617 = vmax.f32 %v5489, 0.0
  %v5618 = vmax.f32 %v5490, 0.0
  %v5619 = vmax.f32 %v5491, 0.0
  %v5620 = vmax.f32 %v5492, 0.0
  %v5621 = vmax.f32 %v5493, 0.0
  %v5622 = vmax.f32 %v5494, 0.0
  %v5623 = vmax.f32 %v5495, 0.0
  %v5624 = vmax.f32 %v5496, 0.0
  %v5625 = vmax.f32 %v5497, 0.0
  %v5626 = vmax.f32 %v5498, 0.0
  %v5627 = vmax.f32 %v5499, 0.0
  %v5628 = vmax.f32 %v5500, 0.0
  %v5629 = vmax.f32 %v5501, 0.0
  %v5630 = vmax.f32 %v5502, 0.0
  %v5631 = vmax.f32 %v5503, 0.0
  %v5632 = vmax.f32 %v5504, 0.0
  %v5633 = vmax.f32 %v5505, 0.0
  %v5634 = vmax.f32 %v5506, 0.0
  %v5635 = vmax.f32 %v5507, 0.0
  %v5636 = vmax.f32 %v5508, 0.0
  %v5637 = vmax.f32 %v5509, 0.0
  %v5638 = vmax.f32 %v5510, 0.0
  %v5639 = vmax.f32 %v5511, 0.0
  %v5640 = vmax.f32 %v5512, 0.0
  %v5641 = vmax.f32 %v5513, 0.0
  %v5642 = vmax.f32 %v5514, 0.0
  %v5643 = vmax.f32 %v5515, 0.0
  %v5644 = vmax.f32 %v5516, 0.0
  %v5645 = vmax.f32 %v5517, 0.0
  %v5646 = vmax.f32 %v5518, 0.0
  %v5647 = vmax.f32 %v5519, 0.0
  %v5648 = vmax.f32 %v5520, 0.0
  %v5649 = vmax.f32 %v5521, 0.0
  %v5650 = vmax.f32 %v5522, 0.0
  %v5651 = vmax.f32 %v5523, 0.0
  %v5652 = vmax.f32 %v5524, 0.0
  %v5653 = vmax.f32 %v5525, 0.0
  %v5654 = vmax.f32 %v5526, 0.0
  %v5655 = vmax.f32 %v5527, 0.0
  %v5656 = vmax.f32 %v5528, 0.0
  %v5657 = vmax.f32 %v5529, 0.0
  %v5658 = vmax.f32 %v5530, 0.0
  %v5659 = vmax.f32 %v5531, 0.0
  %v5660 = vmax.f32 %v5532, 0.0
  %v5661 = vmax.f32 %v5533, 0.0
  %v5662 = vmax.f32 %v5534, 0.0
  %v5663 = vmax.f32 %v5535, 0.0
  %v5664 = vmax.f32 %v5536, 0.0
  %v5665 = vmax.f32 %v5537, 0.0
  %v5666 = vmax.f32 %v5538, 0.0
  %v5667 = vmax.f32 %v5539, 0.0
  %v5668 = vmax.f32 %v5540, 0.0
  %v5669 = vmax.f32 %v5541, 0.0
  %v5670 = vmax.f32 %v5542, 0.0
  %v5671 = vmax.f32 %v5543, 0.0
  %v5672 = vmax.f32 %v5544, 0.0
  %v5673 = vmax.f32 %v5545, 0.0
  %v5674 = vmax.f32 %v5546, 0.0
  %v5675 = vmax.f32 %v5547, 0.0
  %v5676 = vmax.f32 %v5548, 0.0
  %v5677 = vmax.f32 %v5549, 0.0
  %v5678 = vmax.f32 %v5550, 0.0
  %v5679 = vmax.f32 %v5551, 0.0
  %v5680 = vmax.f32 %v5552, 0.0
  %v5681 = vmax.f32 %v5553, 0.0
  %v5682 = vmax.f32 %v5554, 0.0
  %v5683 = vmax.f32 %v5555, 0.0
  %v5684 = vmax.f32 %v5556, 0.0
  %v5685 = vmax.f32 %v5557, 0.0
  %v5686 = vmax.f32 %v5558, 0.0
  %v5687 = vmax.f32 %v5559, 0.0
  %v5688 = vmax.f32 %v5560, 0.0
  %v5689 = vmax.f32 %v5561, 0.0
  %v5690 = vmax.f32 %v5562, 0.0
  %v5691 = vmax.f32 %v5563, 0.0
  %v5692 = vmax.f32 %v5564, 0.0
  %v5693 = vmax.f32 %v5565, 0.0
  %v5694 = vmax.f32 %v5566, 0.0
  %v5695 = vmax.f32 %v5567, 0.0
  %v5696 = vmax.f32 %v5568, 0.0
  %v5697 = vmax.f32 %v5569, 0.0
  %v5698 = vmax.f32 %v5570, 0.0
  %v5699 = vmax.f32 %v5571, 0.0
  %v5700 = vmax.f32 %v5572, 0.0
  %v5701 = vmax.f32 %v5573, 0.0
  %v5702 = vmax.f32 %v5574, 0.0
  %v5703 = vmax.f32 %v5575, 0.0
  %v5704 = vmax.f32 %v5576, 0.0
  %v5705 = vmax.f32 %v5577, 0.0
  %v5706 = vmax.f32 %v5578, 0.0
  %v5707 = vmax.f32 %v5579, 0.0
  %v5708 = vmax.f32 %v5580, 0.0
  %v5709 = vmax.f32 %v5581, 0.0
  %v5710 = vmax.f32 %v5582, 0.0
  %v5711 = vmax.f32 %v5583, 0.0
  %v5712 = vmax.f32 %v5584, 0.0
  %v5713 = vmax.f32 %v5585, 0.0
  %v5714 = vmax.f32 %v5586, 0.0
  %v5715 = vmax.f32 %v5587, 0.0
  %v5716 = vmax.f32 %v5588, 0.0
  %v5717 = vmax.f32 %v5589, 0.0
  %v5718 = vmax.f32 %v5590, 0.0
  %v5719 = vmax.f32 %v5591, 0.0
  %v5720 = vmax.f32 %v5592, 0.0
  %v5721 = vmax.f32 %v5593, 0.0
  %v5722 = vmax.f32 %v5594, 0.0
  %v5723 = vmax.f32 %v5595, 0.0
  %v5724 = vmax.f32 %v5596, 0.0
  %v5725 = vmax.f32 %v5597, 0.0
  %v5726 = vmax.f32 %v5598, 0.0
  %v5727 = vld [vmem:[%s5] sm:$0xff]
  %v5728 = vld [vmem:[%s5 + $0x8] sm:$0xff]
  %vm5729 = vcmask 64512
  %v5731 = vsel %vm5729, %v1557, 0
  %v5734 = vsel %vm5729, %v1562, 0
  %v5737 = vsel %vm5729, %v1567, 0
  %v5740 = vsel %vm5729, %v1572, 0
  %v5743 = vsel %vm5729, %v1577, 0
  %v5746 = vsel %vm5729, %v1582, 0
  %v5749 = vsel %vm5729, %v1587, 0
  %v5752 = vsel %vm5729, %v1592, 0
  %v5755 = vsel %vm5729, %v1597, 0
  %v5758 = vsel %vm5729, %v1602, 0
  %v5761 = vsel %vm5729, %v1607, 0
  %v5764 = vsel %vm5729, %v1612, 0
  %v5767 = vsel %vm5729, %v1617, 0
  %v5770 = vsel %vm5729, %v1622, 0
  %v5773 = vsel %vm5729, %v1627, 0
  %v5776 = vsel %vm5729, %v1632, 0
  %v5779 = vsel %vm5729, %v1637, 0
  %v5782 = vsel %vm5729, %v1642, 0
  %v5785 = vsel %vm5729, %v1647, 0
  %v5788 = vsel %vm5729, %v1652, 0
  %v5791 = vsel %vm5729, %v1657, 0
  %v5794 = vsel %vm5729, %v1662, 0
  %v5797 = vsel %vm5729, %v1667, 0
  %v5800 = vsel %vm5729, %v1672, 0
  %v5803 = vsel %vm5729, %v1677, 0
  %v5806 = vsel %vm5729, %v1682, 0
  %v5809 = vsel %vm5729, %v1687, 0
  %v5812 = vsel %vm5729, %v1692, 0
  %v5815 = vsel %vm5729, %v1697, 0
  %v5818 = vsel %vm5729, %v1702, 0
  %v5821 = vsel %vm5729, %v1707, 0
  %v5824 = vsel %vm5729, %v1712, 0
  %v5827 = vsel %vm5729, %v1717, 0
  %v5830 = vsel %vm5729, %v1722, 0
  %v5833 = vsel %vm5729, %v1727, 0
  %v5836 = vsel %vm5729, %v1732, 0
  %v5839 = vsel %vm5729, %v1737, 0
  %v5842 = vsel %vm5729, %v1742, 0
  %v5845 = vsel %vm5729, %v1747, 0
  %v5848 = vsel %vm5729, %v1752, 0
  %v5851 = vsel %vm5729, %v1757, 0
  %v5854 = vsel %vm5729, %v1762, 0
  %v5857 = vsel %vm5729, %v1767, 0
  %v5860 = vsel %vm5729, %v1772, 0
  %v5863 = vsel %vm5729, %v1777, 0
  %v5866 = vsel %vm5729, %v1782, 0
  %v5869 = vsel %vm5729, %v1787, 0
  %v5872 = vsel %vm5729, %v1792, 0
  %v5875 = vsel %vm5729, %v1797, 0
  %v5878 = vsel %vm5729, %v1802, 0
  %v5881 = vsel %vm5729, %v1807, 0
  %v5884 = vsel %vm5729, %v1812, 0
  %v5887 = vsel %vm5729, %v1817, 0
  %v5890 = vsel %vm5729, %v1822, 0
  %v5893 = vsel %vm5729, %v1827, 0
  %v5896 = vsel %vm5729, %v1832, 0
  %v5899 = vsel %vm5729, %v1837, 0
  %v5902 = vsel %vm5729, %v1842, 0
  %v5905 = vsel %vm5729, %v1847, 0
  %v5908 = vsel %vm5729, %v1852, 0
  %v5911 = vsel %vm5729, %v1857, 0
  %v5914 = vsel %vm5729, %v1862, 0
  %v5917 = vsel %vm5729, %v1867, 0
  %v5920 = vsel %vm5729, %v1872, 0
  %v5923 = vsel %vm5729, %v1877, 0
  %v5926 = vsel %vm5729, %v1882, 0
  %v5929 = vsel %vm5729, %v1887, 0
  %v5932 = vsel %vm5729, %v1892, 0
  %v5935 = vsel %vm5729, %v1897, 0
  %v5938 = vsel %vm5729, %v1902, 0
  %v5941 = vsel %vm5729, %v1907, 0
  %v5944 = vsel %vm5729, %v1912, 0
  %v5947 = vsel %vm5729, %v1917, 0
  %v5950 = vsel %vm5729, %v1922, 0
  %v5953 = vsel %vm5729, %v1927, 0
  %v5956 = vsel %vm5729, %v1932, 0
  %v5959 = vsel %vm5729, %v1937, 0
  %v5962 = vsel %vm5729, %v1942, 0
  %v5965 = vsel %vm5729, %v1947, 0
  %v5968 = vsel %vm5729, %v1952, 0
  %v5971 = vsel %vm5729, %v1957, 0
  %v5974 = vsel %vm5729, %v1962, 0
  %v5977 = vsel %vm5729, %v1967, 0
  %v5980 = vsel %vm5729, %v1972, 0
  %v5983 = vsel %vm5729, %v1977, 0
  %v5986 = vsel %vm5729, %v1982, 0
  %v5989 = vsel %vm5729, %v1987, 0
  %v5992 = vsel %vm5729, %v1992, 0
  %v5995 = vsel %vm5729, %v1997, 0
  %v5998 = vsel %vm5729, %v2002, 0
  %v6001 = vsel %vm5729, %v2007, 0
  %v6004 = vsel %vm5729, %v2012, 0
  %v6007 = vsel %vm5729, %v2017, 0
  %v6010 = vsel %vm5729, %v2022, 0
  %v6013 = vsel %vm5729, %v2027, 0
  %v6016 = vsel %vm5729, %v2032, 0
  %v6019 = vsel %vm5729, %v2037, 0
  %v6022 = vsel %vm5729, %v2042, 0
  %v6025 = vsel %vm5729, %v2047, 0
  %v6028 = vsel %vm5729, %v2052, 0
  %v6031 = vsel %vm5729, %v2057, 0
  %v6034 = vsel %vm5729, %v2062, 0
  %v6037 = vsel %vm5729, %v2067, 0
  %v6040 = vsel %vm5729, %v2072, 0
  %v6043 = vsel %vm5729, %v2077, 0
  %v6046 = vsel %vm5729, %v2082, 0
  %v6049 = vsel %vm5729, %v2087, 0
  %v6052 = vsel %vm5729, %v2092, 0
  %v6055 = vsel %vm5729, %v2097, 0
  %v6058 = vsel %vm5729, %v2102, 0
  %v6061 = vsel %vm5729, %v2107, 0
  %v6064 = vsel %vm5729, %v2112, 0
  %v6067 = vsel %vm5729, %v2117, 0
  %v6070 = vsel %vm5729, %v2122, 0
  %v6073 = vsel %vm5729, %v2127, 0
  %v6076 = vsel %vm5729, %v2132, 0
  %v6079 = vsel %vm5729, %v2137, 0
  %v6082 = vsel %vm5729, %v2142, 0
  %v6085 = vsel %vm5729, %v2147, 0
  %v6088 = vsel %vm5729, %v2152, 0
  %v6091 = vsel %vm5729, %v2157, 0
  %v6094 = vsel %vm5729, %v2162, 0
  %v6097 = vsel %vm5729, %v2167, 0
  %v6100 = vsel %vm5729, %v2172, 0
  %v6103 = vsel %vm5729, %v2177, 0
  %v6106 = vsel %vm5729, %v2182, 0
  %v6109 = vsel %vm5729, %v2187, 0
  %v6112 = vsel %vm5729, %v2192, 0
  %6114 = vmatprep.subr.mxu0 %v5728
  %6115 = vmatpush1.msra.mxu0 %v5727
  %6116 = vmatprep.subr.mxu0 0.0
  %6117 = vmatpush1.msra.mxu0 0.0
  %6118 = vmatprep.subr.mxu0 0.0
  %6119 = vmatpush1.msra.mxu0 0.0
  %6120 = vmatprep.subr.mxu0 0.0
  %6121 = vmatpush1.msra.mxu0 0.0
  %6122 = vmatprep.subr.mxu0 0.0
  %6123 = vmatpush1.msra.mxu0 0.0
  %6124 = vmatprep.subr.mxu0 0.0
  %6125 = vmatpush1.msra.mxu0 0.0
  %6126 = vmatprep.subr.mxu0 0.0
  %6127 = vmatpush1.msra.mxu0 0.0
  %6128 = vmatprep.subr.mxu0 0.0
  %6129 = vmatpush1.msra.mxu0 0.0
  %6130 = vmatprep.subr.mxu0 0.0
  %6131 = vmatpush1.msra.mxu0 0.0
  %6132 = vmatprep.subr.mxu0 0.0
  %6133 = vmatpush1.msra.mxu0 0.0
  %6134 = vmatprep.subr.mxu0 0.0
  %6135 = vmatpush1.msra.mxu0 0.0
  %6136 = vmatprep.subr.mxu0 0.0
  %6137 = vmatpush1.msra.mxu0 0.0
  %6138 = vmatprep.subr.mxu0 0.0
  %6139 = vmatpush1.msra.mxu0 0.0
  %6140 = vmatprep.subr.mxu0 0.0
  %6141 = vmatpush1.msra.mxu0 0.0
  %6142 = vmatprep.subr.mxu0 0.0
  %6143 = vmatpush1.msra.mxu0 0.0
  %6144 = vmatprep.subr.mxu0 0.0
  %6145 = vmatpush1.msra.mxu0 0.0
  %6146 = vmatprep.subr.mxu0 0.0
  %6147 = vmatpush1.msra.mxu0 0.0
  %6148 = vmatprep.subr.mxu0 0.0
  %6149 = vmatpush1.msra.mxu0 0.0
  %6150 = vmatprep.subr.mxu0 0.0
  %6151 = vmatpush1.msra.mxu0 0.0
  %6152 = vmatprep.subr.mxu0 0.0
  %6153 = vmatpush1.msra.mxu0 0.0
  %6154 = vmatprep.subr.mxu0 0.0
  %6155 = vmatpush1.msra.mxu0 0.0
  %6156 = vmatprep.subr.mxu0 0.0
  %6157 = vmatpush1.msra.mxu0 0.0
  %6158 = vmatprep.subr.mxu0 0.0
  %6159 = vmatpush1.msra.mxu0 0.0
  %6160 = vmatprep.subr.mxu0 0.0
  %6161 = vmatpush1.msra.mxu0 0.0
  %6162 = vmatprep.subr.mxu0 0.0
  %6163 = vmatpush1.msra.mxu0 0.0
  %6164 = vmatprep.subr.mxu0 0.0
  %6165 = vmatpush1.msra.mxu0 0.0
  %6166 = vmatprep.subr.mxu0 0.0
  %6167 = vmatpush1.msra.mxu0 0.0
  %6168 = vmatprep.subr.mxu0 0.0
  %6169 = vmatpush1.msra.mxu0 0.0
  %6170 = vmatprep.subr.mxu0 0.0
  %6171 = vmatpush1.msra.mxu0 0.0
  %6172 = vmatprep.subr.mxu0 0.0
  %6173 = vmatpush1.msra.mxu0 0.0
  %6174 = vmatprep.subr.mxu0 0.0
  %6175 = vmatpush1.msra.mxu0 0.0
  %6176 = vmatprep.subr.mxu0 0.0
  %6177 = vmatpush1.msra.mxu0 0.0
  %6178 = vmatprep.mubr.f32.mxu0 0.0
  %6179 = vmatmul.mubr.f32.gmra.mrb[0].mxu0 %v5731
  %v6180 = vpop.f32.mrb[0].mxu0
  %v6181 = vadd.f32 0.0, %v6180
  %v6182 = vpop.f32.mrb[0].mxu0
  %v6183 = vadd.f32 0.0, %v6182
  %6184 = vmatprep.mubr.f32.mxu0 0.0
  %6185 = vmatmul.mubr.f32.gmra.mrb[0].mxu0 %v5734
  %v6186 = vpop.f32.mrb[0].mxu0
  %v6187 = vadd.f32 0.0, %v6186
  %v6188 = vpop.f32.mrb[0].mxu0
  %v6189 = vadd.f32 0.0, %v6188
  %6190 = vmatprep.mubr.f32.mxu0 0.0
  %6191 = vmatmul.mubr.f32.gmra.mrb[0].mxu0 %v5737
  %v6192 = vpop.f32.mrb[0].mxu0
  %v6193 = vadd.f32 0.0, %v6192
  %v6194 = vpop.f32.mrb[0].mxu0
  %v6195 = vadd.f32 0.0, %v6194
  %6196 = vmatprep.mubr.f32.mxu0 0.0
  %6197 = vmatmul.mubr.f32.gmra.mrb[0].mxu0 %v5740
  %v6198 = vpop.f32.mrb[0].mxu0
  %v6199 = vadd.f32 0.0, %v6198
  %v6200 = vpop.f32.mrb[0].mxu0
  %v6201 = vadd.f32 0.0, %v6200
  %6202 = vmatprep.mubr.f32.mxu0 0.0
  %6203 = vmatmul.mubr.f32.gmra.mrb[0].mxu0 %v5743
  %v6204 = vpop.f32.mrb[0].mxu0
  %v6205 = vadd.f32 0.0, %v6204
  %v6206 = vpop.f32.mrb[0].mxu0
  %v6207 = vadd.f32 0.0, %v6206
  %6208 = vmatprep.mubr.f32.mxu0 0.0
  %6209 = vmatmul.mubr.f32.gmra.mrb[0].mxu0 %v5746
  %v6210 = vpop.f32.mrb[0].mxu0
  %v6211 = vadd.f32 0.0, %v6210
  %v6212 = vpop.f32.mrb[0].mxu0
  %v6213 = vadd.f32 0.0, %v6212
  %6214 = vmatprep.mubr.f32.mxu0 0.0
  %6215 = vmatmul.mubr.f32.gmra.mrb[0].mxu0 %v5749
  %v6216 = vpop.f32.mrb[0].mxu0
  %v6217 = vadd.f32 0.0, %v6216
  %v6218 = vpop.f32.mrb[0].mxu0
  %v6219 = vadd.f32 0.0, %v6218
  %6220 = vmatprep.mubr.f32.mxu0 0.0
  %6221 = vmatmul.mubr.f32.gmra.mrb[0].mxu0 %v5752
  %v6222 = vpop.f32.mrb[0].mxu0
  %v6223 = vadd.f32 0.0, %v6222
  %v6224 = vpop.f32.mrb[0].mxu0
  %v6225 = vadd.f32 0.0, %v6224
  %6226 = vmatprep.mubr.f32.mxu0 0.0
  %6227 = vmatmul.mubr.f32.gmra.mrb[0].mxu0 %v5755
  %v6228 = vpop.f32.mrb[0].mxu0
  %v6229 = vadd.f32 0.0, %v6228
  %v6230 = vpop.f32.mrb[0].mxu0
  %v6231 = vadd.f32 0.0, %v6230
  %6232 = vmatprep.mubr.f32.mxu0 0.0
  %6233 = vmatmul.mubr.f32.gmra.mrb[0].mxu0 %v5758
  %v6234 = vpop.f32.mrb[0].mxu0
  %v6235 = vadd.f32 0.0, %v6234
  %v6236 = vpop.f32.mrb[0].mxu0
  %v6237 = vadd.f32 0.0, %v6236
  %6238 = vmatprep.mubr.f32.mxu0 0.0
  %6239 = vmatmul.mubr.f32.gmra.mrb[0].mxu0 %v5761
  %v6240 = vpop.f32.mrb[0].mxu0
  %v6241 = vadd.f32 0.0, %v6240
  %v6242 = vpop.f32.mrb[0].mxu0
  %v6243 = vadd.f32 0.0, %v6242
  %6244 = vmatprep.mubr.f32.mxu0 0.0
  %6245 = vmatmul.mubr.f32.gmra.mrb[0].mxu0 %v5764
  %v6246 = vpop.f32.mrb[0].mxu0
  %v6247 = vadd.f32 0.0, %v6246
  %v6248 = vpop.f32.mrb[0].mxu0
  %v6249 = vadd.f32 0.0, %v6248
  %6250 = vmatprep.mubr.f32.mxu0 0.0
  %6251 = vmatmul.mubr.f32.gmra.mrb[0].mxu0 %v5767
  %v6252 = vpop.f32.mrb[0].mxu0
  %v6253 = vadd.f32 0.0, %v6252
  %v6254 = vpop.f32.mrb[0].mxu0
  %v6255 = vadd.f32 0.0, %v6254
  %6256 = vmatprep.mubr.f32.mxu0 0.0
  %6257 = vmatmul.mubr.f32.gmra.mrb[0].mxu0 %v5770
  %v6258 = vpop.f32.mrb[0].mxu0
  %v6259 = vadd.f32 0.0, %v6258
  %v6260 = vpop.f32.mrb[0].mxu0
  %v6261 = vadd.f32 0.0, %v6260
  %6262 = vmatprep.mubr.f32.mxu0 0.0
  %6263 = vmatmul.mubr.f32.gmra.mrb[0].mxu0 %v5773
  %v6264 = vpop.f32.mrb[0].mxu0
  %v6265 = vadd.f32 0.0, %v6264
  %v6266 = vpop.f32.mrb[0].mxu0
  %v6267 = vadd.f32 0.0, %v6266
  %6268 = vmatprep.mubr.f32.mxu0 0.0
  %6269 = vmatmul.mubr.f32.gmra.mrb[0].mxu0 %v5776
  %v6270 = vpop.f32.mrb[0].mxu0
  %v6271 = vadd.f32 0.0, %v6270
  %v6272 = vpop.f32.mrb[0].mxu0
  %v6273 = vadd.f32 0.0, %v6272
  %6274 = vmatprep.mubr.f32.mxu0 0.0
  %6275 = vmatmul.mubr.f32.gmra.mrb[0].mxu0 %v5779
  %v6276 = vpop.f32.mrb[0].mxu0
  %v6277 = vadd.f32 0.0, %v6276
  %v6278 = vpop.f32.mrb[0].mxu0
  %v6279 = vadd.f32 0.0, %v6278
  %6280 = vmatprep.mubr.f32.mxu0 0.0
  %6281 = vmatmul.mubr.f32.gmra.mrb[0].mxu0 %v5782
  %v6282 = vpop.f32.mrb[0].mxu0
  %v6283 = vadd.f32 0.0, %v6282
  %v6284 = vpop.f32.mrb[0].mxu0
  %v6285 = vadd.f32 0.0, %v6284
  %6286 = vmatprep.mubr.f32.mxu0 0.0
  %6287 = vmatmul.mubr.f32.gmra.mrb[0].mxu0 %v5785
  %v6288 = vpop.f32.mrb[0].mxu0
  %v6289 = vadd.f32 0.0, %v6288
  %v6290 = vpop.f32.mrb[0].mxu0
  %v6291 = vadd.f32 0.0, %v6290
  %6292 = vmatprep.mubr.f32.mxu0 0.0
  %6293 = vmatmul.mubr.f32.gmra.mrb[0].mxu0 %v5788
  %v6294 = vpop.f32.mrb[0].mxu0
  %v6295 = vadd.f32 0.0, %v6294
  %v6296 = vpop.f32.mrb[0].mxu0
  %v6297 = vadd.f32 0.0, %v6296
  %6298 = vmatprep.mubr.f32.mxu0 0.0
  %6299 = vmatmul.mubr.f32.gmra.mrb[0].mxu0 %v5791
  %v6300 = vpop.f32.mrb[0].mxu0
  %v6301 = vadd.f32 0.0, %v6300
  %v6302 = vpop.f32.mrb[0].mxu0
  %v6303 = vadd.f32 0.0, %v6302
  %6304 = vmatprep.mubr.f32.mxu0 0.0
  %6305 = vmatmul.mubr.f32.gmra.mrb[0].mxu0 %v5794
  %v6306 = vpop.f32.mrb[0].mxu0
  %v6307 = vadd.f32 0.0, %v6306
  %v6308 = vpop.f32.mrb[0].mxu0
  %v6309 = vadd.f32 0.0, %v6308
  %6310 = vmatprep.mubr.f32.mxu0 0.0
  %6311 = vmatmul.mubr.f32.gmra.mrb[0].mxu0 %v5797
  %v6312 = vpop.f32.mrb[0].mxu0
  %v6313 = vadd.f32 0.0, %v6312
  %v6314 = vpop.f32.mrb[0].mxu0
  %v6315 = vadd.f32 0.0, %v6314
  %6316 = vmatprep.mubr.f32.mxu0 0.0
  %6317 = vmatmul.mubr.f32.gmra.mrb[0].mxu0 %v5800
  %v6318 = vpop.f32.mrb[0].mxu0
  %v6319 = vadd.f32 0.0, %v6318
  %v6320 = vpop.f32.mrb[0].mxu0
  %v6321 = vadd.f32 0.0, %v6320
  %6322 = vmatprep.mubr.f32.mxu0 0.0
  %6323 = vmatmul.mubr.f32.gmra.mrb[0].mxu0 %v5803
  %v6324 = vpop.f32.mrb[0].mxu0
  %v6325 = vadd.f32 0.0, %v6324
  %v6326 = vpop.f32.mrb[0].mxu0
  %v6327 = vadd.f32 0.0, %v6326
  %6328 = vmatprep.mubr.f32.mxu0 0.0
  %6329 = vmatmul.mubr.f32.gmra.mrb[0].mxu0 %v5806
  %v6330 = vpop.f32.mrb[0].mxu0
  %v6331 = vadd.f32 0.0, %v6330
  %v6332 = vpop.f32.mrb[0].mxu0
  %v6333 = vadd.f32 0.0, %v6332
  %6334 = vmatprep.mubr.f32.mxu0 0.0
  %6335 = vmatmul.mubr.f32.gmra.mrb[0].mxu0 %v5809
  %v6336 = vpop.f32.mrb[0].mxu0
  %v6337 = vadd.f32 0.0, %v6336
  %v6338 = vpop.f32.mrb[0].mxu0
  %v6339 = vadd.f32 0.0, %v6338
  %6340 = vmatprep.mubr.f32.mxu0 0.0
  %6341 = vmatmul.mubr.f32.gmra.mrb[0].mxu0 %v5812
  %v6342 = vpop.f32.mrb[0].mxu0
  %v6343 = vadd.f32 0.0, %v6342
  %v6344 = vpop.f32.mrb[0].mxu0
  %v6345 = vadd.f32 0.0, %v6344
  %6346 = vmatprep.mubr.f32.mxu0 0.0
  %6347 = vmatmul.mubr.f32.gmra.mrb[0].mxu0 %v5815
  %v6348 = vpop.f32.mrb[0].mxu0
  %v6349 = vadd.f32 0.0, %v6348
  %v6350 = vpop.f32.mrb[0].mxu0
  %v6351 = vadd.f32 0.0, %v6350
  %6352 = vmatprep.mubr.f32.mxu0 0.0
  %6353 = vmatmul.mubr.f32.gmra.mrb[0].mxu0 %v5818
  %v6354 = vpop.f32.mrb[0].mxu0
  %v6355 = vadd.f32 0.0, %v6354
  %v6356 = vpop.f32.mrb[0].mxu0
  %v6357 = vadd.f32 0.0, %v6356
  %6358 = vmatprep.mubr.f32.mxu0 0.0
  %6359 = vmatmul.mubr.f32.gmra.mrb[0].mxu0 %v5821
  %v6360 = vpop.f32.mrb[0].mxu0
  %v6361 = vadd.f32 0.0, %v6360
  %v6362 = vpop.f32.mrb[0].mxu0
  %v6363 = vadd.f32 0.0, %v6362
  %6364 = vmatprep.mubr.f32.mxu0 0.0
  %6365 = vmatmul.mubr.f32.gmra.mrb[0].mxu0 %v5824
  %v6366 = vpop.f32.mrb[0].mxu0
  %v6367 = vadd.f32 0.0, %v6366
  %v6368 = vpop.f32.mrb[0].mxu0
  %v6369 = vadd.f32 0.0, %v6368
  %6370 = vmatprep.mubr.f32.mxu0 0.0
  %6371 = vmatmul.mubr.f32.gmra.mrb[0].mxu0 %v5827
  %v6372 = vpop.f32.mrb[0].mxu0
  %v6373 = vadd.f32 0.0, %v6372
  %v6374 = vpop.f32.mrb[0].mxu0
  %v6375 = vadd.f32 0.0, %v6374
  %6376 = vmatprep.mubr.f32.mxu0 0.0
  %6377 = vmatmul.mubr.f32.gmra.mrb[0].mxu0 %v5830
  %v6378 = vpop.f32.mrb[0].mxu0
  %v6379 = vadd.f32 0.0, %v6378
  %v6380 = vpop.f32.mrb[0].mxu0
  %v6381 = vadd.f32 0.0, %v6380
  %6382 = vmatprep.mubr.f32.mxu0 0.0
  %6383 = vmatmul.mubr.f32.gmra.mrb[0].mxu0 %v5833
  %v6384 = vpop.f32.mrb[0].mxu0
  %v6385 = vadd.f32 0.0, %v6384
  %v6386 = vpop.f32.mrb[0].mxu0
  %v6387 = vadd.f32 0.0, %v6386
  %6388 = vmatprep.mubr.f32.mxu0 0.0
  %6389 = vmatmul.mubr.f32.gmra.mrb[0].mxu0 %v5836
  %v6390 = vpop.f32.mrb[0].mxu0
  %v6391 = vadd.f32 0.0, %v6390
  %v6392 = vpop.f32.mrb[0].mxu0
  %v6393 = vadd.f32 0.0, %v6392
  %6394 = vmatprep.mubr.f32.mxu0 0.0
  %6395 = vmatmul.mubr.f32.gmra.mrb[0].mxu0 %v5839
  %v6396 = vpop.f32.mrb[0].mxu0
  %v6397 = vadd.f32 0.0, %v6396
  %v6398 = vpop.f32.mrb[0].mxu0
  %v6399 = vadd.f32 0.0, %v6398
  %6400 = vmatprep.mubr.f32.mxu0 0.0
  %6401 = vmatmul.mubr.f32.gmra.mrb[0].mxu0 %v5842
  %v6402 = vpop.f32.mrb[0].mxu0
  %v6403 = vadd.f32 0.0, %v6402
  %v6404 = vpop.f32.mrb[0].mxu0
  %v6405 = vadd.f32 0.0, %v6404
  %6406 = vmatprep.mubr.f32.mxu0 0.0
  %6407 = vmatmul.mubr.f32.gmra.mrb[0].mxu0 %v5845
  %v6408 = vpop.f32.mrb[0].mxu0
  %v6409 = vadd.f32 0.0, %v6408
  %v6410 = vpop.f32.mrb[0].mxu0
  %v6411 = vadd.f32 0.0, %v6410
  %6412 = vmatprep.mubr.f32.mxu0 0.0
  %6413 = vmatmul.mubr.f32.gmra.mrb[0].mxu0 %v5848
  %v6414 = vpop.f32.mrb[0].mxu0
  %v6415 = vadd.f32 0.0, %v6414
  %v6416 = vpop.f32.mrb[0].mxu0
  %v6417 = vadd.f32 0.0, %v6416
  %6418 = vmatprep.mubr.f32.mxu0 0.0
  %6419 = vmatmul.mubr.f32.gmra.mrb[0].mxu0 %v5851
  %v6420 = vpop.f32.mrb[0].mxu0
  %v6421 = vadd.f32 0.0, %v6420
  %v6422 = vpop.f32.mrb[0].mxu0
  %v6423 = vadd.f32 0.0, %v6422
  %6424 = vmatprep.mubr.f32.mxu0 0.0
  %6425 = vmatmul.mubr.f32.gmra.mrb[0].mxu0 %v5854
  %v6426 = vpop.f32.mrb[0].mxu0
  %v6427 = vadd.f32 0.0, %v6426
  %v6428 = vpop.f32.mrb[0].mxu0
  %v6429 = vadd.f32 0.0, %v6428
  %6430 = vmatprep.mubr.f32.mxu0 0.0
  %6431 = vmatmul.mubr.f32.gmra.mrb[0].mxu0 %v5857
  %v6432 = vpop.f32.mrb[0].mxu0
  %v6433 = vadd.f32 0.0, %v6432
  %v6434 = vpop.f32.mrb[0].mxu0
  %v6435 = vadd.f32 0.0, %v6434
  %6436 = vmatprep.mubr.f32.mxu0 0.0
  %6437 = vmatmul.mubr.f32.gmra.mrb[0].mxu0 %v5860
  %v6438 = vpop.f32.mrb[0].mxu0
  %v6439 = vadd.f32 0.0, %v6438
  %v6440 = vpop.f32.mrb[0].mxu0
  %v6441 = vadd.f32 0.0, %v6440
  %6442 = vmatprep.mubr.f32.mxu0 0.0
  %6443 = vmatmul.mubr.f32.gmra.mrb[0].mxu0 %v5863
  %v6444 = vpop.f32.mrb[0].mxu0
  %v6445 = vadd.f32 0.0, %v6444
  %v6446 = vpop.f32.mrb[0].mxu0
  %v6447 = vadd.f32 0.0, %v6446
  %6448 = vmatprep.mubr.f32.mxu0 0.0
  %6449 = vmatmul.mubr.f32.gmra.mrb[0].mxu0 %v5866
  %v6450 = vpop.f32.mrb[0].mxu0
  %v6451 = vadd.f32 0.0, %v6450
  %v6452 = vpop.f32.mrb[0].mxu0
  %v6453 = vadd.f32 0.0, %v6452
  %6454 = vmatprep.mubr.f32.mxu0 0.0
  %6455 = vmatmul.mubr.f32.gmra.mrb[0].mxu0 %v5869
  %v6456 = vpop.f32.mrb[0].mxu0
  %v6457 = vadd.f32 0.0, %v6456
  %v6458 = vpop.f32.mrb[0].mxu0
  %v6459 = vadd.f32 0.0, %v6458
  %6460 = vmatprep.mubr.f32.mxu0 0.0
  %6461 = vmatmul.mubr.f32.gmra.mrb[0].mxu0 %v5872
  %v6462 = vpop.f32.mrb[0].mxu0
  %v6463 = vadd.f32 0.0, %v6462
  %v6464 = vpop.f32.mrb[0].mxu0
  %v6465 = vadd.f32 0.0, %v6464
  %6466 = vmatprep.mubr.f32.mxu0 0.0
  %6467 = vmatmul.mubr.f32.gmra.mrb[0].mxu0 %v5875
  %v6468 = vpop.f32.mrb[0].mxu0
  %v6469 = vadd.f32 0.0, %v6468
  %v6470 = vpop.f32.mrb[0].mxu0
  %v6471 = vadd.f32 0.0, %v6470
  %6472 = vmatprep.mubr.f32.mxu0 0.0
  %6473 = vmatmul.mubr.f32.gmra.mrb[0].mxu0 %v5878
  %v6474 = vpop.f32.mrb[0].mxu0
  %v6475 = vadd.f32 0.0, %v6474
  %v6476 = vpop.f32.mrb[0].mxu0
  %v6477 = vadd.f32 0.0, %v6476
  %6478 = vmatprep.mubr.f32.mxu0 0.0
  %6479 = vmatmul.mubr.f32.gmra.mrb[0].mxu0 %v5881
  %v6480 = vpop.f32.mrb[0].mxu0
  %v6481 = vadd.f32 0.0, %v6480
  %v6482 = vpop.f32.mrb[0].mxu0
  %v6483 = vadd.f32 0.0, %v6482
  %6484 = vmatprep.mubr.f32.mxu0 0.0
  %6485 = vmatmul.mubr.f32.gmra.mrb[0].mxu0 %v5884
  %v6486 = vpop.f32.mrb[0].mxu0
  %v6487 = vadd.f32 0.0, %v6486
  %v6488 = vpop.f32.mrb[0].mxu0
  %v6489 = vadd.f32 0.0, %v6488
  %6490 = vmatprep.mubr.f32.mxu0 0.0
  %6491 = vmatmul.mubr.f32.gmra.mrb[0].mxu0 %v5887
  %v6492 = vpop.f32.mrb[0].mxu0
  %v6493 = vadd.f32 0.0, %v6492
  %v6494 = vpop.f32.mrb[0].mxu0
  %v6495 = vadd.f32 0.0, %v6494
  %6496 = vmatprep.mubr.f32.mxu0 0.0
  %6497 = vmatmul.mubr.f32.gmra.mrb[0].mxu0 %v5890
  %v6498 = vpop.f32.mrb[0].mxu0
  %v6499 = vadd.f32 0.0, %v6498
  %v6500 = vpop.f32.mrb[0].mxu0
  %v6501 = vadd.f32 0.0, %v6500
  %6502 = vmatprep.mubr.f32.mxu0 0.0
  %6503 = vmatmul.mubr.f32.gmra.mrb[0].mxu0 %v5893
  %v6504 = vpop.f32.mrb[0].mxu0
  %v6505 = vadd.f32 0.0, %v6504
  %v6506 = vpop.f32.mrb[0].mxu0
  %v6507 = vadd.f32 0.0, %v6506
  %6508 = vmatprep.mubr.f32.mxu0 0.0
  %6509 = vmatmul.mubr.f32.gmra.mrb[0].mxu0 %v5896
  %v6510 = vpop.f32.mrb[0].mxu0
  %v6511 = vadd.f32 0.0, %v6510
  %v6512 = vpop.f32.mrb[0].mxu0
  %v6513 = vadd.f32 0.0, %v6512
  %6514 = vmatprep.mubr.f32.mxu0 0.0
  %6515 = vmatmul.mubr.f32.gmra.mrb[0].mxu0 %v5899
  %v6516 = vpop.f32.mrb[0].mxu0
  %v6517 = vadd.f32 0.0, %v6516
  %v6518 = vpop.f32.mrb[0].mxu0
  %v6519 = vadd.f32 0.0, %v6518
  %6520 = vmatprep.mubr.f32.mxu0 0.0
  %6521 = vmatmul.mubr.f32.gmra.mrb[0].mxu0 %v5902
  %v6522 = vpop.f32.mrb[0].mxu0
  %v6523 = vadd.f32 0.0, %v6522
  %v6524 = vpop.f32.mrb[0].mxu0
  %v6525 = vadd.f32 0.0, %v6524
  %6526 = vmatprep.mubr.f32.mxu0 0.0
  %6527 = vmatmul.mubr.f32.gmra.mrb[0].mxu0 %v5905
  %v6528 = vpop.f32.mrb[0].mxu0
  %v6529 = vadd.f32 0.0, %v6528
  %v6530 = vpop.f32.mrb[0].mxu0
  %v6531 = vadd.f32 0.0, %v6530
  %6532 = vmatprep.mubr.f32.mxu0 0.0
  %6533 = vmatmul.mubr.f32.gmra.mrb[0].mxu0 %v5908
  %v6534 = vpop.f32.mrb[0].mxu0
  %v6535 = vadd.f32 0.0, %v6534
  %v6536 = vpop.f32.mrb[0].mxu0
  %v6537 = vadd.f32 0.0, %v6536
  %6538 = vmatprep.mubr.f32.mxu0 0.0
  %6539 = vmatmul.mubr.f32.gmra.mrb[0].mxu0 %v5911
  %v6540 = vpop.f32.mrb[0].mxu0
  %v6541 = vadd.f32 0.0, %v6540
  %v6542 = vpop.f32.mrb[0].mxu0
  %v6543 = vadd.f32 0.0, %v6542
  %6544 = vmatprep.mubr.f32.mxu0 0.0
  %6545 = vmatmul.mubr.f32.gmra.mrb[0].mxu0 %v5914
  %v6546 = vpop.f32.mrb[0].mxu0
  %v6547 = vadd.f32 0.0, %v6546
  %v6548 = vpop.f32.mrb[0].mxu0
  %v6549 = vadd.f32 0.0, %v6548
  %6550 = vmatprep.mubr.f32.mxu0 0.0
  %6551 = vmatmul.mubr.f32.gmra.mrb[0].mxu0 %v5917
  %v6552 = vpop.f32.mrb[0].mxu0
  %v6553 = vadd.f32 0.0, %v6552
  %v6554 = vpop.f32.mrb[0].mxu0
  %v6555 = vadd.f32 0.0, %v6554
  %6556 = vmatprep.mubr.f32.mxu0 0.0
  %6557 = vmatmul.mubr.f32.gmra.mrb[0].mxu0 %v5920
  %v6558 = vpop.f32.mrb[0].mxu0
  %v6559 = vadd.f32 0.0, %v6558
  %v6560 = vpop.f32.mrb[0].mxu0
  %v6561 = vadd.f32 0.0, %v6560
  %6562 = vmatprep.mubr.f32.mxu0 0.0
  %6563 = vmatmul.mubr.f32.gmra.mrb[0].mxu0 %v5923
  %v6564 = vpop.f32.mrb[0].mxu0
  %v6565 = vadd.f32 0.0, %v6564
  %v6566 = vpop.f32.mrb[0].mxu0
  %v6567 = vadd.f32 0.0, %v6566
  %6568 = vmatprep.mubr.f32.mxu0 0.0
  %6569 = vmatmul.mubr.f32.gmra.mrb[0].mxu0 %v5926
  %v6570 = vpop.f32.mrb[0].mxu0
  %v6571 = vadd.f32 0.0, %v6570
  %v6572 = vpop.f32.mrb[0].mxu0
  %v6573 = vadd.f32 0.0, %v6572
  %6574 = vmatprep.mubr.f32.mxu0 0.0
  %6575 = vmatmul.mubr.f32.gmra.mrb[0].mxu0 %v5929
  %v6576 = vpop.f32.mrb[0].mxu0
  %v6577 = vadd.f32 0.0, %v6576
  %v6578 = vpop.f32.mrb[0].mxu0
  %v6579 = vadd.f32 0.0, %v6578
  %6580 = vmatprep.mubr.f32.mxu0 0.0
  %6581 = vmatmul.mubr.f32.gmra.mrb[0].mxu0 %v5932
  %v6582 = vpop.f32.mrb[0].mxu0
  %v6583 = vadd.f32 0.0, %v6582
  %v6584 = vpop.f32.mrb[0].mxu0
  %v6585 = vadd.f32 0.0, %v6584
  %6586 = vmatprep.mubr.f32.mxu0 0.0
  %6587 = vmatmul.mubr.f32.gmra.mrb[0].mxu0 %v5935
  %v6588 = vpop.f32.mrb[0].mxu0
  %v6589 = vadd.f32 0.0, %v6588
  %v6590 = vpop.f32.mrb[0].mxu0
  %v6591 = vadd.f32 0.0, %v6590
  %6592 = vmatprep.mubr.f32.mxu0 0.0
  %6593 = vmatmul.mubr.f32.gmra.mrb[0].mxu0 %v5938
  %v6594 = vpop.f32.mrb[0].mxu0
  %v6595 = vadd.f32 0.0, %v6594
  %v6596 = vpop.f32.mrb[0].mxu0
  %v6597 = vadd.f32 0.0, %v6596
  %6598 = vmatprep.mubr.f32.mxu0 0.0
  %6599 = vmatmul.mubr.f32.gmra.mrb[0].mxu0 %v5941
  %v6600 = vpop.f32.mrb[0].mxu0
  %v6601 = vadd.f32 0.0, %v6600
  %v6602 = vpop.f32.mrb[0].mxu0
  %v6603 = vadd.f32 0.0, %v6602
  %6604 = vmatprep.mubr.f32.mxu0 0.0
  %6605 = vmatmul.mubr.f32.gmra.mrb[0].mxu0 %v5944
  %v6606 = vpop.f32.mrb[0].mxu0
  %v6607 = vadd.f32 0.0, %v6606
  %v6608 = vpop.f32.mrb[0].mxu0
  %v6609 = vadd.f32 0.0, %v6608
  %6610 = vmatprep.mubr.f32.mxu0 0.0
  %6611 = vmatmul.mubr.f32.gmra.mrb[0].mxu0 %v5947
  %v6612 = vpop.f32.mrb[0].mxu0
  %v6613 = vadd.f32 0.0, %v6612
  %v6614 = vpop.f32.mrb[0].mxu0
  %v6615 = vadd.f32 0.0, %v6614
  %6616 = vmatprep.mubr.f32.mxu0 0.0
  %6617 = vmatmul.mubr.f32.gmra.mrb[0].mxu0 %v5950
  %v6618 = vpop.f32.mrb[0].mxu0
  %v6619 = vadd.f32 0.0, %v6618
  %v6620 = vpop.f32.mrb[0].mxu0
  %v6621 = vadd.f32 0.0, %v6620
  %6622 = vmatprep.mubr.f32.mxu0 0.0
  %6623 = vmatmul.mubr.f32.gmra.mrb[0].mxu0 %v5953
  %v6624 = vpop.f32.mrb[0].mxu0
  %v6625 = vadd.f32 0.0, %v6624
  %v6626 = vpop.f32.mrb[0].mxu0
  %v6627 = vadd.f32 0.0, %v6626
  %6628 = vmatprep.mubr.f32.mxu0 0.0
  %6629 = vmatmul.mubr.f32.gmra.mrb[0].mxu0 %v5956
  %v6630 = vpop.f32.mrb[0].mxu0
  %v6631 = vadd.f32 0.0, %v6630
  %v6632 = vpop.f32.mrb[0].mxu0
  %v6633 = vadd.f32 0.0, %v6632
  %6634 = vmatprep.mubr.f32.mxu0 0.0
  %6635 = vmatmul.mubr.f32.gmra.mrb[0].mxu0 %v5959
  %v6636 = vpop.f32.mrb[0].mxu0
  %v6637 = vadd.f32 0.0, %v6636
  %v6638 = vpop.f32.mrb[0].mxu0
  %v6639 = vadd.f32 0.0, %v6638
  %6640 = vmatprep.mubr.f32.mxu0 0.0
  %6641 = vmatmul.mubr.f32.gmra.mrb[0].mxu0 %v5962
  %v6642 = vpop.f32.mrb[0].mxu0
  %v6643 = vadd.f32 0.0, %v6642
  %v6644 = vpop.f32.mrb[0].mxu0
  %v6645 = vadd.f32 0.0, %v6644
  %6646 = vmatprep.mubr.f32.mxu0 0.0
  %6647 = vmatmul.mubr.f32.gmra.mrb[0].mxu0 %v5965
  %v6648 = vpop.f32.mrb[0].mxu0
  %v6649 = vadd.f32 0.0, %v6648
  %v6650 = vpop.f32.mrb[0].mxu0
  %v6651 = vadd.f32 0.0, %v6650
  %6652 = vmatprep.mubr.f32.mxu0 0.0
  %6653 = vmatmul.mubr.f32.gmra.mrb[0].mxu0 %v5968
  %v6654 = vpop.f32.mrb[0].mxu0
  %v6655 = vadd.f32 0.0, %v6654
  %v6656 = vpop.f32.mrb[0].mxu0
  %v6657 = vadd.f32 0.0, %v6656
  %6658 = vmatprep.mubr.f32.mxu0 0.0
  %6659 = vmatmul.mubr.f32.gmra.mrb[0].mxu0 %v5971
  %v6660 = vpop.f32.mrb[0].mxu0
  %v6661 = vadd.f32 0.0, %v6660
  %v6662 = vpop.f32.mrb[0].mxu0
  %v6663 = vadd.f32 0.0, %v6662
  %6664 = vmatprep.mubr.f32.mxu0 0.0
  %6665 = vmatmul.mubr.f32.gmra.mrb[0].mxu0 %v5974
  %v6666 = vpop.f32.mrb[0].mxu0
  %v6667 = vadd.f32 0.0, %v6666
  %v6668 = vpop.f32.mrb[0].mxu0
  %v6669 = vadd.f32 0.0, %v6668
  %6670 = vmatprep.mubr.f32.mxu0 0.0
  %6671 = vmatmul.mubr.f32.gmra.mrb[0].mxu0 %v5977
  %v6672 = vpop.f32.mrb[0].mxu0
  %v6673 = vadd.f32 0.0, %v6672
  %v6674 = vpop.f32.mrb[0].mxu0
  %v6675 = vadd.f32 0.0, %v6674
  %6676 = vmatprep.mubr.f32.mxu0 0.0
  %6677 = vmatmul.mubr.f32.gmra.mrb[0].mxu0 %v5980
  %v6678 = vpop.f32.mrb[0].mxu0
  %v6679 = vadd.f32 0.0, %v6678
  %v6680 = vpop.f32.mrb[0].mxu0
  %v6681 = vadd.f32 0.0, %v6680
  %6682 = vmatprep.mubr.f32.mxu0 0.0
  %6683 = vmatmul.mubr.f32.gmra.mrb[0].mxu0 %v5983
  %v6684 = vpop.f32.mrb[0].mxu0
  %v6685 = vadd.f32 0.0, %v6684
  %v6686 = vpop.f32.mrb[0].mxu0
  %v6687 = vadd.f32 0.0, %v6686
  %6688 = vmatprep.mubr.f32.mxu0 0.0
  %6689 = vmatmul.mubr.f32.gmra.mrb[0].mxu0 %v5986
  %v6690 = vpop.f32.mrb[0].mxu0
  %v6691 = vadd.f32 0.0, %v6690
  %v6692 = vpop.f32.mrb[0].mxu0
  %v6693 = vadd.f32 0.0, %v6692
  %6694 = vmatprep.mubr.f32.mxu0 0.0
  %6695 = vmatmul.mubr.f32.gmra.mrb[0].mxu0 %v5989
  %v6696 = vpop.f32.mrb[0].mxu0
  %v6697 = vadd.f32 0.0, %v6696
  %v6698 = vpop.f32.mrb[0].mxu0
  %v6699 = vadd.f32 0.0, %v6698
  %6700 = vmatprep.mubr.f32.mxu0 0.0
  %6701 = vmatmul.mubr.f32.gmra.mrb[0].mxu0 %v5992
  %v6702 = vpop.f32.mrb[0].mxu0
  %v6703 = vadd.f32 0.0, %v6702
  %v6704 = vpop.f32.mrb[0].mxu0
  %v6705 = vadd.f32 0.0, %v6704
  %6706 = vmatprep.mubr.f32.mxu0 0.0
  %6707 = vmatmul.mubr.f32.gmra.mrb[0].mxu0 %v5995
  %v6708 = vpop.f32.mrb[0].mxu0
  %v6709 = vadd.f32 0.0, %v6708
  %v6710 = vpop.f32.mrb[0].mxu0
  %v6711 = vadd.f32 0.0, %v6710
  %6712 = vmatprep.mubr.f32.mxu0 0.0
  %6713 = vmatmul.mubr.f32.gmra.mrb[0].mxu0 %v5998
  %v6714 = vpop.f32.mrb[0].mxu0
  %v6715 = vadd.f32 0.0, %v6714
  %v6716 = vpop.f32.mrb[0].mxu0
  %v6717 = vadd.f32 0.0, %v6716
  %6718 = vmatprep.mubr.f32.mxu0 0.0
  %6719 = vmatmul.mubr.f32.gmra.mrb[0].mxu0 %v6001
  %v6720 = vpop.f32.mrb[0].mxu0
  %v6721 = vadd.f32 0.0, %v6720
  %v6722 = vpop.f32.mrb[0].mxu0
  %v6723 = vadd.f32 0.0, %v6722
  %6724 = vmatprep.mubr.f32.mxu0 0.0
  %6725 = vmatmul.mubr.f32.gmra.mrb[0].mxu0 %v6004
  %v6726 = vpop.f32.mrb[0].mxu0
  %v6727 = vadd.f32 0.0, %v6726
  %v6728 = vpop.f32.mrb[0].mxu0
  %v6729 = vadd.f32 0.0, %v6728
  %6730 = vmatprep.mubr.f32.mxu0 0.0
  %6731 = vmatmul.mubr.f32.gmra.mrb[0].mxu0 %v6007
  %v6732 = vpop.f32.mrb[0].mxu0
  %v6733 = vadd.f32 0.0, %v6732
  %v6734 = vpop.f32.mrb[0].mxu0
  %v6735 = vadd.f32 0.0, %v6734
  %6736 = vmatprep.mubr.f32.mxu0 0.0
  %6737 = vmatmul.mubr.f32.gmra.mrb[0].mxu0 %v6010
  %v6738 = vpop.f32.mrb[0].mxu0
  %v6739 = vadd.f32 0.0, %v6738
  %v6740 = vpop.f32.mrb[0].mxu0
  %v6741 = vadd.f32 0.0, %v6740
  %6742 = vmatprep.mubr.f32.mxu0 0.0
  %6743 = vmatmul.mubr.f32.gmra.mrb[0].mxu0 %v6013
  %v6744 = vpop.f32.mrb[0].mxu0
  %v6745 = vadd.f32 0.0, %v6744
  %v6746 = vpop.f32.mrb[0].mxu0
  %v6747 = vadd.f32 0.0, %v6746
  %6748 = vmatprep.mubr.f32.mxu0 0.0
  %6749 = vmatmul.mubr.f32.gmra.mrb[0].mxu0 %v6016
  %v6750 = vpop.f32.mrb[0].mxu0
  %v6751 = vadd.f32 0.0, %v6750
  %v6752 = vpop.f32.mrb[0].mxu0
  %v6753 = vadd.f32 0.0, %v6752
  %6754 = vmatprep.mubr.f32.mxu0 0.0
  %6755 = vmatmul.mubr.f32.gmra.mrb[0].mxu0 %v6019
  %v6756 = vpop.f32.mrb[0].mxu0
  %v6757 = vadd.f32 0.0, %v6756
  %v6758 = vpop.f32.mrb[0].mxu0
  %v6759 = vadd.f32 0.0, %v6758
  %6760 = vmatprep.mubr.f32.mxu0 0.0
  %6761 = vmatmul.mubr.f32.gmra.mrb[0].mxu0 %v6022
  %v6762 = vpop.f32.mrb[0].mxu0
  %v6763 = vadd.f32 0.0, %v6762
  %v6764 = vpop.f32.mrb[0].mxu0
  %v6765 = vadd.f32 0.0, %v6764
  %6766 = vmatprep.mubr.f32.mxu0 0.0
  %6767 = vmatmul.mubr.f32.gmra.mrb[0].mxu0 %v6025
  %v6768 = vpop.f32.mrb[0].mxu0
  %v6769 = vadd.f32 0.0, %v6768
  %v6770 = vpop.f32.mrb[0].mxu0
  %v6771 = vadd.f32 0.0, %v6770
  %6772 = vmatprep.mubr.f32.mxu0 0.0
  %6773 = vmatmul.mubr.f32.gmra.mrb[0].mxu0 %v6028
  %v6774 = vpop.f32.mrb[0].mxu0
  %v6775 = vadd.f32 0.0, %v6774
  %v6776 = vpop.f32.mrb[0].mxu0
  %v6777 = vadd.f32 0.0, %v6776
  %6778 = vmatprep.mubr.f32.mxu0 0.0
  %6779 = vmatmul.mubr.f32.gmra.mrb[0].mxu0 %v6031
  %v6780 = vpop.f32.mrb[0].mxu0
  %v6781 = vadd.f32 0.0, %v6780
  %v6782 = vpop.f32.mrb[0].mxu0
  %v6783 = vadd.f32 0.0, %v6782
  %6784 = vmatprep.mubr.f32.mxu0 0.0
  %6785 = vmatmul.mubr.f32.gmra.mrb[0].mxu0 %v6034
  %v6786 = vpop.f32.mrb[0].mxu0
  %v6787 = vadd.f32 0.0, %v6786
  %v6788 = vpop.f32.mrb[0].mxu0
  %v6789 = vadd.f32 0.0, %v6788
  %6790 = vmatprep.mubr.f32.mxu0 0.0
  %6791 = vmatmul.mubr.f32.gmra.mrb[0].mxu0 %v6037
  %v6792 = vpop.f32.mrb[0].mxu0
  %v6793 = vadd.f32 0.0, %v6792
  %v6794 = vpop.f32.mrb[0].mxu0
  %v6795 = vadd.f32 0.0, %v6794
  %6796 = vmatprep.mubr.f32.mxu0 0.0
  %6797 = vmatmul.mubr.f32.gmra.mrb[0].mxu0 %v6040
  %v6798 = vpop.f32.mrb[0].mxu0
  %v6799 = vadd.f32 0.0, %v6798
  %v6800 = vpop.f32.mrb[0].mxu0
  %v6801 = vadd.f32 0.0, %v6800
  %6802 = vmatprep.mubr.f32.mxu0 0.0
  %6803 = vmatmul.mubr.f32.gmra.mrb[0].mxu0 %v6043
  %v6804 = vpop.f32.mrb[0].mxu0
  %v6805 = vadd.f32 0.0, %v6804
  %v6806 = vpop.f32.mrb[0].mxu0
  %v6807 = vadd.f32 0.0, %v6806
  %6808 = vmatprep.mubr.f32.mxu0 0.0
  %6809 = vmatmul.mubr.f32.gmra.mrb[0].mxu0 %v6046
  %v6810 = vpop.f32.mrb[0].mxu0
  %v6811 = vadd.f32 0.0, %v6810
  %v6812 = vpop.f32.mrb[0].mxu0
  %v6813 = vadd.f32 0.0, %v6812
  %6814 = vmatprep.mubr.f32.mxu0 0.0
  %6815 = vmatmul.mubr.f32.gmra.mrb[0].mxu0 %v6049
  %v6816 = vpop.f32.mrb[0].mxu0
  %v6817 = vadd.f32 0.0, %v6816
  %v6818 = vpop.f32.mrb[0].mxu0
  %v6819 = vadd.f32 0.0, %v6818
  %6820 = vmatprep.mubr.f32.mxu0 0.0
  %6821 = vmatmul.mubr.f32.gmra.mrb[0].mxu0 %v6052
  %v6822 = vpop.f32.mrb[0].mxu0
  %v6823 = vadd.f32 0.0, %v6822
  %v6824 = vpop.f32.mrb[0].mxu0
  %v6825 = vadd.f32 0.0, %v6824
  %6826 = vmatprep.mubr.f32.mxu0 0.0
  %6827 = vmatmul.mubr.f32.gmra.mrb[0].mxu0 %v6055
  %v6828 = vpop.f32.mrb[0].mxu0
  %v6829 = vadd.f32 0.0, %v6828
  %v6830 = vpop.f32.mrb[0].mxu0
  %v6831 = vadd.f32 0.0, %v6830
  %6832 = vmatprep.mubr.f32.mxu0 0.0
  %6833 = vmatmul.mubr.f32.gmra.mrb[0].mxu0 %v6058
  %v6834 = vpop.f32.mrb[0].mxu0
  %v6835 = vadd.f32 0.0, %v6834
  %v6836 = vpop.f32.mrb[0].mxu0
  %v6837 = vadd.f32 0.0, %v6836
  %6838 = vmatprep.mubr.f32.mxu0 0.0
  %6839 = vmatmul.mubr.f32.gmra.mrb[0].mxu0 %v6061
  %v6840 = vpop.f32.mrb[0].mxu0
  %v6841 = vadd.f32 0.0, %v6840
  %v6842 = vpop.f32.mrb[0].mxu0
  %v6843 = vadd.f32 0.0, %v6842
  %6844 = vmatprep.mubr.f32.mxu0 0.0
  %6845 = vmatmul.mubr.f32.gmra.mrb[0].mxu0 %v6064
  %v6846 = vpop.f32.mrb[0].mxu0
  %v6847 = vadd.f32 0.0, %v6846
  %v6848 = vpop.f32.mrb[0].mxu0
  %v6849 = vadd.f32 0.0, %v6848
  %6850 = vmatprep.mubr.f32.mxu0 0.0
  %6851 = vmatmul.mubr.f32.gmra.mrb[0].mxu0 %v6067
  %v6852 = vpop.f32.mrb[0].mxu0
  %v6853 = vadd.f32 0.0, %v6852
  %v6854 = vpop.f32.mrb[0].mxu0
  %v6855 = vadd.f32 0.0, %v6854
  %6856 = vmatprep.mubr.f32.mxu0 0.0
  %6857 = vmatmul.mubr.f32.gmra.mrb[0].mxu0 %v6070
  %v6858 = vpop.f32.mrb[0].mxu0
  %v6859 = vadd.f32 0.0, %v6858
  %v6860 = vpop.f32.mrb[0].mxu0
  %v6861 = vadd.f32 0.0, %v6860
  %6862 = vmatprep.mubr.f32.mxu0 0.0
  %6863 = vmatmul.mubr.f32.gmra.mrb[0].mxu0 %v6073
  %v6864 = vpop.f32.mrb[0].mxu0
  %v6865 = vadd.f32 0.0, %v6864
  %v6866 = vpop.f32.mrb[0].mxu0
  %v6867 = vadd.f32 0.0, %v6866
  %6868 = vmatprep.mubr.f32.mxu0 0.0
  %6869 = vmatmul.mubr.f32.gmra.mrb[0].mxu0 %v6076
  %v6870 = vpop.f32.mrb[0].mxu0
  %v6871 = vadd.f32 0.0, %v6870
  %v6872 = vpop.f32.mrb[0].mxu0
  %v6873 = vadd.f32 0.0, %v6872
  %6874 = vmatprep.mubr.f32.mxu0 0.0
  %6875 = vmatmul.mubr.f32.gmra.mrb[0].mxu0 %v6079
  %v6876 = vpop.f32.mrb[0].mxu0
  %v6877 = vadd.f32 0.0, %v6876
  %v6878 = vpop.f32.mrb[0].mxu0
  %v6879 = vadd.f32 0.0, %v6878
  %6880 = vmatprep.mubr.f32.mxu0 0.0
  %6881 = vmatmul.mubr.f32.gmra.mrb[0].mxu0 %v6082
  %v6882 = vpop.f32.mrb[0].mxu0
  %v6883 = vadd.f32 0.0, %v6882
  %v6884 = vpop.f32.mrb[0].mxu0
  %v6885 = vadd.f32 0.0, %v6884
  %6886 = vmatprep.mubr.f32.mxu0 0.0
  %6887 = vmatmul.mubr.f32.gmra.mrb[0].mxu0 %v6085
  %v6888 = vpop.f32.mrb[0].mxu0
  %v6889 = vadd.f32 0.0, %v6888
  %v6890 = vpop.f32.mrb[0].mxu0
  %v6891 = vadd.f32 0.0, %v6890
  %6892 = vmatprep.mubr.f32.mxu0 0.0
  %6893 = vmatmul.mubr.f32.gmra.mrb[0].mxu0 %v6088
  %v6894 = vpop.f32.mrb[0].mxu0
  %v6895 = vadd.f32 0.0, %v6894
  %v6896 = vpop.f32.mrb[0].mxu0
  %v6897 = vadd.f32 0.0, %v6896
  %6898 = vmatprep.mubr.f32.mxu0 0.0
  %6899 = vmatmul.mubr.f32.gmra.mrb[0].mxu0 %v6091
  %v6900 = vpop.f32.mrb[0].mxu0
  %v6901 = vadd.f32 0.0, %v6900
  %v6902 = vpop.f32.mrb[0].mxu0
  %v6903 = vadd.f32 0.0, %v6902
  %6904 = vmatprep.mubr.f32.mxu0 0.0
  %6905 = vmatmul.mubr.f32.gmra.mrb[0].mxu0 %v6094
  %v6906 = vpop.f32.mrb[0].mxu0
  %v6907 = vadd.f32 0.0, %v6906
  %v6908 = vpop.f32.mrb[0].mxu0
  %v6909 = vadd.f32 0.0, %v6908
  %6910 = vmatprep.mubr.f32.mxu0 0.0
  %6911 = vmatmul.mubr.f32.gmra.mrb[0].mxu0 %v6097
  %v6912 = vpop.f32.mrb[0].mxu0
  %v6913 = vadd.f32 0.0, %v6912
  %v6914 = vpop.f32.mrb[0].mxu0
  %v6915 = vadd.f32 0.0, %v6914
  %6916 = vmatprep.mubr.f32.mxu0 0.0
  %6917 = vmatmul.mubr.f32.gmra.mrb[0].mxu0 %v6100
  %v6918 = vpop.f32.mrb[0].mxu0
  %v6919 = vadd.f32 0.0, %v6918
  %v6920 = vpop.f32.mrb[0].mxu0
  %v6921 = vadd.f32 0.0, %v6920
  %6922 = vmatprep.mubr.f32.mxu0 0.0
  %6923 = vmatmul.mubr.f32.gmra.mrb[0].mxu0 %v6103
  %v6924 = vpop.f32.mrb[0].mxu0
  %v6925 = vadd.f32 0.0, %v6924
  %v6926 = vpop.f32.mrb[0].mxu0
  %v6927 = vadd.f32 0.0, %v6926
  %6928 = vmatprep.mubr.f32.mxu0 0.0
  %6929 = vmatmul.mubr.f32.gmra.mrb[0].mxu0 %v6106
  %v6930 = vpop.f32.mrb[0].mxu0
  %v6931 = vadd.f32 0.0, %v6930
  %v6932 = vpop.f32.mrb[0].mxu0
  %v6933 = vadd.f32 0.0, %v6932
  %6934 = vmatprep.mubr.f32.mxu0 0.0
  %6935 = vmatmul.mubr.f32.gmra.mrb[0].mxu0 %v6109
  %v6936 = vpop.f32.mrb[0].mxu0
  %v6937 = vadd.f32 0.0, %v6936
  %v6938 = vpop.f32.mrb[0].mxu0
  %v6939 = vadd.f32 0.0, %v6938
  %6940 = vmatprep.mubr.f32.mxu0 0.0
  %6941 = vmatmul.mubr.f32.gmra.mrb[0].mxu0 %v6112
  %v6942 = vpop.f32.mrb[0].mxu0
  %v6943 = vadd.f32 0.0, %v6942
  %v6944 = vpop.f32.mrb[0].mxu0
  %v6945 = vadd.f32 0.0, %v6944
  %6946 = vdwg.mxu0
  %v6947 = vld [vmem:[%s6] sm:$0xff]
  %v6948 = vld [vmem:[%s6 + $0x8] sm:$0xff]
  %v6949 = vld [vmem:[%s6 + $0x10] sm:$0xff]
  %v6950 = vld [vmem:[%s6 + $0x18] sm:$0xff]
  %v6951 = vld [vmem:[%s6 + $0x20] sm:$0xff]
  %v6952 = vld [vmem:[%s6 + $0x28] sm:$0xff]
  %v6953 = vld [vmem:[%s6 + $0x30] sm:$0xff]
  %v6954 = vld [vmem:[%s6 + $0x38] sm:$0xff]
  %vm6955 = vcmask 261120
  %v6957 = vsel %vm6955, %v5599, 0
  %v6960 = vsel %vm6955, %v5600, 0
  %v6963 = vsel %vm6955, %v5601, 0
  %v6966 = vsel %vm6955, %v5602, 0
  %v6969 = vsel %vm6955, %v5603, 0
  %v6972 = vsel %vm6955, %v5604, 0
  %v6975 = vsel %vm6955, %v5605, 0
  %v6978 = vsel %vm6955, %v5606, 0
  %v6981 = vsel %vm6955, %v5607, 0
  %v6984 = vsel %vm6955, %v5608, 0
  %v6987 = vsel %vm6955, %v5609, 0
  %v6990 = vsel %vm6955, %v5610, 0
  %v6993 = vsel %vm6955, %v5611, 0
  %v6996 = vsel %vm6955, %v5612, 0
  %v6999 = vsel %vm6955, %v5613, 0
  %v7002 = vsel %vm6955, %v5614, 0
  %v7005 = vsel %vm6955, %v5615, 0
  %v7008 = vsel %vm6955, %v5616, 0
  %v7011 = vsel %vm6955, %v5617, 0
  %v7014 = vsel %vm6955, %v5618, 0
  %v7017 = vsel %vm6955, %v5619, 0
  %v7020 = vsel %vm6955, %v5620, 0
  %v7023 = vsel %vm6955, %v5621, 0
  %v7026 = vsel %vm6955, %v5622, 0
  %v7029 = vsel %vm6955, %v5623, 0
  %v7032 = vsel %vm6955, %v5624, 0
  %v7035 = vsel %vm6955, %v5625, 0
  %v7038 = vsel %vm6955, %v5626, 0
  %v7041 = vsel %vm6955, %v5627, 0
  %v7044 = vsel %vm6955, %v5628, 0
  %v7047 = vsel %vm6955, %v5629, 0
  %v7050 = vsel %vm6955, %v5630, 0
  %v7053 = vsel %vm6955, %v5631, 0
  %v7056 = vsel %vm6955, %v5632, 0
  %v7059 = vsel %vm6955, %v5633, 0
  %v7062 = vsel %vm6955, %v5634, 0
  %v7065 = vsel %vm6955, %v5635, 0
  %v7068 = vsel %vm6955, %v5636, 0
  %v7071 = vsel %vm6955, %v5637, 0
  %v7074 = vsel %vm6955, %v5638, 0
  %v7077 = vsel %vm6955, %v5639, 0
  %v7080 = vsel %vm6955, %v5640, 0
  %v7083 = vsel %vm6955, %v5641, 0
  %v7086 = vsel %vm6955, %v5642, 0
  %v7089 = vsel %vm6955, %v5643, 0
  %v7092 = vsel %vm6955, %v5644, 0
  %v7095 = vsel %vm6955, %v5645, 0
  %v7098 = vsel %vm6955, %v5646, 0
  %v7101 = vsel %vm6955, %v5647, 0
  %v7104 = vsel %vm6955, %v5648, 0
  %v7107 = vsel %vm6955, %v5649, 0
  %v7110 = vsel %vm6955, %v5650, 0
  %v7113 = vsel %vm6955, %v5651, 0
  %v7116 = vsel %vm6955, %v5652, 0
  %v7119 = vsel %vm6955, %v5653, 0
  %v7122 = vsel %vm6955, %v5654, 0
  %v7125 = vsel %vm6955, %v5655, 0
  %v7128 = vsel %vm6955, %v5656, 0
  %v7131 = vsel %vm6955, %v5657, 0
  %v7134 = vsel %vm6955, %v5658, 0
  %v7137 = vsel %vm6955, %v5659, 0
  %v7140 = vsel %vm6955, %v5660, 0
  %v7143 = vsel %vm6955, %v5661, 0
  %v7146 = vsel %vm6955, %v5662, 0
  %v7149 = vsel %vm6955, %v5663, 0
  %v7152 = vsel %vm6955, %v5664, 0
  %v7155 = vsel %vm6955, %v5665, 0
  %v7158 = vsel %vm6955, %v5666, 0
  %v7161 = vsel %vm6955, %v5667, 0
  %v7164 = vsel %vm6955, %v5668, 0
  %v7167 = vsel %vm6955, %v5669, 0
  %v7170 = vsel %vm6955, %v5670, 0
  %v7173 = vsel %vm6955, %v5671, 0
  %v7176 = vsel %vm6955, %v5672, 0
  %v7179 = vsel %vm6955, %v5673, 0
  %v7182 = vsel %vm6955, %v5674, 0
  %v7185 = vsel %vm6955, %v5675, 0
  %v7188 = vsel %vm6955, %v5676, 0
  %v7191 = vsel %vm6955, %v5677, 0
  %v7194 = vsel %vm6955, %v5678, 0
  %v7197 = vsel %vm6955, %v5679, 0
  %v7200 = vsel %vm6955, %v5680, 0
  %v7203 = vsel %vm6955, %v5681, 0
  %v7206 = vsel %vm6955, %v5682, 0
  %v7209 = vsel %vm6955, %v5683, 0
  %v7212 = vsel %vm6955, %v5684, 0
  %v7215 = vsel %vm6955, %v5685, 0
  %v7218 = vsel %vm6955, %v5686, 0
  %v7221 = vsel %vm6955, %v5687, 0
  %v7224 = vsel %vm6955, %v5688, 0
  %v7227 = vsel %vm6955, %v5689, 0
  %v7230 = vsel %vm6955, %v5690, 0
  %v7233 = vsel %vm6955, %v5691, 0
  %v7236 = vsel %vm6955, %v5692, 0
  %v7239 = vsel %vm6955, %v5693, 0
  %v7242 = vsel %vm6955, %v5694, 0
  %v7245 = vsel %vm6955, %v5695, 0
  %v7248 = vsel %vm6955, %v5696, 0
  %v7251 = vsel %vm6955, %v5697, 0
  %v7254 = vsel %vm6955, %v5698, 0
  %v7257 = vsel %vm6955, %v5699, 0
  %v7260 = vsel %vm6955, %v5700, 0
  %v7263 = vsel %vm6955, %v5701, 0
  %v7266 = vsel %vm6955, %v5702, 0
  %v7269 = vsel %vm6955, %v5703, 0
  %v7272 = vsel %vm6955, %v5704, 0
  %v7275 = vsel %vm6955, %v5705, 0
  %v7278 = vsel %vm6955, %v5706, 0
  %v7281 = vsel %vm6955, %v5707, 0
  %v7284 = vsel %vm6955, %v5708, 0
  %v7287 = vsel %vm6955, %v5709, 0
  %v7290 = vsel %vm6955, %v5710, 0
  %v7293 = vsel %vm6955, %v5711, 0
  %v7296 = vsel %vm6955, %v5712, 0
  %v7299 = vsel %vm6955, %v5713, 0
  %v7302 = vsel %vm6955, %v5714, 0
  %v7305 = vsel %vm6955, %v5715, 0
  %v7308 = vsel %vm6955, %v5716, 0
  %v7311 = vsel %vm6955, %v5717, 0
  %v7314 = vsel %vm6955, %v5718, 0
  %v7317 = vsel %vm6955, %v5719, 0
  %v7320 = vsel %vm6955, %v5720, 0
  %v7323 = vsel %vm6955, %v5721, 0
  %v7326 = vsel %vm6955, %v5722, 0
  %v7329 = vsel %vm6955, %v5723, 0
  %v7332 = vsel %vm6955, %v5724, 0
  %v7335 = vsel %vm6955, %v5725, 0
  %v7338 = vsel %vm6955, %v5726, 0
  %7340 = vmatprep.subr.mxu0 %v6948
  %7341 = vmatpush1.msra.mxu0 %v6947
  %7342 = vmatprep.subr.mxu0 %v6950
  %7343 = vmatpush1.msra.mxu0 %v6949
  %7344 = vmatprep.subr.mxu0 %v6952
  %7345 = vmatpush1.msra.mxu0 %v6951
  %7346 = vmatprep.subr.mxu0 %v6954
  %7347 = vmatpush1.msra.mxu0 %v6953
  %7348 = vmatprep.subr.mxu0 0.0
  %7349 = vmatpush1.msra.mxu0 0.0
  %7350 = vmatprep.subr.mxu0 0.0
  %7351 = vmatpush1.msra.mxu0 0.0
  %7352 = vmatprep.subr.mxu0 0.0
  %7353 = vmatpush1.msra.mxu0 0.0
  %7354 = vmatprep.subr.mxu0 0.0
  %7355 = vmatpush1.msra.mxu0 0.0
  %7356 = vmatprep.subr.mxu0 0.0
  %7357 = vmatpush1.msra.mxu0 0.0
  %7358 = vmatprep.subr.mxu0 0.0
  %7359 = vmatpush1.msra.mxu0 0.0
  %7360 = vmatprep.subr.mxu0 0.0
  %7361 = vmatpush1.msra.mxu0 0.0
  %7362 = vmatprep.subr.mxu0 0.0
  %7363 = vmatpush1.msra.mxu0 0.0
  %7364 = vmatprep.subr.mxu0 0.0
  %7365 = vmatpush1.msra.mxu0 0.0
  %7366 = vmatprep.subr.mxu0 0.0
  %7367 = vmatpush1.msra.mxu0 0.0
  %7368 = vmatprep.subr.mxu0 0.0
  %7369 = vmatpush1.msra.mxu0 0.0
  %7370 = vmatprep.subr.mxu0 0.0
  %7371 = vmatpush1.msra.mxu0 0.0
  %7372 = vmatprep.subr.mxu0 0.0
  %7373 = vmatpush1.msra.mxu0 0.0
  %7374 = vmatprep.subr.mxu0 0.0
  %7375 = vmatpush1.msra.mxu0 0.0
  %7376 = vmatprep.subr.mxu0 0.0
  %7377 = vmatpush1.msra.mxu0 0.0
  %7378 = vmatprep.subr.mxu0 0.0
  %7379 = vmatpush1.msra.mxu0 0.0
  %7380 = vmatprep.subr.mxu0 0.0
  %7381 = vmatpush1.msra.mxu0 0.0
  %7382 = vmatprep.subr.mxu0 0.0
  %7383 = vmatpush1.msra.mxu0 0.0
  %7384 = vmatprep.subr.mxu0 0.0
  %7385 = vmatpush1.msra.mxu0 0.0
  %7386 = vmatprep.subr.mxu0 0.0
  %7387 = vmatpush1.msra.mxu0 0.0
  %7388 = vmatprep.subr.mxu0 0.0
  %7389 = vmatpush1.msra.mxu0 0.0
  %7390 = vmatprep.subr.mxu0 0.0
  %7391 = vmatpush1.msra.mxu0 0.0
  %7392 = vmatprep.subr.mxu0 0.0
  %7393 = vmatpush1.msra.mxu0 0.0
  %7394 = vmatprep.subr.mxu0 0.0
  %7395 = vmatpush1.msra.mxu0 0.0
  %7396 = vmatprep.subr.mxu0 0.0
  %7397 = vmatpush1.msra.mxu0 0.0
  %7398 = vmatprep.subr.mxu0 0.0
  %7399 = vmatpush1.msra.mxu0 0.0
  %7400 = vmatprep.subr.mxu0 0.0
  %7401 = vmatpush1.msra.mxu0 0.0
  %7402 = vmatprep.subr.mxu0 0.0
  %7403 = vmatpush1.msra.mxu0 0.0
  %7404 = vmatprep.mubr.f32.mxu0 0.0
  %7405 = vmatmul.mubr.f32.gmra.mrb[0].mxu0 %v6957
  %v7406 = vpop.f32.mrb[0].mxu0
  %v7407 = vadd.f32 0.0, %v7406
  %v7408 = vpop.f32.mrb[0].mxu0
  %v7409 = vadd.f32 0.0, %v7408
  %7410 = vmatprep.mubr.f32.mxu0 0.0
  %7411 = vmatmul.mubr.f32.gmra.mrb[0].mxu0 %v6960
  %v7412 = vpop.f32.mrb[0].mxu0
  %v7413 = vadd.f32 0.0, %v7412
  %v7414 = vpop.f32.mrb[0].mxu0
  %v7415 = vadd.f32 0.0, %v7414
  %7416 = vmatprep.mubr.f32.mxu0 0.0
  %7417 = vmatmul.mubr.f32.gmra.mrb[0].mxu0 %v6963
  %v7418 = vpop.f32.mrb[0].mxu0
  %v7419 = vadd.f32 0.0, %v7418
  %v7420 = vpop.f32.mrb[0].mxu0
  %v7421 = vadd.f32 0.0, %v7420
  %7422 = vmatprep.mubr.f32.mxu0 0.0
  %7423 = vmatmul.mubr.f32.gmra.mrb[0].mxu0 %v6966
  %v7424 = vpop.f32.mrb[0].mxu0
  %v7425 = vadd.f32 0.0, %v7424
  %v7426 = vpop.f32.mrb[0].mxu0
  %v7427 = vadd.f32 0.0, %v7426
  %7428 = vmatprep.mubr.f32.mxu0 0.0
  %7429 = vmatmul.mubr.f32.gmra.mrb[0].mxu0 %v6969
  %v7430 = vpop.f32.mrb[0].mxu0
  %v7431 = vadd.f32 0.0, %v7430
  %v7432 = vpop.f32.mrb[0].mxu0
  %v7433 = vadd.f32 0.0, %v7432
  %7434 = vmatprep.mubr.f32.mxu0 0.0
  %7435 = vmatmul.mubr.f32.gmra.mrb[0].mxu0 %v6972
  %v7436 = vpop.f32.mrb[0].mxu0
  %v7437 = vadd.f32 0.0, %v7436
  %v7438 = vpop.f32.mrb[0].mxu0
  %v7439 = vadd.f32 0.0, %v7438
  %7440 = vmatprep.mubr.f32.mxu0 0.0
  %7441 = vmatmul.mubr.f32.gmra.mrb[0].mxu0 %v6975
  %v7442 = vpop.f32.mrb[0].mxu0
  %v7443 = vadd.f32 0.0, %v7442
  %v7444 = vpop.f32.mrb[0].mxu0
  %v7445 = vadd.f32 0.0, %v7444
  %7446 = vmatprep.mubr.f32.mxu0 0.0
  %7447 = vmatmul.mubr.f32.gmra.mrb[0].mxu0 %v6978
  %v7448 = vpop.f32.mrb[0].mxu0
  %v7449 = vadd.f32 0.0, %v7448
  %v7450 = vpop.f32.mrb[0].mxu0
  %v7451 = vadd.f32 0.0, %v7450
  %7452 = vmatprep.mubr.f32.mxu0 0.0
  %7453 = vmatmul.mubr.f32.gmra.mrb[0].mxu0 %v6981
  %v7454 = vpop.f32.mrb[0].mxu0
  %v7455 = vadd.f32 0.0, %v7454
  %v7456 = vpop.f32.mrb[0].mxu0
  %v7457 = vadd.f32 0.0, %v7456
  %7458 = vmatprep.mubr.f32.mxu0 0.0
  %7459 = vmatmul.mubr.f32.gmra.mrb[0].mxu0 %v6984
  %v7460 = vpop.f32.mrb[0].mxu0
  %v7461 = vadd.f32 0.0, %v7460
  %v7462 = vpop.f32.mrb[0].mxu0
  %v7463 = vadd.f32 0.0, %v7462
  %7464 = vmatprep.mubr.f32.mxu0 0.0
  %7465 = vmatmul.mubr.f32.gmra.mrb[0].mxu0 %v6987
  %v7466 = vpop.f32.mrb[0].mxu0
  %v7467 = vadd.f32 0.0, %v7466
  %v7468 = vpop.f32.mrb[0].mxu0
  %v7469 = vadd.f32 0.0, %v7468
  %7470 = vmatprep.mubr.f32.mxu0 0.0
  %7471 = vmatmul.mubr.f32.gmra.mrb[0].mxu0 %v6990
  %v7472 = vpop.f32.mrb[0].mxu0
  %v7473 = vadd.f32 0.0, %v7472
  %v7474 = vpop.f32.mrb[0].mxu0
  %v7475 = vadd.f32 0.0, %v7474
  %7476 = vmatprep.mubr.f32.mxu0 0.0
  %7477 = vmatmul.mubr.f32.gmra.mrb[0].mxu0 %v6993
  %v7478 = vpop.f32.mrb[0].mxu0
  %v7479 = vadd.f32 0.0, %v7478
  %v7480 = vpop.f32.mrb[0].mxu0
  %v7481 = vadd.f32 0.0, %v7480
  %7482 = vmatprep.mubr.f32.mxu0 0.0
  %7483 = vmatmul.mubr.f32.gmra.mrb[0].mxu0 %v6996
  %v7484 = vpop.f32.mrb[0].mxu0
  %v7485 = vadd.f32 0.0, %v7484
  %v7486 = vpop.f32.mrb[0].mxu0
  %v7487 = vadd.f32 0.0, %v7486
  %7488 = vmatprep.mubr.f32.mxu0 0.0
  %7489 = vmatmul.mubr.f32.gmra.mrb[0].mxu0 %v6999
  %v7490 = vpop.f32.mrb[0].mxu0
  %v7491 = vadd.f32 0.0, %v7490
  %v7492 = vpop.f32.mrb[0].mxu0
  %v7493 = vadd.f32 0.0, %v7492
  %7494 = vmatprep.mubr.f32.mxu0 0.0
  %7495 = vmatmul.mubr.f32.gmra.mrb[0].mxu0 %v7002
  %v7496 = vpop.f32.mrb[0].mxu0
  %v7497 = vadd.f32 0.0, %v7496
  %v7498 = vpop.f32.mrb[0].mxu0
  %v7499 = vadd.f32 0.0, %v7498
  %7500 = vmatprep.mubr.f32.mxu0 0.0
  %7501 = vmatmul.mubr.f32.gmra.mrb[0].mxu0 %v7005
  %v7502 = vpop.f32.mrb[0].mxu0
  %v7503 = vadd.f32 0.0, %v7502
  %v7504 = vpop.f32.mrb[0].mxu0
  %v7505 = vadd.f32 0.0, %v7504
  %7506 = vmatprep.mubr.f32.mxu0 0.0
  %7507 = vmatmul.mubr.f32.gmra.mrb[0].mxu0 %v7008
  %v7508 = vpop.f32.mrb[0].mxu0
  %v7509 = vadd.f32 0.0, %v7508
  %v7510 = vpop.f32.mrb[0].mxu0
  %v7511 = vadd.f32 0.0, %v7510
  %7512 = vmatprep.mubr.f32.mxu0 0.0
  %7513 = vmatmul.mubr.f32.gmra.mrb[0].mxu0 %v7011
  %v7514 = vpop.f32.mrb[0].mxu0
  %v7515 = vadd.f32 0.0, %v7514
  %v7516 = vpop.f32.mrb[0].mxu0
  %v7517 = vadd.f32 0.0, %v7516
  %7518 = vmatprep.mubr.f32.mxu0 0.0
  %7519 = vmatmul.mubr.f32.gmra.mrb[0].mxu0 %v7014
  %v7520 = vpop.f32.mrb[0].mxu0
  %v7521 = vadd.f32 0.0, %v7520
  %v7522 = vpop.f32.mrb[0].mxu0
  %v7523 = vadd.f32 0.0, %v7522
  %7524 = vmatprep.mubr.f32.mxu0 0.0
  %7525 = vmatmul.mubr.f32.gmra.mrb[0].mxu0 %v7017
  %v7526 = vpop.f32.mrb[0].mxu0
  %v7527 = vadd.f32 0.0, %v7526
  %v7528 = vpop.f32.mrb[0].mxu0
  %v7529 = vadd.f32 0.0, %v7528
  %7530 = vmatprep.mubr.f32.mxu0 0.0
  %7531 = vmatmul.mubr.f32.gmra.mrb[0].mxu0 %v7020
  %v7532 = vpop.f32.mrb[0].mxu0
  %v7533 = vadd.f32 0.0, %v7532
  %v7534 = vpop.f32.mrb[0].mxu0
  %v7535 = vadd.f32 0.0, %v7534
  %7536 = vmatprep.mubr.f32.mxu0 0.0
  %7537 = vmatmul.mubr.f32.gmra.mrb[0].mxu0 %v7023
  %v7538 = vpop.f32.mrb[0].mxu0
  %v7539 = vadd.f32 0.0, %v7538
  %v7540 = vpop.f32.mrb[0].mxu0
  %v7541 = vadd.f32 0.0, %v7540
  %7542 = vmatprep.mubr.f32.mxu0 0.0
  %7543 = vmatmul.mubr.f32.gmra.mrb[0].mxu0 %v7026
  %v7544 = vpop.f32.mrb[0].mxu0
  %v7545 = vadd.f32 0.0, %v7544
  %v7546 = vpop.f32.mrb[0].mxu0
  %v7547 = vadd.f32 0.0, %v7546
  %7548 = vmatprep.mubr.f32.mxu0 0.0
  %7549 = vmatmul.mubr.f32.gmra.mrb[0].mxu0 %v7029
  %v7550 = vpop.f32.mrb[0].mxu0
  %v7551 = vadd.f32 0.0, %v7550
  %v7552 = vpop.f32.mrb[0].mxu0
  %v7553 = vadd.f32 0.0, %v7552
  %7554 = vmatprep.mubr.f32.mxu0 0.0
  %7555 = vmatmul.mubr.f32.gmra.mrb[0].mxu0 %v7032
  %v7556 = vpop.f32.mrb[0].mxu0
  %v7557 = vadd.f32 0.0, %v7556
  %v7558 = vpop.f32.mrb[0].mxu0
  %v7559 = vadd.f32 0.0, %v7558
  %7560 = vmatprep.mubr.f32.mxu0 0.0
  %7561 = vmatmul.mubr.f32.gmra.mrb[0].mxu0 %v7035
  %v7562 = vpop.f32.mrb[0].mxu0
  %v7563 = vadd.f32 0.0, %v7562
  %v7564 = vpop.f32.mrb[0].mxu0
  %v7565 = vadd.f32 0.0, %v7564
  %7566 = vmatprep.mubr.f32.mxu0 0.0
  %7567 = vmatmul.mubr.f32.gmra.mrb[0].mxu0 %v7038
  %v7568 = vpop.f32.mrb[0].mxu0
  %v7569 = vadd.f32 0.0, %v7568
  %v7570 = vpop.f32.mrb[0].mxu0
  %v7571 = vadd.f32 0.0, %v7570
  %7572 = vmatprep.mubr.f32.mxu0 0.0
  %7573 = vmatmul.mubr.f32.gmra.mrb[0].mxu0 %v7041
  %v7574 = vpop.f32.mrb[0].mxu0
  %v7575 = vadd.f32 0.0, %v7574
  %v7576 = vpop.f32.mrb[0].mxu0
  %v7577 = vadd.f32 0.0, %v7576
  %7578 = vmatprep.mubr.f32.mxu0 0.0
  %7579 = vmatmul.mubr.f32.gmra.mrb[0].mxu0 %v7044
  %v7580 = vpop.f32.mrb[0].mxu0
  %v7581 = vadd.f32 0.0, %v7580
  %v7582 = vpop.f32.mrb[0].mxu0
  %v7583 = vadd.f32 0.0, %v7582
  %7584 = vmatprep.mubr.f32.mxu0 0.0
  %7585 = vmatmul.mubr.f32.gmra.mrb[0].mxu0 %v7047
  %v7586 = vpop.f32.mrb[0].mxu0
  %v7587 = vadd.f32 0.0, %v7586
  %v7588 = vpop.f32.mrb[0].mxu0
  %v7589 = vadd.f32 0.0, %v7588
  %7590 = vmatprep.mubr.f32.mxu0 0.0
  %7591 = vmatmul.mubr.f32.gmra.mrb[0].mxu0 %v7050
  %v7592 = vpop.f32.mrb[0].mxu0
  %v7593 = vadd.f32 0.0, %v7592
  %v7594 = vpop.f32.mrb[0].mxu0
  %v7595 = vadd.f32 0.0, %v7594
  %7596 = vmatprep.mubr.f32.mxu0 0.0
  %7597 = vmatmul.mubr.f32.gmra.mrb[0].mxu0 %v7053
  %v7598 = vpop.f32.mrb[0].mxu0
  %v7599 = vadd.f32 0.0, %v7598
  %v7600 = vpop.f32.mrb[0].mxu0
  %v7601 = vadd.f32 0.0, %v7600
  %7602 = vmatprep.mubr.f32.mxu0 0.0
  %7603 = vmatmul.mubr.f32.gmra.mrb[0].mxu0 %v7056
  %v7604 = vpop.f32.mrb[0].mxu0
  %v7605 = vadd.f32 0.0, %v7604
  %v7606 = vpop.f32.mrb[0].mxu0
  %v7607 = vadd.f32 0.0, %v7606
  %7608 = vmatprep.mubr.f32.mxu0 0.0
  %7609 = vmatmul.mubr.f32.gmra.mrb[0].mxu0 %v7059
  %v7610 = vpop.f32.mrb[0].mxu0
  %v7611 = vadd.f32 0.0, %v7610
  %v7612 = vpop.f32.mrb[0].mxu0
  %v7613 = vadd.f32 0.0, %v7612
  %7614 = vmatprep.mubr.f32.mxu0 0.0
  %7615 = vmatmul.mubr.f32.gmra.mrb[0].mxu0 %v7062
  %v7616 = vpop.f32.mrb[0].mxu0
  %v7617 = vadd.f32 0.0, %v7616
  %v7618 = vpop.f32.mrb[0].mxu0
  %v7619 = vadd.f32 0.0, %v7618
  %7620 = vmatprep.mubr.f32.mxu0 0.0
  %7621 = vmatmul.mubr.f32.gmra.mrb[0].mxu0 %v7065
  %v7622 = vpop.f32.mrb[0].mxu0
  %v7623 = vadd.f32 0.0, %v7622
  %v7624 = vpop.f32.mrb[0].mxu0
  %v7625 = vadd.f32 0.0, %v7624
  %7626 = vmatprep.mubr.f32.mxu0 0.0
  %7627 = vmatmul.mubr.f32.gmra.mrb[0].mxu0 %v7068
  %v7628 = vpop.f32.mrb[0].mxu0
  %v7629 = vadd.f32 0.0, %v7628
  %v7630 = vpop.f32.mrb[0].mxu0
  %v7631 = vadd.f32 0.0, %v7630
  %7632 = vmatprep.mubr.f32.mxu0 0.0
  %7633 = vmatmul.mubr.f32.gmra.mrb[0].mxu0 %v7071
  %v7634 = vpop.f32.mrb[0].mxu0
  %v7635 = vadd.f32 0.0, %v7634
  %v7636 = vpop.f32.mrb[0].mxu0
  %v7637 = vadd.f32 0.0, %v7636
  %7638 = vmatprep.mubr.f32.mxu0 0.0
  %7639 = vmatmul.mubr.f32.gmra.mrb[0].mxu0 %v7074
  %v7640 = vpop.f32.mrb[0].mxu0
  %v7641 = vadd.f32 0.0, %v7640
  %v7642 = vpop.f32.mrb[0].mxu0
  %v7643 = vadd.f32 0.0, %v7642
  %7644 = vmatprep.mubr.f32.mxu0 0.0
  %7645 = vmatmul.mubr.f32.gmra.mrb[0].mxu0 %v7077
  %v7646 = vpop.f32.mrb[0].mxu0
  %v7647 = vadd.f32 0.0, %v7646
  %v7648 = vpop.f32.mrb[0].mxu0
  %v7649 = vadd.f32 0.0, %v7648
  %7650 = vmatprep.mubr.f32.mxu0 0.0
  %7651 = vmatmul.mubr.f32.gmra.mrb[0].mxu0 %v7080
  %v7652 = vpop.f32.mrb[0].mxu0
  %v7653 = vadd.f32 0.0, %v7652
  %v7654 = vpop.f32.mrb[0].mxu0
  %v7655 = vadd.f32 0.0, %v7654
  %7656 = vmatprep.mubr.f32.mxu0 0.0
  %7657 = vmatmul.mubr.f32.gmra.mrb[0].mxu0 %v7083
  %v7658 = vpop.f32.mrb[0].mxu0
  %v7659 = vadd.f32 0.0, %v7658
  %v7660 = vpop.f32.mrb[0].mxu0
  %v7661 = vadd.f32 0.0, %v7660
  %7662 = vmatprep.mubr.f32.mxu0 0.0
  %7663 = vmatmul.mubr.f32.gmra.mrb[0].mxu0 %v7086
  %v7664 = vpop.f32.mrb[0].mxu0
  %v7665 = vadd.f32 0.0, %v7664
  %v7666 = vpop.f32.mrb[0].mxu0
  %v7667 = vadd.f32 0.0, %v7666
  %7668 = vmatprep.mubr.f32.mxu0 0.0
  %7669 = vmatmul.mubr.f32.gmra.mrb[0].mxu0 %v7089
  %v7670 = vpop.f32.mrb[0].mxu0
  %v7671 = vadd.f32 0.0, %v7670
  %v7672 = vpop.f32.mrb[0].mxu0
  %v7673 = vadd.f32 0.0, %v7672
  %7674 = vmatprep.mubr.f32.mxu0 0.0
  %7675 = vmatmul.mubr.f32.gmra.mrb[0].mxu0 %v7092
  %v7676 = vpop.f32.mrb[0].mxu0
  %v7677 = vadd.f32 0.0, %v7676
  %v7678 = vpop.f32.mrb[0].mxu0
  %v7679 = vadd.f32 0.0, %v7678
  %7680 = vmatprep.mubr.f32.mxu0 0.0
  %7681 = vmatmul.mubr.f32.gmra.mrb[0].mxu0 %v7095
  %v7682 = vpop.f32.mrb[0].mxu0
  %v7683 = vadd.f32 0.0, %v7682
  %v7684 = vpop.f32.mrb[0].mxu0
  %v7685 = vadd.f32 0.0, %v7684
  %7686 = vmatprep.mubr.f32.mxu0 0.0
  %7687 = vmatmul.mubr.f32.gmra.mrb[0].mxu0 %v7098
  %v7688 = vpop.f32.mrb[0].mxu0
  %v7689 = vadd.f32 0.0, %v7688
  %v7690 = vpop.f32.mrb[0].mxu0
  %v7691 = vadd.f32 0.0, %v7690
  %7692 = vmatprep.mubr.f32.mxu0 0.0
  %7693 = vmatmul.mubr.f32.gmra.mrb[0].mxu0 %v7101
  %v7694 = vpop.f32.mrb[0].mxu0
  %v7695 = vadd.f32 0.0, %v7694
  %v7696 = vpop.f32.mrb[0].mxu0
  %v7697 = vadd.f32 0.0, %v7696
  %7698 = vmatprep.mubr.f32.mxu0 0.0
  %7699 = vmatmul.mubr.f32.gmra.mrb[0].mxu0 %v7104
  %v7700 = vpop.f32.mrb[0].mxu0
  %v7701 = vadd.f32 0.0, %v7700
  %v7702 = vpop.f32.mrb[0].mxu0
  %v7703 = vadd.f32 0.0, %v7702
  %7704 = vmatprep.mubr.f32.mxu0 0.0
  %7705 = vmatmul.mubr.f32.gmra.mrb[0].mxu0 %v7107
  %v7706 = vpop.f32.mrb[0].mxu0
  %v7707 = vadd.f32 0.0, %v7706
  %v7708 = vpop.f32.mrb[0].mxu0
  %v7709 = vadd.f32 0.0, %v7708
  %7710 = vmatprep.mubr.f32.mxu0 0.0
  %7711 = vmatmul.mubr.f32.gmra.mrb[0].mxu0 %v7110
  %v7712 = vpop.f32.mrb[0].mxu0
  %v7713 = vadd.f32 0.0, %v7712
  %v7714 = vpop.f32.mrb[0].mxu0
  %v7715 = vadd.f32 0.0, %v7714
  %7716 = vmatprep.mubr.f32.mxu0 0.0
  %7717 = vmatmul.mubr.f32.gmra.mrb[0].mxu0 %v7113
  %v7718 = vpop.f32.mrb[0].mxu0
  %v7719 = vadd.f32 0.0, %v7718
  %v7720 = vpop.f32.mrb[0].mxu0
  %v7721 = vadd.f32 0.0, %v7720
  %7722 = vmatprep.mubr.f32.mxu0 0.0
  %7723 = vmatmul.mubr.f32.gmra.mrb[0].mxu0 %v7116
  %v7724 = vpop.f32.mrb[0].mxu0
  %v7725 = vadd.f32 0.0, %v7724
  %v7726 = vpop.f32.mrb[0].mxu0
  %v7727 = vadd.f32 0.0, %v7726
  %7728 = vmatprep.mubr.f32.mxu0 0.0
  %7729 = vmatmul.mubr.f32.gmra.mrb[0].mxu0 %v7119
  %v7730 = vpop.f32.mrb[0].mxu0
  %v7731 = vadd.f32 0.0, %v7730
  %v7732 = vpop.f32.mrb[0].mxu0
  %v7733 = vadd.f32 0.0, %v7732
  %7734 = vmatprep.mubr.f32.mxu0 0.0
  %7735 = vmatmul.mubr.f32.gmra.mrb[0].mxu0 %v7122
  %v7736 = vpop.f32.mrb[0].mxu0
  %v7737 = vadd.f32 0.0, %v7736
  %v7738 = vpop.f32.mrb[0].mxu0
  %v7739 = vadd.f32 0.0, %v7738
  %7740 = vmatprep.mubr.f32.mxu0 0.0
  %7741 = vmatmul.mubr.f32.gmra.mrb[0].mxu0 %v7125
  %v7742 = vpop.f32.mrb[0].mxu0
  %v7743 = vadd.f32 0.0, %v7742
  %v7744 = vpop.f32.mrb[0].mxu0
  %v7745 = vadd.f32 0.0, %v7744
  %7746 = vmatprep.mubr.f32.mxu0 0.0
  %7747 = vmatmul.mubr.f32.gmra.mrb[0].mxu0 %v7128
  %v7748 = vpop.f32.mrb[0].mxu0
  %v7749 = vadd.f32 0.0, %v7748
  %v7750 = vpop.f32.mrb[0].mxu0
  %v7751 = vadd.f32 0.0, %v7750
  %7752 = vmatprep.mubr.f32.mxu0 0.0
  %7753 = vmatmul.mubr.f32.gmra.mrb[0].mxu0 %v7131
  %v7754 = vpop.f32.mrb[0].mxu0
  %v7755 = vadd.f32 0.0, %v7754
  %v7756 = vpop.f32.mrb[0].mxu0
  %v7757 = vadd.f32 0.0, %v7756
  %7758 = vmatprep.mubr.f32.mxu0 0.0
  %7759 = vmatmul.mubr.f32.gmra.mrb[0].mxu0 %v7134
  %v7760 = vpop.f32.mrb[0].mxu0
  %v7761 = vadd.f32 0.0, %v7760
  %v7762 = vpop.f32.mrb[0].mxu0
  %v7763 = vadd.f32 0.0, %v7762
  %7764 = vmatprep.mubr.f32.mxu0 0.0
  %7765 = vmatmul.mubr.f32.gmra.mrb[0].mxu0 %v7137
  %v7766 = vpop.f32.mrb[0].mxu0
  %v7767 = vadd.f32 0.0, %v7766
  %v7768 = vpop.f32.mrb[0].mxu0
  %v7769 = vadd.f32 0.0, %v7768
  %7770 = vmatprep.mubr.f32.mxu0 0.0
  %7771 = vmatmul.mubr.f32.gmra.mrb[0].mxu0 %v7140
  %v7772 = vpop.f32.mrb[0].mxu0
  %v7773 = vadd.f32 0.0, %v7772
  %v7774 = vpop.f32.mrb[0].mxu0
  %v7775 = vadd.f32 0.0, %v7774
  %7776 = vmatprep.mubr.f32.mxu0 0.0
  %7777 = vmatmul.mubr.f32.gmra.mrb[0].mxu0 %v7143
  %v7778 = vpop.f32.mrb[0].mxu0
  %v7779 = vadd.f32 0.0, %v7778
  %v7780 = vpop.f32.mrb[0].mxu0
  %v7781 = vadd.f32 0.0, %v7780
  %7782 = vmatprep.mubr.f32.mxu0 0.0
  %7783 = vmatmul.mubr.f32.gmra.mrb[0].mxu0 %v7146
  %v7784 = vpop.f32.mrb[0].mxu0
  %v7785 = vadd.f32 0.0, %v7784
  %v7786 = vpop.f32.mrb[0].mxu0
  %v7787 = vadd.f32 0.0, %v7786
  %7788 = vmatprep.mubr.f32.mxu0 0.0
  %7789 = vmatmul.mubr.f32.gmra.mrb[0].mxu0 %v7149
  %v7790 = vpop.f32.mrb[0].mxu0
  %v7791 = vadd.f32 0.0, %v7790
  %v7792 = vpop.f32.mrb[0].mxu0
  %v7793 = vadd.f32 0.0, %v7792
  %7794 = vmatprep.mubr.f32.mxu0 0.0
  %7795 = vmatmul.mubr.f32.gmra.mrb[0].mxu0 %v7152
  %v7796 = vpop.f32.mrb[0].mxu0
  %v7797 = vadd.f32 0.0, %v7796
  %v7798 = vpop.f32.mrb[0].mxu0
  %v7799 = vadd.f32 0.0, %v7798
  %7800 = vmatprep.mubr.f32.mxu0 0.0
  %7801 = vmatmul.mubr.f32.gmra.mrb[0].mxu0 %v7155
  %v7802 = vpop.f32.mrb[0].mxu0
  %v7803 = vadd.f32 0.0, %v7802
  %v7804 = vpop.f32.mrb[0].mxu0
  %v7805 = vadd.f32 0.0, %v7804
  %7806 = vmatprep.mubr.f32.mxu0 0.0
  %7807 = vmatmul.mubr.f32.gmra.mrb[0].mxu0 %v7158
  %v7808 = vpop.f32.mrb[0].mxu0
  %v7809 = vadd.f32 0.0, %v7808
  %v7810 = vpop.f32.mrb[0].mxu0
  %v7811 = vadd.f32 0.0, %v7810
  %7812 = vmatprep.mubr.f32.mxu0 0.0
  %7813 = vmatmul.mubr.f32.gmra.mrb[0].mxu0 %v7161
  %v7814 = vpop.f32.mrb[0].mxu0
  %v7815 = vadd.f32 0.0, %v7814
  %v7816 = vpop.f32.mrb[0].mxu0
  %v7817 = vadd.f32 0.0, %v7816
  %7818 = vmatprep.mubr.f32.mxu0 0.0
  %7819 = vmatmul.mubr.f32.gmra.mrb[0].mxu0 %v7164
  %v7820 = vpop.f32.mrb[0].mxu0
  %v7821 = vadd.f32 0.0, %v7820
  %v7822 = vpop.f32.mrb[0].mxu0
  %v7823 = vadd.f32 0.0, %v7822
  %7824 = vmatprep.mubr.f32.mxu0 0.0
  %7825 = vmatmul.mubr.f32.gmra.mrb[0].mxu0 %v7167
  %v7826 = vpop.f32.mrb[0].mxu0
  %v7827 = vadd.f32 0.0, %v7826
  %v7828 = vpop.f32.mrb[0].mxu0
  %v7829 = vadd.f32 0.0, %v7828
  %7830 = vmatprep.mubr.f32.mxu0 0.0
  %7831 = vmatmul.mubr.f32.gmra.mrb[0].mxu0 %v7170
  %v7832 = vpop.f32.mrb[0].mxu0
  %v7833 = vadd.f32 0.0, %v7832
  %v7834 = vpop.f32.mrb[0].mxu0
  %v7835 = vadd.f32 0.0, %v7834
  %7836 = vmatprep.mubr.f32.mxu0 0.0
  %7837 = vmatmul.mubr.f32.gmra.mrb[0].mxu0 %v7173
  %v7838 = vpop.f32.mrb[0].mxu0
  %v7839 = vadd.f32 0.0, %v7838
  %v7840 = vpop.f32.mrb[0].mxu0
  %v7841 = vadd.f32 0.0, %v7840
  %7842 = vmatprep.mubr.f32.mxu0 0.0
  %7843 = vmatmul.mubr.f32.gmra.mrb[0].mxu0 %v7176
  %v7844 = vpop.f32.mrb[0].mxu0
  %v7845 = vadd.f32 0.0, %v7844
  %v7846 = vpop.f32.mrb[0].mxu0
  %v7847 = vadd.f32 0.0, %v7846
  %7848 = vmatprep.mubr.f32.mxu0 0.0
  %7849 = vmatmul.mubr.f32.gmra.mrb[0].mxu0 %v7179
  %v7850 = vpop.f32.mrb[0].mxu0
  %v7851 = vadd.f32 0.0, %v7850
  %v7852 = vpop.f32.mrb[0].mxu0
  %v7853 = vadd.f32 0.0, %v7852
  %7854 = vmatprep.mubr.f32.mxu0 0.0
  %7855 = vmatmul.mubr.f32.gmra.mrb[0].mxu0 %v7182
  %v7856 = vpop.f32.mrb[0].mxu0
  %v7857 = vadd.f32 0.0, %v7856
  %v7858 = vpop.f32.mrb[0].mxu0
  %v7859 = vadd.f32 0.0, %v7858
  %7860 = vmatprep.mubr.f32.mxu0 0.0
  %7861 = vmatmul.mubr.f32.gmra.mrb[0].mxu0 %v7185
  %v7862 = vpop.f32.mrb[0].mxu0
  %v7863 = vadd.f32 0.0, %v7862
  %v7864 = vpop.f32.mrb[0].mxu0
  %v7865 = vadd.f32 0.0, %v7864
  %7866 = vmatprep.mubr.f32.mxu0 0.0
  %7867 = vmatmul.mubr.f32.gmra.mrb[0].mxu0 %v7188
  %v7868 = vpop.f32.mrb[0].mxu0
  %v7869 = vadd.f32 0.0, %v7868
  %v7870 = vpop.f32.mrb[0].mxu0
  %v7871 = vadd.f32 0.0, %v7870
  %7872 = vmatprep.mubr.f32.mxu0 0.0
  %7873 = vmatmul.mubr.f32.gmra.mrb[0].mxu0 %v7191
  %v7874 = vpop.f32.mrb[0].mxu0
  %v7875 = vadd.f32 0.0, %v7874
  %v7876 = vpop.f32.mrb[0].mxu0
  %v7877 = vadd.f32 0.0, %v7876
  %7878 = vmatprep.mubr.f32.mxu0 0.0
  %7879 = vmatmul.mubr.f32.gmra.mrb[0].mxu0 %v7194
  %v7880 = vpop.f32.mrb[0].mxu0
  %v7881 = vadd.f32 0.0, %v7880
  %v7882 = vpop.f32.mrb[0].mxu0
  %v7883 = vadd.f32 0.0, %v7882
  %7884 = vmatprep.mubr.f32.mxu0 0.0
  %7885 = vmatmul.mubr.f32.gmra.mrb[0].mxu0 %v7197
  %v7886 = vpop.f32.mrb[0].mxu0
  %v7887 = vadd.f32 0.0, %v7886
  %v7888 = vpop.f32.mrb[0].mxu0
  %v7889 = vadd.f32 0.0, %v7888
  %7890 = vmatprep.mubr.f32.mxu0 0.0
  %7891 = vmatmul.mubr.f32.gmra.mrb[0].mxu0 %v7200
  %v7892 = vpop.f32.mrb[0].mxu0
  %v7893 = vadd.f32 0.0, %v7892
  %v7894 = vpop.f32.mrb[0].mxu0
  %v7895 = vadd.f32 0.0, %v7894
  %7896 = vmatprep.mubr.f32.mxu0 0.0
  %7897 = vmatmul.mubr.f32.gmra.mrb[0].mxu0 %v7203
  %v7898 = vpop.f32.mrb[0].mxu0
  %v7899 = vadd.f32 0.0, %v7898
  %v7900 = vpop.f32.mrb[0].mxu0
  %v7901 = vadd.f32 0.0, %v7900
  %7902 = vmatprep.mubr.f32.mxu0 0.0
  %7903 = vmatmul.mubr.f32.gmra.mrb[0].mxu0 %v7206
  %v7904 = vpop.f32.mrb[0].mxu0
  %v7905 = vadd.f32 0.0, %v7904
  %v7906 = vpop.f32.mrb[0].mxu0
  %v7907 = vadd.f32 0.0, %v7906
  %7908 = vmatprep.mubr.f32.mxu0 0.0
  %7909 = vmatmul.mubr.f32.gmra.mrb[0].mxu0 %v7209
  %v7910 = vpop.f32.mrb[0].mxu0
  %v7911 = vadd.f32 0.0, %v7910
  %v7912 = vpop.f32.mrb[0].mxu0
  %v7913 = vadd.f32 0.0, %v7912
  %7914 = vmatprep.mubr.f32.mxu0 0.0
  %7915 = vmatmul.mubr.f32.gmra.mrb[0].mxu0 %v7212
  %v7916 = vpop.f32.mrb[0].mxu0
  %v7917 = vadd.f32 0.0, %v7916
  %v7918 = vpop.f32.mrb[0].mxu0
  %v7919 = vadd.f32 0.0, %v7918
  %7920 = vmatprep.mubr.f32.mxu0 0.0
  %7921 = vmatmul.mubr.f32.gmra.mrb[0].mxu0 %v7215
  %v7922 = vpop.f32.mrb[0].mxu0
  %v7923 = vadd.f32 0.0, %v7922
  %v7924 = vpop.f32.mrb[0].mxu0
  %v7925 = vadd.f32 0.0, %v7924
  %7926 = vmatprep.mubr.f32.mxu0 0.0
  %7927 = vmatmul.mubr.f32.gmra.mrb[0].mxu0 %v7218
  %v7928 = vpop.f32.mrb[0].mxu0
  %v7929 = vadd.f32 0.0, %v7928
  %v7930 = vpop.f32.mrb[0].mxu0
  %v7931 = vadd.f32 0.0, %v7930
  %7932 = vmatprep.mubr.f32.mxu0 0.0
  %7933 = vmatmul.mubr.f32.gmra.mrb[0].mxu0 %v7221
  %v7934 = vpop.f32.mrb[0].mxu0
  %v7935 = vadd.f32 0.0, %v7934
  %v7936 = vpop.f32.mrb[0].mxu0
  %v7937 = vadd.f32 0.0, %v7936
  %7938 = vmatprep.mubr.f32.mxu0 0.0
  %7939 = vmatmul.mubr.f32.gmra.mrb[0].mxu0 %v7224
  %v7940 = vpop.f32.mrb[0].mxu0
  %v7941 = vadd.f32 0.0, %v7940
  %v7942 = vpop.f32.mrb[0].mxu0
  %v7943 = vadd.f32 0.0, %v7942
  %7944 = vmatprep.mubr.f32.mxu0 0.0
  %7945 = vmatmul.mubr.f32.gmra.mrb[0].mxu0 %v7227
  %v7946 = vpop.f32.mrb[0].mxu0
  %v7947 = vadd.f32 0.0, %v7946
  %v7948 = vpop.f32.mrb[0].mxu0
  %v7949 = vadd.f32 0.0, %v7948
  %7950 = vmatprep.mubr.f32.mxu0 0.0
  %7951 = vmatmul.mubr.f32.gmra.mrb[0].mxu0 %v7230
  %v7952 = vpop.f32.mrb[0].mxu0
  %v7953 = vadd.f32 0.0, %v7952
  %v7954 = vpop.f32.mrb[0].mxu0
  %v7955 = vadd.f32 0.0, %v7954
  %7956 = vmatprep.mubr.f32.mxu0 0.0
  %7957 = vmatmul.mubr.f32.gmra.mrb[0].mxu0 %v7233
  %v7958 = vpop.f32.mrb[0].mxu0
  %v7959 = vadd.f32 0.0, %v7958
  %v7960 = vpop.f32.mrb[0].mxu0
  %v7961 = vadd.f32 0.0, %v7960
  %7962 = vmatprep.mubr.f32.mxu0 0.0
  %7963 = vmatmul.mubr.f32.gmra.mrb[0].mxu0 %v7236
  %v7964 = vpop.f32.mrb[0].mxu0
  %v7965 = vadd.f32 0.0, %v7964
  %v7966 = vpop.f32.mrb[0].mxu0
  %v7967 = vadd.f32 0.0, %v7966
  %7968 = vmatprep.mubr.f32.mxu0 0.0
  %7969 = vmatmul.mubr.f32.gmra.mrb[0].mxu0 %v7239
  %v7970 = vpop.f32.mrb[0].mxu0
  %v7971 = vadd.f32 0.0, %v7970
  %v7972 = vpop.f32.mrb[0].mxu0
  %v7973 = vadd.f32 0.0, %v7972
  %7974 = vmatprep.mubr.f32.mxu0 0.0
  %7975 = vmatmul.mubr.f32.gmra.mrb[0].mxu0 %v7242
  %v7976 = vpop.f32.mrb[0].mxu0
  %v7977 = vadd.f32 0.0, %v7976
  %v7978 = vpop.f32.mrb[0].mxu0
  %v7979 = vadd.f32 0.0, %v7978
  %7980 = vmatprep.mubr.f32.mxu0 0.0
  %7981 = vmatmul.mubr.f32.gmra.mrb[0].mxu0 %v7245
  %v7982 = vpop.f32.mrb[0].mxu0
  %v7983 = vadd.f32 0.0, %v7982
  %v7984 = vpop.f32.mrb[0].mxu0
  %v7985 = vadd.f32 0.0, %v7984
  %7986 = vmatprep.mubr.f32.mxu0 0.0
  %7987 = vmatmul.mubr.f32.gmra.mrb[0].mxu0 %v7248
  %v7988 = vpop.f32.mrb[0].mxu0
  %v7989 = vadd.f32 0.0, %v7988
  %v7990 = vpop.f32.mrb[0].mxu0
  %v7991 = vadd.f32 0.0, %v7990
  %7992 = vmatprep.mubr.f32.mxu0 0.0
  %7993 = vmatmul.mubr.f32.gmra.mrb[0].mxu0 %v7251
  %v7994 = vpop.f32.mrb[0].mxu0
  %v7995 = vadd.f32 0.0, %v7994
  %v7996 = vpop.f32.mrb[0].mxu0
  %v7997 = vadd.f32 0.0, %v7996
  %7998 = vmatprep.mubr.f32.mxu0 0.0
  %7999 = vmatmul.mubr.f32.gmra.mrb[0].mxu0 %v7254
  %v8000 = vpop.f32.mrb[0].mxu0
  %v8001 = vadd.f32 0.0, %v8000
  %v8002 = vpop.f32.mrb[0].mxu0
  %v8003 = vadd.f32 0.0, %v8002
  %8004 = vmatprep.mubr.f32.mxu0 0.0
  %8005 = vmatmul.mubr.f32.gmra.mrb[0].mxu0 %v7257
  %v8006 = vpop.f32.mrb[0].mxu0
  %v8007 = vadd.f32 0.0, %v8006
  %v8008 = vpop.f32.mrb[0].mxu0
  %v8009 = vadd.f32 0.0, %v8008
  %8010 = vmatprep.mubr.f32.mxu0 0.0
  %8011 = vmatmul.mubr.f32.gmra.mrb[0].mxu0 %v7260
  %v8012 = vpop.f32.mrb[0].mxu0
  %v8013 = vadd.f32 0.0, %v8012
  %v8014 = vpop.f32.mrb[0].mxu0
  %v8015 = vadd.f32 0.0, %v8014
  %8016 = vmatprep.mubr.f32.mxu0 0.0
  %8017 = vmatmul.mubr.f32.gmra.mrb[0].mxu0 %v7263
  %v8018 = vpop.f32.mrb[0].mxu0
  %v8019 = vadd.f32 0.0, %v8018
  %v8020 = vpop.f32.mrb[0].mxu0
  %v8021 = vadd.f32 0.0, %v8020
  %8022 = vmatprep.mubr.f32.mxu0 0.0
  %8023 = vmatmul.mubr.f32.gmra.mrb[0].mxu0 %v7266
  %v8024 = vpop.f32.mrb[0].mxu0
  %v8025 = vadd.f32 0.0, %v8024
  %v8026 = vpop.f32.mrb[0].mxu0
  %v8027 = vadd.f32 0.0, %v8026
  %8028 = vmatprep.mubr.f32.mxu0 0.0
  %8029 = vmatmul.mubr.f32.gmra.mrb[0].mxu0 %v7269
  %v8030 = vpop.f32.mrb[0].mxu0
  %v8031 = vadd.f32 0.0, %v8030
  %v8032 = vpop.f32.mrb[0].mxu0
  %v8033 = vadd.f32 0.0, %v8032
  %8034 = vmatprep.mubr.f32.mxu0 0.0
  %8035 = vmatmul.mubr.f32.gmra.mrb[0].mxu0 %v7272
  %v8036 = vpop.f32.mrb[0].mxu0
  %v8037 = vadd.f32 0.0, %v8036
  %v8038 = vpop.f32.mrb[0].mxu0
  %v8039 = vadd.f32 0.0, %v8038
  %8040 = vmatprep.mubr.f32.mxu0 0.0
  %8041 = vmatmul.mubr.f32.gmra.mrb[0].mxu0 %v7275
  %v8042 = vpop.f32.mrb[0].mxu0
  %v8043 = vadd.f32 0.0, %v8042
  %v8044 = vpop.f32.mrb[0].mxu0
  %v8045 = vadd.f32 0.0, %v8044
  %8046 = vmatprep.mubr.f32.mxu0 0.0
  %8047 = vmatmul.mubr.f32.gmra.mrb[0].mxu0 %v7278
  %v8048 = vpop.f32.mrb[0].mxu0
  %v8049 = vadd.f32 0.0, %v8048
  %v8050 = vpop.f32.mrb[0].mxu0
  %v8051 = vadd.f32 0.0, %v8050
  %8052 = vmatprep.mubr.f32.mxu0 0.0
  %8053 = vmatmul.mubr.f32.gmra.mrb[0].mxu0 %v7281
  %v8054 = vpop.f32.mrb[0].mxu0
  %v8055 = vadd.f32 0.0, %v8054
  %v8056 = vpop.f32.mrb[0].mxu0
  %v8057 = vadd.f32 0.0, %v8056
  %8058 = vmatprep.mubr.f32.mxu0 0.0
  %8059 = vmatmul.mubr.f32.gmra.mrb[0].mxu0 %v7284
  %v8060 = vpop.f32.mrb[0].mxu0
  %v8061 = vadd.f32 0.0, %v8060
  %v8062 = vpop.f32.mrb[0].mxu0
  %v8063 = vadd.f32 0.0, %v8062
  %8064 = vmatprep.mubr.f32.mxu0 0.0
  %8065 = vmatmul.mubr.f32.gmra.mrb[0].mxu0 %v7287
  %v8066 = vpop.f32.mrb[0].mxu0
  %v8067 = vadd.f32 0.0, %v8066
  %v8068 = vpop.f32.mrb[0].mxu0
  %v8069 = vadd.f32 0.0, %v8068
  %8070 = vmatprep.mubr.f32.mxu0 0.0
  %8071 = vmatmul.mubr.f32.gmra.mrb[0].mxu0 %v7290
  %v8072 = vpop.f32.mrb[0].mxu0
  %v8073 = vadd.f32 0.0, %v8072
  %v8074 = vpop.f32.mrb[0].mxu0
  %v8075 = vadd.f32 0.0, %v8074
  %8076 = vmatprep.mubr.f32.mxu0 0.0
  %8077 = vmatmul.mubr.f32.gmra.mrb[0].mxu0 %v7293
  %v8078 = vpop.f32.mrb[0].mxu0
  %v8079 = vadd.f32 0.0, %v8078
  %v8080 = vpop.f32.mrb[0].mxu0
  %v8081 = vadd.f32 0.0, %v8080
  %8082 = vmatprep.mubr.f32.mxu0 0.0
  %8083 = vmatmul.mubr.f32.gmra.mrb[0].mxu0 %v7296
  %v8084 = vpop.f32.mrb[0].mxu0
  %v8085 = vadd.f32 0.0, %v8084
  %v8086 = vpop.f32.mrb[0].mxu0
  %v8087 = vadd.f32 0.0, %v8086
  %8088 = vmatprep.mubr.f32.mxu0 0.0
  %8089 = vmatmul.mubr.f32.gmra.mrb[0].mxu0 %v7299
  %v8090 = vpop.f32.mrb[0].mxu0
  %v8091 = vadd.f32 0.0, %v8090
  %v8092 = vpop.f32.mrb[0].mxu0
  %v8093 = vadd.f32 0.0, %v8092
  %8094 = vmatprep.mubr.f32.mxu0 0.0
  %8095 = vmatmul.mubr.f32.gmra.mrb[0].mxu0 %v7302
  %v8096 = vpop.f32.mrb[0].mxu0
  %v8097 = vadd.f32 0.0, %v8096
  %v8098 = vpop.f32.mrb[0].mxu0
  %v8099 = vadd.f32 0.0, %v8098
  %8100 = vmatprep.mubr.f32.mxu0 0.0
  %8101 = vmatmul.mubr.f32.gmra.mrb[0].mxu0 %v7305
  %v8102 = vpop.f32.mrb[0].mxu0
  %v8103 = vadd.f32 0.0, %v8102
  %v8104 = vpop.f32.mrb[0].mxu0
  %v8105 = vadd.f32 0.0, %v8104
  %8106 = vmatprep.mubr.f32.mxu0 0.0
  %8107 = vmatmul.mubr.f32.gmra.mrb[0].mxu0 %v7308
  %v8108 = vpop.f32.mrb[0].mxu0
  %v8109 = vadd.f32 0.0, %v8108
  %v8110 = vpop.f32.mrb[0].mxu0
  %v8111 = vadd.f32 0.0, %v8110
  %8112 = vmatprep.mubr.f32.mxu0 0.0
  %8113 = vmatmul.mubr.f32.gmra.mrb[0].mxu0 %v7311
  %v8114 = vpop.f32.mrb[0].mxu0
  %v8115 = vadd.f32 0.0, %v8114
  %v8116 = vpop.f32.mrb[0].mxu0
  %v8117 = vadd.f32 0.0, %v8116
  %8118 = vmatprep.mubr.f32.mxu0 0.0
  %8119 = vmatmul.mubr.f32.gmra.mrb[0].mxu0 %v7314
  %v8120 = vpop.f32.mrb[0].mxu0
  %v8121 = vadd.f32 0.0, %v8120
  %v8122 = vpop.f32.mrb[0].mxu0
  %v8123 = vadd.f32 0.0, %v8122
  %8124 = vmatprep.mubr.f32.mxu0 0.0
  %8125 = vmatmul.mubr.f32.gmra.mrb[0].mxu0 %v7317
  %v8126 = vpop.f32.mrb[0].mxu0
  %v8127 = vadd.f32 0.0, %v8126
  %v8128 = vpop.f32.mrb[0].mxu0
  %v8129 = vadd.f32 0.0, %v8128
  %8130 = vmatprep.mubr.f32.mxu0 0.0
  %8131 = vmatmul.mubr.f32.gmra.mrb[0].mxu0 %v7320
  %v8132 = vpop.f32.mrb[0].mxu0
  %v8133 = vadd.f32 0.0, %v8132
  %v8134 = vpop.f32.mrb[0].mxu0
  %v8135 = vadd.f32 0.0, %v8134
  %8136 = vmatprep.mubr.f32.mxu0 0.0
  %8137 = vmatmul.mubr.f32.gmra.mrb[0].mxu0 %v7323
  %v8138 = vpop.f32.mrb[0].mxu0
  %v8139 = vadd.f32 0.0, %v8138
  %v8140 = vpop.f32.mrb[0].mxu0
  %v8141 = vadd.f32 0.0, %v8140
  %8142 = vmatprep.mubr.f32.mxu0 0.0
  %8143 = vmatmul.mubr.f32.gmra.mrb[0].mxu0 %v7326
  %v8144 = vpop.f32.mrb[0].mxu0
  %v8145 = vadd.f32 0.0, %v8144
  %v8146 = vpop.f32.mrb[0].mxu0
  %v8147 = vadd.f32 0.0, %v8146
  %8148 = vmatprep.mubr.f32.mxu0 0.0
  %8149 = vmatmul.mubr.f32.gmra.mrb[0].mxu0 %v7329
  %v8150 = vpop.f32.mrb[0].mxu0
  %v8151 = vadd.f32 0.0, %v8150
  %v8152 = vpop.f32.mrb[0].mxu0
  %v8153 = vadd.f32 0.0, %v8152
  %8154 = vmatprep.mubr.f32.mxu0 0.0
  %8155 = vmatmul.mubr.f32.gmra.mrb[0].mxu0 %v7332
  %v8156 = vpop.f32.mrb[0].mxu0
  %v8157 = vadd.f32 0.0, %v8156
  %v8158 = vpop.f32.mrb[0].mxu0
  %v8159 = vadd.f32 0.0, %v8158
  %8160 = vmatprep.mubr.f32.mxu0 0.0
  %8161 = vmatmul.mubr.f32.gmra.mrb[0].mxu0 %v7335
  %v8162 = vpop.f32.mrb[0].mxu0
  %v8163 = vadd.f32 0.0, %v8162
  %v8164 = vpop.f32.mrb[0].mxu0
  %v8165 = vadd.f32 0.0, %v8164
  %8166 = vmatprep.mubr.f32.mxu0 0.0
  %8167 = vmatmul.mubr.f32.gmra.mrb[0].mxu0 %v7338
  %v8168 = vpop.f32.mrb[0].mxu0
  %v8169 = vadd.f32 0.0, %v8168
  %v8170 = vpop.f32.mrb[0].mxu0
  %v8171 = vadd.f32 0.0, %v8170
  %8172 = vdwg.mxu0
  %v8173 = vmul.f32 %v7407, %v6181
  %v8174 = vmul.f32 %v7409, %v6183
  %v8175 = vmul.f32 %v7413, %v6187
  %v8176 = vmul.f32 %v7415, %v6189
  %v8177 = vmul.f32 %v7419, %v6193
  %v8178 = vmul.f32 %v7421, %v6195
  %v8179 = vmul.f32 %v7425, %v6199
  %v8180 = vmul.f32 %v7427, %v6201
  %v8181 = vmul.f32 %v7431, %v6205
  %v8182 = vmul.f32 %v7433, %v6207
  %v8183 = vmul.f32 %v7437, %v6211
  %v8184 = vmul.f32 %v7439, %v6213
  %v8185 = vmul.f32 %v7443, %v6217
  %v8186 = vmul.f32 %v7445, %v6219
  %v8187 = vmul.f32 %v7449, %v6223
  %v8188 = vmul.f32 %v7451, %v6225
  %v8189 = vmul.f32 %v7455, %v6229
  %v8190 = vmul.f32 %v7457, %v6231
  %v8191 = vmul.f32 %v7461, %v6235
  %v8192 = vmul.f32 %v7463, %v6237
  %v8193 = vmul.f32 %v7467, %v6241
  %v8194 = vmul.f32 %v7469, %v6243
  %v8195 = vmul.f32 %v7473, %v6247
  %v8196 = vmul.f32 %v7475, %v6249
  %v8197 = vmul.f32 %v7479, %v6253
  %v8198 = vmul.f32 %v7481, %v6255
  %v8199 = vmul.f32 %v7485, %v6259
  %v8200 = vmul.f32 %v7487, %v6261
  %v8201 = vmul.f32 %v7491, %v6265
  %v8202 = vmul.f32 %v7493, %v6267
  %v8203 = vmul.f32 %v7497, %v6271
  %v8204 = vmul.f32 %v7499, %v6273
  %v8205 = vmul.f32 %v7503, %v6277
  %v8206 = vmul.f32 %v7505, %v6279
  %v8207 = vmul.f32 %v7509, %v6283
  %v8208 = vmul.f32 %v7511, %v6285
  %v8209 = vmul.f32 %v7515, %v6289
  %v8210 = vmul.f32 %v7517, %v6291
  %v8211 = vmul.f32 %v7521, %v6295
  %v8212 = vmul.f32 %v7523, %v6297
  %v8213 = vmul.f32 %v7527, %v6301
  %v8214 = vmul.f32 %v7529, %v6303
  %v8215 = vmul.f32 %v7533, %v6307
  %v8216 = vmul.f32 %v7535, %v6309
  %v8217 = vmul.f32 %v7539, %v6313
  %v8218 = vmul.f32 %v7541, %v6315
  %v8219 = vmul.f32 %v7545, %v6319
  %v8220 = vmul.f32 %v7547, %v6321
  %v8221 = vmul.f32 %v7551, %v6325
  %v8222 = vmul.f32 %v7553, %v6327
  %v8223 = vmul.f32 %v7557, %v6331
  %v8224 = vmul.f32 %v7559, %v6333
  %v8225 = vmul.f32 %v7563, %v6337
  %v8226 = vmul.f32 %v7565, %v6339
  %v8227 = vmul.f32 %v7569, %v6343
  %v8228 = vmul.f32 %v7571, %v6345
  %v8229 = vmul.f32 %v7575, %v6349
  %v8230 = vmul.f32 %v7577, %v6351
  %v8231 = vmul.f32 %v7581, %v6355
  %v8232 = vmul.f32 %v7583, %v6357
  %v8233 = vmul.f32 %v7587, %v6361
  %v8234 = vmul.f32 %v7589, %v6363
  %v8235 = vmul.f32 %v7593, %v6367
  %v8236 = vmul.f32 %v7595, %v6369
  %v8237 = vmul.f32 %v7599, %v6373
  %v8238 = vmul.f32 %v7601, %v6375
  %v8239 = vmul.f32 %v7605, %v6379
  %v8240 = vmul.f32 %v7607, %v6381
  %v8241 = vmul.f32 %v7611, %v6385
  %v8242 = vmul.f32 %v7613, %v6387
  %v8243 = vmul.f32 %v7617, %v6391
  %v8244 = vmul.f32 %v7619, %v6393
  %v8245 = vmul.f32 %v7623, %v6397
  %v8246 = vmul.f32 %v7625, %v6399
  %v8247 = vmul.f32 %v7629, %v6403
  %v8248 = vmul.f32 %v7631, %v6405
  %v8249 = vmul.f32 %v7635, %v6409
  %v8250 = vmul.f32 %v7637, %v6411
  %v8251 = vmul.f32 %v7641, %v6415
  %v8252 = vmul.f32 %v7643, %v6417
  %v8253 = vmul.f32 %v7647, %v6421
  %v8254 = vmul.f32 %v7649, %v6423
  %v8255 = vmul.f32 %v7653, %v6427
  %v8256 = vmul.f32 %v7655, %v6429
  %v8257 = vmul.f32 %v7659, %v6433
  %v8258 = vmul.f32 %v7661, %v6435
  %v8259 = vmul.f32 %v7665, %v6439
  %v8260 = vmul.f32 %v7667, %v6441
  %v8261 = vmul.f32 %v7671, %v6445
  %v8262 = vmul.f32 %v7673, %v6447
  %v8263 = vmul.f32 %v7677, %v6451
  %v8264 = vmul.f32 %v7679, %v6453
  %v8265 = vmul.f32 %v7683, %v6457
  %v8266 = vmul.f32 %v7685, %v6459
  %v8267 = vmul.f32 %v7689, %v6463
  %v8268 = vmul.f32 %v7691, %v6465
  %v8269 = vmul.f32 %v7695, %v6469
  %v8270 = vmul.f32 %v7697, %v6471
  %v8271 = vmul.f32 %v7701, %v6475
  %v8272 = vmul.f32 %v7703, %v6477
  %v8273 = vmul.f32 %v7707, %v6481
  %v8274 = vmul.f32 %v7709, %v6483
  %v8275 = vmul.f32 %v7713, %v6487
  %v8276 = vmul.f32 %v7715, %v6489
  %v8277 = vmul.f32 %v7719, %v6493
  %v8278 = vmul.f32 %v7721, %v6495
  %v8279 = vmul.f32 %v7725, %v6499
  %v8280 = vmul.f32 %v7727, %v6501
  %v8281 = vmul.f32 %v7731, %v6505
  %v8282 = vmul.f32 %v7733, %v6507
  %v8283 = vmul.f32 %v7737, %v6511
  %v8284 = vmul.f32 %v7739, %v6513
  %v8285 = vmul.f32 %v7743, %v6517
  %v8286 = vmul.f32 %v7745, %v6519
  %v8287 = vmul.f32 %v7749, %v6523
  %v8288 = vmul.f32 %v7751, %v6525
  %v8289 = vmul.f32 %v7755, %v6529
  %v8290 = vmul.f32 %v7757, %v6531
  %v8291 = vmul.f32 %v7761, %v6535
  %v8292 = vmul.f32 %v7763, %v6537
  %v8293 = vmul.f32 %v7767, %v6541
  %v8294 = vmul.f32 %v7769, %v6543
  %v8295 = vmul.f32 %v7773, %v6547
  %v8296 = vmul.f32 %v7775, %v6549
  %v8297 = vmul.f32 %v7779, %v6553
  %v8298 = vmul.f32 %v7781, %v6555
  %v8299 = vmul.f32 %v7785, %v6559
  %v8300 = vmul.f32 %v7787, %v6561
  %v8301 = vmul.f32 %v7791, %v6565
  %v8302 = vmul.f32 %v7793, %v6567
  %v8303 = vmul.f32 %v7797, %v6571
  %v8304 = vmul.f32 %v7799, %v6573
  %v8305 = vmul.f32 %v7803, %v6577
  %v8306 = vmul.f32 %v7805, %v6579
  %v8307 = vmul.f32 %v7809, %v6583
  %v8308 = vmul.f32 %v7811, %v6585
  %v8309 = vmul.f32 %v7815, %v6589
  %v8310 = vmul.f32 %v7817, %v6591
  %v8311 = vmul.f32 %v7821, %v6595
  %v8312 = vmul.f32 %v7823, %v6597
  %v8313 = vmul.f32 %v7827, %v6601
  %v8314 = vmul.f32 %v7829, %v6603
  %v8315 = vmul.f32 %v7833, %v6607
  %v8316 = vmul.f32 %v7835, %v6609
  %v8317 = vmul.f32 %v7839, %v6613
  %v8318 = vmul.f32 %v7841, %v6615
  %v8319 = vmul.f32 %v7845, %v6619
  %v8320 = vmul.f32 %v7847, %v6621
  %v8321 = vmul.f32 %v7851, %v6625
  %v8322 = vmul.f32 %v7853, %v6627
  %v8323 = vmul.f32 %v7857, %v6631
  %v8324 = vmul.f32 %v7859, %v6633
  %v8325 = vmul.f32 %v7863, %v6637
  %v8326 = vmul.f32 %v7865, %v6639
  %v8327 = vmul.f32 %v7869, %v6643
  %v8328 = vmul.f32 %v7871, %v6645
  %v8329 = vmul.f32 %v7875, %v6649
  %v8330 = vmul.f32 %v7877, %v6651
  %v8331 = vmul.f32 %v7881, %v6655
  %v8332 = vmul.f32 %v7883, %v6657
  %v8333 = vmul.f32 %v7887, %v6661
  %v8334 = vmul.f32 %v7889, %v6663
  %v8335 = vmul.f32 %v7893, %v6667
  %v8336 = vmul.f32 %v7895, %v6669
  %v8337 = vmul.f32 %v7899, %v6673
  %v8338 = vmul.f32 %v7901, %v6675
  %v8339 = vmul.f32 %v7905, %v6679
  %v8340 = vmul.f32 %v7907, %v6681
  %v8341 = vmul.f32 %v7911, %v6685
  %v8342 = vmul.f32 %v7913, %v6687
  %v8343 = vmul.f32 %v7917, %v6691
  %v8344 = vmul.f32 %v7919, %v6693
  %v8345 = vmul.f32 %v7923, %v6697
  %v8346 = vmul.f32 %v7925, %v6699
  %v8347 = vmul.f32 %v7929, %v6703
  %v8348 = vmul.f32 %v7931, %v6705
  %v8349 = vmul.f32 %v7935, %v6709
  %v8350 = vmul.f32 %v7937, %v6711
  %v8351 = vmul.f32 %v7941, %v6715
  %v8352 = vmul.f32 %v7943, %v6717
  %v8353 = vmul.f32 %v7947, %v6721
  %v8354 = vmul.f32 %v7949, %v6723
  %v8355 = vmul.f32 %v7953, %v6727
  %v8356 = vmul.f32 %v7955, %v6729
  %v8357 = vmul.f32 %v7959, %v6733
  %v8358 = vmul.f32 %v7961, %v6735
  %v8359 = vmul.f32 %v7965, %v6739
  %v8360 = vmul.f32 %v7967, %v6741
  %v8361 = vmul.f32 %v7971, %v6745
  %v8362 = vmul.f32 %v7973, %v6747
  %v8363 = vmul.f32 %v7977, %v6751
  %v8364 = vmul.f32 %v7979, %v6753
  %v8365 = vmul.f32 %v7983, %v6757
  %v8366 = vmul.f32 %v7985, %v6759
  %v8367 = vmul.f32 %v7989, %v6763
  %v8368 = vmul.f32 %v7991, %v6765
  %v8369 = vmul.f32 %v7995, %v6769
  %v8370 = vmul.f32 %v7997, %v6771
  %v8371 = vmul.f32 %v8001, %v6775
  %v8372 = vmul.f32 %v8003, %v6777
  %v8373 = vmul.f32 %v8007, %v6781
  %v8374 = vmul.f32 %v8009, %v6783
  %v8375 = vmul.f32 %v8013, %v6787
  %v8376 = vmul.f32 %v8015, %v6789
  %v8377 = vmul.f32 %v8019, %v6793
  %v8378 = vmul.f32 %v8021, %v6795
  %v8379 = vmul.f32 %v8025, %v6799
  %v8380 = vmul.f32 %v8027, %v6801
  %v8381 = vmul.f32 %v8031, %v6805
  %v8382 = vmul.f32 %v8033, %v6807
  %v8383 = vmul.f32 %v8037, %v6811
  %v8384 = vmul.f32 %v8039, %v6813
  %v8385 = vmul.f32 %v8043, %v6817
  %v8386 = vmul.f32 %v8045, %v6819
  %v8387 = vmul.f32 %v8049, %v6823
  %v8388 = vmul.f32 %v8051, %v6825
  %v8389 = vmul.f32 %v8055, %v6829
  %v8390 = vmul.f32 %v8057, %v6831
  %v8391 = vmul.f32 %v8061, %v6835
  %v8392 = vmul.f32 %v8063, %v6837
  %v8393 = vmul.f32 %v8067, %v6841
  %v8394 = vmul.f32 %v8069, %v6843
  %v8395 = vmul.f32 %v8073, %v6847
  %v8396 = vmul.f32 %v8075, %v6849
  %v8397 = vmul.f32 %v8079, %v6853
  %v8398 = vmul.f32 %v8081, %v6855
  %v8399 = vmul.f32 %v8085, %v6859
  %v8400 = vmul.f32 %v8087, %v6861
  %v8401 = vmul.f32 %v8091, %v6865
  %v8402 = vmul.f32 %v8093, %v6867
  %v8403 = vmul.f32 %v8097, %v6871
  %v8404 = vmul.f32 %v8099, %v6873
  %v8405 = vmul.f32 %v8103, %v6877
  %v8406 = vmul.f32 %v8105, %v6879
  %v8407 = vmul.f32 %v8109, %v6883
  %v8408 = vmul.f32 %v8111, %v6885
  %v8409 = vmul.f32 %v8115, %v6889
  %v8410 = vmul.f32 %v8117, %v6891
  %v8411 = vmul.f32 %v8121, %v6895
  %v8412 = vmul.f32 %v8123, %v6897
  %v8413 = vmul.f32 %v8127, %v6901
  %v8414 = vmul.f32 %v8129, %v6903
  %v8415 = vmul.f32 %v8133, %v6907
  %v8416 = vmul.f32 %v8135, %v6909
  %v8417 = vmul.f32 %v8139, %v6913
  %v8418 = vmul.f32 %v8141, %v6915
  %v8419 = vmul.f32 %v8145, %v6919
  %v8420 = vmul.f32 %v8147, %v6921
  %v8421 = vmul.f32 %v8151, %v6925
  %v8422 = vmul.f32 %v8153, %v6927
  %v8423 = vmul.f32 %v8157, %v6931
  %v8424 = vmul.f32 %v8159, %v6933
  %v8425 = vmul.f32 %v8163, %v6937
  %v8426 = vmul.f32 %v8165, %v6939
  %v8427 = vmul.f32 %v8169, %v6943
  %v8428 = vmul.f32 %v8171, %v6945
  %v8429 = vadd.f32 %v8173, %v8175
  %v8430 = vrot.slane %v8429, 4
  %v8431 = vadd.f32 %v8429, %v8430
  %v8432 = vrot.slane %v8431, 2
  %v8433 = vadd.f32 %v8431, %v8432
  %v8434 = vrot.slane %v8433, 1
  %v8435 = vadd.f32 %v8433, %v8434
  %v8436 = vadd.f32 %v8174, %v8176
  %v8437 = vrot.slane %v8436, 4
  %v8438 = vadd.f32 %v8436, %v8437
  %v8439 = vrot.slane %v8438, 2
  %v8440 = vadd.f32 %v8438, %v8439
  %v8441 = vrot.slane %v8440, 1
  %v8442 = vadd.f32 %v8440, %v8441
  %v8443 = vadd.f32 %v8177, %v8179
  %v8444 = vrot.slane %v8443, 4
  %v8445 = vadd.f32 %v8443, %v8444
  %v8446 = vrot.slane %v8445, 2
  %v8447 = vadd.f32 %v8445, %v8446
  %v8448 = vrot.slane %v8447, 1
  %v8449 = vadd.f32 %v8447, %v8448
  %v8450 = vadd.f32 %v8178, %v8180
  %v8451 = vrot.slane %v8450, 4
  %v8452 = vadd.f32 %v8450, %v8451
  %v8453 = vrot.slane %v8452, 2
  %v8454 = vadd.f32 %v8452, %v8453
  %v8455 = vrot.slane %v8454, 1
  %v8456 = vadd.f32 %v8454, %v8455
  %v8457 = vadd.f32 %v8181, %v8183
  %v8458 = vrot.slane %v8457, 4
  %v8459 = vadd.f32 %v8457, %v8458
  %v8460 = vrot.slane %v8459, 2
  %v8461 = vadd.f32 %v8459, %v8460
  %v8462 = vrot.slane %v8461, 1
  %v8463 = vadd.f32 %v8461, %v8462
  %v8464 = vadd.f32 %v8182, %v8184
  %v8465 = vrot.slane %v8464, 4
  %v8466 = vadd.f32 %v8464, %v8465
  %v8467 = vrot.slane %v8466, 2
  %v8468 = vadd.f32 %v8466, %v8467
  %v8469 = vrot.slane %v8468, 1
  %v8470 = vadd.f32 %v8468, %v8469
  %v8471 = vadd.f32 %v8185, %v8187
  %v8472 = vrot.slane %v8471, 4
  %v8473 = vadd.f32 %v8471, %v8472
  %v8474 = vrot.slane %v8473, 2
  %v8475 = vadd.f32 %v8473, %v8474
  %v8476 = vrot.slane %v8475, 1
  %v8477 = vadd.f32 %v8475, %v8476
  %v8478 = vadd.f32 %v8186, %v8188
  %v8479 = vrot.slane %v8478, 4
  %v8480 = vadd.f32 %v8478, %v8479
  %v8481 = vrot.slane %v8480, 2
  %v8482 = vadd.f32 %v8480, %v8481
  %v8483 = vrot.slane %v8482, 1
  %v8484 = vadd.f32 %v8482, %v8483
  %v8485 = vadd.f32 %v8189, %v8191
  %v8486 = vrot.slane %v8485, 4
  %v8487 = vadd.f32 %v8485, %v8486
  %v8488 = vrot.slane %v8487, 2
  %v8489 = vadd.f32 %v8487, %v8488
  %v8490 = vrot.slane %v8489, 1
  %v8491 = vadd.f32 %v8489, %v8490
  %v8492 = vadd.f32 %v8190, %v8192
  %v8493 = vrot.slane %v8492, 4
  %v8494 = vadd.f32 %v8492, %v8493
  %v8495 = vrot.slane %v8494, 2
  %v8496 = vadd.f32 %v8494, %v8495
  %v8497 = vrot.slane %v8496, 1
  %v8498 = vadd.f32 %v8496, %v8497
  %v8499 = vadd.f32 %v8193, %v8195
  %v8500 = vrot.slane %v8499, 4
  %v8501 = vadd.f32 %v8499, %v8500
  %v8502 = vrot.slane %v8501, 2
  %v8503 = vadd.f32 %v8501, %v8502
  %v8504 = vrot.slane %v8503, 1
  %v8505 = vadd.f32 %v8503, %v8504
  %v8506 = vadd.f32 %v8194, %v8196
  %v8507 = vrot.slane %v8506, 4
  %v8508 = vadd.f32 %v8506, %v8507
  %v8509 = vrot.slane %v8508, 2
  %v8510 = vadd.f32 %v8508, %v8509
  %v8511 = vrot.slane %v8510, 1
  %v8512 = vadd.f32 %v8510, %v8511
  %v8513 = vadd.f32 %v8197, %v8199
  %v8514 = vrot.slane %v8513, 4
  %v8515 = vadd.f32 %v8513, %v8514
  %v8516 = vrot.slane %v8515, 2
  %v8517 = vadd.f32 %v8515, %v8516
  %v8518 = vrot.slane %v8517, 1
  %v8519 = vadd.f32 %v8517, %v8518
  %v8520 = vadd.f32 %v8198, %v8200
  %v8521 = vrot.slane %v8520, 4
  %v8522 = vadd.f32 %v8520, %v8521
  %v8523 = vrot.slane %v8522, 2
  %v8524 = vadd.f32 %v8522, %v8523
  %v8525 = vrot.slane %v8524, 1
  %v8526 = vadd.f32 %v8524, %v8525
  %v8527 = vadd.f32 %v8201, %v8203
  %v8528 = vrot.slane %v8527, 4
  %v8529 = vadd.f32 %v8527, %v8528
  %v8530 = vrot.slane %v8529, 2
  %v8531 = vadd.f32 %v8529, %v8530
  %v8532 = vrot.slane %v8531, 1
  %v8533 = vadd.f32 %v8531, %v8532
  %v8534 = vadd.f32 %v8202, %v8204
  %v8535 = vrot.slane %v8534, 4
  %v8536 = vadd.f32 %v8534, %v8535
  %v8537 = vrot.slane %v8536, 2
  %v8538 = vadd.f32 %v8536, %v8537
  %v8539 = vrot.slane %v8538, 1
  %v8540 = vadd.f32 %v8538, %v8539
  %v8541 = vadd.f32 %v8205, %v8207
  %v8542 = vrot.slane %v8541, 4
  %v8543 = vadd.f32 %v8541, %v8542
  %v8544 = vrot.slane %v8543, 2
  %v8545 = vadd.f32 %v8543, %v8544
  %v8546 = vrot.slane %v8545, 1
  %v8547 = vadd.f32 %v8545, %v8546
  %v8548 = vadd.f32 %v8206, %v8208
  %v8549 = vrot.slane %v8548, 4
  %v8550 = vadd.f32 %v8548, %v8549
  %v8551 = vrot.slane %v8550, 2
  %v8552 = vadd.f32 %v8550, %v8551
  %v8553 = vrot.slane %v8552, 1
  %v8554 = vadd.f32 %v8552, %v8553
  %v8555 = vadd.f32 %v8209, %v8211
  %v8556 = vrot.slane %v8555, 4
  %v8557 = vadd.f32 %v8555, %v8556
  %v8558 = vrot.slane %v8557, 2
  %v8559 = vadd.f32 %v8557, %v8558
  %v8560 = vrot.slane %v8559, 1
  %v8561 = vadd.f32 %v8559, %v8560
  %v8562 = vadd.f32 %v8210, %v8212
  %v8563 = vrot.slane %v8562, 4
  %v8564 = vadd.f32 %v8562, %v8563
  %v8565 = vrot.slane %v8564, 2
  %v8566 = vadd.f32 %v8564, %v8565
  %v8567 = vrot.slane %v8566, 1
  %v8568 = vadd.f32 %v8566, %v8567
  %v8569 = vadd.f32 %v8213, %v8215
  %v8570 = vrot.slane %v8569, 4
  %v8571 = vadd.f32 %v8569, %v8570
  %v8572 = vrot.slane %v8571, 2
  %v8573 = vadd.f32 %v8571, %v8572
  %v8574 = vrot.slane %v8573, 1
  %v8575 = vadd.f32 %v8573, %v8574
  %v8576 = vadd.f32 %v8214, %v8216
  %v8577 = vrot.slane %v8576, 4
  %v8578 = vadd.f32 %v8576, %v8577
  %v8579 = vrot.slane %v8578, 2
  %v8580 = vadd.f32 %v8578, %v8579
  %v8581 = vrot.slane %v8580, 1
  %v8582 = vadd.f32 %v8580, %v8581
  %v8583 = vadd.f32 %v8217, %v8219
  %v8584 = vrot.slane %v8583, 4
  %v8585 = vadd.f32 %v8583, %v8584
  %v8586 = vrot.slane %v8585, 2
  %v8587 = vadd.f32 %v8585, %v8586
  %v8588 = vrot.slane %v8587, 1
  %v8589 = vadd.f32 %v8587, %v8588
  %v8590 = vadd.f32 %v8218, %v8220
  %v8591 = vrot.slane %v8590, 4
  %v8592 = vadd.f32 %v8590, %v8591
  %v8593 = vrot.slane %v8592, 2
  %v8594 = vadd.f32 %v8592, %v8593
  %v8595 = vrot.slane %v8594, 1
  %v8596 = vadd.f32 %v8594, %v8595
  %v8597 = vadd.f32 %v8221, %v8223
  %v8598 = vrot.slane %v8597, 4
  %v8599 = vadd.f32 %v8597, %v8598
  %v8600 = vrot.slane %v8599, 2
  %v8601 = vadd.f32 %v8599, %v8600
  %v8602 = vrot.slane %v8601, 1
  %v8603 = vadd.f32 %v8601, %v8602
  %v8604 = vadd.f32 %v8222, %v8224
  %v8605 = vrot.slane %v8604, 4
  %v8606 = vadd.f32 %v8604, %v8605
  %v8607 = vrot.slane %v8606, 2
  %v8608 = vadd.f32 %v8606, %v8607
  %v8609 = vrot.slane %v8608, 1
  %v8610 = vadd.f32 %v8608, %v8609
  %v8611 = vadd.f32 %v8225, %v8227
  %v8612 = vrot.slane %v8611, 4
  %v8613 = vadd.f32 %v8611, %v8612
  %v8614 = vrot.slane %v8613, 2
  %v8615 = vadd.f32 %v8613, %v8614
  %v8616 = vrot.slane %v8615, 1
  %v8617 = vadd.f32 %v8615, %v8616
  %v8618 = vadd.f32 %v8226, %v8228
  %v8619 = vrot.slane %v8618, 4
  %v8620 = vadd.f32 %v8618, %v8619
  %v8621 = vrot.slane %v8620, 2
  %v8622 = vadd.f32 %v8620, %v8621
  %v8623 = vrot.slane %v8622, 1
  %v8624 = vadd.f32 %v8622, %v8623
  %v8625 = vadd.f32 %v8229, %v8231
  %v8626 = vrot.slane %v8625, 4
  %v8627 = vadd.f32 %v8625, %v8626
  %v8628 = vrot.slane %v8627, 2
  %v8629 = vadd.f32 %v8627, %v8628
  %v8630 = vrot.slane %v8629, 1
  %v8631 = vadd.f32 %v8629, %v8630
  %v8632 = vadd.f32 %v8230, %v8232
  %v8633 = vrot.slane %v8632, 4
  %v8634 = vadd.f32 %v8632, %v8633
  %v8635 = vrot.slane %v8634, 2
  %v8636 = vadd.f32 %v8634, %v8635
  %v8637 = vrot.slane %v8636, 1
  %v8638 = vadd.f32 %v8636, %v8637
  %v8639 = vadd.f32 %v8233, %v8235
  %v8640 = vrot.slane %v8639, 4
  %v8641 = vadd.f32 %v8639, %v8640
  %v8642 = vrot.slane %v8641, 2
  %v8643 = vadd.f32 %v8641, %v8642
  %v8644 = vrot.slane %v8643, 1
  %v8645 = vadd.f32 %v8643, %v8644
  %v8646 = vadd.f32 %v8234, %v8236
  %v8647 = vrot.slane %v8646, 4
  %v8648 = vadd.f32 %v8646, %v8647
  %v8649 = vrot.slane %v8648, 2
  %v8650 = vadd.f32 %v8648, %v8649
  %v8651 = vrot.slane %v8650, 1
  %v8652 = vadd.f32 %v8650, %v8651
  %v8653 = vadd.f32 %v8237, %v8239
  %v8654 = vrot.slane %v8653, 4
  %v8655 = vadd.f32 %v8653, %v8654
  %v8656 = vrot.slane %v8655, 2
  %v8657 = vadd.f32 %v8655, %v8656
  %v8658 = vrot.slane %v8657, 1
  %v8659 = vadd.f32 %v8657, %v8658
  %v8660 = vadd.f32 %v8238, %v8240
  %v8661 = vrot.slane %v8660, 4
  %v8662 = vadd.f32 %v8660, %v8661
  %v8663 = vrot.slane %v8662, 2
  %v8664 = vadd.f32 %v8662, %v8663
  %v8665 = vrot.slane %v8664, 1
  %v8666 = vadd.f32 %v8664, %v8665
  %v8667 = vadd.f32 %v8241, %v8243
  %v8668 = vrot.slane %v8667, 4
  %v8669 = vadd.f32 %v8667, %v8668
  %v8670 = vrot.slane %v8669, 2
  %v8671 = vadd.f32 %v8669, %v8670
  %v8672 = vrot.slane %v8671, 1
  %v8673 = vadd.f32 %v8671, %v8672
  %v8674 = vadd.f32 %v8242, %v8244
  %v8675 = vrot.slane %v8674, 4
  %v8676 = vadd.f32 %v8674, %v8675
  %v8677 = vrot.slane %v8676, 2
  %v8678 = vadd.f32 %v8676, %v8677
  %v8679 = vrot.slane %v8678, 1
  %v8680 = vadd.f32 %v8678, %v8679
  %v8681 = vadd.f32 %v8245, %v8247
  %v8682 = vrot.slane %v8681, 4
  %v8683 = vadd.f32 %v8681, %v8682
  %v8684 = vrot.slane %v8683, 2
  %v8685 = vadd.f32 %v8683, %v8684
  %v8686 = vrot.slane %v8685, 1
  %v8687 = vadd.f32 %v8685, %v8686
  %v8688 = vadd.f32 %v8246, %v8248
  %v8689 = vrot.slane %v8688, 4
  %v8690 = vadd.f32 %v8688, %v8689
  %v8691 = vrot.slane %v8690, 2
  %v8692 = vadd.f32 %v8690, %v8691
  %v8693 = vrot.slane %v8692, 1
  %v8694 = vadd.f32 %v8692, %v8693
  %v8695 = vadd.f32 %v8249, %v8251
  %v8696 = vrot.slane %v8695, 4
  %v8697 = vadd.f32 %v8695, %v8696
  %v8698 = vrot.slane %v8697, 2
  %v8699 = vadd.f32 %v8697, %v8698
  %v8700 = vrot.slane %v8699, 1
  %v8701 = vadd.f32 %v8699, %v8700
  %v8702 = vadd.f32 %v8250, %v8252
  %v8703 = vrot.slane %v8702, 4
  %v8704 = vadd.f32 %v8702, %v8703
  %v8705 = vrot.slane %v8704, 2
  %v8706 = vadd.f32 %v8704, %v8705
  %v8707 = vrot.slane %v8706, 1
  %v8708 = vadd.f32 %v8706, %v8707
  %v8709 = vadd.f32 %v8253, %v8255
  %v8710 = vrot.slane %v8709, 4
  %v8711 = vadd.f32 %v8709, %v8710
  %v8712 = vrot.slane %v8711, 2
  %v8713 = vadd.f32 %v8711, %v8712
  %v8714 = vrot.slane %v8713, 1
  %v8715 = vadd.f32 %v8713, %v8714
  %v8716 = vadd.f32 %v8254, %v8256
  %v8717 = vrot.slane %v8716, 4
  %v8718 = vadd.f32 %v8716, %v8717
  %v8719 = vrot.slane %v8718, 2
  %v8720 = vadd.f32 %v8718, %v8719
  %v8721 = vrot.slane %v8720, 1
  %v8722 = vadd.f32 %v8720, %v8721
  %v8723 = vadd.f32 %v8257, %v8259
  %v8724 = vrot.slane %v8723, 4
  %v8725 = vadd.f32 %v8723, %v8724
  %v8726 = vrot.slane %v8725, 2
  %v8727 = vadd.f32 %v8725, %v8726
  %v8728 = vrot.slane %v8727, 1
  %v8729 = vadd.f32 %v8727, %v8728
  %v8730 = vadd.f32 %v8258, %v8260
  %v8731 = vrot.slane %v8730, 4
  %v8732 = vadd.f32 %v8730, %v8731
  %v8733 = vrot.slane %v8732, 2
  %v8734 = vadd.f32 %v8732, %v8733
  %v8735 = vrot.slane %v8734, 1
  %v8736 = vadd.f32 %v8734, %v8735
  %v8737 = vadd.f32 %v8261, %v8263
  %v8738 = vrot.slane %v8737, 4
  %v8739 = vadd.f32 %v8737, %v8738
  %v8740 = vrot.slane %v8739, 2
  %v8741 = vadd.f32 %v8739, %v8740
  %v8742 = vrot.slane %v8741, 1
  %v8743 = vadd.f32 %v8741, %v8742
  %v8744 = vadd.f32 %v8262, %v8264
  %v8745 = vrot.slane %v8744, 4
  %v8746 = vadd.f32 %v8744, %v8745
  %v8747 = vrot.slane %v8746, 2
  %v8748 = vadd.f32 %v8746, %v8747
  %v8749 = vrot.slane %v8748, 1
  %v8750 = vadd.f32 %v8748, %v8749
  %v8751 = vadd.f32 %v8265, %v8267
  %v8752 = vrot.slane %v8751, 4
  %v8753 = vadd.f32 %v8751, %v8752
  %v8754 = vrot.slane %v8753, 2
  %v8755 = vadd.f32 %v8753, %v8754
  %v8756 = vrot.slane %v8755, 1
  %v8757 = vadd.f32 %v8755, %v8756
  %v8758 = vadd.f32 %v8266, %v8268
  %v8759 = vrot.slane %v8758, 4
  %v8760 = vadd.f32 %v8758, %v8759
  %v8761 = vrot.slane %v8760, 2
  %v8762 = vadd.f32 %v8760, %v8761
  %v8763 = vrot.slane %v8762, 1
  %v8764 = vadd.f32 %v8762, %v8763
  %v8765 = vadd.f32 %v8269, %v8271
  %v8766 = vrot.slane %v8765, 4
  %v8767 = vadd.f32 %v8765, %v8766
  %v8768 = vrot.slane %v8767, 2
  %v8769 = vadd.f32 %v8767, %v8768
  %v8770 = vrot.slane %v8769, 1
  %v8771 = vadd.f32 %v8769, %v8770
  %v8772 = vadd.f32 %v8270, %v8272
  %v8773 = vrot.slane %v8772, 4
  %v8774 = vadd.f32 %v8772, %v8773
  %v8775 = vrot.slane %v8774, 2
  %v8776 = vadd.f32 %v8774, %v8775
  %v8777 = vrot.slane %v8776, 1
  %v8778 = vadd.f32 %v8776, %v8777
  %v8779 = vadd.f32 %v8273, %v8275
  %v8780 = vrot.slane %v8779, 4
  %v8781 = vadd.f32 %v8779, %v8780
  %v8782 = vrot.slane %v8781, 2
  %v8783 = vadd.f32 %v8781, %v8782
  %v8784 = vrot.slane %v8783, 1
  %v8785 = vadd.f32 %v8783, %v8784
  %v8786 = vadd.f32 %v8274, %v8276
  %v8787 = vrot.slane %v8786, 4
  %v8788 = vadd.f32 %v8786, %v8787
  %v8789 = vrot.slane %v8788, 2
  %v8790 = vadd.f32 %v8788, %v8789
  %v8791 = vrot.slane %v8790, 1
  %v8792 = vadd.f32 %v8790, %v8791
  %v8793 = vadd.f32 %v8277, %v8279
  %v8794 = vrot.slane %v8793, 4
  %v8795 = vadd.f32 %v8793, %v8794
  %v8796 = vrot.slane %v8795, 2
  %v8797 = vadd.f32 %v8795, %v8796
  %v8798 = vrot.slane %v8797, 1
  %v8799 = vadd.f32 %v8797, %v8798
  %v8800 = vadd.f32 %v8278, %v8280
  %v8801 = vrot.slane %v8800, 4
  %v8802 = vadd.f32 %v8800, %v8801
  %v8803 = vrot.slane %v8802, 2
  %v8804 = vadd.f32 %v8802, %v8803
  %v8805 = vrot.slane %v8804, 1
  %v8806 = vadd.f32 %v8804, %v8805
  %v8807 = vadd.f32 %v8281, %v8283
  %v8808 = vrot.slane %v8807, 4
  %v8809 = vadd.f32 %v8807, %v8808
  %v8810 = vrot.slane %v8809, 2
  %v8811 = vadd.f32 %v8809, %v8810
  %v8812 = vrot.slane %v8811, 1
  %v8813 = vadd.f32 %v8811, %v8812
  %v8814 = vadd.f32 %v8282, %v8284
  %v8815 = vrot.slane %v8814, 4
  %v8816 = vadd.f32 %v8814, %v8815
  %v8817 = vrot.slane %v8816, 2
  %v8818 = vadd.f32 %v8816, %v8817
  %v8819 = vrot.slane %v8818, 1
  %v8820 = vadd.f32 %v8818, %v8819
  %v8821 = vadd.f32 %v8285, %v8287
  %v8822 = vrot.slane %v8821, 4
  %v8823 = vadd.f32 %v8821, %v8822
  %v8824 = vrot.slane %v8823, 2
  %v8825 = vadd.f32 %v8823, %v8824
  %v8826 = vrot.slane %v8825, 1
  %v8827 = vadd.f32 %v8825, %v8826
  %v8828 = vadd.f32 %v8286, %v8288
  %v8829 = vrot.slane %v8828, 4
  %v8830 = vadd.f32 %v8828, %v8829
  %v8831 = vrot.slane %v8830, 2
  %v8832 = vadd.f32 %v8830, %v8831
  %v8833 = vrot.slane %v8832, 1
  %v8834 = vadd.f32 %v8832, %v8833
  %v8835 = vadd.f32 %v8289, %v8291
  %v8836 = vrot.slane %v8835, 4
  %v8837 = vadd.f32 %v8835, %v8836
  %v8838 = vrot.slane %v8837, 2
  %v8839 = vadd.f32 %v8837, %v8838
  %v8840 = vrot.slane %v8839, 1
  %v8841 = vadd.f32 %v8839, %v8840
  %v8842 = vadd.f32 %v8290, %v8292
  %v8843 = vrot.slane %v8842, 4
  %v8844 = vadd.f32 %v8842, %v8843
  %v8845 = vrot.slane %v8844, 2
  %v8846 = vadd.f32 %v8844, %v8845
  %v8847 = vrot.slane %v8846, 1
  %v8848 = vadd.f32 %v8846, %v8847
  %v8849 = vadd.f32 %v8293, %v8295
  %v8850 = vrot.slane %v8849, 4
  %v8851 = vadd.f32 %v8849, %v8850
  %v8852 = vrot.slane %v8851, 2
  %v8853 = vadd.f32 %v8851, %v8852
  %v8854 = vrot.slane %v8853, 1
  %v8855 = vadd.f32 %v8853, %v8854
  %v8856 = vadd.f32 %v8294, %v8296
  %v8857 = vrot.slane %v8856, 4
  %v8858 = vadd.f32 %v8856, %v8857
  %v8859 = vrot.slane %v8858, 2
  %v8860 = vadd.f32 %v8858, %v8859
  %v8861 = vrot.slane %v8860, 1
  %v8862 = vadd.f32 %v8860, %v8861
  %v8863 = vadd.f32 %v8297, %v8299
  %v8864 = vrot.slane %v8863, 4
  %v8865 = vadd.f32 %v8863, %v8864
  %v8866 = vrot.slane %v8865, 2
  %v8867 = vadd.f32 %v8865, %v8866
  %v8868 = vrot.slane %v8867, 1
  %v8869 = vadd.f32 %v8867, %v8868
  %v8870 = vadd.f32 %v8298, %v8300
  %v8871 = vrot.slane %v8870, 4
  %v8872 = vadd.f32 %v8870, %v8871
  %v8873 = vrot.slane %v8872, 2
  %v8874 = vadd.f32 %v8872, %v8873
  %v8875 = vrot.slane %v8874, 1
  %v8876 = vadd.f32 %v8874, %v8875
  %v8877 = vadd.f32 %v8301, %v8303
  %v8878 = vrot.slane %v8877, 4
  %v8879 = vadd.f32 %v8877, %v8878
  %v8880 = vrot.slane %v8879, 2
  %v8881 = vadd.f32 %v8879, %v8880
  %v8882 = vrot.slane %v8881, 1
  %v8883 = vadd.f32 %v8881, %v8882
  %v8884 = vadd.f32 %v8302, %v8304
  %v8885 = vrot.slane %v8884, 4
  %v8886 = vadd.f32 %v8884, %v8885
  %v8887 = vrot.slane %v8886, 2
  %v8888 = vadd.f32 %v8886, %v8887
  %v8889 = vrot.slane %v8888, 1
  %v8890 = vadd.f32 %v8888, %v8889
  %v8891 = vadd.f32 %v8305, %v8307
  %v8892 = vrot.slane %v8891, 4
  %v8893 = vadd.f32 %v8891, %v8892
  %v8894 = vrot.slane %v8893, 2
  %v8895 = vadd.f32 %v8893, %v8894
  %v8896 = vrot.slane %v8895, 1
  %v8897 = vadd.f32 %v8895, %v8896
  %v8898 = vadd.f32 %v8306, %v8308
  %v8899 = vrot.slane %v8898, 4
  %v8900 = vadd.f32 %v8898, %v8899
  %v8901 = vrot.slane %v8900, 2
  %v8902 = vadd.f32 %v8900, %v8901
  %v8903 = vrot.slane %v8902, 1
  %v8904 = vadd.f32 %v8902, %v8903
  %v8905 = vadd.f32 %v8309, %v8311
  %v8906 = vrot.slane %v8905, 4
  %v8907 = vadd.f32 %v8905, %v8906
  %v8908 = vrot.slane %v8907, 2
  %v8909 = vadd.f32 %v8907, %v8908
  %v8910 = vrot.slane %v8909, 1
  %v8911 = vadd.f32 %v8909, %v8910
  %v8912 = vadd.f32 %v8310, %v8312
  %v8913 = vrot.slane %v8912, 4
  %v8914 = vadd.f32 %v8912, %v8913
  %v8915 = vrot.slane %v8914, 2
  %v8916 = vadd.f32 %v8914, %v8915
  %v8917 = vrot.slane %v8916, 1
  %v8918 = vadd.f32 %v8916, %v8917
  %v8919 = vadd.f32 %v8313, %v8315
  %v8920 = vrot.slane %v8919, 4
  %v8921 = vadd.f32 %v8919, %v8920
  %v8922 = vrot.slane %v8921, 2
  %v8923 = vadd.f32 %v8921, %v8922
  %v8924 = vrot.slane %v8923, 1
  %v8925 = vadd.f32 %v8923, %v8924
  %v8926 = vadd.f32 %v8314, %v8316
  %v8927 = vrot.slane %v8926, 4
  %v8928 = vadd.f32 %v8926, %v8927
  %v8929 = vrot.slane %v8928, 2
  %v8930 = vadd.f32 %v8928, %v8929
  %v8931 = vrot.slane %v8930, 1
  %v8932 = vadd.f32 %v8930, %v8931
  %v8933 = vadd.f32 %v8317, %v8319
  %v8934 = vrot.slane %v8933, 4
  %v8935 = vadd.f32 %v8933, %v8934
  %v8936 = vrot.slane %v8935, 2
  %v8937 = vadd.f32 %v8935, %v8936
  %v8938 = vrot.slane %v8937, 1
  %v8939 = vadd.f32 %v8937, %v8938
  %v8940 = vadd.f32 %v8318, %v8320
  %v8941 = vrot.slane %v8940, 4
  %v8942 = vadd.f32 %v8940, %v8941
  %v8943 = vrot.slane %v8942, 2
  %v8944 = vadd.f32 %v8942, %v8943
  %v8945 = vrot.slane %v8944, 1
  %v8946 = vadd.f32 %v8944, %v8945
  %v8947 = vadd.f32 %v8321, %v8323
  %v8948 = vrot.slane %v8947, 4
  %v8949 = vadd.f32 %v8947, %v8948
  %v8950 = vrot.slane %v8949, 2
  %v8951 = vadd.f32 %v8949, %v8950
  %v8952 = vrot.slane %v8951, 1
  %v8953 = vadd.f32 %v8951, %v8952
  %v8954 = vadd.f32 %v8322, %v8324
  %v8955 = vrot.slane %v8954, 4
  %v8956 = vadd.f32 %v8954, %v8955
  %v8957 = vrot.slane %v8956, 2
  %v8958 = vadd.f32 %v8956, %v8957
  %v8959 = vrot.slane %v8958, 1
  %v8960 = vadd.f32 %v8958, %v8959
  %v8961 = vadd.f32 %v8325, %v8327
  %v8962 = vrot.slane %v8961, 4
  %v8963 = vadd.f32 %v8961, %v8962
  %v8964 = vrot.slane %v8963, 2
  %v8965 = vadd.f32 %v8963, %v8964
  %v8966 = vrot.slane %v8965, 1
  %v8967 = vadd.f32 %v8965, %v8966
  %v8968 = vadd.f32 %v8326, %v8328
  %v8969 = vrot.slane %v8968, 4
  %v8970 = vadd.f32 %v8968, %v8969
  %v8971 = vrot.slane %v8970, 2
  %v8972 = vadd.f32 %v8970, %v8971
  %v8973 = vrot.slane %v8972, 1
  %v8974 = vadd.f32 %v8972, %v8973
  %v8975 = vadd.f32 %v8329, %v8331
  %v8976 = vrot.slane %v8975, 4
  %v8977 = vadd.f32 %v8975, %v8976
  %v8978 = vrot.slane %v8977, 2
  %v8979 = vadd.f32 %v8977, %v8978
  %v8980 = vrot.slane %v8979, 1
  %v8981 = vadd.f32 %v8979, %v8980
  %v8982 = vadd.f32 %v8330, %v8332
  %v8983 = vrot.slane %v8982, 4
  %v8984 = vadd.f32 %v8982, %v8983
  %v8985 = vrot.slane %v8984, 2
  %v8986 = vadd.f32 %v8984, %v8985
  %v8987 = vrot.slane %v8986, 1
  %v8988 = vadd.f32 %v8986, %v8987
  %v8989 = vadd.f32 %v8333, %v8335
  %v8990 = vrot.slane %v8989, 4
  %v8991 = vadd.f32 %v8989, %v8990
  %v8992 = vrot.slane %v8991, 2
  %v8993 = vadd.f32 %v8991, %v8992
  %v8994 = vrot.slane %v8993, 1
  %v8995 = vadd.f32 %v8993, %v8994
  %v8996 = vadd.f32 %v8334, %v8336
  %v8997 = vrot.slane %v8996, 4
  %v8998 = vadd.f32 %v8996, %v8997
  %v8999 = vrot.slane %v8998, 2
  %v9000 = vadd.f32 %v8998, %v8999
  %v9001 = vrot.slane %v9000, 1
  %v9002 = vadd.f32 %v9000, %v9001
  %v9003 = vadd.f32 %v8337, %v8339
  %v9004 = vrot.slane %v9003, 4
  %v9005 = vadd.f32 %v9003, %v9004
  %v9006 = vrot.slane %v9005, 2
  %v9007 = vadd.f32 %v9005, %v9006
  %v9008 = vrot.slane %v9007, 1
  %v9009 = vadd.f32 %v9007, %v9008
  %v9010 = vadd.f32 %v8338, %v8340
  %v9011 = vrot.slane %v9010, 4
  %v9012 = vadd.f32 %v9010, %v9011
  %v9013 = vrot.slane %v9012, 2
  %v9014 = vadd.f32 %v9012, %v9013
  %v9015 = vrot.slane %v9014, 1
  %v9016 = vadd.f32 %v9014, %v9015
  %v9017 = vadd.f32 %v8341, %v8343
  %v9018 = vrot.slane %v9017, 4
  %v9019 = vadd.f32 %v9017, %v9018
  %v9020 = vrot.slane %v9019, 2
  %v9021 = vadd.f32 %v9019, %v9020
  %v9022 = vrot.slane %v9021, 1
  %v9023 = vadd.f32 %v9021, %v9022
  %v9024 = vadd.f32 %v8342, %v8344
  %v9025 = vrot.slane %v9024, 4
  %v9026 = vadd.f32 %v9024, %v9025
  %v9027 = vrot.slane %v9026, 2
  %v9028 = vadd.f32 %v9026, %v9027
  %v9029 = vrot.slane %v9028, 1
  %v9030 = vadd.f32 %v9028, %v9029
  %v9031 = vadd.f32 %v8345, %v8347
  %v9032 = vrot.slane %v9031, 4
  %v9033 = vadd.f32 %v9031, %v9032
  %v9034 = vrot.slane %v9033, 2
  %v9035 = vadd.f32 %v9033, %v9034
  %v9036 = vrot.slane %v9035, 1
  %v9037 = vadd.f32 %v9035, %v9036
  %v9038 = vadd.f32 %v8346, %v8348
  %v9039 = vrot.slane %v9038, 4
  %v9040 = vadd.f32 %v9038, %v9039
  %v9041 = vrot.slane %v9040, 2
  %v9042 = vadd.f32 %v9040, %v9041
  %v9043 = vrot.slane %v9042, 1
  %v9044 = vadd.f32 %v9042, %v9043
  %v9045 = vadd.f32 %v8349, %v8351
  %v9046 = vrot.slane %v9045, 4
  %v9047 = vadd.f32 %v9045, %v9046
  %v9048 = vrot.slane %v9047, 2
  %v9049 = vadd.f32 %v9047, %v9048
  %v9050 = vrot.slane %v9049, 1
  %v9051 = vadd.f32 %v9049, %v9050
  %v9052 = vadd.f32 %v8350, %v8352
  %v9053 = vrot.slane %v9052, 4
  %v9054 = vadd.f32 %v9052, %v9053
  %v9055 = vrot.slane %v9054, 2
  %v9056 = vadd.f32 %v9054, %v9055
  %v9057 = vrot.slane %v9056, 1
  %v9058 = vadd.f32 %v9056, %v9057
  %v9059 = vadd.f32 %v8353, %v8355
  %v9060 = vrot.slane %v9059, 4
  %v9061 = vadd.f32 %v9059, %v9060
  %v9062 = vrot.slane %v9061, 2
  %v9063 = vadd.f32 %v9061, %v9062
  %v9064 = vrot.slane %v9063, 1
  %v9065 = vadd.f32 %v9063, %v9064
  %v9066 = vadd.f32 %v8354, %v8356
  %v9067 = vrot.slane %v9066, 4
  %v9068 = vadd.f32 %v9066, %v9067
  %v9069 = vrot.slane %v9068, 2
  %v9070 = vadd.f32 %v9068, %v9069
  %v9071 = vrot.slane %v9070, 1
  %v9072 = vadd.f32 %v9070, %v9071
  %v9073 = vadd.f32 %v8357, %v8359
  %v9074 = vrot.slane %v9073, 4
  %v9075 = vadd.f32 %v9073, %v9074
  %v9076 = vrot.slane %v9075, 2
  %v9077 = vadd.f32 %v9075, %v9076
  %v9078 = vrot.slane %v9077, 1
  %v9079 = vadd.f32 %v9077, %v9078
  %v9080 = vadd.f32 %v8358, %v8360
  %v9081 = vrot.slane %v9080, 4
  %v9082 = vadd.f32 %v9080, %v9081
  %v9083 = vrot.slane %v9082, 2
  %v9084 = vadd.f32 %v9082, %v9083
  %v9085 = vrot.slane %v9084, 1
  %v9086 = vadd.f32 %v9084, %v9085
  %v9087 = vadd.f32 %v8361, %v8363
  %v9088 = vrot.slane %v9087, 4
  %v9089 = vadd.f32 %v9087, %v9088
  %v9090 = vrot.slane %v9089, 2
  %v9091 = vadd.f32 %v9089, %v9090
  %v9092 = vrot.slane %v9091, 1
  %v9093 = vadd.f32 %v9091, %v9092
  %v9094 = vadd.f32 %v8362, %v8364
  %v9095 = vrot.slane %v9094, 4
  %v9096 = vadd.f32 %v9094, %v9095
  %v9097 = vrot.slane %v9096, 2
  %v9098 = vadd.f32 %v9096, %v9097
  %v9099 = vrot.slane %v9098, 1
  %v9100 = vadd.f32 %v9098, %v9099
  %v9101 = vadd.f32 %v8365, %v8367
  %v9102 = vrot.slane %v9101, 4
  %v9103 = vadd.f32 %v9101, %v9102
  %v9104 = vrot.slane %v9103, 2
  %v9105 = vadd.f32 %v9103, %v9104
  %v9106 = vrot.slane %v9105, 1
  %v9107 = vadd.f32 %v9105, %v9106
  %v9108 = vadd.f32 %v8366, %v8368
  %v9109 = vrot.slane %v9108, 4
  %v9110 = vadd.f32 %v9108, %v9109
  %v9111 = vrot.slane %v9110, 2
  %v9112 = vadd.f32 %v9110, %v9111
  %v9113 = vrot.slane %v9112, 1
  %v9114 = vadd.f32 %v9112, %v9113
  %v9115 = vadd.f32 %v8369, %v8371
  %v9116 = vrot.slane %v9115, 4
  %v9117 = vadd.f32 %v9115, %v9116
  %v9118 = vrot.slane %v9117, 2
  %v9119 = vadd.f32 %v9117, %v9118
  %v9120 = vrot.slane %v9119, 1
  %v9121 = vadd.f32 %v9119, %v9120
  %v9122 = vadd.f32 %v8370, %v8372
  %v9123 = vrot.slane %v9122, 4
  %v9124 = vadd.f32 %v9122, %v9123
  %v9125 = vrot.slane %v9124, 2
  %v9126 = vadd.f32 %v9124, %v9125
  %v9127 = vrot.slane %v9126, 1
  %v9128 = vadd.f32 %v9126, %v9127
  %v9129 = vadd.f32 %v8373, %v8375
  %v9130 = vrot.slane %v9129, 4
  %v9131 = vadd.f32 %v9129, %v9130
  %v9132 = vrot.slane %v9131, 2
  %v9133 = vadd.f32 %v9131, %v9132
  %v9134 = vrot.slane %v9133, 1
  %v9135 = vadd.f32 %v9133, %v9134
  %v9136 = vadd.f32 %v8374, %v8376
  %v9137 = vrot.slane %v9136, 4
  %v9138 = vadd.f32 %v9136, %v9137
  %v9139 = vrot.slane %v9138, 2
  %v9140 = vadd.f32 %v9138, %v9139
  %v9141 = vrot.slane %v9140, 1
  %v9142 = vadd.f32 %v9140, %v9141
  %v9143 = vadd.f32 %v8377, %v8379
  %v9144 = vrot.slane %v9143, 4
  %v9145 = vadd.f32 %v9143, %v9144
  %v9146 = vrot.slane %v9145, 2
  %v9147 = vadd.f32 %v9145, %v9146
  %v9148 = vrot.slane %v9147, 1
  %v9149 = vadd.f32 %v9147, %v9148
  %v9150 = vadd.f32 %v8378, %v8380
  %v9151 = vrot.slane %v9150, 4
  %v9152 = vadd.f32 %v9150, %v9151
  %v9153 = vrot.slane %v9152, 2
  %v9154 = vadd.f32 %v9152, %v9153
  %v9155 = vrot.slane %v9154, 1
  %v9156 = vadd.f32 %v9154, %v9155
  %v9157 = vadd.f32 %v8381, %v8383
  %v9158 = vrot.slane %v9157, 4
  %v9159 = vadd.f32 %v9157, %v9158
  %v9160 = vrot.slane %v9159, 2
  %v9161 = vadd.f32 %v9159, %v9160
  %v9162 = vrot.slane %v9161, 1
  %v9163 = vadd.f32 %v9161, %v9162
  %v9164 = vadd.f32 %v8382, %v8384
  %v9165 = vrot.slane %v9164, 4
  %v9166 = vadd.f32 %v9164, %v9165
  %v9167 = vrot.slane %v9166, 2
  %v9168 = vadd.f32 %v9166, %v9167
  %v9169 = vrot.slane %v9168, 1
  %v9170 = vadd.f32 %v9168, %v9169
  %v9171 = vadd.f32 %v8385, %v8387
  %v9172 = vrot.slane %v9171, 4
  %v9173 = vadd.f32 %v9171, %v9172
  %v9174 = vrot.slane %v9173, 2
  %v9175 = vadd.f32 %v9173, %v9174
  %v9176 = vrot.slane %v9175, 1
  %v9177 = vadd.f32 %v9175, %v9176
  %v9178 = vadd.f32 %v8386, %v8388
  %v9179 = vrot.slane %v9178, 4
  %v9180 = vadd.f32 %v9178, %v9179
  %v9181 = vrot.slane %v9180, 2
  %v9182 = vadd.f32 %v9180, %v9181
  %v9183 = vrot.slane %v9182, 1
  %v9184 = vadd.f32 %v9182, %v9183
  %v9185 = vadd.f32 %v8389, %v8391
  %v9186 = vrot.slane %v9185, 4
  %v9187 = vadd.f32 %v9185, %v9186
  %v9188 = vrot.slane %v9187, 2
  %v9189 = vadd.f32 %v9187, %v9188
  %v9190 = vrot.slane %v9189, 1
  %v9191 = vadd.f32 %v9189, %v9190
  %v9192 = vadd.f32 %v8390, %v8392
  %v9193 = vrot.slane %v9192, 4
  %v9194 = vadd.f32 %v9192, %v9193
  %v9195 = vrot.slane %v9194, 2
  %v9196 = vadd.f32 %v9194, %v9195
  %v9197 = vrot.slane %v9196, 1
  %v9198 = vadd.f32 %v9196, %v9197
  %v9199 = vadd.f32 %v8393, %v8395
  %v9200 = vrot.slane %v9199, 4
  %v9201 = vadd.f32 %v9199, %v9200
  %v9202 = vrot.slane %v9201, 2
  %v9203 = vadd.f32 %v9201, %v9202
  %v9204 = vrot.slane %v9203, 1
  %v9205 = vadd.f32 %v9203, %v9204
  %v9206 = vadd.f32 %v8394, %v8396
  %v9207 = vrot.slane %v9206, 4
  %v9208 = vadd.f32 %v9206, %v9207
  %v9209 = vrot.slane %v9208, 2
  %v9210 = vadd.f32 %v9208, %v9209
  %v9211 = vrot.slane %v9210, 1
  %v9212 = vadd.f32 %v9210, %v9211
  %v9213 = vadd.f32 %v8397, %v8399
  %v9214 = vrot.slane %v9213, 4
  %v9215 = vadd.f32 %v9213, %v9214
  %v9216 = vrot.slane %v9215, 2
  %v9217 = vadd.f32 %v9215, %v9216
  %v9218 = vrot.slane %v9217, 1
  %v9219 = vadd.f32 %v9217, %v9218
  %v9220 = vadd.f32 %v8398, %v8400
  %v9221 = vrot.slane %v9220, 4
  %v9222 = vadd.f32 %v9220, %v9221
  %v9223 = vrot.slane %v9222, 2
  %v9224 = vadd.f32 %v9222, %v9223
  %v9225 = vrot.slane %v9224, 1
  %v9226 = vadd.f32 %v9224, %v9225
  %v9227 = vadd.f32 %v8401, %v8403
  %v9228 = vrot.slane %v9227, 4
  %v9229 = vadd.f32 %v9227, %v9228
  %v9230 = vrot.slane %v9229, 2
  %v9231 = vadd.f32 %v9229, %v9230
  %v9232 = vrot.slane %v9231, 1
  %v9233 = vadd.f32 %v9231, %v9232
  %v9234 = vadd.f32 %v8402, %v8404
  %v9235 = vrot.slane %v9234, 4
  %v9236 = vadd.f32 %v9234, %v9235
  %v9237 = vrot.slane %v9236, 2
  %v9238 = vadd.f32 %v9236, %v9237
  %v9239 = vrot.slane %v9238, 1
  %v9240 = vadd.f32 %v9238, %v9239
  %v9241 = vadd.f32 %v8405, %v8407
  %v9242 = vrot.slane %v9241, 4
  %v9243 = vadd.f32 %v9241, %v9242
  %v9244 = vrot.slane %v9243, 2
  %v9245 = vadd.f32 %v9243, %v9244
  %v9246 = vrot.slane %v9245, 1
  %v9247 = vadd.f32 %v9245, %v9246
  %v9248 = vadd.f32 %v8406, %v8408
  %v9249 = vrot.slane %v9248, 4
  %v9250 = vadd.f32 %v9248, %v9249
  %v9251 = vrot.slane %v9250, 2
  %v9252 = vadd.f32 %v9250, %v9251
  %v9253 = vrot.slane %v9252, 1
  %v9254 = vadd.f32 %v9252, %v9253
  %v9255 = vadd.f32 %v8409, %v8411
  %v9256 = vrot.slane %v9255, 4
  %v9257 = vadd.f32 %v9255, %v9256
  %v9258 = vrot.slane %v9257, 2
  %v9259 = vadd.f32 %v9257, %v9258
  %v9260 = vrot.slane %v9259, 1
  %v9261 = vadd.f32 %v9259, %v9260
  %v9262 = vadd.f32 %v8410, %v8412
  %v9263 = vrot.slane %v9262, 4
  %v9264 = vadd.f32 %v9262, %v9263
  %v9265 = vrot.slane %v9264, 2
  %v9266 = vadd.f32 %v9264, %v9265
  %v9267 = vrot.slane %v9266, 1
  %v9268 = vadd.f32 %v9266, %v9267
  %v9269 = vadd.f32 %v8413, %v8415
  %v9270 = vrot.slane %v9269, 4
  %v9271 = vadd.f32 %v9269, %v9270
  %v9272 = vrot.slane %v9271, 2
  %v9273 = vadd.f32 %v9271, %v9272
  %v9274 = vrot.slane %v9273, 1
  %v9275 = vadd.f32 %v9273, %v9274
  %v9276 = vadd.f32 %v8414, %v8416
  %v9277 = vrot.slane %v9276, 4
  %v9278 = vadd.f32 %v9276, %v9277
  %v9279 = vrot.slane %v9278, 2
  %v9280 = vadd.f32 %v9278, %v9279
  %v9281 = vrot.slane %v9280, 1
  %v9282 = vadd.f32 %v9280, %v9281
  %v9283 = vadd.f32 %v8417, %v8419
  %v9284 = vrot.slane %v9283, 4
  %v9285 = vadd.f32 %v9283, %v9284
  %v9286 = vrot.slane %v9285, 2
  %v9287 = vadd.f32 %v9285, %v9286
  %v9288 = vrot.slane %v9287, 1
  %v9289 = vadd.f32 %v9287, %v9288
  %v9290 = vadd.f32 %v8418, %v8420
  %v9291 = vrot.slane %v9290, 4
  %v9292 = vadd.f32 %v9290, %v9291
  %v9293 = vrot.slane %v9292, 2
  %v9294 = vadd.f32 %v9292, %v9293
  %v9295 = vrot.slane %v9294, 1
  %v9296 = vadd.f32 %v9294, %v9295
  %v9297 = vadd.f32 %v8421, %v8423
  %v9298 = vrot.slane %v9297, 4
  %v9299 = vadd.f32 %v9297, %v9298
  %v9300 = vrot.slane %v9299, 2
  %v9301 = vadd.f32 %v9299, %v9300
  %v9302 = vrot.slane %v9301, 1
  %v9303 = vadd.f32 %v9301, %v9302
  %v9304 = vadd.f32 %v8422, %v8424
  %v9305 = vrot.slane %v9304, 4
  %v9306 = vadd.f32 %v9304, %v9305
  %v9307 = vrot.slane %v9306, 2
  %v9308 = vadd.f32 %v9306, %v9307
  %v9309 = vrot.slane %v9308, 1
  %v9310 = vadd.f32 %v9308, %v9309
  %v9311 = vadd.f32 %v8425, %v8427
  %v9312 = vrot.slane %v9311, 4
  %v9313 = vadd.f32 %v9311, %v9312
  %v9314 = vrot.slane %v9313, 2
  %v9315 = vadd.f32 %v9313, %v9314
  %v9316 = vrot.slane %v9315, 1
  %v9317 = vadd.f32 %v9315, %v9316
  %v9318 = vadd.f32 %v8426, %v8428
  %v9319 = vrot.slane %v9318, 4
  %v9320 = vadd.f32 %v9318, %v9319
  %v9321 = vrot.slane %v9320, 2
  %v9322 = vadd.f32 %v9320, %v9321
  %v9323 = vrot.slane %v9322, 1
  %v9324 = vadd.f32 %v9322, %v9323
  %v9325 = vld [vmem:[%s7] sm:$0xff]
  %v9326 = vld [vmem:[%s7 + $0x8] sm:$0xff]
  %v9327 = vld [vmem:[%s7 + $0x10] sm:$0xff]
  %v9328 = vld [vmem:[%s7 + $0x18] sm:$0xff]
  %v9329 = vld [vmem:[%s7 + $0x20] sm:$0xff]
  %v9330 = vld [vmem:[%s7 + $0x28] sm:$0xff]
  %v9331 = vld [vmem:[%s7 + $0x30] sm:$0xff]
  %v9332 = vld [vmem:[%s7 + $0x38] sm:$0xff]
  %v9333 = vld [vmem:[%s7 + $0x40] sm:$0xff]
  %v9334 = vld [vmem:[%s7 + $0x48] sm:$0xff]
  %v9335 = vld [vmem:[%s7 + $0x50] sm:$0xff]
  %v9336 = vld [vmem:[%s7 + $0x58] sm:$0xff]
  %v9337 = vld [vmem:[%s7 + $0x60] sm:$0xff]
  %v9338 = vld [vmem:[%s7 + $0x68] sm:$0xff]
  %v9339 = vld [vmem:[%s7 + $0x70] sm:$0xff]
  %v9340 = vld [vmem:[%s7 + $0x78] sm:$0xff]
  %v9341 = vld [vmem:[%s7 + $0x80] sm:$0xff]
  %v9342 = vld [vmem:[%s7 + $0x88] sm:$0xff]
  %v9343 = vld [vmem:[%s7 + $0x90] sm:$0xff]
  %v9344 = vld [vmem:[%s7 + $0x98] sm:$0xff]
  %v9345 = vld [vmem:[%s7 + $0xa0] sm:$0xff]
  %v9346 = vld [vmem:[%s7 + $0xa8] sm:$0xff]
  %v9347 = vld [vmem:[%s7 + $0xb0] sm:$0xff]
  %v9348 = vld [vmem:[%s7 + $0xb8] sm:$0xff]
  %v9349 = vld [vmem:[%s7 + $0xc0] sm:$0xff]
  %v9350 = vld [vmem:[%s7 + $0xc8] sm:$0xff]
  %v9351 = vld [vmem:[%s7 + $0xd0] sm:$0xff]
  %v9352 = vld [vmem:[%s7 + $0xd8] sm:$0xff]
  %v9353 = vld [vmem:[%s7 + $0xe0] sm:$0xff]
  %v9354 = vld [vmem:[%s7 + $0xe8] sm:$0xff]
  %v9355 = vld [vmem:[%s7 + $0xf0] sm:$0xff]
  %v9356 = vld [vmem:[%s7 + $0xf8] sm:$0xff]
  %v9357 = vld [vmem:[%s9] sm:$0x1]
  %v9358 = vlaneseq
  %v9359 = vshrl.u32 %v9358, 7
  %v9360 = vsub.s32 0, %v9359
  %v9361 = vrot.slane %v9357, %v9360
  %vm9490 = vcmask 1041409
  %v9491 = vsel %vm9490, %v8449, %v8435
  %vm9492 = vcmask 1042434
  %v9493 = vsel %vm9492, %v8463, %v9491
  %vm9494 = vcmask 1043459
  %v9495 = vsel %vm9494, %v8477, %v9493
  %vm9496 = vcmask 1044484
  %v9497 = vsel %vm9496, %v8491, %v9495
  %vm9498 = vcmask 1045509
  %v9499 = vsel %vm9498, %v8505, %v9497
  %vm9500 = vcmask 1046534
  %v9501 = vsel %vm9500, %v8519, %v9499
  %vm9502 = vcmask 1047559
  %v9503 = vsel %vm9502, %v8533, %v9501
  %v9504 = vsel %vm9490, %v8456, %v8442
  %v9505 = vsel %vm9492, %v8470, %v9504
  %v9506 = vsel %vm9494, %v8484, %v9505
  %v9507 = vsel %vm9496, %v8498, %v9506
  %v9508 = vsel %vm9498, %v8512, %v9507
  %v9509 = vsel %vm9500, %v8526, %v9508
  %v9510 = vsel %vm9502, %v8540, %v9509
  %v9511 = vsel %vm9490, %v8561, %v8547
  %v9512 = vsel %vm9492, %v8575, %v9511
  %v9513 = vsel %vm9494, %v8589, %v9512
  %v9514 = vsel %vm9496, %v8603, %v9513
  %v9515 = vsel %vm9498, %v8617, %v9514
  %v9516 = vsel %vm9500, %v8631, %v9515
  %v9517 = vsel %vm9502, %v8645, %v9516
  %v9518 = vsel %vm9490, %v8568, %v8554
  %v9519 = vsel %vm9492, %v8582, %v9518
  %v9520 = vsel %vm9494, %v8596, %v9519
  %v9521 = vsel %vm9496, %v8610, %v9520
  %v9522 = vsel %vm9498, %v8624, %v9521
  %v9523 = vsel %vm9500, %v8638, %v9522
  %v9524 = vsel %vm9502, %v8652, %v9523
  %v9525 = vsel %vm9490, %v8673, %v8659
  %v9526 = vsel %vm9492, %v8687, %v9525
  %v9527 = vsel %vm9494, %v8701, %v9526
  %v9528 = vsel %vm9496, %v8715, %v9527
  %v9529 = vsel %vm9498, %v8729, %v9528
  %v9530 = vsel %vm9500, %v8743, %v9529
  %v9531 = vsel %vm9502, %v8757, %v9530
  %v9532 = vsel %vm9490, %v8680, %v8666
  %v9533 = vsel %vm9492, %v8694, %v9532
  %v9534 = vsel %vm9494, %v8708, %v9533
  %v9535 = vsel %vm9496, %v8722, %v9534
  %v9536 = vsel %vm9498, %v8736, %v9535
  %v9537 = vsel %vm9500, %v8750, %v9536
  %v9538 = vsel %vm9502, %v8764, %v9537
  %v9539 = vsel %vm9490, %v8785, %v8771
  %v9540 = vsel %vm9492, %v8799, %v9539
  %v9541 = vsel %vm9494, %v8813, %v9540
  %v9542 = vsel %vm9496, %v8827, %v9541
  %v9543 = vsel %vm9498, %v8841, %v9542
  %v9544 = vsel %vm9500, %v8855, %v9543
  %v9545 = vsel %vm9502, %v8869, %v9544
  %v9546 = vsel %vm9490, %v8792, %v8778
  %v9547 = vsel %vm9492, %v8806, %v9546
  %v9548 = vsel %vm9494, %v8820, %v9547
  %v9549 = vsel %vm9496, %v8834, %v9548
  %v9550 = vsel %vm9498, %v8848, %v9549
  %v9551 = vsel %vm9500, %v8862, %v9550
  %v9552 = vsel %vm9502, %v8876, %v9551
  %v9553 = vsel %vm9490, %v8897, %v8883
  %v9554 = vsel %vm9492, %v8911, %v9553
  %v9555 = vsel %vm9494, %v8925, %v9554
  %v9556 = vsel %vm9496, %v8939, %v9555
  %v9557 = vsel %vm9498, %v8953, %v9556
  %v9558 = vsel %vm9500, %v8967, %v9557
  %v9559 = vsel %vm9502, %v8981, %v9558
  %v9560 = vsel %vm9490, %v8904, %v8890
  %v9561 = vsel %vm9492, %v8918, %v9560
  %v9562 = vsel %vm9494, %v8932, %v9561
  %v9563 = vsel %vm9496, %v8946, %v9562
  %v9564 = vsel %vm9498, %v8960, %v9563
  %v9565 = vsel %vm9500, %v8974, %v9564
  %v9566 = vsel %vm9502, %v8988, %v9565
  %v9567 = vsel %vm9490, %v9009, %v8995
  %v9568 = vsel %vm9492, %v9023, %v9567
  %v9569 = vsel %vm9494, %v9037, %v9568
  %v9570 = vsel %vm9496, %v9051, %v9569
  %v9571 = vsel %vm9498, %v9065, %v9570
  %v9572 = vsel %vm9500, %v9079, %v9571
  %v9573 = vsel %vm9502, %v9093, %v9572
  %v9574 = vsel %vm9490, %v9016, %v9002
  %v9575 = vsel %vm9492, %v9030, %v9574
  %v9576 = vsel %vm9494, %v9044, %v9575
  %v9577 = vsel %vm9496, %v9058, %v9576
  %v9578 = vsel %vm9498, %v9072, %v9577
  %v9579 = vsel %vm9500, %v9086, %v9578
  %v9580 = vsel %vm9502, %v9100, %v9579
  %v9581 = vsel %vm9490, %v9121, %v9107
  %v9582 = vsel %vm9492, %v9135, %v9581
  %v9583 = vsel %vm9494, %v9149, %v9582
  %v9584 = vsel %vm9496, %v9163, %v9583
  %v9585 = vsel %vm9498, %v9177, %v9584
  %v9586 = vsel %vm9500, %v9191, %v9585
  %v9587 = vsel %vm9502, %v9205, %v9586
  %v9588 = vsel %vm9490, %v9128, %v9114
  %v9589 = vsel %vm9492, %v9142, %v9588
  %v9590 = vsel %vm9494, %v9156, %v9589
  %v9591 = vsel %vm9496, %v9170, %v9590
  %v9592 = vsel %vm9498, %v9184, %v9591
  %v9593 = vsel %vm9500, %v9198, %v9592
  %v9594 = vsel %vm9502, %v9212, %v9593
  %v9595 = vsel %vm9490, %v9233, %v9219
  %v9596 = vsel %vm9492, %v9247, %v9595
  %v9597 = vsel %vm9494, %v9261, %v9596
  %v9598 = vsel %vm9496, %v9275, %v9597
  %v9599 = vsel %vm9498, %v9289, %v9598
  %v9600 = vsel %vm9500, %v9303, %v9599
  %v9601 = vsel %vm9502, %v9317, %v9600
  %v9602 = vsel %vm9490, %v9240, %v9226
  %v9603 = vsel %vm9492, %v9254, %v9602
  %v9604 = vsel %vm9494, %v9268, %v9603
  %v9605 = vsel %vm9496, %v9282, %v9604
  %v9606 = vsel %vm9498, %v9296, %v9605
  %v9607 = vsel %vm9500, %v9310, %v9606
  %v9608 = vsel %vm9502, %v9324, %v9607
  %9625 = vmatprep.subr.mxu0 0.0
  %9626 = vmatpush1.msra.mxu0 %v9325
  %9627 = vmatprep.subr.mxu0 0.0
  %9628 = vmatpush1.msra.mxu0 %v9326
  %9629 = vmatprep.subr.mxu0 0.0
  %9630 = vmatpush1.msra.mxu0 %v9327
  %9631 = vmatprep.subr.mxu0 0.0
  %9632 = vmatpush1.msra.mxu0 %v9328
  %9633 = vmatprep.subr.mxu0 0.0
  %9634 = vmatpush1.msra.mxu0 %v9329
  %9635 = vmatprep.subr.mxu0 0.0
  %9636 = vmatpush1.msra.mxu0 %v9330
  %9637 = vmatprep.subr.mxu0 0.0
  %9638 = vmatpush1.msra.mxu0 %v9331
  %9639 = vmatprep.subr.mxu0 0.0
  %9640 = vmatpush1.msra.mxu0 %v9332
  %9641 = vmatprep.subr.mxu0 0.0
  %9642 = vmatpush1.msra.mxu0 %v9333
  %9643 = vmatprep.subr.mxu0 0.0
  %9644 = vmatpush1.msra.mxu0 %v9334
  %9645 = vmatprep.subr.mxu0 0.0
  %9646 = vmatpush1.msra.mxu0 %v9335
  %9647 = vmatprep.subr.mxu0 0.0
  %9648 = vmatpush1.msra.mxu0 %v9336
  %9649 = vmatprep.subr.mxu0 0.0
  %9650 = vmatpush1.msra.mxu0 %v9337
  %9651 = vmatprep.subr.mxu0 0.0
  %9652 = vmatpush1.msra.mxu0 %v9338
  %9653 = vmatprep.subr.mxu0 0.0
  %9654 = vmatpush1.msra.mxu0 %v9339
  %9655 = vmatprep.subr.mxu0 0.0
  %9656 = vmatpush1.msra.mxu0 %v9340
  %9657 = vmatprep.subr.mxu0 0.0
  %9658 = vmatpush1.msra.mxu0 %v9341
  %9659 = vmatprep.subr.mxu0 0.0
  %9660 = vmatpush1.msra.mxu0 %v9342
  %9661 = vmatprep.subr.mxu0 0.0
  %9662 = vmatpush1.msra.mxu0 %v9343
  %9663 = vmatprep.subr.mxu0 0.0
  %9664 = vmatpush1.msra.mxu0 %v9344
  %9665 = vmatprep.subr.mxu0 0.0
  %9666 = vmatpush1.msra.mxu0 %v9345
  %9667 = vmatprep.subr.mxu0 0.0
  %9668 = vmatpush1.msra.mxu0 %v9346
  %9669 = vmatprep.subr.mxu0 0.0
  %9670 = vmatpush1.msra.mxu0 %v9347
  %9671 = vmatprep.subr.mxu0 0.0
  %9672 = vmatpush1.msra.mxu0 %v9348
  %9673 = vmatprep.subr.mxu0 0.0
  %9674 = vmatpush1.msra.mxu0 %v9349
  %9675 = vmatprep.subr.mxu0 0.0
  %9676 = vmatpush1.msra.mxu0 %v9350
  %9677 = vmatprep.subr.mxu0 0.0
  %9678 = vmatpush1.msra.mxu0 %v9351
  %9679 = vmatprep.subr.mxu0 0.0
  %9680 = vmatpush1.msra.mxu0 %v9352
  %9681 = vmatprep.subr.mxu0 0.0
  %9682 = vmatpush1.msra.mxu0 %v9353
  %9683 = vmatprep.subr.mxu0 0.0
  %9684 = vmatpush1.msra.mxu0 %v9354
  %9685 = vmatprep.subr.mxu0 0.0
  %9686 = vmatpush1.msra.mxu0 %v9355
  %9687 = vmatprep.subr.mxu0 0.0
  %9688 = vmatpush1.msra.mxu0 %v9356
  %9689 = vmatprep.mubr.f32.mxu0 %v9510
  %9690 = vmatmul.mubr.f32.gmra.mrb[0].mxu0 %v9503
  %v9691 = vpop.f32.mrb[0].mxu0
  %v9692 = vadd.f32 %v9361, %v9691
  %v9693 = vpop.f32.mrb[0].mxu0
  %9694 = vmatprep.mubr.f32.mxu0 %v9524
  %9695 = vmatmul.mubr.f32.gmra.mrb[0].mxu0 %v9517
  %v9696 = vpop.f32.mrb[0].mxu0
  %v9697 = vadd.f32 %v9361, %v9696
  %v9698 = vpop.f32.mrb[0].mxu0
  %9699 = vmatprep.mubr.f32.mxu0 %v9538
  %9700 = vmatmul.mubr.f32.gmra.mrb[0].mxu0 %v9531
  %v9701 = vpop.f32.mrb[0].mxu0
  %v9702 = vadd.f32 %v9361, %v9701
  %v9703 = vpop.f32.mrb[0].mxu0
  %9704 = vmatprep.mubr.f32.mxu0 %v9552
  %9705 = vmatmul.mubr.f32.gmra.mrb[0].mxu0 %v9545
  %v9706 = vpop.f32.mrb[0].mxu0
  %v9707 = vadd.f32 %v9361, %v9706
  %v9708 = vpop.f32.mrb[0].mxu0
  %9709 = vmatprep.mubr.f32.mxu0 %v9566
  %9710 = vmatmul.mubr.f32.gmra.mrb[0].mxu0 %v9559
  %v9711 = vpop.f32.mrb[0].mxu0
  %v9712 = vadd.f32 %v9361, %v9711
  %v9713 = vpop.f32.mrb[0].mxu0
  %9714 = vmatprep.mubr.f32.mxu0 %v9580
  %9715 = vmatmul.mubr.f32.gmra.mrb[0].mxu0 %v9573
  %v9716 = vpop.f32.mrb[0].mxu0
  %v9717 = vadd.f32 %v9361, %v9716
  %v9718 = vpop.f32.mrb[0].mxu0
  %9719 = vmatprep.mubr.f32.mxu0 %v9594
  %9720 = vmatmul.mubr.f32.gmra.mrb[0].mxu0 %v9587
  %v9721 = vpop.f32.mrb[0].mxu0
  %v9722 = vadd.f32 %v9361, %v9721
  %v9723 = vpop.f32.mrb[0].mxu0
  %9724 = vmatprep.mubr.f32.mxu0 %v9608
  %9725 = vmatmul.mubr.f32.gmra.mrb[0].mxu0 %v9601
  %v9726 = vpop.f32.mrb[0].mxu0
  %v9727 = vadd.f32 %v9361, %v9726
  %v9728 = vpop.f32.mrb[0].mxu0
  %9729 = vdwg.mxu0
  %9738 = vrot.lane.b32.xlu0 %v9692, 112
  %v9739 = vpop.permute.xlu0 %9738
  %9740 = vrot.lane.b32.xlu0 %v9697, 112
  %v9741 = vpop.permute.xlu0 %9740
  %9742 = vrot.lane.b32.xlu0 %v9702, 112
  %v9743 = vpop.permute.xlu0 %9742
  %9744 = vrot.lane.b32.xlu0 %v9707, 112
  %v9745 = vpop.permute.xlu0 %9744
  %9746 = vrot.lane.b32.xlu0 %v9712, 112
  %v9747 = vpop.permute.xlu0 %9746
  %9748 = vrot.lane.b32.xlu0 %v9717, 112
  %v9749 = vpop.permute.xlu0 %9748
  %9750 = vrot.lane.b32.xlu0 %v9722, 112
  %v9751 = vpop.permute.xlu0 %9750
  %9752 = vrot.lane.b32.xlu0 %v9727, 112
  %v9753 = vpop.permute.xlu0 %9752
  %9754 = vrot.lane.b32.xlu0 %v9692, 104
  %v9755 = vpop.permute.xlu0 %9754
  %9756 = vrot.lane.b32.xlu0 %v9697, 104
  %v9757 = vpop.permute.xlu0 %9756
  %9758 = vrot.lane.b32.xlu0 %v9702, 104
  %v9759 = vpop.permute.xlu0 %9758
  %9760 = vrot.lane.b32.xlu0 %v9707, 104
  %v9761 = vpop.permute.xlu0 %9760
  %9762 = vrot.lane.b32.xlu0 %v9712, 104
  %v9763 = vpop.permute.xlu0 %9762
  %9764 = vrot.lane.b32.xlu0 %v9717, 104
  %v9765 = vpop.permute.xlu0 %9764
  %9766 = vrot.lane.b32.xlu0 %v9722, 104
  %v9767 = vpop.permute.xlu0 %9766
  %9768 = vrot.lane.b32.xlu0 %v9727, 104
  %v9769 = vpop.permute.xlu0 %9768
  %v9770 = vsel %vm5729, %v9739, 0
  %v9772 = vsel %vm5729, %v9741, 0
  %v9774 = vsel %vm5729, %v9743, 0
  %v9776 = vsel %vm5729, %v9745, 0
  %v9778 = vsel %vm5729, %v9747, 0
  %v9780 = vsel %vm5729, %v9749, 0
  %v9782 = vsel %vm5729, %v9751, 0
  %v9784 = vsel %vm5729, %v9753, 0
  %v9786 = vsel %vm5729, %v9755, 0
  %v9788 = vsel %vm5729, %v9757, 0
  %v9790 = vsel %vm5729, %v9759, 0
  %v9792 = vsel %vm5729, %v9761, 0
  %v9794 = vsel %vm5729, %v9763, 0
  %v9796 = vsel %vm5729, %v9765, 0
  %v9798 = vsel %vm5729, %v9767, 0
  %v9800 = vsel %vm5729, %v9769, 0
  %9802 = vmatprep.subr.mxu0 0.0
  %9803 = vmatpush1.xpose.msra.mxu0 %v9786
  %9804 = vmatprep.subr.mxu0 0.0
  %9805 = vmatpush1.xpose.msra.mxu0 %v9788
  %9806 = vmatprep.subr.mxu0 0.0
  %9807 = vmatpush1.xpose.msra.mxu0 %v9790
  %9808 = vmatprep.subr.mxu0 0.0
  %9809 = vmatpush1.xpose.msra.mxu0 %v9792
  %9810 = vmatprep.subr.mxu0 0.0
  %9811 = vmatpush1.xpose.msra.mxu0 %v9794
  %9812 = vmatprep.subr.mxu0 0.0
  %9813 = vmatpush1.xpose.msra.mxu0 %v9796
  %9814 = vmatprep.subr.mxu0 0.0
  %9815 = vmatpush1.xpose.msra.mxu0 %v9798
  %9816 = vmatprep.subr.mxu0 0.0
  %9817 = vmatpush1.xpose.msra.mxu0 %v9800
  %9818 = vmatprep.subr.mxu0 0.0
  %9819 = vmatpush1.xpose.msra.mxu0 0.0
  %9820 = vmatprep.subr.mxu0 0.0
  %9821 = vmatpush1.xpose.msra.mxu0 0.0
  %9822 = vmatprep.subr.mxu0 0.0
  %9823 = vmatpush1.xpose.msra.mxu0 0.0
  %9824 = vmatprep.subr.mxu0 0.0
  %9825 = vmatpush1.xpose.msra.mxu0 0.0
  %9826 = vmatprep.subr.mxu0 0.0
  %9827 = vmatpush1.xpose.msra.mxu0 0.0
  %9828 = vmatprep.subr.mxu0 0.0
  %9829 = vmatpush1.xpose.msra.mxu0 0.0
  %9830 = vmatprep.subr.mxu0 0.0
  %9831 = vmatpush1.xpose.msra.mxu0 0.0
  %9832 = vmatprep.subr.mxu0 0.0
  %9833 = vmatpush1.xpose.msra.mxu0 0.0
  %9834 = vmatprep.subr.mxu0 0.0
  %9835 = vmatpush1.xpose.msra.mxu0 0.0
  %9836 = vmatprep.subr.mxu0 0.0
  %9837 = vmatpush1.xpose.msra.mxu0 0.0
  %9838 = vmatprep.subr.mxu0 0.0
  %9839 = vmatpush1.xpose.msra.mxu0 0.0
  %9840 = vmatprep.subr.mxu0 0.0
  %9841 = vmatpush1.xpose.msra.mxu0 0.0
  %9842 = vmatprep.subr.mxu0 0.0
  %9843 = vmatpush1.xpose.msra.mxu0 0.0
  %9844 = vmatprep.subr.mxu0 0.0
  %9845 = vmatpush1.xpose.msra.mxu0 0.0
  %9846 = vmatprep.subr.mxu0 0.0
  %9847 = vmatpush1.xpose.msra.mxu0 0.0
  %9848 = vmatprep.subr.mxu0 0.0
  %9849 = vmatpush1.xpose.msra.mxu0 0.0
  %9850 = vmatprep.subr.mxu0 0.0
  %9851 = vmatpush1.xpose.msra.mxu0 0.0
  %9852 = vmatprep.subr.mxu0 0.0
  %9853 = vmatpush1.xpose.msra.mxu0 0.0
  %9854 = vmatprep.subr.mxu0 0.0
  %9855 = vmatpush1.xpose.msra.mxu0 0.0
  %9856 = vmatprep.subr.mxu0 0.0
  %9857 = vmatpush1.xpose.msra.mxu0 0.0
  %9858 = vmatprep.subr.mxu0 0.0
  %9859 = vmatpush1.xpose.msra.mxu0 0.0
  %9860 = vmatprep.subr.mxu0 0.0
  %9861 = vmatpush1.xpose.msra.mxu0 0.0
  %9862 = vmatprep.subr.mxu0 0.0
  %9863 = vmatpush1.xpose.msra.mxu0 0.0
  %9864 = vmatprep.subr.mxu0 0.0
  %9865 = vmatpush1.xpose.msra.mxu0 0.0
  %9866 = vmatprep.mubr.f32.mxu0 0.0
  %9867 = vmatmul.mubr.f32.gmra.mrb[0].mxu0 %v9770
  %v9868 = vpop.f32.mrb[0].mxu0
  %v9869 = vadd.f32 0.0, %v9868
  %v9870 = vpop.f32.mrb[0].mxu0
  %9871 = vmatprep.mubr.f32.mxu0 0.0
  %9872 = vmatmul.mubr.f32.gmra.mrb[0].mxu0 %v9772
  %v9873 = vpop.f32.mrb[0].mxu0
  %v9874 = vadd.f32 0.0, %v9873
  %v9875 = vpop.f32.mrb[0].mxu0
  %9876 = vmatprep.mubr.f32.mxu0 0.0
  %9877 = vmatmul.mubr.f32.gmra.mrb[0].mxu0 %v9774
  %v9878 = vpop.f32.mrb[0].mxu0
  %v9879 = vadd.f32 0.0, %v9878
  %v9880 = vpop.f32.mrb[0].mxu0
  %9881 = vmatprep.mubr.f32.mxu0 0.0
  %9882 = vmatmul.mubr.f32.gmra.mrb[0].mxu0 %v9776
  %v9883 = vpop.f32.mrb[0].mxu0
  %v9884 = vadd.f32 0.0, %v9883
  %v9885 = vpop.f32.mrb[0].mxu0
  %9886 = vmatprep.mubr.f32.mxu0 0.0
  %9887 = vmatmul.mubr.f32.gmra.mrb[0].mxu0 %v9778
  %v9888 = vpop.f32.mrb[0].mxu0
  %v9889 = vadd.f32 0.0, %v9888
  %v9890 = vpop.f32.mrb[0].mxu0
  %9891 = vmatprep.mubr.f32.mxu0 0.0
  %9892 = vmatmul.mubr.f32.gmra.mrb[0].mxu0 %v9780
  %v9893 = vpop.f32.mrb[0].mxu0
  %v9894 = vadd.f32 0.0, %v9893
  %v9895 = vpop.f32.mrb[0].mxu0
  %9896 = vmatprep.mubr.f32.mxu0 0.0
  %9897 = vmatmul.mubr.f32.gmra.mrb[0].mxu0 %v9782
  %v9898 = vpop.f32.mrb[0].mxu0
  %v9899 = vadd.f32 0.0, %v9898
  %v9900 = vpop.f32.mrb[0].mxu0
  %9901 = vmatprep.mubr.f32.mxu0 0.0
  %9902 = vmatmul.mubr.f32.gmra.mrb[0].mxu0 %v9784
  %v9903 = vpop.f32.mrb[0].mxu0
  %v9904 = vadd.f32 0.0, %v9903
  %v9905 = vpop.f32.mrb[0].mxu0
  %9906 = vdwg.mxu0
  %v9907 = vmul.f32 %v9869, 0.70710677
  %v9908 = vmul.f32 %v9874, 0.70710677
  %v9909 = vmul.f32 %v9879, 0.70710677
  %v9910 = vmul.f32 %v9884, 0.70710677
  %v9911 = vmul.f32 %v9889, 0.70710677
  %v9912 = vmul.f32 %v9894, 0.70710677
  %v9913 = vmul.f32 %v9899, 0.70710677
  %v9914 = vmul.f32 %v9904, 0.70710677
  %v9915 = vld [vmem:[%s9 + $0x1] sm:$0x1]
  %v9916 = vlaneseq
  %v9917 = vshrl.u32 %v9916, 7
  %v9918 = vsub.s32 0, %v9917
  %v9919 = vrot.slane %v9915, %v9918
  %v9921 = vsel %vm1105, %v9907, 0
  %v9924 = vsel %vm1105, %v9908, 0
  %v9927 = vsel %vm1105, %v9909, 0
  %v9930 = vsel %vm1105, %v9910, 0
  %v9933 = vsel %vm1105, %v9911, 0
  %v9936 = vsel %vm1105, %v9912, 0
  %v9939 = vsel %vm1105, %v9913, 0
  %v9942 = vsel %vm1105, %v9914, 0
  %9944 = vmatprep.subr.mxu0 0.0
  %9945 = vmatpush1.msra.mxu0 %v9692
  %9946 = vmatprep.subr.mxu0 0.0
  %9947 = vmatpush1.msra.mxu0 %v9697
  %9948 = vmatprep.subr.mxu0 0.0
  %9949 = vmatpush1.msra.mxu0 %v9702
  %9950 = vmatprep.subr.mxu0 0.0
  %9951 = vmatpush1.msra.mxu0 %v9707
  %9952 = vmatprep.subr.mxu0 0.0
  %9953 = vmatpush1.msra.mxu0 %v9712
  %9954 = vmatprep.subr.mxu0 0.0
  %9955 = vmatpush1.msra.mxu0 %v9717
  %9956 = vmatprep.subr.mxu0 0.0
  %9957 = vmatpush1.msra.mxu0 %v9722
  %9958 = vmatprep.subr.mxu0 0.0
  %9959 = vmatpush1.msra.mxu0 %v9727
  %9960 = vmatprep.subr.mxu0 0.0
  %9961 = vmatpush1.msra.mxu0 0.0
  %9962 = vmatprep.subr.mxu0 0.0
  %9963 = vmatpush1.msra.mxu0 0.0
  %9964 = vmatprep.subr.mxu0 0.0
  %9965 = vmatpush1.msra.mxu0 0.0
  %9966 = vmatprep.subr.mxu0 0.0
  %9967 = vmatpush1.msra.mxu0 0.0
  %9968 = vmatprep.subr.mxu0 0.0
  %9969 = vmatpush1.msra.mxu0 0.0
  %9970 = vmatprep.subr.mxu0 0.0
  %9971 = vmatpush1.msra.mxu0 0.0
  %9972 = vmatprep.subr.mxu0 0.0
  %9973 = vmatpush1.msra.mxu0 0.0
  %9974 = vmatprep.subr.mxu0 0.0
  %9975 = vmatpush1.msra.mxu0 0.0
  %9976 = vmatprep.subr.mxu0 0.0
  %9977 = vmatpush1.msra.mxu0 0.0
  %9978 = vmatprep.subr.mxu0 0.0
  %9979 = vmatpush1.msra.mxu0 0.0
  %9980 = vmatprep.subr.mxu0 0.0
  %9981 = vmatpush1.msra.mxu0 0.0
  %9982 = vmatprep.subr.mxu0 0.0
  %9983 = vmatpush1.msra.mxu0 0.0
  %9984 = vmatprep.subr.mxu0 0.0
  %9985 = vmatpush1.msra.mxu0 0.0
  %9986 = vmatprep.subr.mxu0 0.0
  %9987 = vmatpush1.msra.mxu0 0.0
  %9988 = vmatprep.subr.mxu0 0.0
  %9989 = vmatpush1.msra.mxu0 0.0
  %9990 = vmatprep.subr.mxu0 0.0
  %9991 = vmatpush1.msra.mxu0 0.0
  %9992 = vmatprep.subr.mxu0 0.0
  %9993 = vmatpush1.msra.mxu0 0.0
  %9994 = vmatprep.subr.mxu0 0.0
  %9995 = vmatpush1.msra.mxu0 0.0
  %9996 = vmatprep.subr.mxu0 0.0
  %9997 = vmatpush1.msra.mxu0 0.0
  %9998 = vmatprep.subr.mxu0 0.0
  %9999 = vmatpush1.msra.mxu0 0.0
  %10000 = vmatprep.subr.mxu0 0.0
  %10001 = vmatpush1.msra.mxu0 0.0
  %10002 = vmatprep.subr.mxu0 0.0
  %10003 = vmatpush1.msra.mxu0 0.0
  %10004 = vmatprep.subr.mxu0 0.0
  %10005 = vmatpush1.msra.mxu0 0.0
  %10006 = vmatprep.subr.mxu0 0.0
  %10007 = vmatpush1.msra.mxu0 0.0
  %10008 = vmatprep.mubr.f32.mxu0 0.0
  %10009 = vmatmul.mubr.f32.gmra.mrb[0].mxu0 %v9921
  %v10010 = vpop.f32.mrb[0].mxu0
  %v10011 = vadd.f32 %v9919, %v10010
  %v10012 = vpop.f32.mrb[0].mxu0
  %10013 = vmatprep.mubr.f32.mxu0 0.0
  %10014 = vmatmul.mubr.f32.gmra.mrb[0].mxu0 %v9924
  %v10015 = vpop.f32.mrb[0].mxu0
  %v10016 = vadd.f32 %v9919, %v10015
  %v10017 = vpop.f32.mrb[0].mxu0
  %10018 = vmatprep.mubr.f32.mxu0 0.0
  %10019 = vmatmul.mubr.f32.gmra.mrb[0].mxu0 %v9927
  %v10020 = vpop.f32.mrb[0].mxu0
  %v10021 = vadd.f32 %v9919, %v10020
  %v10022 = vpop.f32.mrb[0].mxu0
  %10023 = vmatprep.mubr.f32.mxu0 0.0
  %10024 = vmatmul.mubr.f32.gmra.mrb[0].mxu0 %v9930
  %v10025 = vpop.f32.mrb[0].mxu0
  %v10026 = vadd.f32 %v9919, %v10025
  %v10027 = vpop.f32.mrb[0].mxu0
  %10028 = vmatprep.mubr.f32.mxu0 0.0
  %10029 = vmatmul.mubr.f32.gmra.mrb[0].mxu0 %v9933
  %v10030 = vpop.f32.mrb[0].mxu0
  %v10031 = vadd.f32 %v9919, %v10030
  %v10032 = vpop.f32.mrb[0].mxu0
  %10033 = vmatprep.mubr.f32.mxu0 0.0
  %10034 = vmatmul.mubr.f32.gmra.mrb[0].mxu0 %v9936
  %v10035 = vpop.f32.mrb[0].mxu0
  %v10036 = vadd.f32 %v9919, %v10035
  %v10037 = vpop.f32.mrb[0].mxu0
  %10038 = vmatprep.mubr.f32.mxu0 0.0
  %10039 = vmatmul.mubr.f32.gmra.mrb[0].mxu0 %v9939
  %v10040 = vpop.f32.mrb[0].mxu0
  %v10041 = vadd.f32 %v9919, %v10040
  %v10042 = vpop.f32.mrb[0].mxu0
  %10043 = vmatprep.mubr.f32.mxu0 0.0
  %10044 = vmatmul.mubr.f32.gmra.mrb[0].mxu0 %v9942
  %v10045 = vpop.f32.mrb[0].mxu0
  %v10046 = vadd.f32 %v9919, %v10045
  %v10047 = vpop.f32.mrb[0].mxu0
  %10048 = vdwg.mxu0
  %v10049 = vmax.f32 %v10011, 0.0
  %v10050 = vmax.f32 %v10016, 0.0
  %v10051 = vmax.f32 %v10021, 0.0
  %v10052 = vmax.f32 %v10026, 0.0
  %v10053 = vmax.f32 %v10031, 0.0
  %v10054 = vmax.f32 %v10036, 0.0
  %v10055 = vmax.f32 %v10041, 0.0
  %v10056 = vmax.f32 %v10046, 0.0
  %10065 = vrot.lane.b32.xlu0 %v10049, 8
  %v10066 = vpop.permute.xlu0 %10065
  %10067 = vrot.lane.b32.xlu0 %v10050, 8
  %v10068 = vpop.permute.xlu0 %10067
  %10069 = vrot.lane.b32.xlu0 %v10051, 8
  %v10070 = vpop.permute.xlu0 %10069
  %10071 = vrot.lane.b32.xlu0 %v10052, 8
  %v10072 = vpop.permute.xlu0 %10071
  %10073 = vrot.lane.b32.xlu0 %v10053, 8
  %v10074 = vpop.permute.xlu0 %10073
  %10075 = vrot.lane.b32.xlu0 %v10054, 8
  %v10076 = vpop.permute.xlu0 %10075
  %10077 = vrot.lane.b32.xlu0 %v10055, 8
  %v10078 = vpop.permute.xlu0 %10077
  %10079 = vrot.lane.b32.xlu0 %v10056, 8
  %v10080 = vpop.permute.xlu0 %10079
  %v10089 = vadd.f32 %v9692, %v10066
  %v10090 = vadd.f32 %v9697, %v10068
  %v10091 = vadd.f32 %v9702, %v10070
  %v10092 = vadd.f32 %v9707, %v10072
  %v10093 = vadd.f32 %v9712, %v10074
  %v10094 = vadd.f32 %v9717, %v10076
  %v10095 = vadd.f32 %v9722, %v10078
  %v10096 = vadd.f32 %v9727, %v10080
  %v10097 = vld [vmem:[%s8] sm:$0xff]
  %10106 = vrot.lane.b32.xlu0 %v10089, 120
  %v10107 = vpop.permute.xlu0 %10106
  %10108 = vrot.lane.b32.xlu0 %v10090, 120
  %v10109 = vpop.permute.xlu0 %10108
  %10110 = vrot.lane.b32.xlu0 %v10091, 120
  %v10111 = vpop.permute.xlu0 %10110
  %10112 = vrot.lane.b32.xlu0 %v10092, 120
  %v10113 = vpop.permute.xlu0 %10112
  %10114 = vrot.lane.b32.xlu0 %v10093, 120
  %v10115 = vpop.permute.xlu0 %10114
  %10116 = vrot.lane.b32.xlu0 %v10094, 120
  %v10117 = vpop.permute.xlu0 %10116
  %10118 = vrot.lane.b32.xlu0 %v10095, 120
  %v10119 = vpop.permute.xlu0 %10118
  %10120 = vrot.lane.b32.xlu0 %v10096, 120
  %v10121 = vpop.permute.xlu0 %10120
  %v10122 = vsel %vm5729, %v10107, 0
  %v10124 = vsel %vm5729, %v10109, 0
  %v10126 = vsel %vm5729, %v10111, 0
  %v10128 = vsel %vm5729, %v10113, 0
  %v10130 = vsel %vm5729, %v10115, 0
  %v10132 = vsel %vm5729, %v10117, 0
  %v10134 = vsel %vm5729, %v10119, 0
  %v10136 = vsel %vm5729, %v10121, 0
  %10138 = vmatprep.subr.mxu0 0.0
  %10139 = vmatpush1.msra.mxu0 %v10097
  %10140 = vmatprep.subr.mxu0 0.0
  %10141 = vmatpush1.msra.mxu0 0.0
  %10142 = vmatprep.subr.mxu0 0.0
  %10143 = vmatpush1.msra.mxu0 0.0
  %10144 = vmatprep.subr.mxu0 0.0
  %10145 = vmatpush1.msra.mxu0 0.0
  %10146 = vmatprep.subr.mxu0 0.0
  %10147 = vmatpush1.msra.mxu0 0.0
  %10148 = vmatprep.subr.mxu0 0.0
  %10149 = vmatpush1.msra.mxu0 0.0
  %10150 = vmatprep.subr.mxu0 0.0
  %10151 = vmatpush1.msra.mxu0 0.0
  %10152 = vmatprep.subr.mxu0 0.0
  %10153 = vmatpush1.msra.mxu0 0.0
  %10154 = vmatprep.subr.mxu0 0.0
  %10155 = vmatpush1.msra.mxu0 0.0
  %10156 = vmatprep.subr.mxu0 0.0
  %10157 = vmatpush1.msra.mxu0 0.0
  %10158 = vmatprep.subr.mxu0 0.0
  %10159 = vmatpush1.msra.mxu0 0.0
  %10160 = vmatprep.subr.mxu0 0.0
  %10161 = vmatpush1.msra.mxu0 0.0
  %10162 = vmatprep.subr.mxu0 0.0
  %10163 = vmatpush1.msra.mxu0 0.0
  %10164 = vmatprep.subr.mxu0 0.0
  %10165 = vmatpush1.msra.mxu0 0.0
  %10166 = vmatprep.subr.mxu0 0.0
  %10167 = vmatpush1.msra.mxu0 0.0
  %10168 = vmatprep.subr.mxu0 0.0
  %10169 = vmatpush1.msra.mxu0 0.0
  %10170 = vmatprep.subr.mxu0 0.0
  %10171 = vmatpush1.msra.mxu0 0.0
  %10172 = vmatprep.subr.mxu0 0.0
  %10173 = vmatpush1.msra.mxu0 0.0
  %10174 = vmatprep.subr.mxu0 0.0
  %10175 = vmatpush1.msra.mxu0 0.0
  %10176 = vmatprep.subr.mxu0 0.0
  %10177 = vmatpush1.msra.mxu0 0.0
  %10178 = vmatprep.subr.mxu0 0.0
  %10179 = vmatpush1.msra.mxu0 0.0
  %10180 = vmatprep.subr.mxu0 0.0
  %10181 = vmatpush1.msra.mxu0 0.0
  %10182 = vmatprep.subr.mxu0 0.0
  %10183 = vmatpush1.msra.mxu0 0.0
  %10184 = vmatprep.subr.mxu0 0.0
  %10185 = vmatpush1.msra.mxu0 0.0
  %10186 = vmatprep.subr.mxu0 0.0
  %10187 = vmatpush1.msra.mxu0 0.0
  %10188 = vmatprep.subr.mxu0 0.0
  %10189 = vmatpush1.msra.mxu0 0.0
  %10190 = vmatprep.subr.mxu0 0.0
  %10191 = vmatpush1.msra.mxu0 0.0
  %10192 = vmatprep.subr.mxu0 0.0
  %10193 = vmatpush1.msra.mxu0 0.0
  %10194 = vmatprep.subr.mxu0 0.0
  %10195 = vmatpush1.msra.mxu0 0.0
  %10196 = vmatprep.subr.mxu0 0.0
  %10197 = vmatpush1.msra.mxu0 0.0
  %10198 = vmatprep.subr.mxu0 0.0
  %10199 = vmatpush1.msra.mxu0 0.0
  %10200 = vmatprep.subr.mxu0 0.0
  %10201 = vmatpush1.msra.mxu0 0.0
  %10202 = vmatprep.mubr.f32.mxu0 0.0
  %10203 = vmatmul.mubr.f32.gmra.mrb[0].mxu0 %v10122
  %v10204 = vpop.f32.mrb[0].mxu0
  %v10205 = vadd.f32 0.0, %v10204
  %v10206 = vpop.f32.mrb[0].mxu0
  %10207 = vmatprep.mubr.f32.mxu0 0.0
  %10208 = vmatmul.mubr.f32.gmra.mrb[0].mxu0 %v10124
  %v10209 = vpop.f32.mrb[0].mxu0
  %v10210 = vadd.f32 0.0, %v10209
  %v10211 = vpop.f32.mrb[0].mxu0
  %10212 = vmatprep.mubr.f32.mxu0 0.0
  %10213 = vmatmul.mubr.f32.gmra.mrb[0].mxu0 %v10126
  %v10214 = vpop.f32.mrb[0].mxu0
  %v10215 = vadd.f32 0.0, %v10214
  %v10216 = vpop.f32.mrb[0].mxu0
  %10217 = vmatprep.mubr.f32.mxu0 0.0
  %10218 = vmatmul.mubr.f32.gmra.mrb[0].mxu0 %v10128
  %v10219 = vpop.f32.mrb[0].mxu0
  %v10220 = vadd.f32 0.0, %v10219
  %v10221 = vpop.f32.mrb[0].mxu0
  %10222 = vmatprep.mubr.f32.mxu0 0.0
  %10223 = vmatmul.mubr.f32.gmra.mrb[0].mxu0 %v10130
  %v10224 = vpop.f32.mrb[0].mxu0
  %v10225 = vadd.f32 0.0, %v10224
  %v10226 = vpop.f32.mrb[0].mxu0
  %10227 = vmatprep.mubr.f32.mxu0 0.0
  %10228 = vmatmul.mubr.f32.gmra.mrb[0].mxu0 %v10132
  %v10229 = vpop.f32.mrb[0].mxu0
  %v10230 = vadd.f32 0.0, %v10229
  %v10231 = vpop.f32.mrb[0].mxu0
  %10232 = vmatprep.mubr.f32.mxu0 0.0
  %10233 = vmatmul.mubr.f32.gmra.mrb[0].mxu0 %v10134
  %v10234 = vpop.f32.mrb[0].mxu0
  %v10235 = vadd.f32 0.0, %v10234
  %v10236 = vpop.f32.mrb[0].mxu0
  %10237 = vmatprep.mubr.f32.mxu0 0.0
  %10238 = vmatmul.mubr.f32.gmra.mrb[0].mxu0 %v10136
  %v10239 = vpop.f32.mrb[0].mxu0
  %v10240 = vadd.f32 0.0, %v10239
  %v10241 = vpop.f32.mrb[0].mxu0
  %10242 = vdwg.mxu0
  %10243 = vrot.lane.b32.xlu0 %v9692, 96
  %v10244 = vpop.permute.xlu0 %10243
  %10245 = vrot.lane.b32.xlu0 %v9697, 96
  %v10246 = vpop.permute.xlu0 %10245
  %10247 = vrot.lane.b32.xlu0 %v9702, 96
  %v10248 = vpop.permute.xlu0 %10247
  %10249 = vrot.lane.b32.xlu0 %v9707, 96
  %v10250 = vpop.permute.xlu0 %10249
  %10251 = vrot.lane.b32.xlu0 %v9712, 96
  %v10252 = vpop.permute.xlu0 %10251
  %10253 = vrot.lane.b32.xlu0 %v9717, 96
  %v10254 = vpop.permute.xlu0 %10253
  %10255 = vrot.lane.b32.xlu0 %v9722, 96
  %v10256 = vpop.permute.xlu0 %10255
  %10257 = vrot.lane.b32.xlu0 %v9727, 96
  %v10258 = vpop.permute.xlu0 %10257
  %v10267 = vadd.f32 %v10205, %v10244
  %v10268 = vadd.f32 %v10210, %v10246
  %v10269 = vadd.f32 %v10215, %v10248
  %v10270 = vadd.f32 %v10220, %v10250
  %v10271 = vadd.f32 %v10225, %v10252
  %v10272 = vadd.f32 %v10230, %v10254
  %v10273 = vadd.f32 %v10235, %v10256
  %v10274 = vadd.f32 %v10240, %v10258
  %10283 = vrot.lane.b32.xlu0 %v10267, 120
  %v10284 = vpop.permute.xlu0 %10283
  %10285 = vrot.lane.b32.xlu0 %v10268, 120
  %v10286 = vpop.permute.xlu0 %10285
  %10287 = vrot.lane.b32.xlu0 %v10269, 120
  %v10288 = vpop.permute.xlu0 %10287
  %10289 = vrot.lane.b32.xlu0 %v10270, 120
  %v10290 = vpop.permute.xlu0 %10289
  %10291 = vrot.lane.b32.xlu0 %v10271, 120
  %v10292 = vpop.permute.xlu0 %10291
  %10293 = vrot.lane.b32.xlu0 %v10272, 120
  %v10294 = vpop.permute.xlu0 %10293
  %10295 = vrot.lane.b32.xlu0 %v10273, 120
  %v10296 = vpop.permute.xlu0 %10295
  %10297 = vrot.lane.b32.xlu0 %v10274, 120
  %v10298 = vpop.permute.xlu0 %10297
  %v10307 = vmax.f32 %v10267, %v10284
  %v10308 = vmax.f32 %v10268, %v10286
  %v10309 = vmax.f32 %v10269, %v10288
  %v10310 = vmax.f32 %v10270, %v10290
  %v10311 = vmax.f32 %v10271, %v10292
  %v10312 = vmax.f32 %v10272, %v10294
  %v10313 = vmax.f32 %v10273, %v10296
  %v10314 = vmax.f32 %v10274, %v10298
  %v10315 = vld [vmem:[%s9 + $0x2] sm:$0x1]
  %v10316 = vlaneseq
  %v10317 = vshrl.u32 %v10316, 7
  %v10318 = vsub.s32 0, %v10317
  %v10319 = vrot.slane %v10315, %v10318
  %v10320 = vadd.f32 %v10307, %v10319
  %v10321 = vadd.f32 %v10308, %v10319
  %v10322 = vadd.f32 %v10309, %v10319
  %v10323 = vadd.f32 %v10310, %v10319
  %v10324 = vadd.f32 %v10311, %v10319
  %v10325 = vadd.f32 %v10312, %v10319
  %v10326 = vadd.f32 %v10313, %v10319
  %v10327 = vadd.f32 %v10314, %v10319
  %vm10328 = vcmp.ge.f32.partialorder %v10320, 0.0
  %vm10329 = vcmp.ge.f32.partialorder %v10321, 0.0
  %vm10330 = vcmp.ge.f32.partialorder %v10322, 0.0
  %vm10331 = vcmp.ge.f32.partialorder %v10323, 0.0
  %vm10332 = vcmp.ge.f32.partialorder %v10324, 0.0
  %vm10333 = vcmp.ge.f32.partialorder %v10325, 0.0
  %vm10334 = vcmp.ge.f32.partialorder %v10326, 0.0
  %vm10335 = vcmp.ge.f32.partialorder %v10327, 0.0
  %v10336 = vmul.f32 %v10320, 0.1
  %v10337 = vmul.f32 %v10321, 0.1
  %v10338 = vmul.f32 %v10322, 0.1
  %v10339 = vmul.f32 %v10323, 0.1
  %v10340 = vmul.f32 %v10324, 0.1
  %v10341 = vmul.f32 %v10325, 0.1
  %v10342 = vmul.f32 %v10326, 0.1
  %v10343 = vmul.f32 %v10327, 0.1
  %v10344 = vsel %vm10328, %v10320, %v10336
  %v10345 = vsel %vm10329, %v10321, %v10337
  %v10346 = vsel %vm10330, %v10322, %v10338
  %v10347 = vsel %vm10331, %v10323, %v10339
  %v10348 = vsel %vm10332, %v10324, %v10340
  %v10349 = vsel %vm10333, %v10325, %v10341
  %v10350 = vsel %vm10334, %v10326, %v10342
  %v10351 = vsel %vm10335, %v10327, %v10343
  %v10352 = vld [vmem:[%s10] sm:$0xff]
  %v10353 = vld [vmem:[%s9 + $0x3] sm:$0x1]
  %v10354 = vlaneseq
  %v10355 = vshrl.u32 %v10354, 7
  %v10356 = vsub.s32 0, %v10355
  %v10357 = vrot.slane %v10353, %v10356
  %v10359 = vsel %vm5729, %v10344, 0
  %v10362 = vsel %vm5729, %v10345, 0
  %v10365 = vsel %vm5729, %v10346, 0
  %v10368 = vsel %vm5729, %v10347, 0
  %v10371 = vsel %vm5729, %v10348, 0
  %v10374 = vsel %vm5729, %v10349, 0
  %v10377 = vsel %vm5729, %v10350, 0
  %v10380 = vsel %vm5729, %v10351, 0
  %10382 = vmatprep.subr.mxu0 0.0
  %10383 = vmatpush1.msra.mxu0 %v10352
  %10384 = vmatprep.subr.mxu0 0.0
  %10385 = vmatpush1.msra.mxu0 0.0
  %10386 = vmatprep.subr.mxu0 0.0
  %10387 = vmatpush1.msra.mxu0 0.0
  %10388 = vmatprep.subr.mxu0 0.0
  %10389 = vmatpush1.msra.mxu0 0.0
  %10390 = vmatprep.subr.mxu0 0.0
  %10391 = vmatpush1.msra.mxu0 0.0
  %10392 = vmatprep.subr.mxu0 0.0
  %10393 = vmatpush1.msra.mxu0 0.0
  %10394 = vmatprep.subr.mxu0 0.0
  %10395 = vmatpush1.msra.mxu0 0.0
  %10396 = vmatprep.subr.mxu0 0.0
  %10397 = vmatpush1.msra.mxu0 0.0
  %10398 = vmatprep.subr.mxu0 0.0
  %10399 = vmatpush1.msra.mxu0 0.0
  %10400 = vmatprep.subr.mxu0 0.0
  %10401 = vmatpush1.msra.mxu0 0.0
  %10402 = vmatprep.subr.mxu0 0.0
  %10403 = vmatpush1.msra.mxu0 0.0
  %10404 = vmatprep.subr.mxu0 0.0
  %10405 = vmatpush1.msra.mxu0 0.0
  %10406 = vmatprep.subr.mxu0 0.0
  %10407 = vmatpush1.msra.mxu0 0.0
  %10408 = vmatprep.subr.mxu0 0.0
  %10409 = vmatpush1.msra.mxu0 0.0
  %10410 = vmatprep.subr.mxu0 0.0
  %10411 = vmatpush1.msra.mxu0 0.0
  %10412 = vmatprep.subr.mxu0 0.0
  %10413 = vmatpush1.msra.mxu0 0.0
  %10414 = vmatprep.subr.mxu0 0.0
  %10415 = vmatpush1.msra.mxu0 0.0
  %10416 = vmatprep.subr.mxu0 0.0
  %10417 = vmatpush1.msra.mxu0 0.0
  %10418 = vmatprep.subr.mxu0 0.0
  %10419 = vmatpush1.msra.mxu0 0.0
  %10420 = vmatprep.subr.mxu0 0.0
  %10421 = vmatpush1.msra.mxu0 0.0
  %10422 = vmatprep.subr.mxu0 0.0
  %10423 = vmatpush1.msra.mxu0 0.0
  %10424 = vmatprep.subr.mxu0 0.0
  %10425 = vmatpush1.msra.mxu0 0.0
  %10426 = vmatprep.subr.mxu0 0.0
  %10427 = vmatpush1.msra.mxu0 0.0
  %10428 = vmatprep.subr.mxu0 0.0
  %10429 = vmatpush1.msra.mxu0 0.0
  %10430 = vmatprep.subr.mxu0 0.0
  %10431 = vmatpush1.msra.mxu0 0.0
  %10432 = vmatprep.subr.mxu0 0.0
  %10433 = vmatpush1.msra.mxu0 0.0
  %10434 = vmatprep.subr.mxu0 0.0
  %10435 = vmatpush1.msra.mxu0 0.0
  %10436 = vmatprep.subr.mxu0 0.0
  %10437 = vmatpush1.msra.mxu0 0.0
  %10438 = vmatprep.subr.mxu0 0.0
  %10439 = vmatpush1.msra.mxu0 0.0
  %10440 = vmatprep.subr.mxu0 0.0
  %10441 = vmatpush1.msra.mxu0 0.0
  %10442 = vmatprep.subr.mxu0 0.0
  %10443 = vmatpush1.msra.mxu0 0.0
  %10444 = vmatprep.subr.mxu0 0.0
  %10445 = vmatpush1.msra.mxu0 0.0
  %10446 = vmatprep.mubr.f32.mxu0 0.0
  %10447 = vmatmul.mubr.f32.gmra.mrb[0].mxu0 %v10359
  %v10448 = vpop.f32.mrb[0].mxu0
  %v10449 = vadd.f32 %v10357, %v10448
  %v10450 = vpop.f32.mrb[0].mxu0
  %10451 = vmatprep.mubr.f32.mxu0 0.0
  %10452 = vmatmul.mubr.f32.gmra.mrb[0].mxu0 %v10362
  %v10453 = vpop.f32.mrb[0].mxu0
  %v10454 = vadd.f32 %v10357, %v10453
  %v10455 = vpop.f32.mrb[0].mxu0
  %10456 = vmatprep.mubr.f32.mxu0 0.0
  %10457 = vmatmul.mubr.f32.gmra.mrb[0].mxu0 %v10365
  %v10458 = vpop.f32.mrb[0].mxu0
  %v10459 = vadd.f32 %v10357, %v10458
  %v10460 = vpop.f32.mrb[0].mxu0
  %10461 = vmatprep.mubr.f32.mxu0 0.0
  %10462 = vmatmul.mubr.f32.gmra.mrb[0].mxu0 %v10368
  %v10463 = vpop.f32.mrb[0].mxu0
  %v10464 = vadd.f32 %v10357, %v10463
  %v10465 = vpop.f32.mrb[0].mxu0
  %10466 = vmatprep.mubr.f32.mxu0 0.0
  %10467 = vmatmul.mubr.f32.gmra.mrb[0].mxu0 %v10371
  %v10468 = vpop.f32.mrb[0].mxu0
  %v10469 = vadd.f32 %v10357, %v10468
  %v10470 = vpop.f32.mrb[0].mxu0
  %10471 = vmatprep.mubr.f32.mxu0 0.0
  %10472 = vmatmul.mubr.f32.gmra.mrb[0].mxu0 %v10374
  %v10473 = vpop.f32.mrb[0].mxu0
  %v10474 = vadd.f32 %v10357, %v10473
  %v10475 = vpop.f32.mrb[0].mxu0
  %10476 = vmatprep.mubr.f32.mxu0 0.0
  %10477 = vmatmul.mubr.f32.gmra.mrb[0].mxu0 %v10377
  %v10478 = vpop.f32.mrb[0].mxu0
  %v10479 = vadd.f32 %v10357, %v10478
  %v10480 = vpop.f32.mrb[0].mxu0
  %10481 = vmatprep.mubr.f32.mxu0 0.0
  %10482 = vmatmul.mubr.f32.gmra.mrb[0].mxu0 %v10380
  %v10483 = vpop.f32.mrb[0].mxu0
  %v10484 = vadd.f32 %v10357, %v10483
  %v10485 = vpop.f32.mrb[0].mxu0
  %10486 = vdwg.mxu0
  %10495 = vrot.lane.b32.xlu0 %v199, 120
  %v10496 = vpop.permute.xlu0 %10495
  %10497 = vrot.lane.b32.xlu0 %v200, 120
  %v10498 = vpop.permute.xlu0 %10497
  %10499 = vrot.lane.b32.xlu0 %v201, 120
  %v10500 = vpop.permute.xlu0 %10499
  %10501 = vrot.lane.b32.xlu0 %v202, 120
  %v10502 = vpop.permute.xlu0 %10501
  %10503 = vrot.lane.b32.xlu0 %v203, 120
  %v10504 = vpop.permute.xlu0 %10503
  %10505 = vrot.lane.b32.xlu0 %v204, 120
  %v10506 = vpop.permute.xlu0 %10505
  %10507 = vrot.lane.b32.xlu0 %v205, 120
  %v10508 = vpop.permute.xlu0 %10507
  %10509 = vrot.lane.b32.xlu0 %v206, 120
  %v10510 = vpop.permute.xlu0 %10509
  %v10519 = vadd.f32 %v10449, %v10496
  %v10520 = vadd.f32 %v10454, %v10498
  %v10521 = vadd.f32 %v10459, %v10500
  %v10522 = vadd.f32 %v10464, %v10502
  %v10523 = vadd.f32 %v10469, %v10504
  %v10524 = vadd.f32 %v10474, %v10506
  %v10525 = vadd.f32 %v10479, %v10508
  %v10526 = vadd.f32 %v10484, %v10510
  %vm10527 = vcmp.ge.f32.partialorder %v10519, 0.0
  %vm10528 = vcmp.ge.f32.partialorder %v10520, 0.0
  %vm10529 = vcmp.ge.f32.partialorder %v10521, 0.0
  %vm10530 = vcmp.ge.f32.partialorder %v10522, 0.0
  %vm10531 = vcmp.ge.f32.partialorder %v10523, 0.0
  %vm10532 = vcmp.ge.f32.partialorder %v10524, 0.0
  %vm10533 = vcmp.ge.f32.partialorder %v10525, 0.0
  %vm10534 = vcmp.ge.f32.partialorder %v10526, 0.0
  %v10535 = vmul.f32 %v10519, 0.1
  %v10536 = vmul.f32 %v10520, 0.1
  %v10537 = vmul.f32 %v10521, 0.1
  %v10538 = vmul.f32 %v10522, 0.1
  %v10539 = vmul.f32 %v10523, 0.1
  %v10540 = vmul.f32 %v10524, 0.1
  %v10541 = vmul.f32 %v10525, 0.1
  %v10542 = vmul.f32 %v10526, 0.1
  %v10543 = vsel %vm10527, %v10519, %v10535
  %v10544 = vsel %vm10528, %v10520, %v10536
  %v10545 = vsel %vm10529, %v10521, %v10537
  %v10546 = vsel %vm10530, %v10522, %v10538
  %v10547 = vsel %vm10531, %v10523, %v10539
  %v10548 = vsel %vm10532, %v10524, %v10540
  %v10549 = vsel %vm10533, %v10525, %v10541
  %v10550 = vsel %vm10534, %v10526, %v10542
  %10551 = vst.msk [vmem:[%s11] sm:$0xff] %vm6955, %v10543
  %10552 = vst.msk [vmem:[%s11 + $0x8] sm:$0xff] %vm6955, %v10544
  %10553 = vst.msk [vmem:[%s11 + $0x10] sm:$0xff] %vm6955, %v10545
  %10554 = vst.msk [vmem:[%s11 + $0x18] sm:$0xff] %vm6955, %v10546
  %10555 = vst.msk [vmem:[%s11 + $0x20] sm:$0xff] %vm6955, %v10547
  %10556 = vst.msk [vmem:[%s11 + $0x28] sm:$0xff] %vm6955, %v10548
  %10557 = vst.msk [vmem:[%s11 + $0x30] sm:$0xff] %vm6955, %v10549
  %10558 = vst.msk [vmem:[%s11 + $0x38] sm:$0xff] %vm6955, %v10550
  // Predicated region
  $region46: #{_lambda_.1} parent=0 // pred_check
    _
  $region47: #{_lambda_.1} parent=0 // pred_check_branch
    %10560 = sbr.rel (0) target = $region49
  $region48: #{_lambda_.1} parent=0 // pred_region
    _
  $region49: #{_lambda_.1} parent=0 // pred_fallthru
    _
  // Predicated region
  $region50: #{_lambda_.1} parent=0 // pred_check
    _
  $region51: #{_lambda_.1} parent=0 // pred_check_branch
    %10562 = sbr.rel (0) target = $region53
  $region52: #{_lambda_.1} parent=0 // pred_region
    _
  $region53: #{_lambda_.1} parent=0 // pred_fallthru
    _

</llo_original>
